<compile_context>
chip_gen: v7x
topology: tpu7x:2x2x1
jax: 0.10.0
libtpu: 0.0.40
codegen_flags: <defaults>
</compile_context>

<pallas_src>
import jax
import jax.numpy as jnp
from jax.experimental import pallas as pl
from jax.experimental.pallas import tpu as pltpu

LANE = 128        # conv channels are zero-padded up to a multiple of this
_ZPAD = 8         # sublane-tile-aligned zero halo for 'same' conv (>= max P=3)
POOL_BINS = 16
REFS_PER_BLOCK = 8   # wc, w1t, w2, s1, sh1, s2, sh2, shs


def _round_up(c, m=LANE):
    return ((c + m - 1) // m) * m


# ---------------------------------------------------------------------------
# Fused kernel: 3 residual blocks + adaptive max-pool(16) + MLP head
# ---------------------------------------------------------------------------
def _make_fused_kernel(B, L, block_cfgs):
    """block_cfgs: tuple of (K, cin_padded, cout_padded) per residual block."""
    NB = len(block_cfgs)
    n_in = 1 + REFS_PER_BLOCK * NB + 4   # x + blocks + (fc1_w, fc1_b, fc2_w, fc2_b)
    n_pref_w = 3 * (NB - 1)              # prefetched conv-weight buffers (blocks 2..)
    M = B * L

    def kernel(*refs):
        x_ref = refs[0]
        blk_refs = [refs[1 + REFS_PER_BLOCK * i: 1 + REFS_PER_BLOCK * (i + 1)]
                    for i in range(NB)]
        fc1w_hbm, fc1b_ref, fc2w_ref, fc2b_ref = refs[1 + REFS_PER_BLOCK * NB: n_in]
        o_ref = refs[n_in]
        scratch = refs[n_in + 1:]
        w_bufs = scratch[:n_pref_w]          # VMEM dst for block 2/3 conv weights
        fc1_buf = scratch[n_pref_w]
        sem = scratch[n_pref_w + 1]

        # --- start all weight prefetch DMAs (hidden behind earlier compute) ---
        copies = []
        for bi in range(1, NB):
            for wi in range(3):              # wc, w1t, w2 of block bi
                idx = 3 * (bi - 1) + wi
                cp = pltpu.make_async_copy(blk_refs[bi][wi], w_bufs[idx],
                                           sem.at[idx])
                cp.start()
                copies.append(cp)
        fc1_cp = pltpu.make_async_copy(fc1w_hbm, fc1_buf, sem.at[n_pref_w])
        fc1_cp.start()

        # --- one residual block: K accumulated per-tap dots, f32 epilogue ----
        def residual_block(h, cfg, wc_ref, w1t_ref, w2_ref,
                           s1_ref, sh1_ref, s2_ref, sh2_ref, shs_ref):
            K, cin_p, cout_p = cfg
            P = (K - 1) // 2
            hb = h.astype(jnp.bfloat16)                         # MXU operand dtype
            xflat = hb.reshape(M, cin_p)

            # center tap of conv1 fused with the 1x1 shortcut: N = 2*Cout
            ctr = jnp.dot(xflat, wc_ref[...],
                          preferred_element_type=jnp.float32)   # (M, 2*cout_p)
            acc = ctr[:, :cout_p]
            identity = ctr[:, cout_p:] + shs_ref[...]           # shortcut + bias

            # shifted taps of conv1 (zero halo, bf16)
            zpad = jnp.zeros((B, _ZPAD, cin_p), jnp.bfloat16)
            xp = jnp.concatenate([zpad, hb, zpad], axis=1)      # (B, L+16, cin_p)
            ti = 0
            for k in range(K):
                if k == P:
                    continue
                tap = xp[:, _ZPAD - P + k: _ZPAD - P + k + L, :].reshape(M, cin_p)
                acc = acc + jnp.dot(tap, w1t_ref[ti],
                                    preferred_element_type=jnp.float32)
                ti += 1
            # relu(bn1(conv1(x)))  -- f32 epilogue
            y1 = jnp.maximum(acc.reshape(B, L, cout_p) * s1_ref[...]
                             + sh1_ref[...], 0.0)

            # conv2 (all K taps), then bn2 + residual + relu
            yb = y1.astype(jnp.bfloat16)
            acc2 = jnp.dot(yb.reshape(M, cout_p), w2_ref[P],
                           preferred_element_type=jnp.float32)
            zpad2 = jnp.zeros((B, _ZPAD, cout_p), jnp.bfloat16)
            yp = jnp.concatenate([zpad2, yb, zpad2], axis=1)
            for k in range(K):
                if k == P:
                    continue
                tap = yp[:, _ZPAD - P + k: _ZPAD - P + k + L, :].reshape(M, cout_p)
                acc2 = acc2 + jnp.dot(tap, w2_ref[k],
                                      preferred_element_type=jnp.float32)
            out = acc2.reshape(B, L, cout_p) * s2_ref[...] + sh2_ref[...]
            out = out + identity.reshape(B, L, cout_p)
            return jnp.maximum(out, 0.0)                        # (B, L, cout_p) f32

        # --- block 1 (weights already in VMEM via BlockSpec) ------------------
        h = x_ref[...]                                          # (B, L, C0_pad) f32
        h = residual_block(h, block_cfgs[0],
                           blk_refs[0][0], blk_refs[0][1], blk_refs[0][2],
                           *blk_refs[0][3:])
        # --- blocks 2..NB: wait for their prefetched weights, then compute ----
        for bi in range(1, NB):
            base = 3 * (bi - 1)
            for wi in range(3):
                copies[base + wi].wait()
            h = residual_block(h, block_cfgs[bi],
                               w_bufs[base], w_bufs[base + 1], w_bufs[base + 2],
                               *blk_refs[bi][3:])

        # --- AdaptiveMaxPool1d(16): single reshape + reduce --------------------
        # TODO(synk): uneven-bin AdaptiveMaxPool1d (L % 16 != 0) not implemented.
        C3 = block_cfgs[-1][2]
        W = L // POOL_BINS
        pooled = jnp.max(h.reshape(B, POOL_BINS, W, C3), axis=2)   # (B, 16, C3)
        # flatten order t*C3 + c; fc1_w rows were permuted once at prep time
        # (PyTorch flattens as c*16 + t), so no runtime transpose is needed.
        flat = pooled.reshape(B, POOL_BINS * C3)

        # --- MLP head ----------------------------------------------------------
        fc1_cp.wait()   # fc1_w load has been hidden behind the three blocks
        hid = jnp.dot(flat.astype(jnp.bfloat16), fc1_buf[...],
                      preferred_element_type=jnp.float32)
        hid = jnp.maximum(hid + fc1b_ref[...], 0.0)
        # TODO(synk): nn.Dropout(0.5) is identity at inference; training-mode
        # dropout is not modeled.
        out = jnp.dot(hid.astype(jnp.bfloat16), fc2w_ref[...],
                      preferred_element_type=jnp.float32) + fc2b_ref[...]
        o_ref[...] = out.astype(o_ref.dtype)

    return kernel


def _full_spec(shape):
    return pl.BlockSpec(shape, lambda i, _n=len(shape): (0,) * _n)


def week1dcnn_forward(x, params):
    """x: (B, L, in_channels) — same layout the PyTorch module receives."""
    B, L, cin0 = x.shape
    assert L % POOL_BINS == 0, "fused AdaptiveMaxPool1d(16) needs L % 16 == 0"
    assert cin0 == params["in_channels"]
    cfgs = params["block_cfgs"]
    NB = len(cfgs)

    # Zero-pad input channels to the lane width once (lane-dense MXU feeds).
    cin_pad = cfgs[0][1]
    if cin_pad != cin0:
        x = jnp.pad(x, ((0, 0), (0, 0), (0, cin_pad - cin0)))

    inputs, in_specs = [x], [_full_spec(x.shape)]
    for bi, bp in enumerate(params["blocks"]):
        for name in ("wc", "w1t", "w2"):
            a = bp[name]
            inputs.append(a)
            # block 1's small weights ride the normal VMEM pipeline; blocks 2/3
            # stay in HBM and are prefetched with manual async DMAs in-kernel.
            in_specs.append(_full_spec(a.shape) if bi == 0
                            else pl.BlockSpec(memory_space=pl.ANY))
        for name in ("s1", "sh1", "s2", "sh2", "shs"):
            a = bp[name]
            inputs.append(a)
            in_specs.append(_full_spec(a.shape))
    inputs.append(params["fc1_w"])
    in_specs.append(pl.BlockSpec(memory_space=pl.ANY))
    for name in ("fc1_b", "fc2_w", "fc2_b"):
        a = params[name]
        inputs.append(a)
        in_specs.append(_full_spec(a.shape))

    scratch_shapes = []
    for bp in params["blocks"][1:]:
        for name in ("wc", "w1t", "w2"):
            a = bp[name]
            scratch_shapes.append(pltpu.VMEM(a.shape, a.dtype))
    scratch_shapes.append(pltpu.VMEM(params["fc1_w"].shape, params["fc1_w"].dtype))
    scratch_shapes.append(pltpu.SemaphoreType.DMA((3 * (NB - 1) + 1,)))

    n_classes = params["fc2_w"].shape[1]
    kernel = _make_fused_kernel(B, L, cfgs)

    return pl.pallas_call(
        kernel,
        out_shape=jax.ShapeDtypeStruct((B, n_classes), jnp.float32),
        grid=(1,),
        in_specs=in_specs,
        out_specs=pl.BlockSpec((B, n_classes), lambda i: (0, 0)),
        scratch_shapes=scratch_shapes,
        compiler_params=pltpu.CompilerParams(
            # Whole forward is one fused step: batch is folded into the matmul
            # M dimension (M = B*L), so there is nothing left to shard at this
            # tiny demo size.
            dimension_semantics=("arbitrary",),
            vmem_limit_bytes=32 * 1024 * 1024,
        ),
    )(*inputs)


# ---------------------------------------------------------------------------
# Parameters: random init (PyTorch-equivalent layout) + prep for the kernel
# ---------------------------------------------------------------------------
def init_params(key):
    """Random parameters in a transposed view of PyTorch's layout:
    conv weights (K, Cin, Cout) [= conv.weight.transpose(2,1,0)], fc weights
    (in_features, out_features) [= fc.weight.T], plus eval-mode BN stats."""
    keys = iter(jax.random.split(key, 64))

    def nrm(shape, s=0.1):
        return s * jax.random.normal(next(keys), shape, jnp.float32)

    def bn(c):
        return dict(gamma=1.0 + nrm((c,)), beta=nrm((c,)), mean=nrm((c,)),
                    var=0.9 + 0.2 * jax.random.uniform(next(keys), (c,), jnp.float32))

    def block(cin, cout, K):
        return dict(K=K, cin=cin, cout=cout,
                    w1=nrm((K, cin, cout)), b1=nrm((cout,)), bn1=bn(cout),
                    w2=nrm((K, cout, cout)), b2=nrm((cout,)), bn2=bn(cout),
                    ws=nrm((1, cin, cout)), bs=nrm((cout,)))

    return dict(
        blocks=[block(2, 64, 7), block(64, 128, 5), block(128, 256, 3)],
        fc1_w=nrm((256 * POOL_BINS, 256), 0.02),   # rows in PyTorch order c*16+t
        fc1_b=nrm((256,)),
        fc2_w=nrm((256, 3), 0.05),
        fc2_b=nrm((3,)),
    )


def prepare_params(raw):
    """Fold eval-mode BatchNorm + conv bias into per-channel (scale, shift),
    split conv weights into per-tap matrices, fuse the 1x1 shortcut into the
    conv1 center-tap weight (N = 2*Cout), zero-pad channels to the lane width,
    permute fc1_w rows to the kernel's pooled flatten order, cast weights bf16."""
    eps = 1e-5

    def pad_w(w, ci_p, co_p):
        K, ci, co = w.shape
        return jnp.zeros((K, ci_p, co_p), jnp.float32).at[:, :ci, :co].set(w)

    def row_pad(v, co_p, fill):
        out = jnp.full((1, co_p), fill, jnp.float32)
        return out.at[0, :v.shape[0]].set(v)

    blocks, cfgs = [], []
    for b in raw["blocks"]:
        K, cin, cout = b["K"], b["cin"], b["cout"]
        P = (K - 1) // 2
        cin_p, cout_p = _round_up(cin), _round_up(cout)
        cfgs.append((K, cin_p, cout_p))

        w1 = pad_w(b["w1"], cin_p, cout_p)          # (K, cin_p, cout_p)
        w2 = pad_w(b["w2"], cout_p, cout_p)         # (K, cout_p, cout_p)
        ws = pad_w(b["ws"], cin_p, cout_p)[0]       # (cin_p, cout_p)
        # fused center tap of conv1 + 1x1 shortcut -> (cin_p, 2*cout_p)
        wc = jnp.concatenate([w1[P], ws], axis=1).astype(jnp.bfloat16)
        # non-center conv1 taps, in k order
        w1t = jnp.stack([w1[k] for k in range(K) if k != P]).astype(jnp.bfloat16)

        s1 = b["bn1"]["gamma"] / jnp.sqrt(b["bn1"]["var"] + eps)
        sh1 = s1 * (b["b1"] - b["bn1"]["mean"]) + b["bn1"]["beta"]
        s2 = b["bn2"]["gamma"] / jnp.sqrt(b["bn2"]["var"] + eps)
        sh2 = s2 * (b["b2"] - b["bn2"]["mean"]) + b["bn2"]["beta"]

        blocks.append(dict(
            wc=wc, w1t=w1t, w2=w2.astype(jnp.bfloat16),
            s1=row_pad(s1, cout_p, 1.0), sh1=row_pad(sh1, cout_p, 0.0),
            s2=row_pad(s2, cout_p, 1.0), sh2=row_pad(sh2, cout_p, 0.0),
            shs=row_pad(b["bs"], cout_p, 0.0),
        ))

    c3 = raw["blocks"][-1]["cout"]
    assert _round_up(c3) == c3, "last block channels must be lane-aligned"
    # fc1_w rows are in PyTorch flatten order (c*16 + t); permute once to
    # (t*C3 + c) so the kernel flattens the pooled tensor with no transpose.
    fc1 = raw["fc1_w"].reshape(c3, POOL_BINS, -1).transpose(1, 0, 2)
    fc1 = fc1.reshape(POOL_BINS * c3, -1)

    return dict(
        in_channels=raw["blocks"][0]["cin"],
        block_cfgs=tuple(cfgs),
        blocks=blocks,
        fc1_w=fc1.astype(jnp.bfloat16),
        fc1_b=raw["fc1_b"].reshape(1, -1),
        fc2_w=raw["fc2_w"].astype(jnp.bfloat16),
        fc2_b=raw["fc2_b"].reshape(1, -1),
    )


if __name__ == "__main__":
    key = jax.random.PRNGKey(0)
    pkey, xkey = jax.random.split(key)
    params = prepare_params(init_params(pkey))

    B, L, C_IN = 2, 64, 2          # (batch, seq_len, in_channels)
    x = jax.random.normal(xkey, (B, L, C_IN), jnp.float32)

    out = week1dcnn_forward(x, params)
    out = jax.block_until_ready(out)
    assert out.shape == (B, 3) and out.dtype == jnp.float32
    assert bool(jnp.all(jnp.isfinite(out)))
    print("KERNEL_OK")
</pallas_src>

<mosaic_0001>
module attributes {stable_mosaic.version = 11 : i64} {
  func.func @kernel(%arg0: i32, %arg1: memref<2x64x128xf32, #tpu.memory_space<vmem>>, %arg2: memref<128x256xbf16, #tpu.memory_space<vmem>>, %arg3: memref<6x128x128xbf16, #tpu.memory_space<vmem>>, %arg4: memref<7x128x128xbf16, #tpu.memory_space<vmem>>, %arg5: memref<1x128xf32, #tpu.memory_space<vmem>>, %arg6: memref<1x128xf32, #tpu.memory_space<vmem>>, %arg7: memref<1x128xf32, #tpu.memory_space<vmem>>, %arg8: memref<1x128xf32, #tpu.memory_space<vmem>>, %arg9: memref<1x128xf32, #tpu.memory_space<vmem>>, %arg10: memref<128x256xbf16, #tpu.memory_space<any>>, %arg11: memref<4x128x128xbf16, #tpu.memory_space<any>>, %arg12: memref<5x128x128xbf16, #tpu.memory_space<any>>, %arg13: memref<1x128xf32, #tpu.memory_space<vmem>>, %arg14: memref<1x128xf32, #tpu.memory_space<vmem>>, %arg15: memref<1x128xf32, #tpu.memory_space<vmem>>, %arg16: memref<1x128xf32, #tpu.memory_space<vmem>>, %arg17: memref<1x128xf32, #tpu.memory_space<vmem>>, %arg18: memref<128x512xbf16, #tpu.memory_space<any>>, %arg19: memref<2x128x256xbf16, #tpu.memory_space<any>>, %arg20: memref<3x256x256xbf16, #tpu.memory_space<any>>, %arg21: memref<1x256xf32, #tpu.memory_space<vmem>>, %arg22: memref<1x256xf32, #tpu.memory_space<vmem>>, %arg23: memref<1x256xf32, #tpu.memory_space<vmem>>, %arg24: memref<1x256xf32, #tpu.memory_space<vmem>>, %arg25: memref<1x256xf32, #tpu.memory_space<vmem>>, %arg26: memref<4096x256xbf16, #tpu.memory_space<any>>, %arg27: memref<1x256xf32, #tpu.memory_space<vmem>>, %arg28: memref<256x3xbf16, #tpu.memory_space<vmem>>, %arg29: memref<1x3xf32, #tpu.memory_space<vmem>>, %arg30: memref<2x3xf32, #tpu.memory_space<vmem>>, %arg31: memref<128x256xbf16, #tpu.memory_space<vmem>>, %arg32: memref<4x128x128xbf16, #tpu.memory_space<vmem>>, %arg33: memref<5x128x128xbf16, #tpu.memory_space<vmem>>, %arg34: memref<128x512xbf16, #tpu.memory_space<vmem>>, %arg35: memref<2x128x256xbf16, #tpu.memory_space<vmem>>, %arg36: memref<3x256x256xbf16, #tpu.memory_space<vmem>>, %arg37: memref<4096x256xbf16, #tpu.memory_space<vmem>>, %arg38: memref<7x!tpu.dma_semaphore, #tpu.memory_space<semaphore_mem>>) attributes {dimension_semantics = [#tpu.dimension_semantics<arbitrary>], iteration_bounds = array<i64: 1>, scalar_prefetch = 0 : i64, scratch_operands = 8 : i64, tpu.core_type = #tpu.core_type<tc>, window_params = [{pipeline_mode = #tpu.pipeline_mode<synchronous>, transform_indices = @transform_0, window_bounds = array<i64: 2, 64, 128>}, {pipeline_mode = #tpu.pipeline_mode<synchronous>, transform_indices = @transform_1, window_bounds = array<i64: 128, 256>}, {pipeline_mode = #tpu.pipeline_mode<synchronous>, transform_indices = @transform_2, window_bounds = array<i64: 6, 128, 128>}, {pipeline_mode = #tpu.pipeline_mode<synchronous>, transform_indices = @transform_3, window_bounds = array<i64: 7, 128, 128>}, {pipeline_mode = #tpu.pipeline_mode<synchronous>, transform_indices = @transform_4, window_bounds = array<i64: 1, 128>}, {pipeline_mode = #tpu.pipeline_mode<synchronous>, transform_indices = @transform_5, window_bounds = array<i64: 1, 128>}, {pipeline_mode = #tpu.pipeline_mode<synchronous>, transform_indices = @transform_6, window_bounds = array<i64: 1, 128>}, {pipeline_mode = #tpu.pipeline_mode<synchronous>, transform_indices = @transform_7, window_bounds = array<i64: 1, 128>}, {pipeline_mode = #tpu.pipeline_mode<synchronous>, transform_indices = @transform_8, window_bounds = array<i64: 1, 128>}, {}, {}, {}, {pipeline_mode = #tpu.pipeline_mode<synchronous>, transform_indices = @transform_12, window_bounds = array<i64: 1, 128>}, {pipeline_mode = #tpu.pipeline_mode<synchronous>, transform_indices = @transform_13, window_bounds = array<i64: 1, 128>}, {pipeline_mode = #tpu.pipeline_mode<synchronous>, transform_indices = @transform_14, window_bounds = array<i64: 1, 128>}, {pipeline_mode = #tpu.pipeline_mode<synchronous>, transform_indices = @transform_15, window_bounds = array<i64: 1, 128>}, {pipeline_mode = #tpu.pipeline_mode<synchronous>, transform_indices = @transform_16, window_bounds = array<i64: 1, 128>}, {}, {}, {}, {pipeline_mode = #tpu.pipeline_mode<synchronous>, transform_indices = @transform_20, window_bounds = array<i64: 1, 256>}, {pipeline_mode = #tpu.pipeline_mode<synchronous>, transform_indices = @transform_21, window_bounds = array<i64: 1, 256>}, {pipeline_mode = #tpu.pipeline_mode<synchronous>, transform_indices = @transform_22, window_bounds = array<i64: 1, 256>}, {pipeline_mode = #tpu.pipeline_mode<synchronous>, transform_indices = @transform_23, window_bounds = array<i64: 1, 256>}, {pipeline_mode = #tpu.pipeline_mode<synchronous>, transform_indices = @transform_24, window_bounds = array<i64: 1, 256>}, {}, {pipeline_mode = #tpu.pipeline_mode<synchronous>, transform_indices = @transform_26, window_bounds = array<i64: 1, 256>}, {pipeline_mode = #tpu.pipeline_mode<synchronous>, transform_indices = @transform_27, window_bounds = array<i64: 256, 3>}, {pipeline_mode = #tpu.pipeline_mode<synchronous>, transform_indices = @transform_28, window_bounds = array<i64: 1, 3>}, {pipeline_mode = #tpu.pipeline_mode<synchronous>, transform_indices = @transform_29, window_bounds = array<i64: 2, 3>}]} {
    %c0_i32 = arith.constant 0 : i32
    %0 = tpu.memref_slice %arg38[%c0_i32] : memref<7x!tpu.dma_semaphore, #tpu.memory_space<semaphore_mem>> -> memref<1x!tpu.dma_semaphore, #tpu.memory_space<semaphore_mem>>
    %1 = tpu.memref_squeeze %0 : memref<1x!tpu.dma_semaphore, #tpu.memory_space<semaphore_mem>> -> memref<!tpu.dma_semaphore, #tpu.memory_space<semaphore_mem>>
    tpu.enqueue_dma source(%arg10 : memref<128x256xbf16, #tpu.memory_space<any>>) target(%arg31 : memref<128x256xbf16, #tpu.memory_space<vmem>>) target_semaphore(%1 : memref<!tpu.dma_semaphore, #tpu.memory_space<semaphore_mem>>)
    %c1_i32 = arith.constant 1 : i32
    %2 = tpu.memref_slice %arg38[%c1_i32] : memref<7x!tpu.dma_semaphore, #tpu.memory_space<semaphore_mem>> -> memref<1x!tpu.dma_semaphore, #tpu.memory_space<semaphore_mem>>
    %3 = tpu.memref_squeeze %2 : memref<1x!tpu.dma_semaphore, #tpu.memory_space<semaphore_mem>> -> memref<!tpu.dma_semaphore, #tpu.memory_space<semaphore_mem>>
    tpu.enqueue_dma source(%arg11 : memref<4x128x128xbf16, #tpu.memory_space<any>>) target(%arg32 : memref<4x128x128xbf16, #tpu.memory_space<vmem>>) target_semaphore(%3 : memref<!tpu.dma_semaphore, #tpu.memory_space<semaphore_mem>>)
    %c2_i32 = arith.constant 2 : i32
    %4 = tpu.memref_slice %arg38[%c2_i32] : memref<7x!tpu.dma_semaphore, #tpu.memory_space<semaphore_mem>> -> memref<1x!tpu.dma_semaphore, #tpu.memory_space<semaphore_mem>>
    %5 = tpu.memref_squeeze %4 : memref<1x!tpu.dma_semaphore, #tpu.memory_space<semaphore_mem>> -> memref<!tpu.dma_semaphore, #tpu.memory_space<semaphore_mem>>
    tpu.enqueue_dma source(%arg12 : memref<5x128x128xbf16, #tpu.memory_space<any>>) target(%arg33 : memref<5x128x128xbf16, #tpu.memory_space<vmem>>) target_semaphore(%5 : memref<!tpu.dma_semaphore, #tpu.memory_space<semaphore_mem>>)
    %c3_i32 = arith.constant 3 : i32
    %6 = tpu.memref_slice %arg38[%c3_i32] : memref<7x!tpu.dma_semaphore, #tpu.memory_space<semaphore_mem>> -> memref<1x!tpu.dma_semaphore, #tpu.memory_space<semaphore_mem>>
    %7 = tpu.memref_squeeze %6 : memref<1x!tpu.dma_semaphore, #tpu.memory_space<semaphore_mem>> -> memref<!tpu.dma_semaphore, #tpu.memory_space<semaphore_mem>>
    tpu.enqueue_dma source(%arg18 : memref<128x512xbf16, #tpu.memory_space<any>>) target(%arg34 : memref<128x512xbf16, #tpu.memory_space<vmem>>) target_semaphore(%7 : memref<!tpu.dma_semaphore, #tpu.memory_space<semaphore_mem>>)
    %c4_i32 = arith.constant 4 : i32
    %8 = tpu.memref_slice %arg38[%c4_i32] : memref<7x!tpu.dma_semaphore, #tpu.memory_space<semaphore_mem>> -> memref<1x!tpu.dma_semaphore, #tpu.memory_space<semaphore_mem>>
    %9 = tpu.memref_squeeze %8 : memref<1x!tpu.dma_semaphore, #tpu.memory_space<semaphore_mem>> -> memref<!tpu.dma_semaphore, #tpu.memory_space<semaphore_mem>>
    tpu.enqueue_dma source(%arg19 : memref<2x128x256xbf16, #tpu.memory_space<any>>) target(%arg35 : memref<2x128x256xbf16, #tpu.memory_space<vmem>>) target_semaphore(%9 : memref<!tpu.dma_semaphore, #tpu.memory_space<semaphore_mem>>)
    %c5_i32 = arith.constant 5 : i32
    %10 = tpu.memref_slice %arg38[%c5_i32] : memref<7x!tpu.dma_semaphore, #tpu.memory_space<semaphore_mem>> -> memref<1x!tpu.dma_semaphore, #tpu.memory_space<semaphore_mem>>
    %11 = tpu.memref_squeeze %10 : memref<1x!tpu.dma_semaphore, #tpu.memory_space<semaphore_mem>> -> memref<!tpu.dma_semaphore, #tpu.memory_space<semaphore_mem>>
    tpu.enqueue_dma source(%arg20 : memref<3x256x256xbf16, #tpu.memory_space<any>>) target(%arg36 : memref<3x256x256xbf16, #tpu.memory_space<vmem>>) target_semaphore(%11 : memref<!tpu.dma_semaphore, #tpu.memory_space<semaphore_mem>>)
    %c6_i32 = arith.constant 6 : i32
    %12 = tpu.memref_slice %arg38[%c6_i32] : memref<7x!tpu.dma_semaphore, #tpu.memory_space<semaphore_mem>> -> memref<1x!tpu.dma_semaphore, #tpu.memory_space<semaphore_mem>>
    %13 = tpu.memref_squeeze %12 : memref<1x!tpu.dma_semaphore, #tpu.memory_space<semaphore_mem>> -> memref<!tpu.dma_semaphore, #tpu.memory_space<semaphore_mem>>
    tpu.enqueue_dma source(%arg26 : memref<4096x256xbf16, #tpu.memory_space<any>>) target(%arg37 : memref<4096x256xbf16, #tpu.memory_space<vmem>>) target_semaphore(%13 : memref<!tpu.dma_semaphore, #tpu.memory_space<semaphore_mem>>)
    %c0 = arith.constant 0 : index
    %c0_0 = arith.constant 0 : index
    %c0_1 = arith.constant 0 : index
    %14 = vector.load %arg1[%c0, %c0_0, %c0_1] : memref<2x64x128xf32, #tpu.memory_space<vmem>>, vector<2x64x128xf32>
    %15 = arith.truncf %14 : vector<2x64x128xf32> to vector<2x64x128xbf16>
    %16 = vector.shape_cast %15 : vector<2x64x128xbf16> to vector<128x128xbf16>
    %c0_2 = arith.constant 0 : index
    %c0_3 = arith.constant 0 : index
    %17 = vector.load %arg2[%c0_2, %c0_3] : memref<128x256xbf16, #tpu.memory_space<vmem>>, vector<128x256xbf16>
    %cst = arith.constant dense<0.000000e+00> : vector<128x256xf32>
    %18 = tpu.matmul %16, %17, %cst {dimension_numbers = #tpu.dot_dimension_numbers<[1], [0], [0], [1], [0, 0, 1, 1], [], []>} : vector<128x128xbf16>, vector<128x256xbf16>, vector<128x256xf32> -> vector<128x256xf32>
    %19 = vector.extract_strided_slice %18 {offsets = [0, 0], sizes = [128, 128], strides = [1, 1]} : vector<128x256xf32> to vector<128x128xf32>
    %20 = vector.extract_strided_slice %18 {offsets = [0, 128], sizes = [128, 128], strides = [1, 1]} : vector<128x256xf32> to vector<128x128xf32>
    %c0_4 = arith.constant 0 : index
    %c0_5 = arith.constant 0 : index
    %21 = vector.load %arg9[%c0_4, %c0_5] : memref<1x128xf32, #tpu.memory_space<vmem>>, vector<1x128xf32>
    %22 = vector.broadcast %21 : vector<1x128xf32> to vector<128x128xf32>
    %23 = arith.addf %20, %22 : vector<128x128xf32>
    %cst_6 = arith.constant 0.000000e+00 : bf16
    %24 = vector.broadcast %cst_6 : bf16 to vector<2x8x128xbf16>
    %25 = tpu.concatenate %24, %15, %24 in 1 : vector<2x8x128xbf16>, vector<2x64x128xbf16>, vector<2x8x128xbf16> -> vector<2x80x128xbf16>
    %26 = vector.extract_strided_slice %25 {offsets = [0, 5, 0], sizes = [2, 64, 128], strides = [1, 1, 1]} : vector<2x80x128xbf16> to vector<2x64x128xbf16>
    %27 = vector.shape_cast %26 : vector<2x64x128xbf16> to vector<128x128xbf16>
    %c0_7 = arith.constant 0 : index
    %c0_8 = arith.constant 0 : index
    %c0_9 = arith.constant 0 : index
    %28 = vector.load %arg3[%c0_7, %c0_8, %c0_9] : memref<6x128x128xbf16, #tpu.memory_space<vmem>>, vector<1x128x128xbf16>
    %29 = vector.shape_cast %28 : vector<1x128x128xbf16> to vector<128x128xbf16>
    %cst_10 = arith.constant dense<0.000000e+00> : vector<128x128xf32>
    %30 = tpu.matmul %27, %29, %cst_10 {dimension_numbers = #tpu.dot_dimension_numbers<[1], [0], [0], [1], [0, 0, 1, 1], [], []>} : vector<128x128xbf16>, vector<128x128xbf16>, vector<128x128xf32> -> vector<128x128xf32>
    %31 = arith.addf %19, %30 : vector<128x128xf32>
    %32 = vector.extract_strided_slice %25 {offsets = [0, 6, 0], sizes = [2, 64, 128], strides = [1, 1, 1]} : vector<2x80x128xbf16> to vector<2x64x128xbf16>
    %33 = vector.shape_cast %32 : vector<2x64x128xbf16> to vector<128x128xbf16>
    %c1 = arith.constant 1 : index
    %c0_11 = arith.constant 0 : index
    %c0_12 = arith.constant 0 : index
    %34 = vector.load %arg3[%c1, %c0_11, %c0_12] : memref<6x128x128xbf16, #tpu.memory_space<vmem>>, vector<1x128x128xbf16>
    %35 = vector.shape_cast %34 : vector<1x128x128xbf16> to vector<128x128xbf16>
    %cst_13 = arith.constant dense<0.000000e+00> : vector<128x128xf32>
    %36 = tpu.matmul %33, %35, %cst_13 {dimension_numbers = #tpu.dot_dimension_numbers<[1], [0], [0], [1], [0, 0, 1, 1], [], []>} : vector<128x128xbf16>, vector<128x128xbf16>, vector<128x128xf32> -> vector<128x128xf32>
    %37 = arith.addf %31, %36 : vector<128x128xf32>
    %38 = vector.extract_strided_slice %25 {offsets = [0, 7, 0], sizes = [2, 64, 128], strides = [1, 1, 1]} : vector<2x80x128xbf16> to vector<2x64x128xbf16>
    %39 = vector.shape_cast %38 : vector<2x64x128xbf16> to vector<128x128xbf16>
    %c2 = arith.constant 2 : index
    %c0_14 = arith.constant 0 : index
    %c0_15 = arith.constant 0 : index
    %40 = vector.load %arg3[%c2, %c0_14, %c0_15] : memref<6x128x128xbf16, #tpu.memory_space<vmem>>, vector<1x128x128xbf16>
    %41 = vector.shape_cast %40 : vector<1x128x128xbf16> to vector<128x128xbf16>
    %cst_16 = arith.constant dense<0.000000e+00> : vector<128x128xf32>
    %42 = tpu.matmul %39, %41, %cst_16 {dimension_numbers = #tpu.dot_dimension_numbers<[1], [0], [0], [1], [0, 0, 1, 1], [], []>} : vector<128x128xbf16>, vector<128x128xbf16>, vector<128x128xf32> -> vector<128x128xf32>
    %43 = arith.addf %37, %42 : vector<128x128xf32>
    %44 = vector.extract_strided_slice %25 {offsets = [0, 9, 0], sizes = [2, 64, 128], strides = [1, 1, 1]} : vector<2x80x128xbf16> to vector<2x64x128xbf16>
    %45 = vector.shape_cast %44 : vector<2x64x128xbf16> to vector<128x128xbf16>
    %c3 = arith.constant 3 : index
    %c0_17 = arith.constant 0 : index
    %c0_18 = arith.constant 0 : index
    %46 = vector.load %arg3[%c3, %c0_17, %c0_18] : memref<6x128x128xbf16, #tpu.memory_space<vmem>>, vector<1x128x128xbf16>
    %47 = vector.shape_cast %46 : vector<1x128x128xbf16> to vector<128x128xbf16>
    %cst_19 = arith.constant dense<0.000000e+00> : vector<128x128xf32>
    %48 = tpu.matmul %45, %47, %cst_19 {dimension_numbers = #tpu.dot_dimension_numbers<[1], [0], [0], [1], [0, 0, 1, 1], [], []>} : vector<128x128xbf16>, vector<128x128xbf16>, vector<128x128xf32> -> vector<128x128xf32>
    %49 = arith.addf %43, %48 : vector<128x128xf32>
    %50 = vector.extract_strided_slice %25 {offsets = [0, 10, 0], sizes = [2, 64, 128], strides = [1, 1, 1]} : vector<2x80x128xbf16> to vector<2x64x128xbf16>
    %51 = vector.shape_cast %50 : vector<2x64x128xbf16> to vector<128x128xbf16>
    %c4 = arith.constant 4 : index
    %c0_20 = arith.constant 0 : index
    %c0_21 = arith.constant 0 : index
    %52 = vector.load %arg3[%c4, %c0_20, %c0_21] : memref<6x128x128xbf16, #tpu.memory_space<vmem>>, vector<1x128x128xbf16>
    %53 = vector.shape_cast %52 : vector<1x128x128xbf16> to vector<128x128xbf16>
    %cst_22 = arith.constant dense<0.000000e+00> : vector<128x128xf32>
    %54 = tpu.matmul %51, %53, %cst_22 {dimension_numbers = #tpu.dot_dimension_numbers<[1], [0], [0], [1], [0, 0, 1, 1], [], []>} : vector<128x128xbf16>, vector<128x128xbf16>, vector<128x128xf32> -> vector<128x128xf32>
    %55 = arith.addf %49, %54 : vector<128x128xf32>
    %56 = vector.extract_strided_slice %25 {offsets = [0, 11, 0], sizes = [2, 64, 128], strides = [1, 1, 1]} : vector<2x80x128xbf16> to vector<2x64x128xbf16>
    %57 = vector.shape_cast %56 : vector<2x64x128xbf16> to vector<128x128xbf16>
    %c5 = arith.constant 5 : index
    %c0_23 = arith.constant 0 : index
    %c0_24 = arith.constant 0 : index
    %58 = vector.load %arg3[%c5, %c0_23, %c0_24] : memref<6x128x128xbf16, #tpu.memory_space<vmem>>, vector<1x128x128xbf16>
    %59 = vector.shape_cast %58 : vector<1x128x128xbf16> to vector<128x128xbf16>
    %cst_25 = arith.constant dense<0.000000e+00> : vector<128x128xf32>
    %60 = tpu.matmul %57, %59, %cst_25 {dimension_numbers = #tpu.dot_dimension_numbers<[1], [0], [0], [1], [0, 0, 1, 1], [], []>} : vector<128x128xbf16>, vector<128x128xbf16>, vector<128x128xf32> -> vector<128x128xf32>
    %61 = arith.addf %55, %60 : vector<128x128xf32>
    %62 = vector.shape_cast %61 : vector<128x128xf32> to vector<2x64x128xf32>
    %c0_26 = arith.constant 0 : index
    %c0_27 = arith.constant 0 : index
    %63 = vector.load %arg5[%c0_26, %c0_27] : memref<1x128xf32, #tpu.memory_space<vmem>>, vector<1x128xf32>
    %64 = vector.shape_cast %63 : vector<1x128xf32> to vector<1x1x128xf32>
    %65 = vector.broadcast %64 : vector<1x1x128xf32> to vector<2x64x128xf32>
    %66 = arith.mulf %62, %65 : vector<2x64x128xf32>
    %c0_28 = arith.constant 0 : index
    %c0_29 = arith.constant 0 : index
    %67 = vector.load %arg6[%c0_28, %c0_29] : memref<1x128xf32, #tpu.memory_space<vmem>>, vector<1x128xf32>
    %68 = vector.shape_cast %67 : vector<1x128xf32> to vector<1x1x128xf32>
    %69 = vector.broadcast %68 : vector<1x1x128xf32> to vector<2x64x128xf32>
    %70 = arith.addf %66, %69 : vector<2x64x128xf32>
    %cst_30 = arith.constant 0.000000e+00 : f32
    %71 = vector.broadcast %cst_30 : f32 to vector<2x64x128xf32>
    %72 = arith.maximumf %70, %71 : vector<2x64x128xf32>
    %73 = arith.truncf %72 : vector<2x64x128xf32> to vector<2x64x128xbf16>
    %74 = vector.shape_cast %73 : vector<2x64x128xbf16> to vector<128x128xbf16>
    %c3_31 = arith.constant 3 : index
    %c0_32 = arith.constant 0 : index
    %c0_33 = arith.constant 0 : index
    %75 = vector.load %arg4[%c3_31, %c0_32, %c0_33] : memref<7x128x128xbf16, #tpu.memory_space<vmem>>, vector<1x128x128xbf16>
    %76 = vector.shape_cast %75 : vector<1x128x128xbf16> to vector<128x128xbf16>
    %cst_34 = arith.constant dense<0.000000e+00> : vector<128x128xf32>
    %77 = tpu.matmul %74, %76, %cst_34 {dimension_numbers = #tpu.dot_dimension_numbers<[1], [0], [0], [1], [0, 0, 1, 1], [], []>} : vector<128x128xbf16>, vector<128x128xbf16>, vector<128x128xf32> -> vector<128x128xf32>
    %cst_35 = arith.constant 0.000000e+00 : bf16
    %78 = vector.broadcast %cst_35 : bf16 to vector<2x8x128xbf16>
    %79 = tpu.concatenate %78, %73, %78 in 1 : vector<2x8x128xbf16>, vector<2x64x128xbf16>, vector<2x8x128xbf16> -> vector<2x80x128xbf16>
    %80 = vector.extract_strided_slice %79 {offsets = [0, 5, 0], sizes = [2, 64, 128], strides = [1, 1, 1]} : vector<2x80x128xbf16> to vector<2x64x128xbf16>
    %81 = vector.shape_cast %80 : vector<2x64x128xbf16> to vector<128x128xbf16>
    %c0_36 = arith.constant 0 : index
    %c0_37 = arith.constant 0 : index
    %c0_38 = arith.constant 0 : index
    %82 = vector.load %arg4[%c0_36, %c0_37, %c0_38] : memref<7x128x128xbf16, #tpu.memory_space<vmem>>, vector<1x128x128xbf16>
    %83 = vector.shape_cast %82 : vector<1x128x128xbf16> to vector<128x128xbf16>
    %cst_39 = arith.constant dense<0.000000e+00> : vector<128x128xf32>
    %84 = tpu.matmul %81, %83, %cst_39 {dimension_numbers = #tpu.dot_dimension_numbers<[1], [0], [0], [1], [0, 0, 1, 1], [], []>} : vector<128x128xbf16>, vector<128x128xbf16>, vector<128x128xf32> -> vector<128x128xf32>
    %85 = arith.addf %77, %84 : vector<128x128xf32>
    %86 = vector.extract_strided_slice %79 {offsets = [0, 6, 0], sizes = [2, 64, 128], strides = [1, 1, 1]} : vector<2x80x128xbf16> to vector<2x64x128xbf16>
    %87 = vector.shape_cast %86 : vector<2x64x128xbf16> to vector<128x128xbf16>
    %c1_40 = arith.constant 1 : index
    %c0_41 = arith.constant 0 : index
    %c0_42 = arith.constant 0 : index
    %88 = vector.load %arg4[%c1_40, %c0_41, %c0_42] : memref<7x128x128xbf16, #tpu.memory_space<vmem>>, vector<1x128x128xbf16>
    %89 = vector.shape_cast %88 : vector<1x128x128xbf16> to vector<128x128xbf16>
    %cst_43 = arith.constant dense<0.000000e+00> : vector<128x128xf32>
    %90 = tpu.matmul %87, %89, %cst_43 {dimension_numbers = #tpu.dot_dimension_numbers<[1], [0], [0], [1], [0, 0, 1, 1], [], []>} : vector<128x128xbf16>, vector<128x128xbf16>, vector<128x128xf32> -> vector<128x128xf32>
    %91 = arith.addf %85, %90 : vector<128x128xf32>
    %92 = vector.extract_strided_slice %79 {offsets = [0, 7, 0], sizes = [2, 64, 128], strides = [1, 1, 1]} : vector<2x80x128xbf16> to vector<2x64x128xbf16>
    %93 = vector.shape_cast %92 : vector<2x64x128xbf16> to vector<128x128xbf16>
    %c2_44 = arith.constant 2 : index
    %c0_45 = arith.constant 0 : index
    %c0_46 = arith.constant 0 : index
    %94 = vector.load %arg4[%c2_44, %c0_45, %c0_46] : memref<7x128x128xbf16, #tpu.memory_space<vmem>>, vector<1x128x128xbf16>
    %95 = vector.shape_cast %94 : vector<1x128x128xbf16> to vector<128x128xbf16>
    %cst_47 = arith.constant dense<0.000000e+00> : vector<128x128xf32>
    %96 = tpu.matmul %93, %95, %cst_47 {dimension_numbers = #tpu.dot_dimension_numbers<[1], [0], [0], [1], [0, 0, 1, 1], [], []>} : vector<128x128xbf16>, vector<128x128xbf16>, vector<128x128xf32> -> vector<128x128xf32>
    %97 = arith.addf %91, %96 : vector<128x128xf32>
    %98 = vector.extract_strided_slice %79 {offsets = [0, 9, 0], sizes = [2, 64, 128], strides = [1, 1, 1]} : vector<2x80x128xbf16> to vector<2x64x128xbf16>
    %99 = vector.shape_cast %98 : vector<2x64x128xbf16> to vector<128x128xbf16>
    %c4_48 = arith.constant 4 : index
    %c0_49 = arith.constant 0 : index
    %c0_50 = arith.constant 0 : index
    %100 = vector.load %arg4[%c4_48, %c0_49, %c0_50] : memref<7x128x128xbf16, #tpu.memory_space<vmem>>, vector<1x128x128xbf16>
    %101 = vector.shape_cast %100 : vector<1x128x128xbf16> to vector<128x128xbf16>
    %cst_51 = arith.constant dense<0.000000e+00> : vector<128x128xf32>
    %102 = tpu.matmul %99, %101, %cst_51 {dimension_numbers = #tpu.dot_dimension_numbers<[1], [0], [0], [1], [0, 0, 1, 1], [], []>} : vector<128x128xbf16>, vector<128x128xbf16>, vector<128x128xf32> -> vector<128x128xf32>
    %103 = arith.addf %97, %102 : vector<128x128xf32>
    %104 = vector.extract_strided_slice %79 {offsets = [0, 10, 0], sizes = [2, 64, 128], strides = [1, 1, 1]} : vector<2x80x128xbf16> to vector<2x64x128xbf16>
    %105 = vector.shape_cast %104 : vector<2x64x128xbf16> to vector<128x128xbf16>
    %c5_52 = arith.constant 5 : index
    %c0_53 = arith.constant 0 : index
    %c0_54 = arith.constant 0 : index
    %106 = vector.load %arg4[%c5_52, %c0_53, %c0_54] : memref<7x128x128xbf16, #tpu.memory_space<vmem>>, vector<1x128x128xbf16>
    %107 = vector.shape_cast %106 : vector<1x128x128xbf16> to vector<128x128xbf16>
    %cst_55 = arith.constant dense<0.000000e+00> : vector<128x128xf32>
    %108 = tpu.matmul %105, %107, %cst_55 {dimension_numbers = #tpu.dot_dimension_numbers<[1], [0], [0], [1], [0, 0, 1, 1], [], []>} : vector<128x128xbf16>, vector<128x128xbf16>, vector<128x128xf32> -> vector<128x128xf32>
    %109 = arith.addf %103, %108 : vector<128x128xf32>
    %110 = vector.extract_strided_slice %79 {offsets = [0, 11, 0], sizes = [2, 64, 128], strides = [1, 1, 1]} : vector<2x80x128xbf16> to vector<2x64x128xbf16>
    %111 = vector.shape_cast %110 : vector<2x64x128xbf16> to vector<128x128xbf16>
    %c6 = arith.constant 6 : index
    %c0_56 = arith.constant 0 : index
    %c0_57 = arith.constant 0 : index
    %112 = vector.load %arg4[%c6, %c0_56, %c0_57] : memref<7x128x128xbf16, #tpu.memory_space<vmem>>, vector<1x128x128xbf16>
    %113 = vector.shape_cast %112 : vector<1x128x128xbf16> to vector<128x128xbf16>
    %cst_58 = arith.constant dense<0.000000e+00> : vector<128x128xf32>
    %114 = tpu.matmul %111, %113, %cst_58 {dimension_numbers = #tpu.dot_dimension_numbers<[1], [0], [0], [1], [0, 0, 1, 1], [], []>} : vector<128x128xbf16>, vector<128x128xbf16>, vector<128x128xf32> -> vector<128x128xf32>
    %115 = arith.addf %109, %114 : vector<128x128xf32>
    %116 = vector.shape_cast %115 : vector<128x128xf32> to vector<2x64x128xf32>
    %c0_59 = arith.constant 0 : index
    %c0_60 = arith.constant 0 : index
    %117 = vector.load %arg7[%c0_59, %c0_60] : memref<1x128xf32, #tpu.memory_space<vmem>>, vector<1x128xf32>
    %118 = vector.shape_cast %117 : vector<1x128xf32> to vector<1x1x128xf32>
    %119 = vector.broadcast %118 : vector<1x1x128xf32> to vector<2x64x128xf32>
    %120 = arith.mulf %116, %119 : vector<2x64x128xf32>
    %c0_61 = arith.constant 0 : index
    %c0_62 = arith.constant 0 : index
    %121 = vector.load %arg8[%c0_61, %c0_62] : memref<1x128xf32, #tpu.memory_space<vmem>>, vector<1x128xf32>
    %122 = vector.shape_cast %121 : vector<1x128xf32> to vector<1x1x128xf32>
    %123 = vector.broadcast %122 : vector<1x1x128xf32> to vector<2x64x128xf32>
    %124 = arith.addf %120, %123 : vector<2x64x128xf32>
    %125 = vector.shape_cast %23 : vector<128x128xf32> to vector<2x64x128xf32>
    %126 = arith.addf %124, %125 : vector<2x64x128xf32>
    %cst_63 = arith.constant 0.000000e+00 : f32
    %127 = vector.broadcast %cst_63 : f32 to vector<2x64x128xf32>
    %128 = arith.maximumf %126, %127 : vector<2x64x128xf32>
    %c0_i32_64 = arith.constant 0 : i32
    %129 = tpu.memref_slice %arg38[%c0_i32_64] : memref<7x!tpu.dma_semaphore, #tpu.memory_space<semaphore_mem>> -> memref<1x!tpu.dma_semaphore, #tpu.memory_space<semaphore_mem>>
    %130 = tpu.memref_squeeze %129 : memref<1x!tpu.dma_semaphore, #tpu.memory_space<semaphore_mem>> -> memref<!tpu.dma_semaphore, #tpu.memory_space<semaphore_mem>>
    tpu.wait_dma2 semaphore(%130 : memref<!tpu.dma_semaphore, #tpu.memory_space<semaphore_mem>>) src(%arg10 : memref<128x256xbf16, #tpu.memory_space<any>>) dst(%arg31 : memref<128x256xbf16, #tpu.memory_space<vmem>>)
    %c1_i32_65 = arith.constant 1 : i32
    %131 = tpu.memref_slice %arg38[%c1_i32_65] : memref<7x!tpu.dma_semaphore, #tpu.memory_space<semaphore_mem>> -> memref<1x!tpu.dma_semaphore, #tpu.memory_space<semaphore_mem>>
    %132 = tpu.memref_squeeze %131 : memref<1x!tpu.dma_semaphore, #tpu.memory_space<semaphore_mem>> -> memref<!tpu.dma_semaphore, #tpu.memory_space<semaphore_mem>>
    tpu.wait_dma2 semaphore(%132 : memref<!tpu.dma_semaphore, #tpu.memory_space<semaphore_mem>>) src(%arg11 : memref<4x128x128xbf16, #tpu.memory_space<any>>) dst(%arg32 : memref<4x128x128xbf16, #tpu.memory_space<vmem>>)
    %c2_i32_66 = arith.constant 2 : i32
    %133 = tpu.memref_slice %arg38[%c2_i32_66] : memref<7x!tpu.dma_semaphore, #tpu.memory_space<semaphore_mem>> -> memref<1x!tpu.dma_semaphore, #tpu.memory_space<semaphore_mem>>
    %134 = tpu.memref_squeeze %133 : memref<1x!tpu.dma_semaphore, #tpu.memory_space<semaphore_mem>> -> memref<!tpu.dma_semaphore, #tpu.memory_space<semaphore_mem>>
    tpu.wait_dma2 semaphore(%134 : memref<!tpu.dma_semaphore, #tpu.memory_space<semaphore_mem>>) src(%arg12 : memref<5x128x128xbf16, #tpu.memory_space<any>>) dst(%arg33 : memref<5x128x128xbf16, #tpu.memory_space<vmem>>)
    %135 = arith.truncf %128 : vector<2x64x128xf32> to vector<2x64x128xbf16>
    %136 = vector.shape_cast %135 : vector<2x64x128xbf16> to vector<128x128xbf16>
    %c0_67 = arith.constant 0 : index
    %c0_68 = arith.constant 0 : index
    %137 = vector.load %arg31[%c0_67, %c0_68] : memref<128x256xbf16, #tpu.memory_space<vmem>>, vector<128x256xbf16>
    %cst_69 = arith.constant dense<0.000000e+00> : vector<128x256xf32>
    %138 = tpu.matmul %136, %137, %cst_69 {dimension_numbers = #tpu.dot_dimension_numbers<[1], [0], [0], [1], [0, 0, 1, 1], [], []>} : vector<128x128xbf16>, vector<128x256xbf16>, vector<128x256xf32> -> vector<128x256xf32>
    %139 = vector.extract_strided_slice %138 {offsets = [0, 0], sizes = [128, 128], strides = [1, 1]} : vector<128x256xf32> to vector<128x128xf32>
    %140 = vector.extract_strided_slice %138 {offsets = [0, 128], sizes = [128, 128], strides = [1, 1]} : vector<128x256xf32> to vector<128x128xf32>
    %c0_70 = arith.constant 0 : index
    %c0_71 = arith.constant 0 : index
    %141 = vector.load %arg17[%c0_70, %c0_71] : memref<1x128xf32, #tpu.memory_space<vmem>>, vector<1x128xf32>
    %142 = vector.broadcast %141 : vector<1x128xf32> to vector<128x128xf32>
    %143 = arith.addf %140, %142 : vector<128x128xf32>
    %cst_72 = arith.constant 0.000000e+00 : bf16
    %144 = vector.broadcast %cst_72 : bf16 to vector<2x8x128xbf16>
    %145 = tpu.concatenate %144, %135, %144 in 1 : vector<2x8x128xbf16>, vector<2x64x128xbf16>, vector<2x8x128xbf16> -> vector<2x80x128xbf16>
    %146 = vector.extract_strided_slice %145 {offsets = [0, 6, 0], sizes = [2, 64, 128], strides = [1, 1, 1]} : vector<2x80x128xbf16> to vector<2x64x128xbf16>
    %147 = vector.shape_cast %146 : vector<2x64x128xbf16> to vector<128x128xbf16>
    %c0_73 = arith.constant 0 : index
    %c0_74 = arith.constant 0 : index
    %c0_75 = arith.constant 0 : index
    %148 = vector.load %arg32[%c0_73, %c0_74, %c0_75] : memref<4x128x128xbf16, #tpu.memory_space<vmem>>, vector<1x128x128xbf16>
    %149 = vector.shape_cast %148 : vector<1x128x128xbf16> to vector<128x128xbf16>
    %cst_76 = arith.constant dense<0.000000e+00> : vector<128x128xf32>
    %150 = tpu.matmul %147, %149, %cst_76 {dimension_numbers = #tpu.dot_dimension_numbers<[1], [0], [0], [1], [0, 0, 1, 1], [], []>} : vector<128x128xbf16>, vector<128x128xbf16>, vector<128x128xf32> -> vector<128x128xf32>
    %151 = arith.addf %139, %150 : vector<128x128xf32>
    %152 = vector.extract_strided_slice %145 {offsets = [0, 7, 0], sizes = [2, 64, 128], strides = [1, 1, 1]} : vector<2x80x128xbf16> to vector<2x64x128xbf16>
    %153 = vector.shape_cast %152 : vector<2x64x128xbf16> to vector<128x128xbf16>
    %c1_77 = arith.constant 1 : index
    %c0_78 = arith.constant 0 : index
    %c0_79 = arith.constant 0 : index
    %154 = vector.load %arg32[%c1_77, %c0_78, %c0_79] : memref<4x128x128xbf16, #tpu.memory_space<vmem>>, vector<1x128x128xbf16>
    %155 = vector.shape_cast %154 : vector<1x128x128xbf16> to vector<128x128xbf16>
    %cst_80 = arith.constant dense<0.000000e+00> : vector<128x128xf32>
    %156 = tpu.matmul %153, %155, %cst_80 {dimension_numbers = #tpu.dot_dimension_numbers<[1], [0], [0], [1], [0, 0, 1, 1], [], []>} : vector<128x128xbf16>, vector<128x128xbf16>, vector<128x128xf32> -> vector<128x128xf32>
    %157 = arith.addf %151, %156 : vector<128x128xf32>
    %158 = vector.extract_strided_slice %145 {offsets = [0, 9, 0], sizes = [2, 64, 128], strides = [1, 1, 1]} : vector<2x80x128xbf16> to vector<2x64x128xbf16>
    %159 = vector.shape_cast %158 : vector<2x64x128xbf16> to vector<128x128xbf16>
    %c2_81 = arith.constant 2 : index
    %c0_82 = arith.constant 0 : index
    %c0_83 = arith.constant 0 : index
    %160 = vector.load %arg32[%c2_81, %c0_82, %c0_83] : memref<4x128x128xbf16, #tpu.memory_space<vmem>>, vector<1x128x128xbf16>
    %161 = vector.shape_cast %160 : vector<1x128x128xbf16> to vector<128x128xbf16>
    %cst_84 = arith.constant dense<0.000000e+00> : vector<128x128xf32>
    %162 = tpu.matmul %159, %161, %cst_84 {dimension_numbers = #tpu.dot_dimension_numbers<[1], [0], [0], [1], [0, 0, 1, 1], [], []>} : vector<128x128xbf16>, vector<128x128xbf16>, vector<128x128xf32> -> vector<128x128xf32>
    %163 = arith.addf %157, %162 : vector<128x128xf32>
    %164 = vector.extract_strided_slice %145 {offsets = [0, 10, 0], sizes = [2, 64, 128], strides = [1, 1, 1]} : vector<2x80x128xbf16> to vector<2x64x128xbf16>
    %165 = vector.shape_cast %164 : vector<2x64x128xbf16> to vector<128x128xbf16>
    %c3_85 = arith.constant 3 : index
    %c0_86 = arith.constant 0 : index
    %c0_87 = arith.constant 0 : index
    %166 = vector.load %arg32[%c3_85, %c0_86, %c0_87] : memref<4x128x128xbf16, #tpu.memory_space<vmem>>, vector<1x128x128xbf16>
    %167 = vector.shape_cast %166 : vector<1x128x128xbf16> to vector<128x128xbf16>
    %cst_88 = arith.constant dense<0.000000e+00> : vector<128x128xf32>
    %168 = tpu.matmul %165, %167, %cst_88 {dimension_numbers = #tpu.dot_dimension_numbers<[1], [0], [0], [1], [0, 0, 1, 1], [], []>} : vector<128x128xbf16>, vector<128x128xbf16>, vector<128x128xf32> -> vector<128x128xf32>
    %169 = arith.addf %163, %168 : vector<128x128xf32>
    %170 = vector.shape_cast %169 : vector<128x128xf32> to vector<2x64x128xf32>
    %c0_89 = arith.constant 0 : index
    %c0_90 = arith.constant 0 : index
    %171 = vector.load %arg13[%c0_89, %c0_90] : memref<1x128xf32, #tpu.memory_space<vmem>>, vector<1x128xf32>
    %172 = vector.shape_cast %171 : vector<1x128xf32> to vector<1x1x128xf32>
    %173 = vector.broadcast %172 : vector<1x1x128xf32> to vector<2x64x128xf32>
    %174 = arith.mulf %170, %173 : vector<2x64x128xf32>
    %c0_91 = arith.constant 0 : index
    %c0_92 = arith.constant 0 : index
    %175 = vector.load %arg14[%c0_91, %c0_92] : memref<1x128xf32, #tpu.memory_space<vmem>>, vector<1x128xf32>
    %176 = vector.shape_cast %175 : vector<1x128xf32> to vector<1x1x128xf32>
    %177 = vector.broadcast %176 : vector<1x1x128xf32> to vector<2x64x128xf32>
    %178 = arith.addf %174, %177 : vector<2x64x128xf32>
    %cst_93 = arith.constant 0.000000e+00 : f32
    %179 = vector.broadcast %cst_93 : f32 to vector<2x64x128xf32>
    %180 = arith.maximumf %178, %179 : vector<2x64x128xf32>
    %181 = arith.truncf %180 : vector<2x64x128xf32> to vector<2x64x128xbf16>
    %182 = vector.shape_cast %181 : vector<2x64x128xbf16> to vector<128x128xbf16>
    %c2_94 = arith.constant 2 : index
    %c0_95 = arith.constant 0 : index
    %c0_96 = arith.constant 0 : index
    %183 = vector.load %arg33[%c2_94, %c0_95, %c0_96] : memref<5x128x128xbf16, #tpu.memory_space<vmem>>, vector<1x128x128xbf16>
    %184 = vector.shape_cast %183 : vector<1x128x128xbf16> to vector<128x128xbf16>
    %cst_97 = arith.constant dense<0.000000e+00> : vector<128x128xf32>
    %185 = tpu.matmul %182, %184, %cst_97 {dimension_numbers = #tpu.dot_dimension_numbers<[1], [0], [0], [1], [0, 0, 1, 1], [], []>} : vector<128x128xbf16>, vector<128x128xbf16>, vector<128x128xf32> -> vector<128x128xf32>
    %cst_98 = arith.constant 0.000000e+00 : bf16
    %186 = vector.broadcast %cst_98 : bf16 to vector<2x8x128xbf16>
    %187 = tpu.concatenate %186, %181, %186 in 1 : vector<2x8x128xbf16>, vector<2x64x128xbf16>, vector<2x8x128xbf16> -> vector<2x80x128xbf16>
    %188 = vector.extract_strided_slice %187 {offsets = [0, 6, 0], sizes = [2, 64, 128], strides = [1, 1, 1]} : vector<2x80x128xbf16> to vector<2x64x128xbf16>
    %189 = vector.shape_cast %188 : vector<2x64x128xbf16> to vector<128x128xbf16>
    %c0_99 = arith.constant 0 : index
    %c0_100 = arith.constant 0 : index
    %c0_101 = arith.constant 0 : index
    %190 = vector.load %arg33[%c0_99, %c0_100, %c0_101] : memref<5x128x128xbf16, #tpu.memory_space<vmem>>, vector<1x128x128xbf16>
    %191 = vector.shape_cast %190 : vector<1x128x128xbf16> to vector<128x128xbf16>
    %cst_102 = arith.constant dense<0.000000e+00> : vector<128x128xf32>
    %192 = tpu.matmul %189, %191, %cst_102 {dimension_numbers = #tpu.dot_dimension_numbers<[1], [0], [0], [1], [0, 0, 1, 1], [], []>} : vector<128x128xbf16>, vector<128x128xbf16>, vector<128x128xf32> -> vector<128x128xf32>
    %193 = arith.addf %185, %192 : vector<128x128xf32>
    %194 = vector.extract_strided_slice %187 {offsets = [0, 7, 0], sizes = [2, 64, 128], strides = [1, 1, 1]} : vector<2x80x128xbf16> to vector<2x64x128xbf16>
    %195 = vector.shape_cast %194 : vector<2x64x128xbf16> to vector<128x128xbf16>
    %c1_103 = arith.constant 1 : index
    %c0_104 = arith.constant 0 : index
    %c0_105 = arith.constant 0 : index
    %196 = vector.load %arg33[%c1_103, %c0_104, %c0_105] : memref<5x128x128xbf16, #tpu.memory_space<vmem>>, vector<1x128x128xbf16>
    %197 = vector.shape_cast %196 : vector<1x128x128xbf16> to vector<128x128xbf16>
    %cst_106 = arith.constant dense<0.000000e+00> : vector<128x128xf32>
    %198 = tpu.matmul %195, %197, %cst_106 {dimension_numbers = #tpu.dot_dimension_numbers<[1], [0], [0], [1], [0, 0, 1, 1], [], []>} : vector<128x128xbf16>, vector<128x128xbf16>, vector<128x128xf32> -> vector<128x128xf32>
    %199 = arith.addf %193, %198 : vector<128x128xf32>
    %200 = vector.extract_strided_slice %187 {offsets = [0, 9, 0], sizes = [2, 64, 128], strides = [1, 1, 1]} : vector<2x80x128xbf16> to vector<2x64x128xbf16>
    %201 = vector.shape_cast %200 : vector<2x64x128xbf16> to vector<128x128xbf16>
    %c3_107 = arith.constant 3 : index
    %c0_108 = arith.constant 0 : index
    %c0_109 = arith.constant 0 : index
    %202 = vector.load %arg33[%c3_107, %c0_108, %c0_109] : memref<5x128x128xbf16, #tpu.memory_space<vmem>>, vector<1x128x128xbf16>
    %203 = vector.shape_cast %202 : vector<1x128x128xbf16> to vector<128x128xbf16>
    %cst_110 = arith.constant dense<0.000000e+00> : vector<128x128xf32>
    %204 = tpu.matmul %201, %203, %cst_110 {dimension_numbers = #tpu.dot_dimension_numbers<[1], [0], [0], [1], [0, 0, 1, 1], [], []>} : vector<128x128xbf16>, vector<128x128xbf16>, vector<128x128xf32> -> vector<128x128xf32>
    %205 = arith.addf %199, %204 : vector<128x128xf32>
    %206 = vector.extract_strided_slice %187 {offsets = [0, 10, 0], sizes = [2, 64, 128], strides = [1, 1, 1]} : vector<2x80x128xbf16> to vector<2x64x128xbf16>
    %207 = vector.shape_cast %206 : vector<2x64x128xbf16> to vector<128x128xbf16>
    %c4_111 = arith.constant 4 : index
    %c0_112 = arith.constant 0 : index
    %c0_113 = arith.constant 0 : index
    %208 = vector.load %arg33[%c4_111, %c0_112, %c0_113] : memref<5x128x128xbf16, #tpu.memory_space<vmem>>, vector<1x128x128xbf16>
    %209 = vector.shape_cast %208 : vector<1x128x128xbf16> to vector<128x128xbf16>
    %cst_114 = arith.constant dense<0.000000e+00> : vector<128x128xf32>
    %210 = tpu.matmul %207, %209, %cst_114 {dimension_numbers = #tpu.dot_dimension_numbers<[1], [0], [0], [1], [0, 0, 1, 1], [], []>} : vector<128x128xbf16>, vector<128x128xbf16>, vector<128x128xf32> -> vector<128x128xf32>
    %211 = arith.addf %205, %210 : vector<128x128xf32>
    %212 = vector.shape_cast %211 : vector<128x128xf32> to vector<2x64x128xf32>
    %c0_115 = arith.constant 0 : index
    %c0_116 = arith.constant 0 : index
    %213 = vector.load %arg15[%c0_115, %c0_116] : memref<1x128xf32, #tpu.memory_space<vmem>>, vector<1x128xf32>
    %214 = vector.shape_cast %213 : vector<1x128xf32> to vector<1x1x128xf32>
    %215 = vector.broadcast %214 : vector<1x1x128xf32> to vector<2x64x128xf32>
    %216 = arith.mulf %212, %215 : vector<2x64x128xf32>
    %c0_117 = arith.constant 0 : index
    %c0_118 = arith.constant 0 : index
    %217 = vector.load %arg16[%c0_117, %c0_118] : memref<1x128xf32, #tpu.memory_space<vmem>>, vector<1x128xf32>
    %218 = vector.shape_cast %217 : vector<1x128xf32> to vector<1x1x128xf32>
    %219 = vector.broadcast %218 : vector<1x1x128xf32> to vector<2x64x128xf32>
    %220 = arith.addf %216, %219 : vector<2x64x128xf32>
    %221 = vector.shape_cast %143 : vector<128x128xf32> to vector<2x64x128xf32>
    %222 = arith.addf %220, %221 : vector<2x64x128xf32>
    %cst_119 = arith.constant 0.000000e+00 : f32
    %223 = vector.broadcast %cst_119 : f32 to vector<2x64x128xf32>
    %224 = arith.maximumf %222, %223 : vector<2x64x128xf32>
    %c3_i32_120 = arith.constant 3 : i32
    %225 = tpu.memref_slice %arg38[%c3_i32_120] : memref<7x!tpu.dma_semaphore, #tpu.memory_space<semaphore_mem>> -> memref<1x!tpu.dma_semaphore, #tpu.memory_space<semaphore_mem>>
    %226 = tpu.memref_squeeze %225 : memref<1x!tpu.dma_semaphore, #tpu.memory_space<semaphore_mem>> -> memref<!tpu.dma_semaphore, #tpu.memory_space<semaphore_mem>>
    tpu.wait_dma2 semaphore(%226 : memref<!tpu.dma_semaphore, #tpu.memory_space<semaphore_mem>>) src(%arg18 : memref<128x512xbf16, #tpu.memory_space<any>>) dst(%arg34 : memref<128x512xbf16, #tpu.memory_space<vmem>>)
    %c4_i32_121 = arith.constant 4 : i32
    %227 = tpu.memref_slice %arg38[%c4_i32_121] : memref<7x!tpu.dma_semaphore, #tpu.memory_space<semaphore_mem>> -> memref<1x!tpu.dma_semaphore, #tpu.memory_space<semaphore_mem>>
    %228 = tpu.memref_squeeze %227 : memref<1x!tpu.dma_semaphore, #tpu.memory_space<semaphore_mem>> -> memref<!tpu.dma_semaphore, #tpu.memory_space<semaphore_mem>>
    tpu.wait_dma2 semaphore(%228 : memref<!tpu.dma_semaphore, #tpu.memory_space<semaphore_mem>>) src(%arg19 : memref<2x128x256xbf16, #tpu.memory_space<any>>) dst(%arg35 : memref<2x128x256xbf16, #tpu.memory_space<vmem>>)
    %c5_i32_122 = arith.constant 5 : i32
    %229 = tpu.memref_slice %arg38[%c5_i32_122] : memref<7x!tpu.dma_semaphore, #tpu.memory_space<semaphore_mem>> -> memref<1x!tpu.dma_semaphore, #tpu.memory_space<semaphore_mem>>
    %230 = tpu.memref_squeeze %229 : memref<1x!tpu.dma_semaphore, #tpu.memory_space<semaphore_mem>> -> memref<!tpu.dma_semaphore, #tpu.memory_space<semaphore_mem>>
    tpu.wait_dma2 semaphore(%230 : memref<!tpu.dma_semaphore, #tpu.memory_space<semaphore_mem>>) src(%arg20 : memref<3x256x256xbf16, #tpu.memory_space<any>>) dst(%arg36 : memref<3x256x256xbf16, #tpu.memory_space<vmem>>)
    %231 = arith.truncf %224 : vector<2x64x128xf32> to vector<2x64x128xbf16>
    %232 = vector.shape_cast %231 : vector<2x64x128xbf16> to vector<128x128xbf16>
    %c0_123 = arith.constant 0 : index
    %c0_124 = arith.constant 0 : index
    %233 = vector.load %arg34[%c0_123, %c0_124] : memref<128x512xbf16, #tpu.memory_space<vmem>>, vector<128x512xbf16>
    %cst_125 = arith.constant dense<0.000000e+00> : vector<128x512xf32>
    %234 = tpu.matmul %232, %233, %cst_125 {dimension_numbers = #tpu.dot_dimension_numbers<[1], [0], [0], [1], [0, 0, 1, 1], [], []>} : vector<128x128xbf16>, vector<128x512xbf16>, vector<128x512xf32> -> vector<128x512xf32>
    %235 = vector.extract_strided_slice %234 {offsets = [0, 0], sizes = [128, 256], strides = [1, 1]} : vector<128x512xf32> to vector<128x256xf32>
    %236 = vector.extract_strided_slice %234 {offsets = [0, 256], sizes = [128, 256], strides = [1, 1]} : vector<128x512xf32> to vector<128x256xf32>
    %c0_126 = arith.constant 0 : index
    %c0_127 = arith.constant 0 : index
    %237 = vector.load %arg25[%c0_126, %c0_127] : memref<1x256xf32, #tpu.memory_space<vmem>>, vector<1x256xf32>
    %238 = vector.broadcast %237 : vector<1x256xf32> to vector<128x256xf32>
    %239 = arith.addf %236, %238 : vector<128x256xf32>
    %cst_128 = arith.constant 0.000000e+00 : bf16
    %240 = vector.broadcast %cst_128 : bf16 to vector<2x8x128xbf16>
    %241 = tpu.concatenate %240, %231, %240 in 1 : vector<2x8x128xbf16>, vector<2x64x128xbf16>, vector<2x8x128xbf16> -> vector<2x80x128xbf16>
    %242 = vector.extract_strided_slice %241 {offsets = [0, 7, 0], sizes = [2, 64, 128], strides = [1, 1, 1]} : vector<2x80x128xbf16> to vector<2x64x128xbf16>
    %243 = vector.shape_cast %242 : vector<2x64x128xbf16> to vector<128x128xbf16>
    %c0_129 = arith.constant 0 : index
    %c0_130 = arith.constant 0 : index
    %c0_131 = arith.constant 0 : index
    %244 = vector.load %arg35[%c0_129, %c0_130, %c0_131] : memref<2x128x256xbf16, #tpu.memory_space<vmem>>, vector<1x128x256xbf16>
    %245 = vector.shape_cast %244 : vector<1x128x256xbf16> to vector<128x256xbf16>
    %cst_132 = arith.constant dense<0.000000e+00> : vector<128x256xf32>
    %246 = tpu.matmul %243, %245, %cst_132 {dimension_numbers = #tpu.dot_dimension_numbers<[1], [0], [0], [1], [0, 0, 1, 1], [], []>} : vector<128x128xbf16>, vector<128x256xbf16>, vector<128x256xf32> -> vector<128x256xf32>
    %247 = arith.addf %235, %246 : vector<128x256xf32>
    %248 = vector.extract_strided_slice %241 {offsets = [0, 9, 0], sizes = [2, 64, 128], strides = [1, 1, 1]} : vector<2x80x128xbf16> to vector<2x64x128xbf16>
    %249 = vector.shape_cast %248 : vector<2x64x128xbf16> to vector<128x128xbf16>
    %c1_133 = arith.constant 1 : index
    %c0_134 = arith.constant 0 : index
    %c0_135 = arith.constant 0 : index
    %250 = vector.load %arg35[%c1_133, %c0_134, %c0_135] : memref<2x128x256xbf16, #tpu.memory_space<vmem>>, vector<1x128x256xbf16>
    %251 = vector.shape_cast %250 : vector<1x128x256xbf16> to vector<128x256xbf16>
    %cst_136 = arith.constant dense<0.000000e+00> : vector<128x256xf32>
    %252 = tpu.matmul %249, %251, %cst_136 {dimension_numbers = #tpu.dot_dimension_numbers<[1], [0], [0], [1], [0, 0, 1, 1], [], []>} : vector<128x128xbf16>, vector<128x256xbf16>, vector<128x256xf32> -> vector<128x256xf32>
    %253 = arith.addf %247, %252 : vector<128x256xf32>
    %254 = vector.shape_cast %253 : vector<128x256xf32> to vector<2x64x256xf32>
    %c0_137 = arith.constant 0 : index
    %c0_138 = arith.constant 0 : index
    %255 = vector.load %arg21[%c0_137, %c0_138] : memref<1x256xf32, #tpu.memory_space<vmem>>, vector<1x256xf32>
    %256 = vector.shape_cast %255 : vector<1x256xf32> to vector<1x1x256xf32>
    %257 = vector.broadcast %256 : vector<1x1x256xf32> to vector<2x64x256xf32>
    %258 = arith.mulf %254, %257 : vector<2x64x256xf32>
    %c0_139 = arith.constant 0 : index
    %c0_140 = arith.constant 0 : index
    %259 = vector.load %arg22[%c0_139, %c0_140] : memref<1x256xf32, #tpu.memory_space<vmem>>, vector<1x256xf32>
    %260 = vector.shape_cast %259 : vector<1x256xf32> to vector<1x1x256xf32>
    %261 = vector.broadcast %260 : vector<1x1x256xf32> to vector<2x64x256xf32>
    %262 = arith.addf %258, %261 : vector<2x64x256xf32>
    %cst_141 = arith.constant 0.000000e+00 : f32
    %263 = vector.broadcast %cst_141 : f32 to vector<2x64x256xf32>
    %264 = arith.maximumf %262, %263 : vector<2x64x256xf32>
    %265 = arith.truncf %264 : vector<2x64x256xf32> to vector<2x64x256xbf16>
    %266 = vector.shape_cast %265 : vector<2x64x256xbf16> to vector<128x256xbf16>
    %c1_142 = arith.constant 1 : index
    %c0_143 = arith.constant 0 : index
    %c0_144 = arith.constant 0 : index
    %267 = vector.load %arg36[%c1_142, %c0_143, %c0_144] : memref<3x256x256xbf16, #tpu.memory_space<vmem>>, vector<1x256x256xbf16>
    %268 = vector.shape_cast %267 : vector<1x256x256xbf16> to vector<256x256xbf16>
    %cst_145 = arith.constant dense<0.000000e+00> : vector<128x256xf32>
    %269 = tpu.matmul %266, %268, %cst_145 {dimension_numbers = #tpu.dot_dimension_numbers<[1], [0], [0], [1], [0, 0, 1, 1], [], []>} : vector<128x256xbf16>, vector<256x256xbf16>, vector<128x256xf32> -> vector<128x256xf32>
    %cst_146 = arith.constant 0.000000e+00 : bf16
    %270 = vector.broadcast %cst_146 : bf16 to vector<2x8x256xbf16>
    %271 = tpu.concatenate %270, %265, %270 in 1 : vector<2x8x256xbf16>, vector<2x64x256xbf16>, vector<2x8x256xbf16> -> vector<2x80x256xbf16>
    %272 = vector.extract_strided_slice %271 {offsets = [0, 7, 0], sizes = [2, 64, 256], strides = [1, 1, 1]} : vector<2x80x256xbf16> to vector<2x64x256xbf16>
    %273 = vector.shape_cast %272 : vector<2x64x256xbf16> to vector<128x256xbf16>
    %c0_147 = arith.constant 0 : index
    %c0_148 = arith.constant 0 : index
    %c0_149 = arith.constant 0 : index
    %274 = vector.load %arg36[%c0_147, %c0_148, %c0_149] : memref<3x256x256xbf16, #tpu.memory_space<vmem>>, vector<1x256x256xbf16>
    %275 = vector.shape_cast %274 : vector<1x256x256xbf16> to vector<256x256xbf16>
    %cst_150 = arith.constant dense<0.000000e+00> : vector<128x256xf32>
    %276 = tpu.matmul %273, %275, %cst_150 {dimension_numbers = #tpu.dot_dimension_numbers<[1], [0], [0], [1], [0, 0, 1, 1], [], []>} : vector<128x256xbf16>, vector<256x256xbf16>, vector<128x256xf32> -> vector<128x256xf32>
    %277 = arith.addf %269, %276 : vector<128x256xf32>
    %278 = vector.extract_strided_slice %271 {offsets = [0, 9, 0], sizes = [2, 64, 256], strides = [1, 1, 1]} : vector<2x80x256xbf16> to vector<2x64x256xbf16>
    %279 = vector.shape_cast %278 : vector<2x64x256xbf16> to vector<128x256xbf16>
    %c2_151 = arith.constant 2 : index
    %c0_152 = arith.constant 0 : index
    %c0_153 = arith.constant 0 : index
    %280 = vector.load %arg36[%c2_151, %c0_152, %c0_153] : memref<3x256x256xbf16, #tpu.memory_space<vmem>>, vector<1x256x256xbf16>
    %281 = vector.shape_cast %280 : vector<1x256x256xbf16> to vector<256x256xbf16>
    %cst_154 = arith.constant dense<0.000000e+00> : vector<128x256xf32>
    %282 = tpu.matmul %279, %281, %cst_154 {dimension_numbers = #tpu.dot_dimension_numbers<[1], [0], [0], [1], [0, 0, 1, 1], [], []>} : vector<128x256xbf16>, vector<256x256xbf16>, vector<128x256xf32> -> vector<128x256xf32>
    %283 = arith.addf %277, %282 : vector<128x256xf32>
    %284 = vector.shape_cast %283 : vector<128x256xf32> to vector<2x64x256xf32>
    %c0_155 = arith.constant 0 : index
    %c0_156 = arith.constant 0 : index
    %285 = vector.load %arg23[%c0_155, %c0_156] : memref<1x256xf32, #tpu.memory_space<vmem>>, vector<1x256xf32>
    %286 = vector.shape_cast %285 : vector<1x256xf32> to vector<1x1x256xf32>
    %287 = vector.broadcast %286 : vector<1x1x256xf32> to vector<2x64x256xf32>
    %288 = arith.mulf %284, %287 : vector<2x64x256xf32>
    %c0_157 = arith.constant 0 : index
    %c0_158 = arith.constant 0 : index
    %289 = vector.load %arg24[%c0_157, %c0_158] : memref<1x256xf32, #tpu.memory_space<vmem>>, vector<1x256xf32>
    %290 = vector.shape_cast %289 : vector<1x256xf32> to vector<1x1x256xf32>
    %291 = vector.broadcast %290 : vector<1x1x256xf32> to vector<2x64x256xf32>
    %292 = arith.addf %288, %291 : vector<2x64x256xf32>
    %293 = vector.shape_cast %239 : vector<128x256xf32> to vector<2x64x256xf32>
    %294 = arith.addf %292, %293 : vector<2x64x256xf32>
    %cst_159 = arith.constant 0.000000e+00 : f32
    %295 = vector.broadcast %cst_159 : f32 to vector<2x64x256xf32>
    %296 = arith.maximumf %294, %295 : vector<2x64x256xf32>
    %297 = vector.shape_cast %296 : vector<2x64x256xf32> to vector<2x16x4x256xf32>
    %cst_160 = arith.constant dense<0xFF800000> : vector<2x16x256xf32>
    %298 = vector.multi_reduction <maximumf>, %297, %cst_160 [2] : vector<2x16x4x256xf32> to vector<2x16x256xf32>
    %299 = vector.shape_cast %298 : vector<2x16x256xf32> to vector<2x4096xf32>
    %c6_i32_161 = arith.constant 6 : i32
    %300 = tpu.memref_slice %arg38[%c6_i32_161] : memref<7x!tpu.dma_semaphore, #tpu.memory_space<semaphore_mem>> -> memref<1x!tpu.dma_semaphore, #tpu.memory_space<semaphore_mem>>
    %301 = tpu.memref_squeeze %300 : memref<1x!tpu.dma_semaphore, #tpu.memory_space<semaphore_mem>> -> memref<!tpu.dma_semaphore, #tpu.memory_space<semaphore_mem>>
    tpu.wait_dma2 semaphore(%301 : memref<!tpu.dma_semaphore, #tpu.memory_space<semaphore_mem>>) src(%arg26 : memref<4096x256xbf16, #tpu.memory_space<any>>) dst(%arg37 : memref<4096x256xbf16, #tpu.memory_space<vmem>>)
    %302 = arith.truncf %299 : vector<2x4096xf32> to vector<2x4096xbf16>
    %c0_162 = arith.constant 0 : index
    %c0_163 = arith.constant 0 : index
    %303 = vector.load %arg37[%c0_162, %c0_163] : memref<4096x256xbf16, #tpu.memory_space<vmem>>, vector<4096x256xbf16>
    %cst_164 = arith.constant dense<0.000000e+00> : vector<2x256xf32>
    %304 = tpu.matmul %302, %303, %cst_164 {dimension_numbers = #tpu.dot_dimension_numbers<[1], [0], [0], [1], [0, 0, 1, 1], [], []>} : vector<2x4096xbf16>, vector<4096x256xbf16>, vector<2x256xf32> -> vector<2x256xf32>
    %c0_165 = arith.constant 0 : index
    %c0_166 = arith.constant 0 : index
    %305 = vector.load %arg27[%c0_165, %c0_166] : memref<1x256xf32, #tpu.memory_space<vmem>>, vector<1x256xf32>
    %306 = vector.broadcast %305 : vector<1x256xf32> to vector<2x256xf32>
    %307 = arith.addf %304, %306 : vector<2x256xf32>
    %cst_167 = arith.constant 0.000000e+00 : f32
    %308 = vector.broadcast %cst_167 : f32 to vector<2x256xf32>
    %309 = arith.maximumf %307, %308 : vector<2x256xf32>
    %310 = arith.truncf %309 : vector<2x256xf32> to vector<2x256xbf16>
    %c0_168 = arith.constant 0 : index
    %c0_169 = arith.constant 0 : index
    %311 = vector.load %arg28[%c0_168, %c0_169] : memref<256x3xbf16, #tpu.memory_space<vmem>>, vector<256x3xbf16>
    %cst_170 = arith.constant dense<0.000000e+00> : vector<2x3xf32>
    %312 = tpu.matmul %310, %311, %cst_170 {dimension_numbers = #tpu.dot_dimension_numbers<[1], [0], [0], [1], [0, 0, 1, 1], [], []>} : vector<2x256xbf16>, vector<256x3xbf16>, vector<2x3xf32> -> vector<2x3xf32>
    %c0_171 = arith.constant 0 : index
    %c0_172 = arith.constant 0 : index
    %313 = vector.load %arg29[%c0_171, %c0_172] : memref<1x3xf32, #tpu.memory_space<vmem>>, vector<1x3xf32>
    %314 = vector.broadcast %313 : vector<1x3xf32> to vector<2x3xf32>
    %315 = arith.addf %312, %314 : vector<2x3xf32>
    %c0_173 = arith.constant 0 : index
    %c0_174 = arith.constant 0 : index
    %316 = vector.load %arg30[%c0_173, %c0_174] : memref<2x3xf32, #tpu.memory_space<vmem>>, vector<2x3xf32>
    tpu.vector_store %arg30[%c0_173, %c0_174], %315 {strides = array<i32>} : memref<2x3xf32, #tpu.memory_space<vmem>>, vector<2x3xf32>,
    return
  }
  func.func @transform_0(%arg0: i32) -> (i32, i32, i32) {
    %c0_i32 = arith.constant 0 : i32
    %c0_i32_0 = arith.constant 0 : i32
    %c0_i32_1 = arith.constant 0 : i32
    %c0_i32_2 = arith.constant 0 : i32
    return %c0_i32, %c0_i32_0, %c0_i32_1 : i32, i32, i32
  }
  func.func @transform_1(%arg0: i32) -> (i32, i32) {
    %c0_i32 = arith.constant 0 : i32
    %c0_i32_0 = arith.constant 0 : i32
    %c0_i32_1 = arith.constant 0 : i32
    return %c0_i32, %c0_i32_0 : i32, i32
  }
  func.func @transform_2(%arg0: i32) -> (i32, i32, i32) {
    %c0_i32 = arith.constant 0 : i32
    %c0_i32_0 = arith.constant 0 : i32
    %c0_i32_1 = arith.constant 0 : i32
    %c0_i32_2 = arith.constant 0 : i32
    return %c0_i32, %c0_i32_0, %c0_i32_1 : i32, i32, i32
  }
  func.func @transform_3(%arg0: i32) -> (i32, i32, i32) {
    %c0_i32 = arith.constant 0 : i32
    %c0_i32_0 = arith.constant 0 : i32
    %c0_i32_1 = arith.constant 0 : i32
    %c0_i32_2 = arith.constant 0 : i32
    return %c0_i32, %c0_i32_0, %c0_i32_1 : i32, i32, i32
  }
  func.func @transform_4(%arg0: i32) -> (i32, i32) {
    %c0_i32 = arith.constant 0 : i32
    %c0_i32_0 = arith.constant 0 : i32
    %c0_i32_1 = arith.constant 0 : i32
    return %c0_i32, %c0_i32_0 : i32, i32
  }
  func.func @transform_5(%arg0: i32) -> (i32, i32) {
    %c0_i32 = arith.constant 0 : i32
    %c0_i32_0 = arith.constant 0 : i32
    %c0_i32_1 = arith.constant 0 : i32
    return %c0_i32, %c0_i32_0 : i32, i32
  }
  func.func @transform_6(%arg0: i32) -> (i32, i32) {
    %c0_i32 = arith.constant 0 : i32
    %c0_i32_0 = arith.constant 0 : i32
    %c0_i32_1 = arith.constant 0 : i32
    return %c0_i32, %c0_i32_0 : i32, i32
  }
  func.func @transform_7(%arg0: i32) -> (i32, i32) {
    %c0_i32 = arith.constant 0 : i32
    %c0_i32_0 = arith.constant 0 : i32
    %c0_i32_1 = arith.constant 0 : i32
    return %c0_i32, %c0_i32_0 : i32, i32
  }
  func.func @transform_8(%arg0: i32) -> (i32, i32) {
    %c0_i32 = arith.constant 0 : i32
    %c0_i32_0 = arith.constant 0 : i32
    %c0_i32_1 = arith.constant 0 : i32
    return %c0_i32, %c0_i32_0 : i32, i32
  }
  func.func @transform_12(%arg0: i32) -> (i32, i32) {
    %c0_i32 = arith.constant 0 : i32
    %c0_i32_0 = arith.constant 0 : i32
    %c0_i32_1 = arith.constant 0 : i32
    return %c0_i32, %c0_i32_0 : i32, i32
  }
  func.func @transform_13(%arg0: i32) -> (i32, i32) {
    %c0_i32 = arith.constant 0 : i32
    %c0_i32_0 = arith.constant 0 : i32
    %c0_i32_1 = arith.constant 0 : i32
    return %c0_i32, %c0_i32_0 : i32, i32
  }
  func.func @transform_14(%arg0: i32) -> (i32, i32) {
    %c0_i32 = arith.constant 0 : i32
    %c0_i32_0 = arith.constant 0 : i32
    %c0_i32_1 = arith.constant 0 : i32
    return %c0_i32, %c0_i32_0 : i32, i32
  }
  func.func @transform_15(%arg0: i32) -> (i32, i32) {
    %c0_i32 = arith.constant 0 : i32
    %c0_i32_0 = arith.constant 0 : i32
    %c0_i32_1 = arith.constant 0 : i32
    return %c0_i32, %c0_i32_0 : i32, i32
  }
  func.func @transform_16(%arg0: i32) -> (i32, i32) {
    %c0_i32 = arith.constant 0 : i32
    %c0_i32_0 = arith.constant 0 : i32
    %c0_i32_1 = arith.constant 0 : i32
    return %c0_i32, %c0_i32_0 : i32, i32
  }
  func.func @transform_20(%arg0: i32) -> (i32, i32) {
    %c0_i32 = arith.constant 0 : i32
    %c0_i32_0 = arith.constant 0 : i32
    %c0_i32_1 = arith.constant 0 : i32
    return %c0_i32, %c0_i32_0 : i32, i32
  }
  func.func @transform_21(%arg0: i32) -> (i32, i32) {
    %c0_i32 = arith.constant 0 : i32
    %c0_i32_0 = arith.constant 0 : i32
    %c0_i32_1 = arith.constant 0 : i32
    return %c0_i32, %c0_i32_0 : i32, i32
  }
  func.func @transform_22(%arg0: i32) -> (i32, i32) {
    %c0_i32 = arith.constant 0 : i32
    %c0_i32_0 = arith.constant 0 : i32
    %c0_i32_1 = arith.constant 0 : i32
    return %c0_i32, %c0_i32_0 : i32, i32
  }
  func.func @transform_23(%arg0: i32) -> (i32, i32) {
    %c0_i32 = arith.constant 0 : i32
    %c0_i32_0 = arith.constant 0 : i32
    %c0_i32_1 = arith.constant 0 : i32
    return %c0_i32, %c0_i32_0 : i32, i32
  }
  func.func @transform_24(%arg0: i32) -> (i32, i32) {
    %c0_i32 = arith.constant 0 : i32
    %c0_i32_0 = arith.constant 0 : i32
    %c0_i32_1 = arith.constant 0 : i32
    return %c0_i32, %c0_i32_0 : i32, i32
  }
  func.func @transform_26(%arg0: i32) -> (i32, i32) {
    %c0_i32 = arith.constant 0 : i32
    %c0_i32_0 = arith.constant 0 : i32
    %c0_i32_1 = arith.constant 0 : i32
    return %c0_i32, %c0_i32_0 : i32, i32
  }
  func.func @transform_27(%arg0: i32) -> (i32, i32) {
    %c0_i32 = arith.constant 0 : i32
    %c0_i32_0 = arith.constant 0 : i32
    %c0_i32_1 = arith.constant 0 : i32
    return %c0_i32, %c0_i32_0 : i32, i32
  }
  func.func @transform_28(%arg0: i32) -> (i32, i32) {
    %c0_i32 = arith.constant 0 : i32
    %c0_i32_0 = arith.constant 0 : i32
    %c0_i32_1 = arith.constant 0 : i32
    return %c0_i32, %c0_i32_0 : i32, i32
  }
  func.func @transform_29(%arg0: i32) -> (i32, i32) {
    %c0_i32 = arith.constant 0 : i32
    %c0_i32_0 = arith.constant 0 : i32
    %c0_i32_1 = arith.constant 0 : i32
    return %c0_i32, %c0_i32_0 : i32, i32
  }
}

</mosaic_0001>

<llo_original>
// kernel: tpu_custom_call.1
$region0: #{tpu_custom_call.1}
  #allocation0 [shape = 'u32[]', space=smem, size = 0x4, offset = 0x4, fixed_abs, tag = 'smem constant byte address 0x4 - core index']
  #allocation1 [shape = 'u32[144,128]{1,0:T(1,128)}', space=vmem, size = 0x12000, scoped, tag = 'internal scratch']
  #allocation2 [shape = 'bf16[128,256]{1,0:T(16,128)(2,1)}', space=vmem, size = 0x10000, scoped, tag = 'scratch operand']
  #allocation3 [shape = 'bf16[4,128,128]{2,1,0:T(16,128)(2,1)}', space=vmem, size = 0x20000, scoped, tag = 'scratch operand']
  #allocation4 [shape = 'bf16[5,128,128]{2,1,0:T(16,128)(2,1)}', space=vmem, size = 0x28000, scoped, tag = 'scratch operand']
  #allocation5 [shape = 'bf16[128,512]{1,0:T(16,128)(2,1)}', space=vmem, size = 0x20000, scoped, tag = 'scratch operand']
  #allocation6 [shape = 'bf16[2,128,256]{2,1,0:T(16,128)(2,1)}', space=vmem, size = 0x20000, scoped, tag = 'scratch operand']
  #allocation7 [shape = 'bf16[3,256,256]{2,1,0:T(16,128)(2,1)}', space=vmem, size = 0x60000, scoped, tag = 'scratch operand']
  #allocation8 [shape = 'bf16[4096,256]{1,0:T(16,128)(2,1)}', space=vmem, size = 0x200000, scoped, tag = 'scratch operand']
  #allocation9 [shape = 's32[7]{0}', space=sflag, size = 0x1c, scoped, tag = 'scratch operand']
  #allocation44 [shape = 's32[]', space=sflag, size = 0x4, offset = 0, fixed_abs, tag = 'sflag constant byte address 0x0 - dummy sync flag']
  #allocation46 [shape = 's32[]', space=sflag, size = 0x4, offset = 0, fixed_abs, tag = 'sflag constant byte address 0x0 - dummy sync flag']
  #allocation47 [shape = 's32[]', space=sflag, size = 0x4, offset = 0, fixed_abs, tag = 'sflag constant byte address 0x0 - dummy sync flag']
  #allocation48 [shape = 'u32[]', space=smem, size = 0x4, offset = 0x44, fixed_abs, tag = 'smem constant byte address 0x44 - assertion arg 0']
  #allocation49 [shape = 'u32[]', space=smem, size = 0x4, offset = 0x48, fixed_abs, tag = 'smem constant byte address 0x48 - assertion arg 1']
  #allocation50 [shape = 's32[]', space=sflag, size = 0x4, offset = 0, fixed_abs, tag = 'sflag constant byte address 0x0 - dummy sync flag']
  #allocation51 [shape = 's32[]', space=sflag, size = 0x4, offset = 0, fixed_abs, tag = 'sflag constant byte address 0x0 - dummy sync flag']
  #allocation52 [shape = 's32[]', space=sflag, size = 0x4, offset = 0, fixed_abs, tag = 'sflag constant byte address 0x0 - dummy sync flag']
  #allocation54 [shape = 's32[]', space=sflag, size = 0x4, offset = 0, fixed_abs, tag = 'sflag constant byte address 0x0 - dummy sync flag']
  #allocation56 [shape = 's32[]', space=sflag, size = 0x4, offset = 0, fixed_abs, tag = 'sflag constant byte address 0x0 - dummy sync flag']
  #allocation58 [shape = 's32[]', space=sflag, size = 0x4, offset = 0, fixed_abs, tag = 'sflag constant byte address 0x0 - dummy sync flag']
  %s0 = inlined_call_operand.smem [shape: u32[30], index: -1, kind: input, shape index: {}]
  %s1 = sld [smem:[%s0]]
  %s2 = scalar_lea.smem %s0, 1
  %s3 = sld [smem:[%s2]]
  %s4 = scalar_lea.smem %s0, 2
  %s5 = sld [smem:[%s4]]
  %s6 = scalar_lea.smem %s0, 3
  %s7 = sld [smem:[%s6]]
  %s8 = scalar_lea.smem %s0, 4
  %s9 = sld [smem:[%s8]]
  %s10 = scalar_lea.smem %s0, 5
  %s11 = sld [smem:[%s10]]
  %s12 = scalar_lea.smem %s0, 6
  %s13 = sld [smem:[%s12]]
  %s14 = scalar_lea.smem %s0, 7
  %s15 = sld [smem:[%s14]]
  %s16 = scalar_lea.smem %s0, 8
  %s17 = sld [smem:[%s16]]
  %s18 = scalar_lea.smem %s0, 9
  %s19 = sld [smem:[%s18]]
  %s20 = scalar_lea.smem %s0, 10
  %s21 = sld [smem:[%s20]]
  %s22 = scalar_lea.smem %s0, 11
  %s23 = sld [smem:[%s22]]
  %s24 = scalar_lea.smem %s0, 12
  %s25 = sld [smem:[%s24]]
  %s26 = scalar_lea.smem %s0, 13
  %s27 = sld [smem:[%s26]]
  %s28 = scalar_lea.smem %s0, 14
  %s29 = sld [smem:[%s28]]
  %s30 = scalar_lea.smem %s0, 15
  %s31 = sld [smem:[%s30]]
  %s32 = scalar_lea.smem %s0, 16
  %s33 = sld [smem:[%s32]]
  %s34 = scalar_lea.smem %s0, 17
  %s35 = sld [smem:[%s34]]
  %s36 = scalar_lea.smem %s0, 18
  %s37 = sld [smem:[%s36]]
  %s38 = scalar_lea.smem %s0, 19
  %s39 = sld [smem:[%s38]]
  %s40 = scalar_lea.smem %s0, 20
  %s41 = sld [smem:[%s40]]
  %s42 = scalar_lea.smem %s0, 21
  %s43 = sld [smem:[%s42]]
  %s44 = scalar_lea.smem %s0, 22
  %s45 = sld [smem:[%s44]]
  %s46 = scalar_lea.smem %s0, 23
  %s47 = sld [smem:[%s46]]
  %s48 = scalar_lea.smem %s0, 24
  %s49 = sld [smem:[%s48]]
  %s50 = scalar_lea.smem %s0, 25
  %s51 = sld [smem:[%s50]]
  %s52 = scalar_lea.smem %s0, 26
  %s53 = sld [smem:[%s52]]
  %s54 = scalar_lea.smem %s0, 27
  %s55 = sld [smem:[%s54]]
  %s56 = scalar_lea.smem %s0, 28
  %s57 = sld [smem:[%s56]]
  %s58 = scalar_lea.smem %s0, 29
  %s59 = sld [smem:[%s58]]
  %s60 = sld [smem:[#allocation0]]
  $region190: #{tpu_custom_call.1} parent=0
    _
  %s62 = ssub.s32 1, %s60
  %s63 = scalar_select 0, %s62, %s60
  $region1: #{tpu_custom_call.1} parent=0
    #allocation10 [shape = 'u8[65536]{0}', space=vmem, size = 0x10000, scoped, tag = 'input window, operand 0, single buffered']
    #allocation11 [shape = 's32[1]{0}', space=sflag, size = 0x4, scoped, tag = 'scoped memory for tpu_custom_call.1']
    #allocation12 [shape = 's32[1]{0}', space=sflag, size = 0x4, scoped, tag = 'scoped memory for tpu_custom_call.1']
    #allocation13 [shape = 'u8[65536]{0}', space=vmem, size = 0x10000, scoped, tag = 'input window, operand 1, single buffered']
    #allocation14 [shape = 's32[1]{0}', space=sflag, size = 0x4, scoped, tag = 'scoped memory for tpu_custom_call.1']
    #allocation15 [shape = 'u8[196608]{0}', space=vmem, size = 0x30000, scoped, tag = 'input window, operand 2, single buffered']
    #allocation16 [shape = 'u8[229376]{0}', space=vmem, size = 0x38000, scoped, tag = 'input window, operand 3, single buffered']
    #allocation17 [shape = 's32[1]{0}', space=sflag, size = 0x4, scoped, tag = 'scoped memory for tpu_custom_call.1']
    #allocation18 [shape = 'u8[512]{0}', space=vmem, size = 0x400, scoped, tag = 'input window, operand 4, single buffered']
    #allocation19 [shape = 'u8[512]{0}', space=vmem, size = 0x400, scoped, tag = 'input window, operand 5, single buffered']
    #allocation20 [shape = 's32[1]{0}', space=sflag, size = 0x4, scoped, tag = 'scoped memory for tpu_custom_call.1']
    #allocation21 [shape = 'u8[512]{0}', space=vmem, size = 0x400, scoped, tag = 'input window, operand 6, single buffered']
    #allocation22 [shape = 'u8[512]{0}', space=vmem, size = 0x400, scoped, tag = 'input window, operand 7, single buffered']
    #allocation23 [shape = 's32[1]{0}', space=sflag, size = 0x4, scoped, tag = 'scoped memory for tpu_custom_call.1']
    #allocation24 [shape = 'u8[512]{0}', space=vmem, size = 0x400, scoped, tag = 'input window, operand 8, single buffered']
    #allocation25 [shape = 'u8[512]{0}', space=vmem, size = 0x400, scoped, tag = 'input window, operand 12, single buffered']
    #allocation26 [shape = 's32[1]{0}', space=sflag, size = 0x4, scoped, tag = 'scoped memory for tpu_custom_call.1']
    #allocation27 [shape = 'u8[512]{0}', space=vmem, size = 0x400, scoped, tag = 'input window, operand 13, single buffered']
    #allocation28 [shape = 'u8[512]{0}', space=vmem, size = 0x400, scoped, tag = 'input window, operand 14, single buffered']
    #allocation29 [shape = 's32[1]{0}', space=sflag, size = 0x4, scoped, tag = 'scoped memory for tpu_custom_call.1']
    #allocation30 [shape = 'u8[512]{0}', space=vmem, size = 0x400, scoped, tag = 'input window, operand 15, single buffered']
    #allocation31 [shape = 'u8[512]{0}', space=vmem, size = 0x400, scoped, tag = 'input window, operand 16, single buffered']
    #allocation32 [shape = 's32[1]{0}', space=sflag, size = 0x4, scoped, tag = 'scoped memory for tpu_custom_call.1']
    #allocation33 [shape = 'u8[1024]{0}', space=vmem, size = 0x400, scoped, tag = 'input window, operand 20, single buffered']
    #allocation34 [shape = 'u8[1024]{0}', space=vmem, size = 0x400, scoped, tag = 'input window, operand 21, single buffered']
    #allocation35 [shape = 's32[1]{0}', space=sflag, size = 0x4, scoped, tag = 'scoped memory for tpu_custom_call.1']
    #allocation36 [shape = 'u8[1024]{0}', space=vmem, size = 0x400, scoped, tag = 'input window, operand 22, single buffered']
    #allocation37 [shape = 'u8[1024]{0}', space=vmem, size = 0x400, scoped, tag = 'input window, operand 23, single buffered']
    #allocation38 [shape = 's32[1]{0}', space=sflag, size = 0x4, scoped, tag = 'scoped memory for tpu_custom_call.1']
    #allocation39 [shape = 'u8[1024]{0}', space=vmem, size = 0x400, scoped, tag = 'input window, operand 24, single buffered']
    #allocation40 [shape = 'u8[1024]{0}', space=vmem, size = 0x400, scoped, tag = 'input window, operand 26, single buffered']
    #allocation41 [shape = 's32[1]{0}', space=sflag, size = 0x4, scoped, tag = 'scoped memory for tpu_custom_call.1']
    #allocation42 [shape = 'u8[512]{0}', space=vmem, size = 0x400, scoped, tag = 'input window, operand 28, single buffered']
    #allocation43 [shape = 'u8[1024]{0}', space=vmem, size = 0x400, scoped, tag = 'output window, operand 0, single buffered']
    #allocation45 [shape = 'u32[9]{0}', space=smem, size = 0x24, scoped, tag = 'DMA stride descriptor']
    #allocation53 [shape = 'u32[9]{0}', space=smem, size = 0x24, scoped, tag = 'DMA stride descriptor']
    #allocation55 [shape = 'u32[9]{0}', space=smem, size = 0x24, scoped, tag = 'DMA stride descriptor']
    #allocation57 [shape = 'u32[9]{0}', space=smem, size = 0x24, scoped, tag = 'DMA stride descriptor']
    #allocation59 [shape = 'u32[9]{0}', space=smem, size = 0x24, scoped, tag = 'DMA stride descriptor']
    %64 = vsyncpa [#allocation11], 0
    %65 = vsyncpa [#allocation14], 0
    %66 = vsyncpa [#allocation17], 0
    %67 = vsyncpa [#allocation20], 0
    %68 = vsyncpa [#allocation23], 0
    %69 = vsyncpa [#allocation26], 0
    %70 = vsyncpa [#allocation29], 0
    %71 = vsyncpa [#allocation32], 0
    %72 = vsyncpa [#allocation35], 0
    %73 = vsyncpa [#allocation38], 0
    %74 = vsyncpa [#allocation41], 0
    %75 = vsyncpa [#allocation12], 0
    // Predicated region
    $region2: #{tpu_custom_call.1} parent=1 // pred_check
      _
    $region3: #{tpu_custom_call.1} parent=1 // pred_check_branch
      %77 = sbr.rel (0) target = $region5
    $region4: #{tpu_custom_call.1} parent=1 // pred_region
      %s79 = ssub.s32 2048, 2048
      %80 = vsyncadd [#allocation11], %s79
      %s81 = sshll.u32 [#allocation10], 4
      %s82 = int_to_ptr.vmem [resolvable:$true] %s81
      %87 = dma.hbm_to_vmem [thread:$0]  %s1, 2048, %s82, [#allocation11], 128, 128, 8
    $region5: #{tpu_custom_call.1} parent=1 // pred_fallthru
      _
    // Predicated region
    $region6: #{tpu_custom_call.1} parent=1 // pred_check
      _
    $region7: #{tpu_custom_call.1} parent=1 // pred_check_branch
      %89 = sbr.rel (0) target = $region9
    $region8: #{tpu_custom_call.1} parent=1 // pred_region
      %s91 = ssub.s32 2048, 2048
      %92 = vsyncadd [#allocation14], %s91
      %s93 = sshll.u32 [#allocation13], 4
      %s94 = int_to_ptr.vmem [resolvable:$true] %s93
      %99 = dma.hbm_to_vmem [thread:$0]  %s3, 2048, %s94, [#allocation14], 128, 128, 8
    $region9: #{tpu_custom_call.1} parent=1 // pred_fallthru
      _
    // Predicated region
    $region10: #{tpu_custom_call.1} parent=1 // pred_check
      _
    $region11: #{tpu_custom_call.1} parent=1 // pred_check_branch
      %101 = sbr.rel (0) target = $region13
    $region12: #{tpu_custom_call.1} parent=1 // pred_region
      %s103 = ssub.s32 6144, 6144
      %104 = vsyncadd [#allocation14], %s103
      %s105 = sshll.u32 [#allocation15], 4
      %s106 = int_to_ptr.vmem [resolvable:$true] %s105
      %111 = dma.hbm_to_vmem [thread:$0]  %s5, 6144, %s106, [#allocation14], 64, 64, 4
    $region13: #{tpu_custom_call.1} parent=1 // pred_fallthru
      _
    // Predicated region
    $region14: #{tpu_custom_call.1} parent=1 // pred_check
      _
    $region15: #{tpu_custom_call.1} parent=1 // pred_check_branch
      %113 = sbr.rel (0) target = $region17
    $region16: #{tpu_custom_call.1} parent=1 // pred_region
      %s115 = ssub.s32 7168, 7168
      %116 = vsyncadd [#allocation17], %s115
      %s117 = sshll.u32 [#allocation16], 4
      %s118 = int_to_ptr.vmem [resolvable:$true] %s117
      %123 = dma.hbm_to_vmem [thread:$0]  %s7, 7168, %s118, [#allocation17], 64, 64, 4
    $region17: #{tpu_custom_call.1} parent=1 // pred_fallthru
      _
    // Predicated region
    $region18: #{tpu_custom_call.1} parent=1 // pred_check
      _
    $region19: #{tpu_custom_call.1} parent=1 // pred_check_branch
      %125 = sbr.rel (0) target = $region21
    $region20: #{tpu_custom_call.1} parent=1 // pred_region
      %s127 = ssub.s32 16, 16
      %128 = vsyncadd [#allocation17], %s127
      %s130 = sshll.u32 [#allocation18], 4
      %s131 = int_to_ptr.vmem [resolvable:$true] %s130
      %133 = dma.hbm_to_vmem [thread:$0]  %s9, 16, %s131, [#allocation17]
    $region21: #{tpu_custom_call.1} parent=1 // pred_fallthru
      _
    // Predicated region
    $region22: #{tpu_custom_call.1} parent=1 // pred_check
      _
    $region23: #{tpu_custom_call.1} parent=1 // pred_check_branch
      %135 = sbr.rel (0) target = $region25
    $region24: #{tpu_custom_call.1} parent=1 // pred_region
      %s137 = ssub.s32 16, 16
      %138 = vsyncadd [#allocation20], %s137
      %s140 = sshll.u32 [#allocation19], 4
      %s141 = int_to_ptr.vmem [resolvable:$true] %s140
      %143 = dma.hbm_to_vmem [thread:$0]  %s11, 16, %s141, [#allocation20]
    $region25: #{tpu_custom_call.1} parent=1 // pred_fallthru
      _
    // Predicated region
    $region26: #{tpu_custom_call.1} parent=1 // pred_check
      _
    $region27: #{tpu_custom_call.1} parent=1 // pred_check_branch
      %145 = sbr.rel (0) target = $region29
    $region28: #{tpu_custom_call.1} parent=1 // pred_region
      %s147 = ssub.s32 16, 16
      %148 = vsyncadd [#allocation20], %s147
      %s150 = sshll.u32 [#allocation21], 4
      %s151 = int_to_ptr.vmem [resolvable:$true] %s150
      %153 = dma.hbm_to_vmem [thread:$0]  %s13, 16, %s151, [#allocation20]
    $region29: #{tpu_custom_call.1} parent=1 // pred_fallthru
      _
    // Predicated region
    $region30: #{tpu_custom_call.1} parent=1 // pred_check
      _
    $region31: #{tpu_custom_call.1} parent=1 // pred_check_branch
      %155 = sbr.rel (0) target = $region33
    $region32: #{tpu_custom_call.1} parent=1 // pred_region
      %s157 = ssub.s32 16, 16
      %158 = vsyncadd [#allocation23], %s157
      %s160 = sshll.u32 [#allocation22], 4
      %s161 = int_to_ptr.vmem [resolvable:$true] %s160
      %163 = dma.hbm_to_vmem [thread:$0]  %s15, 16, %s161, [#allocation23]
    $region33: #{tpu_custom_call.1} parent=1 // pred_fallthru
      _
    // Predicated region
    $region34: #{tpu_custom_call.1} parent=1 // pred_check
      _
    $region35: #{tpu_custom_call.1} parent=1 // pred_check_branch
      %165 = sbr.rel (0) target = $region37
    $region36: #{tpu_custom_call.1} parent=1 // pred_region
      %s167 = ssub.s32 16, 16
      %168 = vsyncadd [#allocation23], %s167
      %s170 = sshll.u32 [#allocation24], 4
      %s171 = int_to_ptr.vmem [resolvable:$true] %s170
      %173 = dma.hbm_to_vmem [thread:$0]  %s17, 16, %s171, [#allocation23]
    $region37: #{tpu_custom_call.1} parent=1 // pred_fallthru
      _
    // Predicated region
    $region38: #{tpu_custom_call.1} parent=1 // pred_check
      _
    $region39: #{tpu_custom_call.1} parent=1 // pred_check_branch
      %175 = sbr.rel (0) target = $region41
    $region40: #{tpu_custom_call.1} parent=1 // pred_region
      %s177 = ssub.s32 16, 16
      %178 = vsyncadd [#allocation26], %s177
      %s180 = sshll.u32 [#allocation25], 4
      %s181 = int_to_ptr.vmem [resolvable:$true] %s180
      %183 = dma.hbm_to_vmem [thread:$0]  %s25, 16, %s181, [#allocation26]
    $region41: #{tpu_custom_call.1} parent=1 // pred_fallthru
      _
    // Predicated region
    $region42: #{tpu_custom_call.1} parent=1 // pred_check
      _
    $region43: #{tpu_custom_call.1} parent=1 // pred_check_branch
      %185 = sbr.rel (0) target = $region45
    $region44: #{tpu_custom_call.1} parent=1 // pred_region
      %s187 = ssub.s32 16, 16
      %188 = vsyncadd [#allocation26], %s187
      %s190 = sshll.u32 [#allocation27], 4
      %s191 = int_to_ptr.vmem [resolvable:$true] %s190
      %193 = dma.hbm_to_vmem [thread:$0]  %s27, 16, %s191, [#allocation26]
    $region45: #{tpu_custom_call.1} parent=1 // pred_fallthru
      _
    // Predicated region
    $region46: #{tpu_custom_call.1} parent=1 // pred_check
      _
    $region47: #{tpu_custom_call.1} parent=1 // pred_check_branch
      %195 = sbr.rel (0) target = $region49
    $region48: #{tpu_custom_call.1} parent=1 // pred_region
      %s197 = ssub.s32 16, 16
      %198 = vsyncadd [#allocation29], %s197
      %s200 = sshll.u32 [#allocation28], 4
      %s201 = int_to_ptr.vmem [resolvable:$true] %s200
      %203 = dma.hbm_to_vmem [thread:$0]  %s29, 16, %s201, [#allocation29]
    $region49: #{tpu_custom_call.1} parent=1 // pred_fallthru
      _
    // Predicated region
    $region50: #{tpu_custom_call.1} parent=1 // pred_check
      _
    $region51: #{tpu_custom_call.1} parent=1 // pred_check_branch
      %205 = sbr.rel (0) target = $region53
    $region52: #{tpu_custom_call.1} parent=1 // pred_region
      %s207 = ssub.s32 16, 16
      %208 = vsyncadd [#allocation29], %s207
      %s210 = sshll.u32 [#allocation30], 4
      %s211 = int_to_ptr.vmem [resolvable:$true] %s210
      %213 = dma.hbm_to_vmem [thread:$0]  %s31, 16, %s211, [#allocation29]
    $region53: #{tpu_custom_call.1} parent=1 // pred_fallthru
      _
    // Predicated region
    $region54: #{tpu_custom_call.1} parent=1 // pred_check
      _
    $region55: #{tpu_custom_call.1} parent=1 // pred_check_branch
      %215 = sbr.rel (0) target = $region57
    $region56: #{tpu_custom_call.1} parent=1 // pred_region
      %s217 = ssub.s32 16, 16
      %218 = vsyncadd [#allocation32], %s217
      %s220 = sshll.u32 [#allocation31], 4
      %s221 = int_to_ptr.vmem [resolvable:$true] %s220
      %223 = dma.hbm_to_vmem [thread:$0]  %s33, 16, %s221, [#allocation32]
    $region57: #{tpu_custom_call.1} parent=1 // pred_fallthru
      _
    // Predicated region
    $region58: #{tpu_custom_call.1} parent=1 // pred_check
      _
    $region59: #{tpu_custom_call.1} parent=1 // pred_check_branch
      %225 = sbr.rel (0) target = $region61
    $region60: #{tpu_custom_call.1} parent=1 // pred_region
      %s227 = ssub.s32 32, 32
      %228 = vsyncadd [#allocation32], %s227
      %s230 = sshll.u32 [#allocation33], 4
      %s231 = int_to_ptr.vmem [resolvable:$true] %s230
      %233 = dma.hbm_to_vmem [thread:$0]  %s41, 32, %s231, [#allocation32]
    $region61: #{tpu_custom_call.1} parent=1 // pred_fallthru
      _
    // Predicated region
    $region62: #{tpu_custom_call.1} parent=1 // pred_check
      _
    $region63: #{tpu_custom_call.1} parent=1 // pred_check_branch
      %235 = sbr.rel (0) target = $region65
    $region64: #{tpu_custom_call.1} parent=1 // pred_region
      %s237 = ssub.s32 32, 32
      %238 = vsyncadd [#allocation35], %s237
      %s240 = sshll.u32 [#allocation34], 4
      %s241 = int_to_ptr.vmem [resolvable:$true] %s240
      %243 = dma.hbm_to_vmem [thread:$0]  %s43, 32, %s241, [#allocation35]
    $region65: #{tpu_custom_call.1} parent=1 // pred_fallthru
      _
    // Predicated region
    $region66: #{tpu_custom_call.1} parent=1 // pred_check
      _
    $region67: #{tpu_custom_call.1} parent=1 // pred_check_branch
      %245 = sbr.rel (0) target = $region69
    $region68: #{tpu_custom_call.1} parent=1 // pred_region
      %s247 = ssub.s32 32, 32
      %248 = vsyncadd [#allocation35], %s247
      %s250 = sshll.u32 [#allocation36], 4
      %s251 = int_to_ptr.vmem [resolvable:$true] %s250
      %253 = dma.hbm_to_vmem [thread:$0]  %s45, 32, %s251, [#allocation35]
    $region69: #{tpu_custom_call.1} parent=1 // pred_fallthru
      _
    // Predicated region
    $region70: #{tpu_custom_call.1} parent=1 // pred_check
      _
    $region71: #{tpu_custom_call.1} parent=1 // pred_check_branch
      %255 = sbr.rel (0) target = $region73
    $region72: #{tpu_custom_call.1} parent=1 // pred_region
      %s257 = ssub.s32 32, 32
      %258 = vsyncadd [#allocation38], %s257
      %s260 = sshll.u32 [#allocation37], 4
      %s261 = int_to_ptr.vmem [resolvable:$true] %s260
      %263 = dma.hbm_to_vmem [thread:$0]  %s47, 32, %s261, [#allocation38]
    $region73: #{tpu_custom_call.1} parent=1 // pred_fallthru
      _
    // Predicated region
    $region74: #{tpu_custom_call.1} parent=1 // pred_check
      _
    $region75: #{tpu_custom_call.1} parent=1 // pred_check_branch
      %265 = sbr.rel (0) target = $region77
    $region76: #{tpu_custom_call.1} parent=1 // pred_region
      %s267 = ssub.s32 32, 32
      %268 = vsyncadd [#allocation38], %s267
      %s270 = sshll.u32 [#allocation39], 4
      %s271 = int_to_ptr.vmem [resolvable:$true] %s270
      %273 = dma.hbm_to_vmem [thread:$0]  %s49, 32, %s271, [#allocation38]
    $region77: #{tpu_custom_call.1} parent=1 // pred_fallthru
      _
    // Predicated region
    $region78: #{tpu_custom_call.1} parent=1 // pred_check
      _
    $region79: #{tpu_custom_call.1} parent=1 // pred_check_branch
      %275 = sbr.rel (0) target = $region81
    $region80: #{tpu_custom_call.1} parent=1 // pred_region
      %s277 = ssub.s32 32, 32
      %278 = vsyncadd [#allocation41], %s277
      %s280 = sshll.u32 [#allocation40], 4
      %s281 = int_to_ptr.vmem [resolvable:$true] %s280
      %283 = dma.hbm_to_vmem [thread:$0]  %s53, 32, %s281, [#allocation41]
    $region81: #{tpu_custom_call.1} parent=1 // pred_fallthru
      _
    // Predicated region
    $region82: #{tpu_custom_call.1} parent=1 // pred_check
      _
    $region83: #{tpu_custom_call.1} parent=1 // pred_check_branch
      %285 = sbr.rel (0) target = $region85
    $region84: #{tpu_custom_call.1} parent=1 // pred_region
      _
    $region85: #{tpu_custom_call.1} parent=1 // pred_fallthru
      _
    // Predicated region
    $region86: #{tpu_custom_call.1} parent=1 // pred_check
      _
    $region87: #{tpu_custom_call.1} parent=1 // pred_check_branch
      %287 = sbr.rel (0) target = $region89
    $region88: #{tpu_custom_call.1} parent=1 // pred_region
      %s289 = ssub.s32 16, 16
      %290 = vsyncadd [#allocation41], %s289
      %s292 = sshll.u32 [#allocation42], 4
      %s293 = int_to_ptr.vmem [resolvable:$true] %s292
      %295 = dma.hbm_to_vmem [thread:$0]  %s57, 16, %s293, [#allocation41]
    $region89: #{tpu_custom_call.1} parent=1 // pred_fallthru
      _
    // Predicated region
    $region90: #{tpu_custom_call.1} parent=1 // pred_check
      _
    $region91: #{tpu_custom_call.1} parent=1 // pred_check_branch
      %297 = sbr.rel (0) target = $region93
    $region92: #{tpu_custom_call.1} parent=1 // pred_region
      %298 = dma.done [#allocation11], 2048
    $region93: #{tpu_custom_call.1} parent=1 // pred_fallthru
      _
    // Predicated region
    $region94: #{tpu_custom_call.1} parent=1 // pred_check
      _
    $region95: #{tpu_custom_call.1} parent=1 // pred_check_branch
      %300 = sbr.rel (0) target = $region97
    $region96: #{tpu_custom_call.1} parent=1 // pred_region
      %301 = dma.done [#allocation14], 2048
    $region97: #{tpu_custom_call.1} parent=1 // pred_fallthru
      _
    // Predicated region
    $region98: #{tpu_custom_call.1} parent=1 // pred_check
      _
    $region99: #{tpu_custom_call.1} parent=1 // pred_check_branch
      %303 = sbr.rel (0) target = $region101
    $region100: #{tpu_custom_call.1} parent=1 // pred_region
      %304 = dma.done [#allocation14], 6144
    $region101: #{tpu_custom_call.1} parent=1 // pred_fallthru
      _
    // Predicated region
    $region102: #{tpu_custom_call.1} parent=1 // pred_check
      _
    $region103: #{tpu_custom_call.1} parent=1 // pred_check_branch
      %306 = sbr.rel (0) target = $region105
    $region104: #{tpu_custom_call.1} parent=1 // pred_region
      %307 = dma.done [#allocation17], 7168
    $region105: #{tpu_custom_call.1} parent=1 // pred_fallthru
      _
    // Predicated region
    $region106: #{tpu_custom_call.1} parent=1 // pred_check
      _
    $region107: #{tpu_custom_call.1} parent=1 // pred_check_branch
      %309 = sbr.rel (0) target = $region109
    $region108: #{tpu_custom_call.1} parent=1 // pred_region
      %310 = dma.done [#allocation17], 16
    $region109: #{tpu_custom_call.1} parent=1 // pred_fallthru
      _
    // Predicated region
    $region110: #{tpu_custom_call.1} parent=1 // pred_check
      _
    $region111: #{tpu_custom_call.1} parent=1 // pred_check_branch
      %312 = sbr.rel (0) target = $region113
    $region112: #{tpu_custom_call.1} parent=1 // pred_region
      %313 = dma.done [#allocation20], 16
    $region113: #{tpu_custom_call.1} parent=1 // pred_fallthru
      _
    // Predicated region
    $region114: #{tpu_custom_call.1} parent=1 // pred_check
      _
    $region115: #{tpu_custom_call.1} parent=1 // pred_check_branch
      %315 = sbr.rel (0) target = $region117
    $region116: #{tpu_custom_call.1} parent=1 // pred_region
      %316 = dma.done [#allocation20], 16
    $region117: #{tpu_custom_call.1} parent=1 // pred_fallthru
      _
    // Predicated region
    $region118: #{tpu_custom_call.1} parent=1 // pred_check
      _
    $region119: #{tpu_custom_call.1} parent=1 // pred_check_branch
      %318 = sbr.rel (0) target = $region121
    $region120: #{tpu_custom_call.1} parent=1 // pred_region
      %319 = dma.done [#allocation23], 16
    $region121: #{tpu_custom_call.1} parent=1 // pred_fallthru
      _
    // Predicated region
    $region122: #{tpu_custom_call.1} parent=1 // pred_check
      _
    $region123: #{tpu_custom_call.1} parent=1 // pred_check_branch
      %321 = sbr.rel (0) target = $region125
    $region124: #{tpu_custom_call.1} parent=1 // pred_region
      %322 = dma.done [#allocation23], 16
    $region125: #{tpu_custom_call.1} parent=1 // pred_fallthru
      _
    // Predicated region
    $region126: #{tpu_custom_call.1} parent=1 // pred_check
      _
    $region127: #{tpu_custom_call.1} parent=1 // pred_check_branch
      %324 = sbr.rel (0) target = $region129
    $region128: #{tpu_custom_call.1} parent=1 // pred_region
      %325 = dma.done [#allocation26], 16
    $region129: #{tpu_custom_call.1} parent=1 // pred_fallthru
      _
    // Predicated region
    $region130: #{tpu_custom_call.1} parent=1 // pred_check
      _
    $region131: #{tpu_custom_call.1} parent=1 // pred_check_branch
      %327 = sbr.rel (0) target = $region133
    $region132: #{tpu_custom_call.1} parent=1 // pred_region
      %328 = dma.done [#allocation26], 16
    $region133: #{tpu_custom_call.1} parent=1 // pred_fallthru
      _
    // Predicated region
    $region134: #{tpu_custom_call.1} parent=1 // pred_check
      _
    $region135: #{tpu_custom_call.1} parent=1 // pred_check_branch
      %330 = sbr.rel (0) target = $region137
    $region136: #{tpu_custom_call.1} parent=1 // pred_region
      %331 = dma.done [#allocation29], 16
    $region137: #{tpu_custom_call.1} parent=1 // pred_fallthru
      _
    // Predicated region
    $region138: #{tpu_custom_call.1} parent=1 // pred_check
      _
    $region139: #{tpu_custom_call.1} parent=1 // pred_check_branch
      %333 = sbr.rel (0) target = $region141
    $region140: #{tpu_custom_call.1} parent=1 // pred_region
      %334 = dma.done [#allocation29], 16
    $region141: #{tpu_custom_call.1} parent=1 // pred_fallthru
      _
    // Predicated region
    $region142: #{tpu_custom_call.1} parent=1 // pred_check
      _
    $region143: #{tpu_custom_call.1} parent=1 // pred_check_branch
      %336 = sbr.rel (0) target = $region145
    $region144: #{tpu_custom_call.1} parent=1 // pred_region
      %337 = dma.done [#allocation32], 16
    $region145: #{tpu_custom_call.1} parent=1 // pred_fallthru
      _
    // Predicated region
    $region146: #{tpu_custom_call.1} parent=1 // pred_check
      _
    $region147: #{tpu_custom_call.1} parent=1 // pred_check_branch
      %339 = sbr.rel (0) target = $region149
    $region148: #{tpu_custom_call.1} parent=1 // pred_region
      %340 = dma.done [#allocation32], 32
    $region149: #{tpu_custom_call.1} parent=1 // pred_fallthru
      _
    // Predicated region
    $region150: #{tpu_custom_call.1} parent=1 // pred_check
      _
    $region151: #{tpu_custom_call.1} parent=1 // pred_check_branch
      %342 = sbr.rel (0) target = $region153
    $region152: #{tpu_custom_call.1} parent=1 // pred_region
      %343 = dma.done [#allocation35], 32
    $region153: #{tpu_custom_call.1} parent=1 // pred_fallthru
      _
    // Predicated region
    $region154: #{tpu_custom_call.1} parent=1 // pred_check
      _
    $region155: #{tpu_custom_call.1} parent=1 // pred_check_branch
      %345 = sbr.rel (0) target = $region157
    $region156: #{tpu_custom_call.1} parent=1 // pred_region
      %346 = dma.done [#allocation35], 32
    $region157: #{tpu_custom_call.1} parent=1 // pred_fallthru
      _
    // Predicated region
    $region158: #{tpu_custom_call.1} parent=1 // pred_check
      _
    $region159: #{tpu_custom_call.1} parent=1 // pred_check_branch
      %348 = sbr.rel (0) target = $region161
    $region160: #{tpu_custom_call.1} parent=1 // pred_region
      %349 = dma.done [#allocation38], 32
    $region161: #{tpu_custom_call.1} parent=1 // pred_fallthru
      _
    // Predicated region
    $region162: #{tpu_custom_call.1} parent=1 // pred_check
      _
    $region163: #{tpu_custom_call.1} parent=1 // pred_check_branch
      %351 = sbr.rel (0) target = $region165
    $region164: #{tpu_custom_call.1} parent=1 // pred_region
      %352 = dma.done [#allocation38], 32
    $region165: #{tpu_custom_call.1} parent=1 // pred_fallthru
      _
    // Predicated region
    $region166: #{tpu_custom_call.1} parent=1 // pred_check
      _
    $region167: #{tpu_custom_call.1} parent=1 // pred_check_branch
      %354 = sbr.rel (0) target = $region169
    $region168: #{tpu_custom_call.1} parent=1 // pred_region
      %355 = dma.done [#allocation41], 32
    $region169: #{tpu_custom_call.1} parent=1 // pred_fallthru
      _
    // Predicated region
    $region170: #{tpu_custom_call.1} parent=1 // pred_check
      _
    $region171: #{tpu_custom_call.1} parent=1 // pred_check_branch
      %357 = sbr.rel (0) target = $region173
    $region172: #{tpu_custom_call.1} parent=1 // pred_region
      %358 = dma.done [#allocation41], 16
    $region173: #{tpu_custom_call.1} parent=1 // pred_fallthru
      _
    %s361 = sshll.u32 1, 14
    %s362 = sxor.u32 4294967295, %s361
    %s364 = sld [smem:[#allocation0]]
    %s365 = sadd.s32 2, %s364
    %s367 = sshll.u32 7, 26
    %s368 = sxor.u32 4294967295, %s367
    %s369 = sand.u32 0, %s368
    %s370 = sshll.u32 %s365, 26
    %s371 = sor.u32 %s369, %s370
    %s372 = sshll.u32 [#allocation2], 4
    %s373 = int_to_ptr.vmem [resolvable:$true] %s372
    %376 = sst [smem:[#allocation45]] 256
    %s377 = scalar_lea.smem [#allocation45], 1
    %378 = sst [smem:[%s377]] 256
    %s379 = scalar_lea.smem [#allocation45], 2
    %380 = sst [smem:[%s379]] 2
    %s381 = scalar_lea.smem [#allocation45], 3
    %382 = sst [smem:[%s381]] 64
    %s383 = scalar_lea.smem [#allocation45], 4
    %384 = sst [smem:[%s383]] 128
    %s385 = scalar_lea.smem [#allocation45], 5
    %386 = sst [smem:[%s385]] 2
    %s387 = scalar_lea.smem [#allocation45], 6
    %388 = sst [smem:[%s387]] 128
    %s389 = scalar_lea.smem [#allocation45], 7
    %390 = sst [smem:[%s389]] 64
    %s391 = scalar_lea.smem [#allocation45], 8
    %392 = sst [smem:[%s391]] 4
    %394 = dma.general %s19, 2048, %s373, [#allocation9], [#allocation44], [#allocation45], %s371, 0
    %s395 = scalar_lea.sflag [#allocation9], 1
    // Predicated region
    $region174: #{tpu_custom_call.1} parent=1 // pred_check
      _
    $region175: #{tpu_custom_call.1} parent=1 // pred_check_branch
      %397 = sbr.rel target = $region177
    $region176: #{tpu_custom_call.1} parent=1 // pred_region
      %398 = sst [smem:[#allocation48]] [#allocation47]
      %399 = sst [smem:[#allocation49]] [#allocation46]
    $region177: #{tpu_custom_call.1} parent=1 // pred_fallthru
      _
    %401 = shalt.err (0)
    %s403 = sshll.u32 [#allocation3], 4
    %s404 = int_to_ptr.vmem [resolvable:$true] %s403
    %406 = dma.hbm_to_vmem [thread:$0]  %s21, 4096, %s404, %s395
    %s407 = scalar_lea.sflag [#allocation9], 2
    // Predicated region
    $region178: #{tpu_custom_call.1} parent=1 // pred_check
      _
    $region179: #{tpu_custom_call.1} parent=1 // pred_check_branch
      %409 = sbr.rel target = $region181
    $region180: #{tpu_custom_call.1} parent=1 // pred_region
      %410 = sst [smem:[#allocation48]] [#allocation51]
      %411 = sst [smem:[#allocation49]] [#allocation50]
    $region181: #{tpu_custom_call.1} parent=1 // pred_fallthru
      _
    %413 = shalt.err (0)
    %s415 = sshll.u32 [#allocation4], 4
    %s416 = int_to_ptr.vmem [resolvable:$true] %s415
    %418 = dma.hbm_to_vmem [thread:$0]  %s23, 5120, %s416, %s407
    %s419 = scalar_lea.sflag [#allocation9], 3
    %s421 = sshll.u32 1, 14
    %s422 = sxor.u32 4294967295, %s421
    %s424 = sadd.s32 2, %s364
    %s426 = sshll.u32 7, 26
    %s427 = sxor.u32 4294967295, %s426
    %s428 = sand.u32 0, %s427
    %s429 = sshll.u32 %s424, 26
    %s430 = sor.u32 %s428, %s429
    %s431 = sshll.u32 [#allocation5], 4
    %s432 = int_to_ptr.vmem [resolvable:$true] %s431
    %435 = sst [smem:[#allocation53]] 512
    %s436 = scalar_lea.smem [#allocation53], 1
    %437 = sst [smem:[%s436]] 512
    %s438 = scalar_lea.smem [#allocation53], 2
    %439 = sst [smem:[%s438]] 4
    %s440 = scalar_lea.smem [#allocation53], 3
    %441 = sst [smem:[%s440]] 64
    %s442 = scalar_lea.smem [#allocation53], 4
    %443 = sst [smem:[%s442]] 128
    %s444 = scalar_lea.smem [#allocation53], 5
    %445 = sst [smem:[%s444]] 2
    %s446 = scalar_lea.smem [#allocation53], 6
    %447 = sst [smem:[%s446]] 256
    %s448 = scalar_lea.smem [#allocation53], 7
    %449 = sst [smem:[%s448]] 64
    %s450 = scalar_lea.smem [#allocation53], 8
    %451 = sst [smem:[%s450]] 4
    %453 = dma.general %s35, 4096, %s432, %s419, [#allocation52], [#allocation53], %s430, 0
    %s454 = scalar_lea.sflag [#allocation9], 4
    %s456 = sshll.u32 1, 14
    %s457 = sxor.u32 4294967295, %s456
    %s459 = sadd.s32 2, %s364
    %s461 = sshll.u32 7, 26
    %s462 = sxor.u32 4294967295, %s461
    %s463 = sand.u32 0, %s462
    %s464 = sshll.u32 %s459, 26
    %s465 = sor.u32 %s463, %s464
    %s466 = sshll.u32 [#allocation6], 4
    %s467 = int_to_ptr.vmem [resolvable:$true] %s466
    %470 = sst [smem:[#allocation55]] 256
    %s471 = scalar_lea.smem [#allocation55], 1
    %472 = sst [smem:[%s471]] 256
    %s473 = scalar_lea.smem [#allocation55], 2
    %474 = sst [smem:[%s473]] 2
    %s475 = scalar_lea.smem [#allocation55], 3
    %476 = sst [smem:[%s475]] 64
    %s477 = scalar_lea.smem [#allocation55], 4
    %478 = sst [smem:[%s477]] 128
    %s479 = scalar_lea.smem [#allocation55], 5
    %480 = sst [smem:[%s479]] 2
    %s481 = scalar_lea.smem [#allocation55], 6
    %482 = sst [smem:[%s481]] 128
    %s483 = scalar_lea.smem [#allocation55], 7
    %484 = sst [smem:[%s483]] 64
    %s485 = scalar_lea.smem [#allocation55], 8
    %486 = sst [smem:[%s485]] 4
    %488 = dma.general %s37, 4096, %s467, %s454, [#allocation54], [#allocation55], %s465, 0
    %s489 = scalar_lea.sflag [#allocation9], 5
    %s491 = sshll.u32 1, 14
    %s492 = sxor.u32 4294967295, %s491
    %s494 = sadd.s32 2, %s364
    %s496 = sshll.u32 7, 26
    %s497 = sxor.u32 4294967295, %s496
    %s498 = sand.u32 0, %s497
    %s499 = sshll.u32 %s494, 26
    %s500 = sor.u32 %s498, %s499
    %s501 = sshll.u32 [#allocation7], 4
    %s502 = int_to_ptr.vmem [resolvable:$true] %s501
    %505 = sst [smem:[#allocation57]] 256
    %s506 = scalar_lea.smem [#allocation57], 1
    %507 = sst [smem:[%s506]] 256
    %s508 = scalar_lea.smem [#allocation57], 2
    %509 = sst [smem:[%s508]] 2
    %s510 = scalar_lea.smem [#allocation57], 3
    %511 = sst [smem:[%s510]] 64
    %s512 = scalar_lea.smem [#allocation57], 4
    %513 = sst [smem:[%s512]] 128
    %s514 = scalar_lea.smem [#allocation57], 5
    %515 = sst [smem:[%s514]] 2
    %s516 = scalar_lea.smem [#allocation57], 6
    %517 = sst [smem:[%s516]] 128
    %s518 = scalar_lea.smem [#allocation57], 7
    %519 = sst [smem:[%s518]] 64
    %s520 = scalar_lea.smem [#allocation57], 8
    %521 = sst [smem:[%s520]] 4
    %523 = dma.general %s39, 12288, %s502, %s489, [#allocation56], [#allocation57], %s500, 0
    %s524 = scalar_lea.sflag [#allocation9], 6
    %s526 = sshll.u32 1, 14
    %s527 = sxor.u32 4294967295, %s526
    %s529 = sadd.s32 2, %s364
    %s531 = sshll.u32 7, 26
    %s532 = sxor.u32 4294967295, %s531
    %s533 = sand.u32 0, %s532
    %s534 = sshll.u32 %s529, 26
    %s535 = sor.u32 %s533, %s534
    %s536 = sshll.u32 [#allocation8], 4
    %s537 = int_to_ptr.vmem [resolvable:$true] %s536
    %540 = sst [smem:[#allocation59]] 256
    %s541 = scalar_lea.smem [#allocation59], 1
    %542 = sst [smem:[%s541]] 256
    %s543 = scalar_lea.smem [#allocation59], 2
    %544 = sst [smem:[%s543]] 2
    %s545 = scalar_lea.smem [#allocation59], 3
    %546 = sst [smem:[%s545]] 64
    %s547 = scalar_lea.smem [#allocation59], 4
    %548 = sst [smem:[%s547]] 128
    %s549 = scalar_lea.smem [#allocation59], 5
    %550 = sst [smem:[%s549]] 2
    %s551 = scalar_lea.smem [#allocation59], 6
    %552 = sst [smem:[%s551]] 128
    %s553 = scalar_lea.smem [#allocation59], 7
    %554 = sst [smem:[%s553]] 64
    %s555 = scalar_lea.smem [#allocation59], 8
    %556 = sst [smem:[%s555]] 4
    %558 = dma.general %s51, 65536, %s537, %s524, [#allocation58], [#allocation59], %s535, 0
    %v559 = vld [vmem:[#allocation10] sm:$0xff]
    %v560 = vld [vmem:[#allocation10 + $0x8] sm:$0xff]
    %v561 = vld [vmem:[#allocation10 + $0x10] sm:$0xff]
    %v562 = vld [vmem:[#allocation10 + $0x18] sm:$0xff]
    %v563 = vld [vmem:[#allocation10 + $0x20] sm:$0xff]
    %v564 = vld [vmem:[#allocation10 + $0x28] sm:$0xff]
    %v565 = vld [vmem:[#allocation10 + $0x30] sm:$0xff]
    %v566 = vld [vmem:[#allocation10 + $0x38] sm:$0xff]
    %v567 = vld [vmem:[#allocation10 + $0x40] sm:$0xff]
    %v568 = vld [vmem:[#allocation10 + $0x48] sm:$0xff]
    %v569 = vld [vmem:[#allocation10 + $0x50] sm:$0xff]
    %v570 = vld [vmem:[#allocation10 + $0x58] sm:$0xff]
    %v571 = vld [vmem:[#allocation10 + $0x60] sm:$0xff]
    %v572 = vld [vmem:[#allocation10 + $0x68] sm:$0xff]
    %v573 = vld [vmem:[#allocation10 + $0x70] sm:$0xff]
    %v574 = vld [vmem:[#allocation10 + $0x78] sm:$0xff]
    %v575 = vpack.c.bf16 %v560, %v559
    %v576 = vpack.c.bf16 %v562, %v561
    %v577 = vpack.c.bf16 %v564, %v563
    %v578 = vpack.c.bf16 %v566, %v565
    %v579 = vpack.c.bf16 %v568, %v567
    %v580 = vpack.c.bf16 %v570, %v569
    %v581 = vpack.c.bf16 %v572, %v571
    %v582 = vpack.c.bf16 %v574, %v573
    %v583 = vld [vmem:[#allocation13] sm:$0xff]
    %v584 = vld [vmem:[#allocation13 + $0x8] sm:$0xff]
    %v585 = vld [vmem:[#allocation13 + $0x10] sm:$0xff]
    %v586 = vld [vmem:[#allocation13 + $0x18] sm:$0xff]
    %v587 = vld [vmem:[#allocation13 + $0x20] sm:$0xff]
    %v588 = vld [vmem:[#allocation13 + $0x28] sm:$0xff]
    %v589 = vld [vmem:[#allocation13 + $0x30] sm:$0xff]
    %v590 = vld [vmem:[#allocation13 + $0x38] sm:$0xff]
    %v591 = vld [vmem:[#allocation13 + $0x40] sm:$0xff]
    %v592 = vld [vmem:[#allocation13 + $0x48] sm:$0xff]
    %v593 = vld [vmem:[#allocation13 + $0x50] sm:$0xff]
    %v594 = vld [vmem:[#allocation13 + $0x58] sm:$0xff]
    %v595 = vld [vmem:[#allocation13 + $0x60] sm:$0xff]
    %v596 = vld [vmem:[#allocation13 + $0x68] sm:$0xff]
    %v597 = vld [vmem:[#allocation13 + $0x70] sm:$0xff]
    %v598 = vld [vmem:[#allocation13 + $0x78] sm:$0xff]
    %v615 = vunpack.c.l.b16 %v583
    %v616 = vunpack.c.h.b16 %v583
    %v617 = vunpack.c.l.b16 %v584
    %v618 = vunpack.c.h.b16 %v584
    %v619 = vunpack.c.l.b16 %v585
    %v620 = vunpack.c.h.b16 %v585
    %v621 = vunpack.c.l.b16 %v586
    %v622 = vunpack.c.h.b16 %v586
    %v623 = vunpack.c.l.b16 %v587
    %v624 = vunpack.c.h.b16 %v587
    %v625 = vunpack.c.l.b16 %v588
    %v626 = vunpack.c.h.b16 %v588
    %v627 = vunpack.c.l.b16 %v589
    %v628 = vunpack.c.h.b16 %v589
    %v629 = vunpack.c.l.b16 %v590
    %v630 = vunpack.c.h.b16 %v590
    %v631 = vunpack.c.l.b16 %v591
    %v632 = vunpack.c.h.b16 %v591
    %v633 = vunpack.c.l.b16 %v592
    %v634 = vunpack.c.h.b16 %v592
    %v635 = vunpack.c.l.b16 %v593
    %v636 = vunpack.c.h.b16 %v593
    %v637 = vunpack.c.l.b16 %v594
    %v638 = vunpack.c.h.b16 %v594
    %v639 = vunpack.c.l.b16 %v595
    %v640 = vunpack.c.h.b16 %v595
    %v641 = vunpack.c.l.b16 %v596
    %v642 = vunpack.c.h.b16 %v596
    %v643 = vunpack.c.l.b16 %v597
    %v644 = vunpack.c.h.b16 %v597
    %v645 = vunpack.c.l.b16 %v598
    %v646 = vunpack.c.h.b16 %v598
    %v647 = vpack.c.b16 %v617, %v615
    %v648 = vpack.c.b16 %v618, %v616
    %v649 = vpack.c.b16 %v621, %v619
    %v650 = vpack.c.b16 %v622, %v620
    %v651 = vpack.c.b16 %v625, %v623
    %v652 = vpack.c.b16 %v626, %v624
    %v653 = vpack.c.b16 %v629, %v627
    %v654 = vpack.c.b16 %v630, %v628
    %v655 = vpack.c.b16 %v633, %v631
    %v656 = vpack.c.b16 %v634, %v632
    %v657 = vpack.c.b16 %v637, %v635
    %v658 = vpack.c.b16 %v638, %v636
    %v659 = vpack.c.b16 %v641, %v639
    %v660 = vpack.c.b16 %v642, %v640
    %v661 = vpack.c.b16 %v645, %v643
    %v662 = vpack.c.b16 %v646, %v644
    %679 = vmatprep.subr.bf16.mxu0 %v648
    %680 = vmatpush1.bf16.msra.mxu0 %v647
    %681 = vmatprep.subr.bf16.mxu0 %v650
    %682 = vmatpush1.bf16.msra.mxu0 %v649
    %683 = vmatprep.subr.bf16.mxu0 %v652
    %684 = vmatpush1.bf16.msra.mxu0 %v651
    %685 = vmatprep.subr.bf16.mxu0 %v654
    %686 = vmatpush1.bf16.msra.mxu0 %v653
    %687 = vmatprep.subr.bf16.mxu0 %v656
    %688 = vmatpush1.bf16.msra.mxu0 %v655
    %689 = vmatprep.subr.bf16.mxu0 %v658
    %690 = vmatpush1.bf16.msra.mxu0 %v657
    %691 = vmatprep.subr.bf16.mxu0 %v660
    %692 = vmatpush1.bf16.msra.mxu0 %v659
    %693 = vmatprep.subr.bf16.mxu0 %v662
    %694 = vmatpush1.bf16.msra.mxu0 %v661
    %695 = vmatprep.subr.bf16.mxu0 0
    %696 = vmatpush1.bf16.msra.mxu0 0
    %697 = vmatprep.subr.bf16.mxu0 0
    %698 = vmatpush1.bf16.msra.mxu0 0
    %699 = vmatprep.subr.bf16.mxu0 0
    %700 = vmatpush1.bf16.msra.mxu0 0
    %701 = vmatprep.subr.bf16.mxu0 0
    %702 = vmatpush1.bf16.msra.mxu0 0
    %703 = vmatprep.subr.bf16.mxu0 0
    %704 = vmatpush1.bf16.msra.mxu0 0
    %705 = vmatprep.subr.bf16.mxu0 0
    %706 = vmatpush1.bf16.msra.mxu0 0
    %707 = vmatprep.subr.bf16.mxu0 0
    %708 = vmatpush1.bf16.msra.mxu0 0
    %709 = vmatprep.subr.bf16.mxu0 0
    %710 = vmatpush1.bf16.msra.mxu0 0
    %711 = vmatprep.mubr.bf16.mxu0 0
    %712 = vmatmul.mubr.bf16.gmra.mrb[0].mxu0 %v575
    %v713 = vpop.f32.mrb[0].mxu0
    %v714 = vadd.f32 0.0, %v713
    %v715 = vpop.f32.mrb[0].mxu0
    %v716 = vadd.f32 0.0, %v715
    %v717 = vpop.f32.mrb[0].mxu0
    %v718 = vadd.f32 0.0, %v717
    %v719 = vpop.f32.mrb[0].mxu0
    %v720 = vadd.f32 0.0, %v719
    %721 = vmatprep.mubr.bf16.mxu0 0
    %722 = vmatmul.mubr.bf16.gmra.mrb[0].mxu0 %v576
    %v723 = vpop.f32.mrb[0].mxu0
    %v724 = vadd.f32 0.0, %v723
    %v725 = vpop.f32.mrb[0].mxu0
    %v726 = vadd.f32 0.0, %v725
    %v727 = vpop.f32.mrb[0].mxu0
    %v728 = vadd.f32 0.0, %v727
    %v729 = vpop.f32.mrb[0].mxu0
    %v730 = vadd.f32 0.0, %v729
    %731 = vmatprep.mubr.bf16.mxu0 0
    %732 = vmatmul.mubr.bf16.gmra.mrb[0].mxu0 %v577
    %v733 = vpop.f32.mrb[0].mxu0
    %v734 = vadd.f32 0.0, %v733
    %v735 = vpop.f32.mrb[0].mxu0
    %v736 = vadd.f32 0.0, %v735
    %v737 = vpop.f32.mrb[0].mxu0
    %v738 = vadd.f32 0.0, %v737
    %v739 = vpop.f32.mrb[0].mxu0
    %v740 = vadd.f32 0.0, %v739
    %741 = vmatprep.mubr.bf16.mxu0 0
    %742 = vmatmul.mubr.bf16.gmra.mrb[0].mxu0 %v578
    %v743 = vpop.f32.mrb[0].mxu0
    %v744 = vadd.f32 0.0, %v743
    %v745 = vpop.f32.mrb[0].mxu0
    %v746 = vadd.f32 0.0, %v745
    %v747 = vpop.f32.mrb[0].mxu0
    %v748 = vadd.f32 0.0, %v747
    %v749 = vpop.f32.mrb[0].mxu0
    %v750 = vadd.f32 0.0, %v749
    %751 = vmatprep.mubr.bf16.mxu0 0
    %752 = vmatmul.mubr.bf16.gmra.mrb[0].mxu0 %v579
    %v753 = vpop.f32.mrb[0].mxu0
    %v754 = vadd.f32 0.0, %v753
    %v755 = vpop.f32.mrb[0].mxu0
    %v756 = vadd.f32 0.0, %v755
    %v757 = vpop.f32.mrb[0].mxu0
    %v758 = vadd.f32 0.0, %v757
    %v759 = vpop.f32.mrb[0].mxu0
    %v760 = vadd.f32 0.0, %v759
    %761 = vmatprep.mubr.bf16.mxu0 0
    %762 = vmatmul.mubr.bf16.gmra.mrb[0].mxu0 %v580
    %v763 = vpop.f32.mrb[0].mxu0
    %v764 = vadd.f32 0.0, %v763
    %v765 = vpop.f32.mrb[0].mxu0
    %v766 = vadd.f32 0.0, %v765
    %v767 = vpop.f32.mrb[0].mxu0
    %v768 = vadd.f32 0.0, %v767
    %v769 = vpop.f32.mrb[0].mxu0
    %v770 = vadd.f32 0.0, %v769
    %771 = vmatprep.mubr.bf16.mxu0 0
    %772 = vmatmul.mubr.bf16.gmra.mrb[0].mxu0 %v581
    %v773 = vpop.f32.mrb[0].mxu0
    %v774 = vadd.f32 0.0, %v773
    %v775 = vpop.f32.mrb[0].mxu0
    %v776 = vadd.f32 0.0, %v775
    %v777 = vpop.f32.mrb[0].mxu0
    %v778 = vadd.f32 0.0, %v777
    %v779 = vpop.f32.mrb[0].mxu0
    %v780 = vadd.f32 0.0, %v779
    %781 = vmatprep.mubr.bf16.mxu0 0
    %782 = vmatmul.mubr.bf16.gmra.mrb[0].mxu0 %v582
    %v783 = vpop.f32.mrb[0].mxu0
    %v784 = vadd.f32 0.0, %v783
    %v785 = vpop.f32.mrb[0].mxu0
    %v786 = vadd.f32 0.0, %v785
    %v787 = vpop.f32.mrb[0].mxu0
    %v788 = vadd.f32 0.0, %v787
    %v789 = vpop.f32.mrb[0].mxu0
    %v790 = vadd.f32 0.0, %v789
    %791 = vdwg.mxu0
    %v792 = vld [vmem:[#allocation24] sm:$0x1]
    %v794 = vlaneseq
    %v795 = vshrl.u32 %v794, 7
    %v796 = vsub.s32 0, %v795
    %v797 = vrot.slane %v792, %v796
    %v799 = vadd.f32 %v716, %v797
    %v800 = vadd.f32 %v720, %v797
    %v801 = vadd.f32 %v726, %v797
    %v802 = vadd.f32 %v730, %v797
    %v803 = vadd.f32 %v736, %v797
    %v804 = vadd.f32 %v740, %v797
    %v805 = vadd.f32 %v746, %v797
    %v806 = vadd.f32 %v750, %v797
    %v807 = vadd.f32 %v756, %v797
    %v808 = vadd.f32 %v760, %v797
    %v809 = vadd.f32 %v766, %v797
    %v810 = vadd.f32 %v770, %v797
    %v811 = vadd.f32 %v776, %v797
    %v812 = vadd.f32 %v780, %v797
    %v813 = vadd.f32 %v786, %v797
    %v814 = vadd.f32 %v790, %v797
    %vm823 = vcmask 1043456
    %v824 = vrot.slane %v575, 4
    %v825 = vrot.slane %v576, 4
    %v826 = vsel %vm823, %v824, %v825
    %v827 = vrot.slane %v577, 4
    %v828 = vsel %vm823, %v825, %v827
    %v829 = vrot.slane %v578, 4
    %v830 = vsel %vm823, %v827, %v829
    %v831 = vrot.slane %v579, 4
    %v832 = vrot.slane %v580, 4
    %v833 = vsel %vm823, %v831, %v832
    %v834 = vrot.slane %v581, 4
    %v835 = vsel %vm823, %v832, %v834
    %v836 = vrot.slane %v582, 4
    %v837 = vsel %vm823, %v834, %v836
    %vm838 = vcmask 1043456
    %v841 = vsel %vm838, 0, %v824
    %v843 = vsel %vm838, 0, %v831
    %v845 = vsel %vm838, %v829, 0
    %v847 = vsel %vm838, %v836, 0
    %vm848 = vsmask.f32 5376
    %v849 = vshrl.u32 %v841, 16
    %v851 = vrot.slane %v849, 2
    %v852 = vshll.u32 %v841, 16
    %v854 = vrot.slane %v852, 3
    %v855 = vor.u32 %v851, %v854
    %v857 = vshrl.u32 %v826, 16
    %v859 = vrot.slane %v857, 2
    %v860 = vshll.u32 %v826, 16
    %v862 = vrot.slane %v860, 3
    %v863 = vor.u32 %v859, %v862
    %v864 = vsel %vm848, %v855, %v863
    %v866 = vshrl.u32 %v828, 16
    %v868 = vrot.slane %v866, 2
    %v869 = vshll.u32 %v828, 16
    %v871 = vrot.slane %v869, 3
    %v872 = vor.u32 %v868, %v871
    %v873 = vsel %vm848, %v863, %v872
    %v875 = vshrl.u32 %v830, 16
    %v877 = vrot.slane %v875, 2
    %v878 = vshll.u32 %v830, 16
    %v880 = vrot.slane %v878, 3
    %v881 = vor.u32 %v877, %v880
    %v882 = vsel %vm848, %v872, %v881
    %v883 = vshrl.u32 %v845, 16
    %v885 = vrot.slane %v883, 2
    %v886 = vshll.u32 %v845, 16
    %v888 = vrot.slane %v886, 3
    %v889 = vor.u32 %v885, %v888
    %v890 = vsel %vm848, %v881, %v889
    %v891 = vshrl.u32 %v843, 16
    %v893 = vrot.slane %v891, 2
    %v894 = vshll.u32 %v843, 16
    %v896 = vrot.slane %v894, 3
    %v897 = vor.u32 %v893, %v896
    %v899 = vshrl.u32 %v833, 16
    %v901 = vrot.slane %v899, 2
    %v902 = vshll.u32 %v833, 16
    %v904 = vrot.slane %v902, 3
    %v905 = vor.u32 %v901, %v904
    %v906 = vsel %vm848, %v897, %v905
    %v908 = vshrl.u32 %v835, 16
    %v910 = vrot.slane %v908, 2
    %v911 = vshll.u32 %v835, 16
    %v913 = vrot.slane %v911, 3
    %v914 = vor.u32 %v910, %v913
    %v915 = vsel %vm848, %v905, %v914
    %v917 = vshrl.u32 %v837, 16
    %v919 = vrot.slane %v917, 2
    %v920 = vshll.u32 %v837, 16
    %v922 = vrot.slane %v920, 3
    %v923 = vor.u32 %v919, %v922
    %v924 = vsel %vm848, %v914, %v923
    %v925 = vshrl.u32 %v847, 16
    %v927 = vrot.slane %v925, 2
    %v928 = vshll.u32 %v847, 16
    %v930 = vrot.slane %v928, 3
    %v931 = vor.u32 %v927, %v930
    %v932 = vsel %vm848, %v923, %v931
    %v941 = vld [vmem:[#allocation15] sm:$0xf]
    %v942 = vld [vmem:[#allocation15 + $0x4] sm:$0xf]
    %v943 = vld [vmem:[#allocation15 + $0x8] sm:$0xf]
    %v944 = vld [vmem:[#allocation15 + $0xc] sm:$0xf]
    %v945 = vld [vmem:[#allocation15 + $0x10] sm:$0xf]
    %v946 = vld [vmem:[#allocation15 + $0x14] sm:$0xf]
    %v947 = vld [vmem:[#allocation15 + $0x18] sm:$0xf]
    %v948 = vld [vmem:[#allocation15 + $0x1c] sm:$0xf]
    %v949 = vld [vmem:[#allocation15 + $0x20] sm:$0xf]
    %v950 = vld [vmem:[#allocation15 + $0x24] sm:$0xf]
    %v951 = vld [vmem:[#allocation15 + $0x28] sm:$0xf]
    %v952 = vld [vmem:[#allocation15 + $0x2c] sm:$0xf]
    %v953 = vld [vmem:[#allocation15 + $0x30] sm:$0xf]
    %v954 = vld [vmem:[#allocation15 + $0x34] sm:$0xf]
    %v955 = vld [vmem:[#allocation15 + $0x38] sm:$0xf]
    %v956 = vld [vmem:[#allocation15 + $0x3c] sm:$0xf]
    %v973 = vunpack.c.l.b16 %v941
    %v974 = vunpack.c.l.b16 %v942
    %v975 = vunpack.c.l.b16 %v943
    %v976 = vunpack.c.l.b16 %v944
    %v977 = vunpack.c.l.b16 %v945
    %v978 = vunpack.c.l.b16 %v946
    %v979 = vunpack.c.l.b16 %v947
    %v980 = vunpack.c.l.b16 %v948
    %v981 = vunpack.c.l.b16 %v949
    %v982 = vunpack.c.l.b16 %v950
    %v983 = vunpack.c.l.b16 %v951
    %v984 = vunpack.c.l.b16 %v952
    %v985 = vunpack.c.l.b16 %v953
    %v986 = vunpack.c.l.b16 %v954
    %v987 = vunpack.c.l.b16 %v955
    %v988 = vunpack.c.l.b16 %v956
    %v989 = vpack.c.b16 %v974, %v973
    %v990 = vpack.c.b16 %v976, %v975
    %v991 = vpack.c.b16 %v978, %v977
    %v992 = vpack.c.b16 %v980, %v979
    %v993 = vpack.c.b16 %v982, %v981
    %v994 = vpack.c.b16 %v984, %v983
    %v995 = vpack.c.b16 %v986, %v985
    %v996 = vpack.c.b16 %v988, %v987
    %1005 = vmatprep.subr.bf16.mxu0 0
    %1006 = vmatpush1.bf16.msra.mxu0 %v989
    %1007 = vmatprep.subr.bf16.mxu0 0
    %1008 = vmatpush1.bf16.msra.mxu0 %v990
    %1009 = vmatprep.subr.bf16.mxu0 0
    %1010 = vmatpush1.bf16.msra.mxu0 %v991
    %1011 = vmatprep.subr.bf16.mxu0 0
    %1012 = vmatpush1.bf16.msra.mxu0 %v992
    %1013 = vmatprep.subr.bf16.mxu0 0
    %1014 = vmatpush1.bf16.msra.mxu0 %v993
    %1015 = vmatprep.subr.bf16.mxu0 0
    %1016 = vmatpush1.bf16.msra.mxu0 %v994
    %1017 = vmatprep.subr.bf16.mxu0 0
    %1018 = vmatpush1.bf16.msra.mxu0 %v995
    %1019 = vmatprep.subr.bf16.mxu0 0
    %1020 = vmatpush1.bf16.msra.mxu0 %v996
    %1021 = vmatprep.subr.bf16.mxu0 0
    %1022 = vmatpush1.bf16.msra.mxu0 0
    %1023 = vmatprep.subr.bf16.mxu0 0
    %1024 = vmatpush1.bf16.msra.mxu0 0
    %1025 = vmatprep.subr.bf16.mxu0 0
    %1026 = vmatpush1.bf16.msra.mxu0 0
    %1027 = vmatprep.subr.bf16.mxu0 0
    %1028 = vmatpush1.bf16.msra.mxu0 0
    %1029 = vmatprep.subr.bf16.mxu0 0
    %1030 = vmatpush1.bf16.msra.mxu0 0
    %1031 = vmatprep.subr.bf16.mxu0 0
    %1032 = vmatpush1.bf16.msra.mxu0 0
    %1033 = vmatprep.subr.bf16.mxu0 0
    %1034 = vmatpush1.bf16.msra.mxu0 0
    %1035 = vmatprep.subr.bf16.mxu0 0
    %1036 = vmatpush1.bf16.msra.mxu0 0
    %1037 = vmatprep.mubr.bf16.mxu0 0
    %1038 = vmatmul.mubr.bf16.gmra.mrb[0].mxu0 %v864
    %v1039 = vpop.f32.mrb[0].mxu0
    %v1040 = vadd.f32 0.0, %v1039
    %v1041 = vpop.f32.mrb[0].mxu0
    %v1042 = vpop.f32.mrb[0].mxu0
    %v1043 = vadd.f32 0.0, %v1042
    %v1044 = vpop.f32.mrb[0].mxu0
    %1045 = vmatprep.mubr.bf16.mxu0 0
    %1046 = vmatmul.mubr.bf16.gmra.mrb[0].mxu0 %v873
    %v1047 = vpop.f32.mrb[0].mxu0
    %v1048 = vadd.f32 0.0, %v1047
    %v1049 = vpop.f32.mrb[0].mxu0
    %v1050 = vpop.f32.mrb[0].mxu0
    %v1051 = vadd.f32 0.0, %v1050
    %v1052 = vpop.f32.mrb[0].mxu0
    %1053 = vmatprep.mubr.bf16.mxu0 0
    %1054 = vmatmul.mubr.bf16.gmra.mrb[0].mxu0 %v882
    %v1055 = vpop.f32.mrb[0].mxu0
    %v1056 = vadd.f32 0.0, %v1055
    %v1057 = vpop.f32.mrb[0].mxu0
    %v1058 = vpop.f32.mrb[0].mxu0
    %v1059 = vadd.f32 0.0, %v1058
    %v1060 = vpop.f32.mrb[0].mxu0
    %1061 = vmatprep.mubr.bf16.mxu0 0
    %1062 = vmatmul.mubr.bf16.gmra.mrb[0].mxu0 %v890
    %v1063 = vpop.f32.mrb[0].mxu0
    %v1064 = vadd.f32 0.0, %v1063
    %v1065 = vpop.f32.mrb[0].mxu0
    %v1066 = vpop.f32.mrb[0].mxu0
    %v1067 = vadd.f32 0.0, %v1066
    %v1068 = vpop.f32.mrb[0].mxu0
    %1069 = vmatprep.mubr.bf16.mxu0 0
    %1070 = vmatmul.mubr.bf16.gmra.mrb[0].mxu0 %v906
    %v1071 = vpop.f32.mrb[0].mxu0
    %v1072 = vadd.f32 0.0, %v1071
    %v1073 = vpop.f32.mrb[0].mxu0
    %v1074 = vpop.f32.mrb[0].mxu0
    %v1075 = vadd.f32 0.0, %v1074
    %v1076 = vpop.f32.mrb[0].mxu0
    %1077 = vmatprep.mubr.bf16.mxu0 0
    %1078 = vmatmul.mubr.bf16.gmra.mrb[0].mxu0 %v915
    %v1079 = vpop.f32.mrb[0].mxu0
    %v1080 = vadd.f32 0.0, %v1079
    %v1081 = vpop.f32.mrb[0].mxu0
    %v1082 = vpop.f32.mrb[0].mxu0
    %v1083 = vadd.f32 0.0, %v1082
    %v1084 = vpop.f32.mrb[0].mxu0
    %1085 = vmatprep.mubr.bf16.mxu0 0
    %1086 = vmatmul.mubr.bf16.gmra.mrb[0].mxu0 %v924
    %v1087 = vpop.f32.mrb[0].mxu0
    %v1088 = vadd.f32 0.0, %v1087
    %v1089 = vpop.f32.mrb[0].mxu0
    %v1090 = vpop.f32.mrb[0].mxu0
    %v1091 = vadd.f32 0.0, %v1090
    %v1092 = vpop.f32.mrb[0].mxu0
    %1093 = vmatprep.mubr.bf16.mxu0 0
    %1094 = vmatmul.mubr.bf16.gmra.mrb[0].mxu0 %v932
    %v1095 = vpop.f32.mrb[0].mxu0
    %v1096 = vadd.f32 0.0, %v1095
    %v1097 = vpop.f32.mrb[0].mxu0
    %v1098 = vpop.f32.mrb[0].mxu0
    %v1099 = vadd.f32 0.0, %v1098
    %v1100 = vpop.f32.mrb[0].mxu0
    %1101 = vdwg.mxu0
    %v1102 = vadd.f32 %v714, %v1040
    %v1103 = vadd.f32 %v718, %v1043
    %v1104 = vadd.f32 %v724, %v1048
    %v1105 = vadd.f32 %v728, %v1051
    %v1106 = vadd.f32 %v734, %v1056
    %v1107 = vadd.f32 %v738, %v1059
    %v1108 = vadd.f32 %v744, %v1064
    %v1109 = vadd.f32 %v748, %v1067
    %v1110 = vadd.f32 %v754, %v1072
    %v1111 = vadd.f32 %v758, %v1075
    %v1112 = vadd.f32 %v764, %v1080
    %v1113 = vadd.f32 %v768, %v1083
    %v1114 = vadd.f32 %v774, %v1088
    %v1115 = vadd.f32 %v778, %v1091
    %v1116 = vadd.f32 %v784, %v1096
    %v1117 = vadd.f32 %v788, %v1099
    %vm1122 = vcmask 1044480
    %v1123 = vrot.slane %v841, 3
    %v1124 = vrot.slane %v826, 3
    %v1125 = vsel %vm1122, %v1123, %v1124
    %v1126 = vrot.slane %v828, 3
    %v1127 = vsel %vm1122, %v1124, %v1126
    %v1128 = vrot.slane %v830, 3
    %v1129 = vsel %vm1122, %v1126, %v1128
    %v1130 = vrot.slane %v845, 3
    %v1131 = vsel %vm1122, %v1128, %v1130
    %v1132 = vrot.slane %v843, 3
    %v1133 = vrot.slane %v833, 3
    %v1134 = vsel %vm1122, %v1132, %v1133
    %v1135 = vrot.slane %v835, 3
    %v1136 = vsel %vm1122, %v1133, %v1135
    %v1137 = vrot.slane %v837, 3
    %v1138 = vsel %vm1122, %v1135, %v1137
    %v1139 = vrot.slane %v847, 3
    %v1140 = vsel %vm1122, %v1137, %v1139
    %s1149 = scalar_lea.vmem [#allocation15], 64
    %v1150 = vld [vmem:[%s1149] sm:$0xf]
    %v1151 = vld [vmem:[%s1149 + $0x4] sm:$0xf]
    %v1152 = vld [vmem:[%s1149 + $0x8] sm:$0xf]
    %v1153 = vld [vmem:[%s1149 + $0xc] sm:$0xf]
    %v1154 = vld [vmem:[%s1149 + $0x10] sm:$0xf]
    %v1155 = vld [vmem:[%s1149 + $0x14] sm:$0xf]
    %v1156 = vld [vmem:[%s1149 + $0x18] sm:$0xf]
    %v1157 = vld [vmem:[%s1149 + $0x1c] sm:$0xf]
    %v1158 = vld [vmem:[%s1149 + $0x20] sm:$0xf]
    %v1159 = vld [vmem:[%s1149 + $0x24] sm:$0xf]
    %v1160 = vld [vmem:[%s1149 + $0x28] sm:$0xf]
    %v1161 = vld [vmem:[%s1149 + $0x2c] sm:$0xf]
    %v1162 = vld [vmem:[%s1149 + $0x30] sm:$0xf]
    %v1163 = vld [vmem:[%s1149 + $0x34] sm:$0xf]
    %v1164 = vld [vmem:[%s1149 + $0x38] sm:$0xf]
    %v1165 = vld [vmem:[%s1149 + $0x3c] sm:$0xf]
    %v1182 = vunpack.c.l.b16 %v1150
    %v1183 = vunpack.c.l.b16 %v1151
    %v1184 = vunpack.c.l.b16 %v1152
    %v1185 = vunpack.c.l.b16 %v1153
    %v1186 = vunpack.c.l.b16 %v1154
    %v1187 = vunpack.c.l.b16 %v1155
    %v1188 = vunpack.c.l.b16 %v1156
    %v1189 = vunpack.c.l.b16 %v1157
    %v1190 = vunpack.c.l.b16 %v1158
    %v1191 = vunpack.c.l.b16 %v1159
    %v1192 = vunpack.c.l.b16 %v1160
    %v1193 = vunpack.c.l.b16 %v1161
    %v1194 = vunpack.c.l.b16 %v1162
    %v1195 = vunpack.c.l.b16 %v1163
    %v1196 = vunpack.c.l.b16 %v1164
    %v1197 = vunpack.c.l.b16 %v1165
    %v1198 = vpack.c.b16 %v1183, %v1182
    %v1199 = vpack.c.b16 %v1185, %v1184
    %v1200 = vpack.c.b16 %v1187, %v1186
    %v1201 = vpack.c.b16 %v1189, %v1188
    %v1202 = vpack.c.b16 %v1191, %v1190
    %v1203 = vpack.c.b16 %v1193, %v1192
    %v1204 = vpack.c.b16 %v1195, %v1194
    %v1205 = vpack.c.b16 %v1197, %v1196
    %1214 = vmatprep.subr.bf16.mxu0 0
    %1215 = vmatpush1.bf16.msra.mxu0 %v1198
    %1216 = vmatprep.subr.bf16.mxu0 0
    %1217 = vmatpush1.bf16.msra.mxu0 %v1199
    %1218 = vmatprep.subr.bf16.mxu0 0
    %1219 = vmatpush1.bf16.msra.mxu0 %v1200
    %1220 = vmatprep.subr.bf16.mxu0 0
    %1221 = vmatpush1.bf16.msra.mxu0 %v1201
    %1222 = vmatprep.subr.bf16.mxu0 0
    %1223 = vmatpush1.bf16.msra.mxu0 %v1202
    %1224 = vmatprep.subr.bf16.mxu0 0
    %1225 = vmatpush1.bf16.msra.mxu0 %v1203
    %1226 = vmatprep.subr.bf16.mxu0 0
    %1227 = vmatpush1.bf16.msra.mxu0 %v1204
    %1228 = vmatprep.subr.bf16.mxu0 0
    %1229 = vmatpush1.bf16.msra.mxu0 %v1205
    %1230 = vmatprep.subr.bf16.mxu0 0
    %1231 = vmatpush1.bf16.msra.mxu0 0
    %1232 = vmatprep.subr.bf16.mxu0 0
    %1233 = vmatpush1.bf16.msra.mxu0 0
    %1234 = vmatprep.subr.bf16.mxu0 0
    %1235 = vmatpush1.bf16.msra.mxu0 0
    %1236 = vmatprep.subr.bf16.mxu0 0
    %1237 = vmatpush1.bf16.msra.mxu0 0
    %1238 = vmatprep.subr.bf16.mxu0 0
    %1239 = vmatpush1.bf16.msra.mxu0 0
    %1240 = vmatprep.subr.bf16.mxu0 0
    %1241 = vmatpush1.bf16.msra.mxu0 0
    %1242 = vmatprep.subr.bf16.mxu0 0
    %1243 = vmatpush1.bf16.msra.mxu0 0
    %1244 = vmatprep.subr.bf16.mxu0 0
    %1245 = vmatpush1.bf16.msra.mxu0 0
    %1246 = vmatprep.mubr.bf16.mxu0 0
    %1247 = vmatmul.mubr.bf16.gmra.mrb[0].mxu0 %v1125
    %v1248 = vpop.f32.mrb[0].mxu0
    %v1249 = vadd.f32 0.0, %v1248
    %v1250 = vpop.f32.mrb[0].mxu0
    %v1251 = vpop.f32.mrb[0].mxu0
    %v1252 = vadd.f32 0.0, %v1251
    %v1253 = vpop.f32.mrb[0].mxu0
    %1254 = vmatprep.mubr.bf16.mxu0 0
    %1255 = vmatmul.mubr.bf16.gmra.mrb[0].mxu0 %v1127
    %v1256 = vpop.f32.mrb[0].mxu0
    %v1257 = vadd.f32 0.0, %v1256
    %v1258 = vpop.f32.mrb[0].mxu0
    %v1259 = vpop.f32.mrb[0].mxu0
    %v1260 = vadd.f32 0.0, %v1259
    %v1261 = vpop.f32.mrb[0].mxu0
    %1262 = vmatprep.mubr.bf16.mxu0 0
    %1263 = vmatmul.mubr.bf16.gmra.mrb[0].mxu0 %v1129
    %v1264 = vpop.f32.mrb[0].mxu0
    %v1265 = vadd.f32 0.0, %v1264
    %v1266 = vpop.f32.mrb[0].mxu0
    %v1267 = vpop.f32.mrb[0].mxu0
    %v1268 = vadd.f32 0.0, %v1267
    %v1269 = vpop.f32.mrb[0].mxu0
    %1270 = vmatprep.mubr.bf16.mxu0 0
    %1271 = vmatmul.mubr.bf16.gmra.mrb[0].mxu0 %v1131
    %v1272 = vpop.f32.mrb[0].mxu0
    %v1273 = vadd.f32 0.0, %v1272
    %v1274 = vpop.f32.mrb[0].mxu0
    %v1275 = vpop.f32.mrb[0].mxu0
    %v1276 = vadd.f32 0.0, %v1275
    %v1277 = vpop.f32.mrb[0].mxu0
    %1278 = vmatprep.mubr.bf16.mxu0 0
    %1279 = vmatmul.mubr.bf16.gmra.mrb[0].mxu0 %v1134
    %v1280 = vpop.f32.mrb[0].mxu0
    %v1281 = vadd.f32 0.0, %v1280
    %v1282 = vpop.f32.mrb[0].mxu0
    %v1283 = vpop.f32.mrb[0].mxu0
    %v1284 = vadd.f32 0.0, %v1283
    %v1285 = vpop.f32.mrb[0].mxu0
    %1286 = vmatprep.mubr.bf16.mxu0 0
    %1287 = vmatmul.mubr.bf16.gmra.mrb[0].mxu0 %v1136
    %v1288 = vpop.f32.mrb[0].mxu0
    %v1289 = vadd.f32 0.0, %v1288
    %v1290 = vpop.f32.mrb[0].mxu0
    %v1291 = vpop.f32.mrb[0].mxu0
    %v1292 = vadd.f32 0.0, %v1291
    %v1293 = vpop.f32.mrb[0].mxu0
    %1294 = vmatprep.mubr.bf16.mxu0 0
    %1295 = vmatmul.mubr.bf16.gmra.mrb[0].mxu0 %v1138
    %v1296 = vpop.f32.mrb[0].mxu0
    %v1297 = vadd.f32 0.0, %v1296
    %v1298 = vpop.f32.mrb[0].mxu0
    %v1299 = vpop.f32.mrb[0].mxu0
    %v1300 = vadd.f32 0.0, %v1299
    %v1301 = vpop.f32.mrb[0].mxu0
    %1302 = vmatprep.mubr.bf16.mxu0 0
    %1303 = vmatmul.mubr.bf16.gmra.mrb[0].mxu0 %v1140
    %v1304 = vpop.f32.mrb[0].mxu0
    %v1305 = vadd.f32 0.0, %v1304
    %v1306 = vpop.f32.mrb[0].mxu0
    %v1307 = vpop.f32.mrb[0].mxu0
    %v1308 = vadd.f32 0.0, %v1307
    %v1309 = vpop.f32.mrb[0].mxu0
    %1310 = vdwg.mxu0
    %v1311 = vadd.f32 %v1102, %v1249
    %v1312 = vadd.f32 %v1103, %v1252
    %v1313 = vadd.f32 %v1104, %v1257
    %v1314 = vadd.f32 %v1105, %v1260
    %v1315 = vadd.f32 %v1106, %v1265
    %v1316 = vadd.f32 %v1107, %v1268
    %v1317 = vadd.f32 %v1108, %v1273
    %v1318 = vadd.f32 %v1109, %v1276
    %v1319 = vadd.f32 %v1110, %v1281
    %v1320 = vadd.f32 %v1111, %v1284
    %v1321 = vadd.f32 %v1112, %v1289
    %v1322 = vadd.f32 %v1113, %v1292
    %v1323 = vadd.f32 %v1114, %v1297
    %v1324 = vadd.f32 %v1115, %v1300
    %v1325 = vadd.f32 %v1116, %v1305
    %v1326 = vadd.f32 %v1117, %v1308
    %vm1327 = vsmask.f32 4352
    %v1328 = vrot.slane %v849, 3
    %v1329 = vrot.slane %v852, 4
    %v1330 = vor.u32 %v1328, %v1329
    %v1331 = vrot.slane %v857, 3
    %v1332 = vrot.slane %v860, 4
    %v1333 = vor.u32 %v1331, %v1332
    %v1334 = vsel %vm1327, %v1330, %v1333
    %v1335 = vrot.slane %v866, 3
    %v1336 = vrot.slane %v869, 4
    %v1337 = vor.u32 %v1335, %v1336
    %v1338 = vsel %vm1327, %v1333, %v1337
    %v1339 = vrot.slane %v875, 3
    %v1340 = vrot.slane %v878, 4
    %v1341 = vor.u32 %v1339, %v1340
    %v1342 = vsel %vm1327, %v1337, %v1341
    %v1343 = vrot.slane %v883, 3
    %v1344 = vrot.slane %v886, 4
    %v1345 = vor.u32 %v1343, %v1344
    %v1346 = vsel %vm1327, %v1341, %v1345
    %v1347 = vrot.slane %v891, 3
    %v1348 = vrot.slane %v894, 4
    %v1349 = vor.u32 %v1347, %v1348
    %v1350 = vrot.slane %v899, 3
    %v1351 = vrot.slane %v902, 4
    %v1352 = vor.u32 %v1350, %v1351
    %v1353 = vsel %vm1327, %v1349, %v1352
    %v1354 = vrot.slane %v908, 3
    %v1355 = vrot.slane %v911, 4
    %v1356 = vor.u32 %v1354, %v1355
    %v1357 = vsel %vm1327, %v1352, %v1356
    %v1358 = vrot.slane %v917, 3
    %v1359 = vrot.slane %v920, 4
    %v1360 = vor.u32 %v1358, %v1359
    %v1361 = vsel %vm1327, %v1356, %v1360
    %v1362 = vrot.slane %v925, 3
    %v1363 = vrot.slane %v928, 4
    %v1364 = vor.u32 %v1362, %v1363
    %v1365 = vsel %vm1327, %v1360, %v1364
    %s1374 = scalar_lea.vmem [#allocation15], 128
    %v1375 = vld [vmem:[%s1374] sm:$0xf]
    %v1376 = vld [vmem:[%s1374 + $0x4] sm:$0xf]
    %v1377 = vld [vmem:[%s1374 + $0x8] sm:$0xf]
    %v1378 = vld [vmem:[%s1374 + $0xc] sm:$0xf]
    %v1379 = vld [vmem:[%s1374 + $0x10] sm:$0xf]
    %v1380 = vld [vmem:[%s1374 + $0x14] sm:$0xf]
    %v1381 = vld [vmem:[%s1374 + $0x18] sm:$0xf]
    %v1382 = vld [vmem:[%s1374 + $0x1c] sm:$0xf]
    %v1383 = vld [vmem:[%s1374 + $0x20] sm:$0xf]
    %v1384 = vld [vmem:[%s1374 + $0x24] sm:$0xf]
    %v1385 = vld [vmem:[%s1374 + $0x28] sm:$0xf]
    %v1386 = vld [vmem:[%s1374 + $0x2c] sm:$0xf]
    %v1387 = vld [vmem:[%s1374 + $0x30] sm:$0xf]
    %v1388 = vld [vmem:[%s1374 + $0x34] sm:$0xf]
    %v1389 = vld [vmem:[%s1374 + $0x38] sm:$0xf]
    %v1390 = vld [vmem:[%s1374 + $0x3c] sm:$0xf]
    %v1407 = vunpack.c.l.b16 %v1375
    %v1408 = vunpack.c.l.b16 %v1376
    %v1409 = vunpack.c.l.b16 %v1377
    %v1410 = vunpack.c.l.b16 %v1378
    %v1411 = vunpack.c.l.b16 %v1379
    %v1412 = vunpack.c.l.b16 %v1380
    %v1413 = vunpack.c.l.b16 %v1381
    %v1414 = vunpack.c.l.b16 %v1382
    %v1415 = vunpack.c.l.b16 %v1383
    %v1416 = vunpack.c.l.b16 %v1384
    %v1417 = vunpack.c.l.b16 %v1385
    %v1418 = vunpack.c.l.b16 %v1386
    %v1419 = vunpack.c.l.b16 %v1387
    %v1420 = vunpack.c.l.b16 %v1388
    %v1421 = vunpack.c.l.b16 %v1389
    %v1422 = vunpack.c.l.b16 %v1390
    %v1423 = vpack.c.b16 %v1408, %v1407
    %v1424 = vpack.c.b16 %v1410, %v1409
    %v1425 = vpack.c.b16 %v1412, %v1411
    %v1426 = vpack.c.b16 %v1414, %v1413
    %v1427 = vpack.c.b16 %v1416, %v1415
    %v1428 = vpack.c.b16 %v1418, %v1417
    %v1429 = vpack.c.b16 %v1420, %v1419
    %v1430 = vpack.c.b16 %v1422, %v1421
    %1439 = vmatprep.subr.bf16.mxu0 0
    %1440 = vmatpush1.bf16.msra.mxu0 %v1423
    %1441 = vmatprep.subr.bf16.mxu0 0
    %1442 = vmatpush1.bf16.msra.mxu0 %v1424
    %1443 = vmatprep.subr.bf16.mxu0 0
    %1444 = vmatpush1.bf16.msra.mxu0 %v1425
    %1445 = vmatprep.subr.bf16.mxu0 0
    %1446 = vmatpush1.bf16.msra.mxu0 %v1426
    %1447 = vmatprep.subr.bf16.mxu0 0
    %1448 = vmatpush1.bf16.msra.mxu0 %v1427
    %1449 = vmatprep.subr.bf16.mxu0 0
    %1450 = vmatpush1.bf16.msra.mxu0 %v1428
    %1451 = vmatprep.subr.bf16.mxu0 0
    %1452 = vmatpush1.bf16.msra.mxu0 %v1429
    %1453 = vmatprep.subr.bf16.mxu0 0
    %1454 = vmatpush1.bf16.msra.mxu0 %v1430
    %1455 = vmatprep.subr.bf16.mxu0 0
    %1456 = vmatpush1.bf16.msra.mxu0 0
    %1457 = vmatprep.subr.bf16.mxu0 0
    %1458 = vmatpush1.bf16.msra.mxu0 0
    %1459 = vmatprep.subr.bf16.mxu0 0
    %1460 = vmatpush1.bf16.msra.mxu0 0
    %1461 = vmatprep.subr.bf16.mxu0 0
    %1462 = vmatpush1.bf16.msra.mxu0 0
    %1463 = vmatprep.subr.bf16.mxu0 0
    %1464 = vmatpush1.bf16.msra.mxu0 0
    %1465 = vmatprep.subr.bf16.mxu0 0
    %1466 = vmatpush1.bf16.msra.mxu0 0
    %1467 = vmatprep.subr.bf16.mxu0 0
    %1468 = vmatpush1.bf16.msra.mxu0 0
    %1469 = vmatprep.subr.bf16.mxu0 0
    %1470 = vmatpush1.bf16.msra.mxu0 0
    %1471 = vmatprep.mubr.bf16.mxu0 0
    %1472 = vmatmul.mubr.bf16.gmra.mrb[0].mxu0 %v1334
    %v1473 = vpop.f32.mrb[0].mxu0
    %v1474 = vadd.f32 0.0, %v1473
    %v1475 = vpop.f32.mrb[0].mxu0
    %v1476 = vpop.f32.mrb[0].mxu0
    %v1477 = vadd.f32 0.0, %v1476
    %v1478 = vpop.f32.mrb[0].mxu0
    %1479 = vmatprep.mubr.bf16.mxu0 0
    %1480 = vmatmul.mubr.bf16.gmra.mrb[0].mxu0 %v1338
    %v1481 = vpop.f32.mrb[0].mxu0
    %v1482 = vadd.f32 0.0, %v1481
    %v1483 = vpop.f32.mrb[0].mxu0
    %v1484 = vpop.f32.mrb[0].mxu0
    %v1485 = vadd.f32 0.0, %v1484
    %v1486 = vpop.f32.mrb[0].mxu0
    %1487 = vmatprep.mubr.bf16.mxu0 0
    %1488 = vmatmul.mubr.bf16.gmra.mrb[0].mxu0 %v1342
    %v1489 = vpop.f32.mrb[0].mxu0
    %v1490 = vadd.f32 0.0, %v1489
    %v1491 = vpop.f32.mrb[0].mxu0
    %v1492 = vpop.f32.mrb[0].mxu0
    %v1493 = vadd.f32 0.0, %v1492
    %v1494 = vpop.f32.mrb[0].mxu0
    %1495 = vmatprep.mubr.bf16.mxu0 0
    %1496 = vmatmul.mubr.bf16.gmra.mrb[0].mxu0 %v1346
    %v1497 = vpop.f32.mrb[0].mxu0
    %v1498 = vadd.f32 0.0, %v1497
    %v1499 = vpop.f32.mrb[0].mxu0
    %v1500 = vpop.f32.mrb[0].mxu0
    %v1501 = vadd.f32 0.0, %v1500
    %v1502 = vpop.f32.mrb[0].mxu0
    %1503 = vmatprep.mubr.bf16.mxu0 0
    %1504 = vmatmul.mubr.bf16.gmra.mrb[0].mxu0 %v1353
    %v1505 = vpop.f32.mrb[0].mxu0
    %v1506 = vadd.f32 0.0, %v1505
    %v1507 = vpop.f32.mrb[0].mxu0
    %v1508 = vpop.f32.mrb[0].mxu0
    %v1509 = vadd.f32 0.0, %v1508
    %v1510 = vpop.f32.mrb[0].mxu0
    %1511 = vmatprep.mubr.bf16.mxu0 0
    %1512 = vmatmul.mubr.bf16.gmra.mrb[0].mxu0 %v1357
    %v1513 = vpop.f32.mrb[0].mxu0
    %v1514 = vadd.f32 0.0, %v1513
    %v1515 = vpop.f32.mrb[0].mxu0
    %v1516 = vpop.f32.mrb[0].mxu0
    %v1517 = vadd.f32 0.0, %v1516
    %v1518 = vpop.f32.mrb[0].mxu0
    %1519 = vmatprep.mubr.bf16.mxu0 0
    %1520 = vmatmul.mubr.bf16.gmra.mrb[0].mxu0 %v1361
    %v1521 = vpop.f32.mrb[0].mxu0
    %v1522 = vadd.f32 0.0, %v1521
    %v1523 = vpop.f32.mrb[0].mxu0
    %v1524 = vpop.f32.mrb[0].mxu0
    %v1525 = vadd.f32 0.0, %v1524
    %v1526 = vpop.f32.mrb[0].mxu0
    %1527 = vmatprep.mubr.bf16.mxu0 0
    %1528 = vmatmul.mubr.bf16.gmra.mrb[0].mxu0 %v1365
    %v1529 = vpop.f32.mrb[0].mxu0
    %v1530 = vadd.f32 0.0, %v1529
    %v1531 = vpop.f32.mrb[0].mxu0
    %v1532 = vpop.f32.mrb[0].mxu0
    %v1533 = vadd.f32 0.0, %v1532
    %v1534 = vpop.f32.mrb[0].mxu0
    %1535 = vdwg.mxu0
    %v1536 = vadd.f32 %v1311, %v1474
    %v1537 = vadd.f32 %v1312, %v1477
    %v1538 = vadd.f32 %v1313, %v1482
    %v1539 = vadd.f32 %v1314, %v1485
    %v1540 = vadd.f32 %v1315, %v1490
    %v1541 = vadd.f32 %v1316, %v1493
    %v1542 = vadd.f32 %v1317, %v1498
    %v1543 = vadd.f32 %v1318, %v1501
    %v1544 = vadd.f32 %v1319, %v1506
    %v1545 = vadd.f32 %v1320, %v1509
    %v1546 = vadd.f32 %v1321, %v1514
    %v1547 = vadd.f32 %v1322, %v1517
    %v1548 = vadd.f32 %v1323, %v1522
    %v1549 = vadd.f32 %v1324, %v1525
    %v1550 = vadd.f32 %v1325, %v1530
    %v1551 = vadd.f32 %v1326, %v1533
    %vm1552 = vsmask.f32 3328
    %v1553 = vrot.slane %v849, 4
    %v1554 = vrot.slane %v852, 5
    %v1555 = vor.u32 %v1553, %v1554
    %v1556 = vrot.slane %v857, 4
    %v1557 = vrot.slane %v860, 5
    %v1558 = vor.u32 %v1556, %v1557
    %v1559 = vsel %vm1552, %v1555, %v1558
    %v1560 = vrot.slane %v866, 4
    %v1561 = vrot.slane %v869, 5
    %v1562 = vor.u32 %v1560, %v1561
    %v1563 = vsel %vm1552, %v1558, %v1562
    %v1564 = vrot.slane %v875, 4
    %v1565 = vrot.slane %v878, 5
    %v1566 = vor.u32 %v1564, %v1565
    %v1567 = vsel %vm1552, %v1562, %v1566
    %v1568 = vrot.slane %v883, 4
    %v1569 = vrot.slane %v886, 5
    %v1570 = vor.u32 %v1568, %v1569
    %v1571 = vsel %vm1552, %v1566, %v1570
    %v1572 = vrot.slane %v891, 4
    %v1573 = vrot.slane %v894, 5
    %v1574 = vor.u32 %v1572, %v1573
    %v1575 = vrot.slane %v899, 4
    %v1576 = vrot.slane %v902, 5
    %v1577 = vor.u32 %v1575, %v1576
    %v1578 = vsel %vm1552, %v1574, %v1577
    %v1579 = vrot.slane %v908, 4
    %v1580 = vrot.slane %v911, 5
    %v1581 = vor.u32 %v1579, %v1580
    %v1582 = vsel %vm1552, %v1577, %v1581
    %v1583 = vrot.slane %v917, 4
    %v1584 = vrot.slane %v920, 5
    %v1585 = vor.u32 %v1583, %v1584
    %v1586 = vsel %vm1552, %v1581, %v1585
    %v1587 = vrot.slane %v925, 4
    %v1588 = vrot.slane %v928, 5
    %v1589 = vor.u32 %v1587, %v1588
    %v1590 = vsel %vm1552, %v1585, %v1589
    %s1599 = scalar_lea.vmem [#allocation15], 192
    %v1600 = vld [vmem:[%s1599] sm:$0xf]
    %v1601 = vld [vmem:[%s1599 + $0x4] sm:$0xf]
    %v1602 = vld [vmem:[%s1599 + $0x8] sm:$0xf]
    %v1603 = vld [vmem:[%s1599 + $0xc] sm:$0xf]
    %v1604 = vld [vmem:[%s1599 + $0x10] sm:$0xf]
    %v1605 = vld [vmem:[%s1599 + $0x14] sm:$0xf]
    %v1606 = vld [vmem:[%s1599 + $0x18] sm:$0xf]
    %v1607 = vld [vmem:[%s1599 + $0x1c] sm:$0xf]
    %v1608 = vld [vmem:[%s1599 + $0x20] sm:$0xf]
    %v1609 = vld [vmem:[%s1599 + $0x24] sm:$0xf]
    %v1610 = vld [vmem:[%s1599 + $0x28] sm:$0xf]
    %v1611 = vld [vmem:[%s1599 + $0x2c] sm:$0xf]
    %v1612 = vld [vmem:[%s1599 + $0x30] sm:$0xf]
    %v1613 = vld [vmem:[%s1599 + $0x34] sm:$0xf]
    %v1614 = vld [vmem:[%s1599 + $0x38] sm:$0xf]
    %v1615 = vld [vmem:[%s1599 + $0x3c] sm:$0xf]
    %v1632 = vunpack.c.l.b16 %v1600
    %v1633 = vunpack.c.l.b16 %v1601
    %v1634 = vunpack.c.l.b16 %v1602
    %v1635 = vunpack.c.l.b16 %v1603
    %v1636 = vunpack.c.l.b16 %v1604
    %v1637 = vunpack.c.l.b16 %v1605
    %v1638 = vunpack.c.l.b16 %v1606
    %v1639 = vunpack.c.l.b16 %v1607
    %v1640 = vunpack.c.l.b16 %v1608
    %v1641 = vunpack.c.l.b16 %v1609
    %v1642 = vunpack.c.l.b16 %v1610
    %v1643 = vunpack.c.l.b16 %v1611
    %v1644 = vunpack.c.l.b16 %v1612
    %v1645 = vunpack.c.l.b16 %v1613
    %v1646 = vunpack.c.l.b16 %v1614
    %v1647 = vunpack.c.l.b16 %v1615
    %v1648 = vpack.c.b16 %v1633, %v1632
    %v1649 = vpack.c.b16 %v1635, %v1634
    %v1650 = vpack.c.b16 %v1637, %v1636
    %v1651 = vpack.c.b16 %v1639, %v1638
    %v1652 = vpack.c.b16 %v1641, %v1640
    %v1653 = vpack.c.b16 %v1643, %v1642
    %v1654 = vpack.c.b16 %v1645, %v1644
    %v1655 = vpack.c.b16 %v1647, %v1646
    %1664 = vmatprep.subr.bf16.mxu0 0
    %1665 = vmatpush1.bf16.msra.mxu0 %v1648
    %1666 = vmatprep.subr.bf16.mxu0 0
    %1667 = vmatpush1.bf16.msra.mxu0 %v1649
    %1668 = vmatprep.subr.bf16.mxu0 0
    %1669 = vmatpush1.bf16.msra.mxu0 %v1650
    %1670 = vmatprep.subr.bf16.mxu0 0
    %1671 = vmatpush1.bf16.msra.mxu0 %v1651
    %1672 = vmatprep.subr.bf16.mxu0 0
    %1673 = vmatpush1.bf16.msra.mxu0 %v1652
    %1674 = vmatprep.subr.bf16.mxu0 0
    %1675 = vmatpush1.bf16.msra.mxu0 %v1653
    %1676 = vmatprep.subr.bf16.mxu0 0
    %1677 = vmatpush1.bf16.msra.mxu0 %v1654
    %1678 = vmatprep.subr.bf16.mxu0 0
    %1679 = vmatpush1.bf16.msra.mxu0 %v1655
    %1680 = vmatprep.subr.bf16.mxu0 0
    %1681 = vmatpush1.bf16.msra.mxu0 0
    %1682 = vmatprep.subr.bf16.mxu0 0
    %1683 = vmatpush1.bf16.msra.mxu0 0
    %1684 = vmatprep.subr.bf16.mxu0 0
    %1685 = vmatpush1.bf16.msra.mxu0 0
    %1686 = vmatprep.subr.bf16.mxu0 0
    %1687 = vmatpush1.bf16.msra.mxu0 0
    %1688 = vmatprep.subr.bf16.mxu0 0
    %1689 = vmatpush1.bf16.msra.mxu0 0
    %1690 = vmatprep.subr.bf16.mxu0 0
    %1691 = vmatpush1.bf16.msra.mxu0 0
    %1692 = vmatprep.subr.bf16.mxu0 0
    %1693 = vmatpush1.bf16.msra.mxu0 0
    %1694 = vmatprep.subr.bf16.mxu0 0
    %1695 = vmatpush1.bf16.msra.mxu0 0
    %1696 = vmatprep.mubr.bf16.mxu0 0
    %1697 = vmatmul.mubr.bf16.gmra.mrb[0].mxu0 %v1559
    %v1698 = vpop.f32.mrb[0].mxu0
    %v1699 = vadd.f32 0.0, %v1698
    %v1700 = vpop.f32.mrb[0].mxu0
    %v1701 = vpop.f32.mrb[0].mxu0
    %v1702 = vadd.f32 0.0, %v1701
    %v1703 = vpop.f32.mrb[0].mxu0
    %1704 = vmatprep.mubr.bf16.mxu0 0
    %1705 = vmatmul.mubr.bf16.gmra.mrb[0].mxu0 %v1563
    %v1706 = vpop.f32.mrb[0].mxu0
    %v1707 = vadd.f32 0.0, %v1706
    %v1708 = vpop.f32.mrb[0].mxu0
    %v1709 = vpop.f32.mrb[0].mxu0
    %v1710 = vadd.f32 0.0, %v1709
    %v1711 = vpop.f32.mrb[0].mxu0
    %1712 = vmatprep.mubr.bf16.mxu0 0
    %1713 = vmatmul.mubr.bf16.gmra.mrb[0].mxu0 %v1567
    %v1714 = vpop.f32.mrb[0].mxu0
    %v1715 = vadd.f32 0.0, %v1714
    %v1716 = vpop.f32.mrb[0].mxu0
    %v1717 = vpop.f32.mrb[0].mxu0
    %v1718 = vadd.f32 0.0, %v1717
    %v1719 = vpop.f32.mrb[0].mxu0
    %1720 = vmatprep.mubr.bf16.mxu0 0
    %1721 = vmatmul.mubr.bf16.gmra.mrb[0].mxu0 %v1571
    %v1722 = vpop.f32.mrb[0].mxu0
    %v1723 = vadd.f32 0.0, %v1722
    %v1724 = vpop.f32.mrb[0].mxu0
    %v1725 = vpop.f32.mrb[0].mxu0
    %v1726 = vadd.f32 0.0, %v1725
    %v1727 = vpop.f32.mrb[0].mxu0
    %1728 = vmatprep.mubr.bf16.mxu0 0
    %1729 = vmatmul.mubr.bf16.gmra.mrb[0].mxu0 %v1578
    %v1730 = vpop.f32.mrb[0].mxu0
    %v1731 = vadd.f32 0.0, %v1730
    %v1732 = vpop.f32.mrb[0].mxu0
    %v1733 = vpop.f32.mrb[0].mxu0
    %v1734 = vadd.f32 0.0, %v1733
    %v1735 = vpop.f32.mrb[0].mxu0
    %1736 = vmatprep.mubr.bf16.mxu0 0
    %1737 = vmatmul.mubr.bf16.gmra.mrb[0].mxu0 %v1582
    %v1738 = vpop.f32.mrb[0].mxu0
    %v1739 = vadd.f32 0.0, %v1738
    %v1740 = vpop.f32.mrb[0].mxu0
    %v1741 = vpop.f32.mrb[0].mxu0
    %v1742 = vadd.f32 0.0, %v1741
    %v1743 = vpop.f32.mrb[0].mxu0
    %1744 = vmatprep.mubr.bf16.mxu0 0
    %1745 = vmatmul.mubr.bf16.gmra.mrb[0].mxu0 %v1586
    %v1746 = vpop.f32.mrb[0].mxu0
    %v1747 = vadd.f32 0.0, %v1746
    %v1748 = vpop.f32.mrb[0].mxu0
    %v1749 = vpop.f32.mrb[0].mxu0
    %v1750 = vadd.f32 0.0, %v1749
    %v1751 = vpop.f32.mrb[0].mxu0
    %1752 = vmatprep.mubr.bf16.mxu0 0
    %1753 = vmatmul.mubr.bf16.gmra.mrb[0].mxu0 %v1590
    %v1754 = vpop.f32.mrb[0].mxu0
    %v1755 = vadd.f32 0.0, %v1754
    %v1756 = vpop.f32.mrb[0].mxu0
    %v1757 = vpop.f32.mrb[0].mxu0
    %v1758 = vadd.f32 0.0, %v1757
    %v1759 = vpop.f32.mrb[0].mxu0
    %1760 = vdwg.mxu0
    %v1761 = vadd.f32 %v1536, %v1699
    %v1762 = vadd.f32 %v1537, %v1702
    %v1763 = vadd.f32 %v1538, %v1707
    %v1764 = vadd.f32 %v1539, %v1710
    %v1765 = vadd.f32 %v1540, %v1715
    %v1766 = vadd.f32 %v1541, %v1718
    %v1767 = vadd.f32 %v1542, %v1723
    %v1768 = vadd.f32 %v1543, %v1726
    %v1769 = vadd.f32 %v1544, %v1731
    %v1770 = vadd.f32 %v1545, %v1734
    %v1771 = vadd.f32 %v1546, %v1739
    %v1772 = vadd.f32 %v1547, %v1742
    %v1773 = vadd.f32 %v1548, %v1747
    %v1774 = vadd.f32 %v1549, %v1750
    %v1775 = vadd.f32 %v1550, %v1755
    %v1776 = vadd.f32 %v1551, %v1758
    %vm1777 = vcmask 1042432
    %v1778 = vrot.slane %v841, 5
    %v1779 = vrot.slane %v826, 5
    %v1780 = vsel %vm1777, %v1778, %v1779
    %v1781 = vrot.slane %v828, 5
    %v1782 = vsel %vm1777, %v1779, %v1781
    %v1783 = vrot.slane %v830, 5
    %v1784 = vsel %vm1777, %v1781, %v1783
    %v1785 = vrot.slane %v845, 5
    %v1786 = vsel %vm1777, %v1783, %v1785
    %v1787 = vrot.slane %v843, 5
    %v1788 = vrot.slane %v833, 5
    %v1789 = vsel %vm1777, %v1787, %v1788
    %v1790 = vrot.slane %v835, 5
    %v1791 = vsel %vm1777, %v1788, %v1790
    %v1792 = vrot.slane %v837, 5
    %v1793 = vsel %vm1777, %v1790, %v1792
    %v1794 = vrot.slane %v847, 5
    %v1795 = vsel %vm1777, %v1792, %v1794
    %s1804 = scalar_lea.vmem [#allocation15], 256
    %v1805 = vld [vmem:[%s1804] sm:$0xf]
    %v1806 = vld [vmem:[%s1804 + $0x4] sm:$0xf]
    %v1807 = vld [vmem:[%s1804 + $0x8] sm:$0xf]
    %v1808 = vld [vmem:[%s1804 + $0xc] sm:$0xf]
    %v1809 = vld [vmem:[%s1804 + $0x10] sm:$0xf]
    %v1810 = vld [vmem:[%s1804 + $0x14] sm:$0xf]
    %v1811 = vld [vmem:[%s1804 + $0x18] sm:$0xf]
    %v1812 = vld [vmem:[%s1804 + $0x1c] sm:$0xf]
    %v1813 = vld [vmem:[%s1804 + $0x20] sm:$0xf]
    %v1814 = vld [vmem:[%s1804 + $0x24] sm:$0xf]
    %v1815 = vld [vmem:[%s1804 + $0x28] sm:$0xf]
    %v1816 = vld [vmem:[%s1804 + $0x2c] sm:$0xf]
    %v1817 = vld [vmem:[%s1804 + $0x30] sm:$0xf]
    %v1818 = vld [vmem:[%s1804 + $0x34] sm:$0xf]
    %v1819 = vld [vmem:[%s1804 + $0x38] sm:$0xf]
    %v1820 = vld [vmem:[%s1804 + $0x3c] sm:$0xf]
    %v1837 = vunpack.c.l.b16 %v1805
    %v1838 = vunpack.c.l.b16 %v1806
    %v1839 = vunpack.c.l.b16 %v1807
    %v1840 = vunpack.c.l.b16 %v1808
    %v1841 = vunpack.c.l.b16 %v1809
    %v1842 = vunpack.c.l.b16 %v1810
    %v1843 = vunpack.c.l.b16 %v1811
    %v1844 = vunpack.c.l.b16 %v1812
    %v1845 = vunpack.c.l.b16 %v1813
    %v1846 = vunpack.c.l.b16 %v1814
    %v1847 = vunpack.c.l.b16 %v1815
    %v1848 = vunpack.c.l.b16 %v1816
    %v1849 = vunpack.c.l.b16 %v1817
    %v1850 = vunpack.c.l.b16 %v1818
    %v1851 = vunpack.c.l.b16 %v1819
    %v1852 = vunpack.c.l.b16 %v1820
    %v1853 = vpack.c.b16 %v1838, %v1837
    %v1854 = vpack.c.b16 %v1840, %v1839
    %v1855 = vpack.c.b16 %v1842, %v1841
    %v1856 = vpack.c.b16 %v1844, %v1843
    %v1857 = vpack.c.b16 %v1846, %v1845
    %v1858 = vpack.c.b16 %v1848, %v1847
    %v1859 = vpack.c.b16 %v1850, %v1849
    %v1860 = vpack.c.b16 %v1852, %v1851
    %1869 = vmatprep.subr.bf16.mxu0 0
    %1870 = vmatpush1.bf16.msra.mxu0 %v1853
    %1871 = vmatprep.subr.bf16.mxu0 0
    %1872 = vmatpush1.bf16.msra.mxu0 %v1854
    %1873 = vmatprep.subr.bf16.mxu0 0
    %1874 = vmatpush1.bf16.msra.mxu0 %v1855
    %1875 = vmatprep.subr.bf16.mxu0 0
    %1876 = vmatpush1.bf16.msra.mxu0 %v1856
    %1877 = vmatprep.subr.bf16.mxu0 0
    %1878 = vmatpush1.bf16.msra.mxu0 %v1857
    %1879 = vmatprep.subr.bf16.mxu0 0
    %1880 = vmatpush1.bf16.msra.mxu0 %v1858
    %1881 = vmatprep.subr.bf16.mxu0 0
    %1882 = vmatpush1.bf16.msra.mxu0 %v1859
    %1883 = vmatprep.subr.bf16.mxu0 0
    %1884 = vmatpush1.bf16.msra.mxu0 %v1860
    %1885 = vmatprep.subr.bf16.mxu0 0
    %1886 = vmatpush1.bf16.msra.mxu0 0
    %1887 = vmatprep.subr.bf16.mxu0 0
    %1888 = vmatpush1.bf16.msra.mxu0 0
    %1889 = vmatprep.subr.bf16.mxu0 0
    %1890 = vmatpush1.bf16.msra.mxu0 0
    %1891 = vmatprep.subr.bf16.mxu0 0
    %1892 = vmatpush1.bf16.msra.mxu0 0
    %1893 = vmatprep.subr.bf16.mxu0 0
    %1894 = vmatpush1.bf16.msra.mxu0 0
    %1895 = vmatprep.subr.bf16.mxu0 0
    %1896 = vmatpush1.bf16.msra.mxu0 0
    %1897 = vmatprep.subr.bf16.mxu0 0
    %1898 = vmatpush1.bf16.msra.mxu0 0
    %1899 = vmatprep.subr.bf16.mxu0 0
    %1900 = vmatpush1.bf16.msra.mxu0 0
    %1901 = vmatprep.mubr.bf16.mxu0 0
    %1902 = vmatmul.mubr.bf16.gmra.mrb[0].mxu0 %v1780
    %v1903 = vpop.f32.mrb[0].mxu0
    %v1904 = vadd.f32 0.0, %v1903
    %v1905 = vpop.f32.mrb[0].mxu0
    %v1906 = vpop.f32.mrb[0].mxu0
    %v1907 = vadd.f32 0.0, %v1906
    %v1908 = vpop.f32.mrb[0].mxu0
    %1909 = vmatprep.mubr.bf16.mxu0 0
    %1910 = vmatmul.mubr.bf16.gmra.mrb[0].mxu0 %v1782
    %v1911 = vpop.f32.mrb[0].mxu0
    %v1912 = vadd.f32 0.0, %v1911
    %v1913 = vpop.f32.mrb[0].mxu0
    %v1914 = vpop.f32.mrb[0].mxu0
    %v1915 = vadd.f32 0.0, %v1914
    %v1916 = vpop.f32.mrb[0].mxu0
    %1917 = vmatprep.mubr.bf16.mxu0 0
    %1918 = vmatmul.mubr.bf16.gmra.mrb[0].mxu0 %v1784
    %v1919 = vpop.f32.mrb[0].mxu0
    %v1920 = vadd.f32 0.0, %v1919
    %v1921 = vpop.f32.mrb[0].mxu0
    %v1922 = vpop.f32.mrb[0].mxu0
    %v1923 = vadd.f32 0.0, %v1922
    %v1924 = vpop.f32.mrb[0].mxu0
    %1925 = vmatprep.mubr.bf16.mxu0 0
    %1926 = vmatmul.mubr.bf16.gmra.mrb[0].mxu0 %v1786
    %v1927 = vpop.f32.mrb[0].mxu0
    %v1928 = vadd.f32 0.0, %v1927
    %v1929 = vpop.f32.mrb[0].mxu0
    %v1930 = vpop.f32.mrb[0].mxu0
    %v1931 = vadd.f32 0.0, %v1930
    %v1932 = vpop.f32.mrb[0].mxu0
    %1933 = vmatprep.mubr.bf16.mxu0 0
    %1934 = vmatmul.mubr.bf16.gmra.mrb[0].mxu0 %v1789
    %v1935 = vpop.f32.mrb[0].mxu0
    %v1936 = vadd.f32 0.0, %v1935
    %v1937 = vpop.f32.mrb[0].mxu0
    %v1938 = vpop.f32.mrb[0].mxu0
    %v1939 = vadd.f32 0.0, %v1938
    %v1940 = vpop.f32.mrb[0].mxu0
    %1941 = vmatprep.mubr.bf16.mxu0 0
    %1942 = vmatmul.mubr.bf16.gmra.mrb[0].mxu0 %v1791
    %v1943 = vpop.f32.mrb[0].mxu0
    %v1944 = vadd.f32 0.0, %v1943
    %v1945 = vpop.f32.mrb[0].mxu0
    %v1946 = vpop.f32.mrb[0].mxu0
    %v1947 = vadd.f32 0.0, %v1946
    %v1948 = vpop.f32.mrb[0].mxu0
    %1949 = vmatprep.mubr.bf16.mxu0 0
    %1950 = vmatmul.mubr.bf16.gmra.mrb[0].mxu0 %v1793
    %v1951 = vpop.f32.mrb[0].mxu0
    %v1952 = vadd.f32 0.0, %v1951
    %v1953 = vpop.f32.mrb[0].mxu0
    %v1954 = vpop.f32.mrb[0].mxu0
    %v1955 = vadd.f32 0.0, %v1954
    %v1956 = vpop.f32.mrb[0].mxu0
    %1957 = vmatprep.mubr.bf16.mxu0 0
    %1958 = vmatmul.mubr.bf16.gmra.mrb[0].mxu0 %v1795
    %v1959 = vpop.f32.mrb[0].mxu0
    %v1960 = vadd.f32 0.0, %v1959
    %v1961 = vpop.f32.mrb[0].mxu0
    %v1962 = vpop.f32.mrb[0].mxu0
    %v1963 = vadd.f32 0.0, %v1962
    %v1964 = vpop.f32.mrb[0].mxu0
    %1965 = vdwg.mxu0
    %v1966 = vadd.f32 %v1761, %v1904
    %v1967 = vadd.f32 %v1762, %v1907
    %v1968 = vadd.f32 %v1763, %v1912
    %v1969 = vadd.f32 %v1764, %v1915
    %v1970 = vadd.f32 %v1765, %v1920
    %v1971 = vadd.f32 %v1766, %v1923
    %v1972 = vadd.f32 %v1767, %v1928
    %v1973 = vadd.f32 %v1768, %v1931
    %v1974 = vadd.f32 %v1769, %v1936
    %v1975 = vadd.f32 %v1770, %v1939
    %v1976 = vadd.f32 %v1771, %v1944
    %v1977 = vadd.f32 %v1772, %v1947
    %v1978 = vadd.f32 %v1773, %v1952
    %v1979 = vadd.f32 %v1774, %v1955
    %v1980 = vadd.f32 %v1775, %v1960
    %v1981 = vadd.f32 %v1776, %v1963
    %vm1982 = vsmask.f32 2304
    %v1983 = vrot.slane %v849, 5
    %v1984 = vrot.slane %v852, 6
    %v1985 = vor.u32 %v1983, %v1984
    %v1986 = vrot.slane %v857, 5
    %v1987 = vrot.slane %v860, 6
    %v1988 = vor.u32 %v1986, %v1987
    %v1989 = vsel %vm1982, %v1985, %v1988
    %v1990 = vrot.slane %v866, 5
    %v1991 = vrot.slane %v869, 6
    %v1992 = vor.u32 %v1990, %v1991
    %v1993 = vsel %vm1982, %v1988, %v1992
    %v1994 = vrot.slane %v875, 5
    %v1995 = vrot.slane %v878, 6
    %v1996 = vor.u32 %v1994, %v1995
    %v1997 = vsel %vm1982, %v1992, %v1996
    %v1998 = vrot.slane %v883, 5
    %v1999 = vrot.slane %v886, 6
    %v2000 = vor.u32 %v1998, %v1999
    %v2001 = vsel %vm1982, %v1996, %v2000
    %v2002 = vrot.slane %v891, 5
    %v2003 = vrot.slane %v894, 6
    %v2004 = vor.u32 %v2002, %v2003
    %v2005 = vrot.slane %v899, 5
    %v2006 = vrot.slane %v902, 6
    %v2007 = vor.u32 %v2005, %v2006
    %v2008 = vsel %vm1982, %v2004, %v2007
    %v2009 = vrot.slane %v908, 5
    %v2010 = vrot.slane %v911, 6
    %v2011 = vor.u32 %v2009, %v2010
    %v2012 = vsel %vm1982, %v2007, %v2011
    %v2013 = vrot.slane %v917, 5
    %v2014 = vrot.slane %v920, 6
    %v2015 = vor.u32 %v2013, %v2014
    %v2016 = vsel %vm1982, %v2011, %v2015
    %v2017 = vrot.slane %v925, 5
    %v2018 = vrot.slane %v928, 6
    %v2019 = vor.u32 %v2017, %v2018
    %v2020 = vsel %vm1982, %v2015, %v2019
    %s2029 = scalar_lea.vmem [#allocation15], 320
    %v2030 = vld [vmem:[%s2029] sm:$0xf]
    %v2031 = vld [vmem:[%s2029 + $0x4] sm:$0xf]
    %v2032 = vld [vmem:[%s2029 + $0x8] sm:$0xf]
    %v2033 = vld [vmem:[%s2029 + $0xc] sm:$0xf]
    %v2034 = vld [vmem:[%s2029 + $0x10] sm:$0xf]
    %v2035 = vld [vmem:[%s2029 + $0x14] sm:$0xf]
    %v2036 = vld [vmem:[%s2029 + $0x18] sm:$0xf]
    %v2037 = vld [vmem:[%s2029 + $0x1c] sm:$0xf]
    %v2038 = vld [vmem:[%s2029 + $0x20] sm:$0xf]
    %v2039 = vld [vmem:[%s2029 + $0x24] sm:$0xf]
    %v2040 = vld [vmem:[%s2029 + $0x28] sm:$0xf]
    %v2041 = vld [vmem:[%s2029 + $0x2c] sm:$0xf]
    %v2042 = vld [vmem:[%s2029 + $0x30] sm:$0xf]
    %v2043 = vld [vmem:[%s2029 + $0x34] sm:$0xf]
    %v2044 = vld [vmem:[%s2029 + $0x38] sm:$0xf]
    %v2045 = vld [vmem:[%s2029 + $0x3c] sm:$0xf]
    %v2062 = vunpack.c.l.b16 %v2030
    %v2063 = vunpack.c.l.b16 %v2031
    %v2064 = vunpack.c.l.b16 %v2032
    %v2065 = vunpack.c.l.b16 %v2033
    %v2066 = vunpack.c.l.b16 %v2034
    %v2067 = vunpack.c.l.b16 %v2035
    %v2068 = vunpack.c.l.b16 %v2036
    %v2069 = vunpack.c.l.b16 %v2037
    %v2070 = vunpack.c.l.b16 %v2038
    %v2071 = vunpack.c.l.b16 %v2039
    %v2072 = vunpack.c.l.b16 %v2040
    %v2073 = vunpack.c.l.b16 %v2041
    %v2074 = vunpack.c.l.b16 %v2042
    %v2075 = vunpack.c.l.b16 %v2043
    %v2076 = vunpack.c.l.b16 %v2044
    %v2077 = vunpack.c.l.b16 %v2045
    %v2078 = vpack.c.b16 %v2063, %v2062
    %v2079 = vpack.c.b16 %v2065, %v2064
    %v2080 = vpack.c.b16 %v2067, %v2066
    %v2081 = vpack.c.b16 %v2069, %v2068
    %v2082 = vpack.c.b16 %v2071, %v2070
    %v2083 = vpack.c.b16 %v2073, %v2072
    %v2084 = vpack.c.b16 %v2075, %v2074
    %v2085 = vpack.c.b16 %v2077, %v2076
    %2094 = vmatprep.subr.bf16.mxu0 0
    %2095 = vmatpush1.bf16.msra.mxu0 %v2078
    %2096 = vmatprep.subr.bf16.mxu0 0
    %2097 = vmatpush1.bf16.msra.mxu0 %v2079
    %2098 = vmatprep.subr.bf16.mxu0 0
    %2099 = vmatpush1.bf16.msra.mxu0 %v2080
    %2100 = vmatprep.subr.bf16.mxu0 0
    %2101 = vmatpush1.bf16.msra.mxu0 %v2081
    %2102 = vmatprep.subr.bf16.mxu0 0
    %2103 = vmatpush1.bf16.msra.mxu0 %v2082
    %2104 = vmatprep.subr.bf16.mxu0 0
    %2105 = vmatpush1.bf16.msra.mxu0 %v2083
    %2106 = vmatprep.subr.bf16.mxu0 0
    %2107 = vmatpush1.bf16.msra.mxu0 %v2084
    %2108 = vmatprep.subr.bf16.mxu0 0
    %2109 = vmatpush1.bf16.msra.mxu0 %v2085
    %2110 = vmatprep.subr.bf16.mxu0 0
    %2111 = vmatpush1.bf16.msra.mxu0 0
    %2112 = vmatprep.subr.bf16.mxu0 0
    %2113 = vmatpush1.bf16.msra.mxu0 0
    %2114 = vmatprep.subr.bf16.mxu0 0
    %2115 = vmatpush1.bf16.msra.mxu0 0
    %2116 = vmatprep.subr.bf16.mxu0 0
    %2117 = vmatpush1.bf16.msra.mxu0 0
    %2118 = vmatprep.subr.bf16.mxu0 0
    %2119 = vmatpush1.bf16.msra.mxu0 0
    %2120 = vmatprep.subr.bf16.mxu0 0
    %2121 = vmatpush1.bf16.msra.mxu0 0
    %2122 = vmatprep.subr.bf16.mxu0 0
    %2123 = vmatpush1.bf16.msra.mxu0 0
    %2124 = vmatprep.subr.bf16.mxu0 0
    %2125 = vmatpush1.bf16.msra.mxu0 0
    %2126 = vmatprep.mubr.bf16.mxu0 0
    %2127 = vmatmul.mubr.bf16.gmra.mrb[0].mxu0 %v1989
    %v2128 = vpop.f32.mrb[0].mxu0
    %v2129 = vadd.f32 0.0, %v2128
    %v2130 = vpop.f32.mrb[0].mxu0
    %v2131 = vpop.f32.mrb[0].mxu0
    %v2132 = vadd.f32 0.0, %v2131
    %v2133 = vpop.f32.mrb[0].mxu0
    %2134 = vmatprep.mubr.bf16.mxu0 0
    %2135 = vmatmul.mubr.bf16.gmra.mrb[0].mxu0 %v1993
    %v2136 = vpop.f32.mrb[0].mxu0
    %v2137 = vadd.f32 0.0, %v2136
    %v2138 = vpop.f32.mrb[0].mxu0
    %v2139 = vpop.f32.mrb[0].mxu0
    %v2140 = vadd.f32 0.0, %v2139
    %v2141 = vpop.f32.mrb[0].mxu0
    %2142 = vmatprep.mubr.bf16.mxu0 0
    %2143 = vmatmul.mubr.bf16.gmra.mrb[0].mxu0 %v1997
    %v2144 = vpop.f32.mrb[0].mxu0
    %v2145 = vadd.f32 0.0, %v2144
    %v2146 = vpop.f32.mrb[0].mxu0
    %v2147 = vpop.f32.mrb[0].mxu0
    %v2148 = vadd.f32 0.0, %v2147
    %v2149 = vpop.f32.mrb[0].mxu0
    %2150 = vmatprep.mubr.bf16.mxu0 0
    %2151 = vmatmul.mubr.bf16.gmra.mrb[0].mxu0 %v2001
    %v2152 = vpop.f32.mrb[0].mxu0
    %v2153 = vadd.f32 0.0, %v2152
    %v2154 = vpop.f32.mrb[0].mxu0
    %v2155 = vpop.f32.mrb[0].mxu0
    %v2156 = vadd.f32 0.0, %v2155
    %v2157 = vpop.f32.mrb[0].mxu0
    %2158 = vmatprep.mubr.bf16.mxu0 0
    %2159 = vmatmul.mubr.bf16.gmra.mrb[0].mxu0 %v2008
    %v2160 = vpop.f32.mrb[0].mxu0
    %v2161 = vadd.f32 0.0, %v2160
    %v2162 = vpop.f32.mrb[0].mxu0
    %v2163 = vpop.f32.mrb[0].mxu0
    %v2164 = vadd.f32 0.0, %v2163
    %v2165 = vpop.f32.mrb[0].mxu0
    %2166 = vmatprep.mubr.bf16.mxu0 0
    %2167 = vmatmul.mubr.bf16.gmra.mrb[0].mxu0 %v2012
    %v2168 = vpop.f32.mrb[0].mxu0
    %v2169 = vadd.f32 0.0, %v2168
    %v2170 = vpop.f32.mrb[0].mxu0
    %v2171 = vpop.f32.mrb[0].mxu0
    %v2172 = vadd.f32 0.0, %v2171
    %v2173 = vpop.f32.mrb[0].mxu0
    %2174 = vmatprep.mubr.bf16.mxu0 0
    %2175 = vmatmul.mubr.bf16.gmra.mrb[0].mxu0 %v2016
    %v2176 = vpop.f32.mrb[0].mxu0
    %v2177 = vadd.f32 0.0, %v2176
    %v2178 = vpop.f32.mrb[0].mxu0
    %v2179 = vpop.f32.mrb[0].mxu0
    %v2180 = vadd.f32 0.0, %v2179
    %v2181 = vpop.f32.mrb[0].mxu0
    %2182 = vmatprep.mubr.bf16.mxu0 0
    %2183 = vmatmul.mubr.bf16.gmra.mrb[0].mxu0 %v2020
    %v2184 = vpop.f32.mrb[0].mxu0
    %v2185 = vadd.f32 0.0, %v2184
    %v2186 = vpop.f32.mrb[0].mxu0
    %v2187 = vpop.f32.mrb[0].mxu0
    %v2188 = vadd.f32 0.0, %v2187
    %v2189 = vpop.f32.mrb[0].mxu0
    %2190 = vdwg.mxu0
    %v2191 = vadd.f32 %v1966, %v2129
    %v2192 = vadd.f32 %v1967, %v2132
    %v2193 = vadd.f32 %v1968, %v2137
    %v2194 = vadd.f32 %v1969, %v2140
    %v2195 = vadd.f32 %v1970, %v2145
    %v2196 = vadd.f32 %v1971, %v2148
    %v2197 = vadd.f32 %v1972, %v2153
    %v2198 = vadd.f32 %v1973, %v2156
    %v2199 = vadd.f32 %v1974, %v2161
    %v2200 = vadd.f32 %v1975, %v2164
    %v2201 = vadd.f32 %v1976, %v2169
    %v2202 = vadd.f32 %v1977, %v2172
    %v2203 = vadd.f32 %v1978, %v2177
    %v2204 = vadd.f32 %v1979, %v2180
    %v2205 = vadd.f32 %v1980, %v2185
    %v2206 = vadd.f32 %v1981, %v2188
    %v2207 = vld [vmem:[#allocation18] sm:$0x1]
    %v2209 = vlaneseq
    %v2210 = vshrl.u32 %v2209, 7
    %v2211 = vsub.s32 0, %v2210
    %v2212 = vrot.slane %v2207, %v2211
    %v2214 = vmul.f32 %v2191, %v2212
    %v2215 = vmul.f32 %v2192, %v2212
    %v2216 = vmul.f32 %v2193, %v2212
    %v2217 = vmul.f32 %v2194, %v2212
    %v2218 = vmul.f32 %v2195, %v2212
    %v2219 = vmul.f32 %v2196, %v2212
    %v2220 = vmul.f32 %v2197, %v2212
    %v2221 = vmul.f32 %v2198, %v2212
    %v2222 = vmul.f32 %v2199, %v2212
    %v2223 = vmul.f32 %v2200, %v2212
    %v2224 = vmul.f32 %v2201, %v2212
    %v2225 = vmul.f32 %v2202, %v2212
    %v2226 = vmul.f32 %v2203, %v2212
    %v2227 = vmul.f32 %v2204, %v2212
    %v2228 = vmul.f32 %v2205, %v2212
    %v2229 = vmul.f32 %v2206, %v2212
    %v2230 = vld [vmem:[#allocation19] sm:$0x1]
    %v2232 = vlaneseq
    %v2233 = vshrl.u32 %v2232, 7
    %v2234 = vsub.s32 0, %v2233
    %v2235 = vrot.slane %v2230, %v2234
    %v2237 = vadd.f32 %v2214, %v2235
    %v2238 = vadd.f32 %v2215, %v2235
    %v2239 = vadd.f32 %v2216, %v2235
    %v2240 = vadd.f32 %v2217, %v2235
    %v2241 = vadd.f32 %v2218, %v2235
    %v2242 = vadd.f32 %v2219, %v2235
    %v2243 = vadd.f32 %v2220, %v2235
    %v2244 = vadd.f32 %v2221, %v2235
    %v2245 = vadd.f32 %v2222, %v2235
    %v2246 = vadd.f32 %v2223, %v2235
    %v2247 = vadd.f32 %v2224, %v2235
    %v2248 = vadd.f32 %v2225, %v2235
    %v2249 = vadd.f32 %v2226, %v2235
    %v2250 = vadd.f32 %v2227, %v2235
    %v2251 = vadd.f32 %v2228, %v2235
    %v2252 = vadd.f32 %v2229, %v2235
    %v2253 = vmax.f32 %v2237, 0.0
    %v2254 = vmax.f32 %v2238, 0.0
    %v2255 = vmax.f32 %v2239, 0.0
    %v2256 = vmax.f32 %v2240, 0.0
    %v2257 = vmax.f32 %v2241, 0.0
    %v2258 = vmax.f32 %v2242, 0.0
    %v2259 = vmax.f32 %v2243, 0.0
    %v2260 = vmax.f32 %v2244, 0.0
    %v2261 = vmax.f32 %v2245, 0.0
    %v2262 = vmax.f32 %v2246, 0.0
    %v2263 = vmax.f32 %v2247, 0.0
    %v2264 = vmax.f32 %v2248, 0.0
    %v2265 = vmax.f32 %v2249, 0.0
    %v2266 = vmax.f32 %v2250, 0.0
    %v2267 = vmax.f32 %v2251, 0.0
    %v2268 = vmax.f32 %v2252, 0.0
    %v2269 = vpack.c.bf16 %v2254, %v2253
    %v2270 = vpack.c.bf16 %v2256, %v2255
    %v2271 = vpack.c.bf16 %v2258, %v2257
    %v2272 = vpack.c.bf16 %v2260, %v2259
    %v2273 = vpack.c.bf16 %v2262, %v2261
    %v2274 = vpack.c.bf16 %v2264, %v2263
    %v2275 = vpack.c.bf16 %v2266, %v2265
    %v2276 = vpack.c.bf16 %v2268, %v2267
    %s2277 = scalar_lea.vmem [#allocation16], 192
    %v2278 = vld [vmem:[%s2277] sm:$0xf]
    %v2279 = vld [vmem:[%s2277 + $0x4] sm:$0xf]
    %v2280 = vld [vmem:[%s2277 + $0x8] sm:$0xf]
    %v2281 = vld [vmem:[%s2277 + $0xc] sm:$0xf]
    %v2282 = vld [vmem:[%s2277 + $0x10] sm:$0xf]
    %v2283 = vld [vmem:[%s2277 + $0x14] sm:$0xf]
    %v2284 = vld [vmem:[%s2277 + $0x18] sm:$0xf]
    %v2285 = vld [vmem:[%s2277 + $0x1c] sm:$0xf]
    %v2286 = vld [vmem:[%s2277 + $0x20] sm:$0xf]
    %v2287 = vld [vmem:[%s2277 + $0x24] sm:$0xf]
    %v2288 = vld [vmem:[%s2277 + $0x28] sm:$0xf]
    %v2289 = vld [vmem:[%s2277 + $0x2c] sm:$0xf]
    %v2290 = vld [vmem:[%s2277 + $0x30] sm:$0xf]
    %v2291 = vld [vmem:[%s2277 + $0x34] sm:$0xf]
    %v2292 = vld [vmem:[%s2277 + $0x38] sm:$0xf]
    %v2293 = vld [vmem:[%s2277 + $0x3c] sm:$0xf]
    %v2302 = vrot.slane %v2269, 4
    %v2303 = vrot.slane %v2270, 4
    %v2304 = vsel %vm823, %v2302, %v2303
    %v2305 = vrot.slane %v2271, 4
    %v2306 = vsel %vm823, %v2303, %v2305
    %v2307 = vrot.slane %v2272, 4
    %v2308 = vsel %vm823, %v2305, %v2307
    %v2309 = vrot.slane %v2273, 4
    %v2310 = vrot.slane %v2274, 4
    %v2311 = vsel %vm823, %v2309, %v2310
    %v2312 = vrot.slane %v2275, 4
    %v2313 = vsel %vm823, %v2310, %v2312
    %v2314 = vrot.slane %v2276, 4
    %v2315 = vsel %vm823, %v2312, %v2314
    %v2317 = vsel %vm838, 0, %v2302
    %v2319 = vsel %vm838, 0, %v2309
    %v2321 = vsel %vm838, %v2307, 0
    %v2323 = vsel %vm838, %v2314, 0
    %v2324 = vshrl.u32 %v2317, 16
    %v2326 = vrot.slane %v2324, 2
    %v2327 = vshll.u32 %v2317, 16
    %v2329 = vrot.slane %v2327, 3
    %v2330 = vor.u32 %v2326, %v2329
    %v2332 = vshrl.u32 %v2304, 16
    %v2334 = vrot.slane %v2332, 2
    %v2335 = vshll.u32 %v2304, 16
    %v2337 = vrot.slane %v2335, 3
    %v2338 = vor.u32 %v2334, %v2337
    %v2339 = vsel %vm848, %v2330, %v2338
    %v2341 = vshrl.u32 %v2306, 16
    %v2343 = vrot.slane %v2341, 2
    %v2344 = vshll.u32 %v2306, 16
    %v2346 = vrot.slane %v2344, 3
    %v2347 = vor.u32 %v2343, %v2346
    %v2348 = vsel %vm848, %v2338, %v2347
    %v2350 = vshrl.u32 %v2308, 16
    %v2352 = vrot.slane %v2350, 2
    %v2353 = vshll.u32 %v2308, 16
    %v2355 = vrot.slane %v2353, 3
    %v2356 = vor.u32 %v2352, %v2355
    %v2357 = vsel %vm848, %v2347, %v2356
    %v2358 = vshrl.u32 %v2321, 16
    %v2360 = vrot.slane %v2358, 2
    %v2361 = vshll.u32 %v2321, 16
    %v2363 = vrot.slane %v2361, 3
    %v2364 = vor.u32 %v2360, %v2363
    %v2365 = vsel %vm848, %v2356, %v2364
    %v2366 = vshrl.u32 %v2319, 16
    %v2368 = vrot.slane %v2366, 2
    %v2369 = vshll.u32 %v2319, 16
    %v2371 = vrot.slane %v2369, 3
    %v2372 = vor.u32 %v2368, %v2371
    %v2374 = vshrl.u32 %v2311, 16
    %v2376 = vrot.slane %v2374, 2
    %v2377 = vshll.u32 %v2311, 16
    %v2379 = vrot.slane %v2377, 3
    %v2380 = vor.u32 %v2376, %v2379
    %v2381 = vsel %vm848, %v2372, %v2380
    %v2383 = vshrl.u32 %v2313, 16
    %v2385 = vrot.slane %v2383, 2
    %v2386 = vshll.u32 %v2313, 16
    %v2388 = vrot.slane %v2386, 3
    %v2389 = vor.u32 %v2385, %v2388
    %v2390 = vsel %vm848, %v2380, %v2389
    %v2392 = vshrl.u32 %v2315, 16
    %v2394 = vrot.slane %v2392, 2
    %v2395 = vshll.u32 %v2315, 16
    %v2397 = vrot.slane %v2395, 3
    %v2398 = vor.u32 %v2394, %v2397
    %v2399 = vsel %vm848, %v2389, %v2398
    %v2400 = vshrl.u32 %v2323, 16
    %v2402 = vrot.slane %v2400, 2
    %v2403 = vshll.u32 %v2323, 16
    %v2405 = vrot.slane %v2403, 3
    %v2406 = vor.u32 %v2402, %v2405
    %v2407 = vsel %vm848, %v2398, %v2406
    %v2416 = vld [vmem:[#allocation16] sm:$0xf]
    %v2417 = vld [vmem:[#allocation16 + $0x4] sm:$0xf]
    %v2418 = vld [vmem:[#allocation16 + $0x8] sm:$0xf]
    %v2419 = vld [vmem:[#allocation16 + $0xc] sm:$0xf]
    %v2420 = vld [vmem:[#allocation16 + $0x10] sm:$0xf]
    %v2421 = vld [vmem:[#allocation16 + $0x14] sm:$0xf]
    %v2422 = vld [vmem:[#allocation16 + $0x18] sm:$0xf]
    %v2423 = vld [vmem:[#allocation16 + $0x1c] sm:$0xf]
    %v2424 = vld [vmem:[#allocation16 + $0x20] sm:$0xf]
    %v2425 = vld [vmem:[#allocation16 + $0x24] sm:$0xf]
    %v2426 = vld [vmem:[#allocation16 + $0x28] sm:$0xf]
    %v2427 = vld [vmem:[#allocation16 + $0x2c] sm:$0xf]
    %v2428 = vld [vmem:[#allocation16 + $0x30] sm:$0xf]
    %v2429 = vld [vmem:[#allocation16 + $0x34] sm:$0xf]
    %v2430 = vld [vmem:[#allocation16 + $0x38] sm:$0xf]
    %v2431 = vld [vmem:[#allocation16 + $0x3c] sm:$0xf]
    %v2448 = vunpack.c.l.b16 %v2416
    %v2449 = vunpack.c.l.b16 %v2417
    %v2450 = vunpack.c.l.b16 %v2418
    %v2451 = vunpack.c.l.b16 %v2419
    %v2452 = vunpack.c.l.b16 %v2420
    %v2453 = vunpack.c.l.b16 %v2421
    %v2454 = vunpack.c.l.b16 %v2422
    %v2455 = vunpack.c.l.b16 %v2423
    %v2456 = vunpack.c.l.b16 %v2424
    %v2457 = vunpack.c.l.b16 %v2425
    %v2458 = vunpack.c.l.b16 %v2426
    %v2459 = vunpack.c.l.b16 %v2427
    %v2460 = vunpack.c.l.b16 %v2428
    %v2461 = vunpack.c.l.b16 %v2429
    %v2462 = vunpack.c.l.b16 %v2430
    %v2463 = vunpack.c.l.b16 %v2431
    %v2464 = vpack.c.b16 %v2449, %v2448
    %v2465 = vpack.c.b16 %v2451, %v2450
    %v2466 = vpack.c.b16 %v2453, %v2452
    %v2467 = vpack.c.b16 %v2455, %v2454
    %v2468 = vpack.c.b16 %v2457, %v2456
    %v2469 = vpack.c.b16 %v2459, %v2458
    %v2470 = vpack.c.b16 %v2461, %v2460
    %v2471 = vpack.c.b16 %v2463, %v2462
    %2480 = vmatprep.subr.bf16.mxu0 0
    %2481 = vmatpush1.bf16.msra.mxu0 %v2464
    %2482 = vmatprep.subr.bf16.mxu0 0
    %2483 = vmatpush1.bf16.msra.mxu0 %v2465
    %2484 = vmatprep.subr.bf16.mxu0 0
    %2485 = vmatpush1.bf16.msra.mxu0 %v2466
    %2486 = vmatprep.subr.bf16.mxu0 0
    %2487 = vmatpush1.bf16.msra.mxu0 %v2467
    %2488 = vmatprep.subr.bf16.mxu0 0
    %2489 = vmatpush1.bf16.msra.mxu0 %v2468
    %2490 = vmatprep.subr.bf16.mxu0 0
    %2491 = vmatpush1.bf16.msra.mxu0 %v2469
    %2492 = vmatprep.subr.bf16.mxu0 0
    %2493 = vmatpush1.bf16.msra.mxu0 %v2470
    %2494 = vmatprep.subr.bf16.mxu0 0
    %2495 = vmatpush1.bf16.msra.mxu0 %v2471
    %2496 = vmatprep.subr.bf16.mxu0 0
    %2497 = vmatpush1.bf16.msra.mxu0 0
    %2498 = vmatprep.subr.bf16.mxu0 0
    %2499 = vmatpush1.bf16.msra.mxu0 0
    %2500 = vmatprep.subr.bf16.mxu0 0
    %2501 = vmatpush1.bf16.msra.mxu0 0
    %2502 = vmatprep.subr.bf16.mxu0 0
    %2503 = vmatpush1.bf16.msra.mxu0 0
    %2504 = vmatprep.subr.bf16.mxu0 0
    %2505 = vmatpush1.bf16.msra.mxu0 0
    %2506 = vmatprep.subr.bf16.mxu0 0
    %2507 = vmatpush1.bf16.msra.mxu0 0
    %2508 = vmatprep.subr.bf16.mxu0 0
    %2509 = vmatpush1.bf16.msra.mxu0 0
    %2510 = vmatprep.subr.bf16.mxu0 0
    %2511 = vmatpush1.bf16.msra.mxu0 0
    %2512 = vmatprep.mubr.bf16.mxu0 0
    %2513 = vmatmul.mubr.bf16.gmra.mrb[0].mxu0 %v2339
    %v2514 = vpop.f32.mrb[0].mxu0
    %v2515 = vadd.f32 0.0, %v2514
    %v2516 = vpop.f32.mrb[0].mxu0
    %v2517 = vpop.f32.mrb[0].mxu0
    %v2518 = vadd.f32 0.0, %v2517
    %v2519 = vpop.f32.mrb[0].mxu0
    %2520 = vmatprep.mubr.bf16.mxu0 0
    %2521 = vmatmul.mubr.bf16.gmra.mrb[0].mxu0 %v2348
    %v2522 = vpop.f32.mrb[0].mxu0
    %v2523 = vadd.f32 0.0, %v2522
    %v2524 = vpop.f32.mrb[0].mxu0
    %v2525 = vpop.f32.mrb[0].mxu0
    %v2526 = vadd.f32 0.0, %v2525
    %v2527 = vpop.f32.mrb[0].mxu0
    %2528 = vmatprep.mubr.bf16.mxu0 0
    %2529 = vmatmul.mubr.bf16.gmra.mrb[0].mxu0 %v2357
    %v2530 = vpop.f32.mrb[0].mxu0
    %v2531 = vadd.f32 0.0, %v2530
    %v2532 = vpop.f32.mrb[0].mxu0
    %v2533 = vpop.f32.mrb[0].mxu0
    %v2534 = vadd.f32 0.0, %v2533
    %v2535 = vpop.f32.mrb[0].mxu0
    %2536 = vmatprep.mubr.bf16.mxu0 0
    %2537 = vmatmul.mubr.bf16.gmra.mrb[0].mxu0 %v2365
    %v2538 = vpop.f32.mrb[0].mxu0
    %v2539 = vadd.f32 0.0, %v2538
    %v2540 = vpop.f32.mrb[0].mxu0
    %v2541 = vpop.f32.mrb[0].mxu0
    %v2542 = vadd.f32 0.0, %v2541
    %v2543 = vpop.f32.mrb[0].mxu0
    %2544 = vmatprep.mubr.bf16.mxu0 0
    %2545 = vmatmul.mubr.bf16.gmra.mrb[0].mxu0 %v2381
    %v2546 = vpop.f32.mrb[0].mxu0
    %v2547 = vadd.f32 0.0, %v2546
    %v2548 = vpop.f32.mrb[0].mxu0
    %v2549 = vpop.f32.mrb[0].mxu0
    %v2550 = vadd.f32 0.0, %v2549
    %v2551 = vpop.f32.mrb[0].mxu0
    %2552 = vmatprep.mubr.bf16.mxu0 0
    %2553 = vmatmul.mubr.bf16.gmra.mrb[0].mxu0 %v2390
    %v2554 = vpop.f32.mrb[0].mxu0
    %v2555 = vadd.f32 0.0, %v2554
    %v2556 = vpop.f32.mrb[0].mxu0
    %v2557 = vpop.f32.mrb[0].mxu0
    %v2558 = vadd.f32 0.0, %v2557
    %v2559 = vpop.f32.mrb[0].mxu0
    %2560 = vmatprep.mubr.bf16.mxu0 0
    %2561 = vmatmul.mubr.bf16.gmra.mrb[0].mxu0 %v2399
    %v2562 = vpop.f32.mrb[0].mxu0
    %v2563 = vadd.f32 0.0, %v2562
    %v2564 = vpop.f32.mrb[0].mxu0
    %v2565 = vpop.f32.mrb[0].mxu0
    %v2566 = vadd.f32 0.0, %v2565
    %v2567 = vpop.f32.mrb[0].mxu0
    %2568 = vmatprep.mubr.bf16.mxu0 0
    %2569 = vmatmul.mubr.bf16.gmra.mrb[0].mxu0 %v2407
    %v2570 = vpop.f32.mrb[0].mxu0
    %v2571 = vadd.f32 0.0, %v2570
    %v2572 = vpop.f32.mrb[0].mxu0
    %v2573 = vpop.f32.mrb[0].mxu0
    %v2574 = vadd.f32 0.0, %v2573
    %v2575 = vpop.f32.mrb[0].mxu0
    %2576 = vdwg.mxu0
    %v2593 = vunpack.c.l.b16 %v2278
    %v2594 = vunpack.c.l.b16 %v2279
    %v2595 = vunpack.c.l.b16 %v2280
    %v2596 = vunpack.c.l.b16 %v2281
    %v2597 = vunpack.c.l.b16 %v2282
    %v2598 = vunpack.c.l.b16 %v2283
    %v2599 = vunpack.c.l.b16 %v2284
    %v2600 = vunpack.c.l.b16 %v2285
    %v2601 = vunpack.c.l.b16 %v2286
    %v2602 = vunpack.c.l.b16 %v2287
    %v2603 = vunpack.c.l.b16 %v2288
    %v2604 = vunpack.c.l.b16 %v2289
    %v2605 = vunpack.c.l.b16 %v2290
    %v2606 = vunpack.c.l.b16 %v2291
    %v2607 = vunpack.c.l.b16 %v2292
    %v2608 = vunpack.c.l.b16 %v2293
    %v2609 = vpack.c.b16 %v2594, %v2593
    %v2610 = vpack.c.b16 %v2596, %v2595
    %v2611 = vpack.c.b16 %v2598, %v2597
    %v2612 = vpack.c.b16 %v2600, %v2599
    %v2613 = vpack.c.b16 %v2602, %v2601
    %v2614 = vpack.c.b16 %v2604, %v2603
    %v2615 = vpack.c.b16 %v2606, %v2605
    %v2616 = vpack.c.b16 %v2608, %v2607
    %2625 = vmatprep.subr.bf16.mxu0 0
    %2626 = vmatpush1.bf16.msra.mxu0 %v2609
    %2627 = vmatprep.subr.bf16.mxu0 0
    %2628 = vmatpush1.bf16.msra.mxu0 %v2610
    %2629 = vmatprep.subr.bf16.mxu0 0
    %2630 = vmatpush1.bf16.msra.mxu0 %v2611
    %2631 = vmatprep.subr.bf16.mxu0 0
    %2632 = vmatpush1.bf16.msra.mxu0 %v2612
    %2633 = vmatprep.subr.bf16.mxu0 0
    %2634 = vmatpush1.bf16.msra.mxu0 %v2613
    %2635 = vmatprep.subr.bf16.mxu0 0
    %2636 = vmatpush1.bf16.msra.mxu0 %v2614
    %2637 = vmatprep.subr.bf16.mxu0 0
    %2638 = vmatpush1.bf16.msra.mxu0 %v2615
    %2639 = vmatprep.subr.bf16.mxu0 0
    %2640 = vmatpush1.bf16.msra.mxu0 %v2616
    %2641 = vmatprep.subr.bf16.mxu0 0
    %2642 = vmatpush1.bf16.msra.mxu0 0
    %2643 = vmatprep.subr.bf16.mxu0 0
    %2644 = vmatpush1.bf16.msra.mxu0 0
    %2645 = vmatprep.subr.bf16.mxu0 0
    %2646 = vmatpush1.bf16.msra.mxu0 0
    %2647 = vmatprep.subr.bf16.mxu0 0
    %2648 = vmatpush1.bf16.msra.mxu0 0
    %2649 = vmatprep.subr.bf16.mxu0 0
    %2650 = vmatpush1.bf16.msra.mxu0 0
    %2651 = vmatprep.subr.bf16.mxu0 0
    %2652 = vmatpush1.bf16.msra.mxu0 0
    %2653 = vmatprep.subr.bf16.mxu0 0
    %2654 = vmatpush1.bf16.msra.mxu0 0
    %2655 = vmatprep.subr.bf16.mxu0 0
    %2656 = vmatpush1.bf16.msra.mxu0 0
    %2657 = vmatprep.mubr.bf16.mxu0 0
    %2658 = vmatmul.mubr.bf16.gmra.mrb[0].mxu0 %v2269
    %v2659 = vpop.f32.mrb[0].mxu0
    %v2660 = vadd.f32 %v2515, %v2659
    %v2661 = vpop.f32.mrb[0].mxu0
    %v2662 = vpop.f32.mrb[0].mxu0
    %v2663 = vadd.f32 %v2518, %v2662
    %v2664 = vpop.f32.mrb[0].mxu0
    %2665 = vmatprep.mubr.bf16.mxu0 0
    %2666 = vmatmul.mubr.bf16.gmra.mrb[0].mxu0 %v2270
    %v2667 = vpop.f32.mrb[0].mxu0
    %v2668 = vadd.f32 %v2523, %v2667
    %v2669 = vpop.f32.mrb[0].mxu0
    %v2670 = vpop.f32.mrb[0].mxu0
    %v2671 = vadd.f32 %v2526, %v2670
    %v2672 = vpop.f32.mrb[0].mxu0
    %2673 = vmatprep.mubr.bf16.mxu0 0
    %2674 = vmatmul.mubr.bf16.gmra.mrb[0].mxu0 %v2271
    %v2675 = vpop.f32.mrb[0].mxu0
    %v2676 = vadd.f32 %v2531, %v2675
    %v2677 = vpop.f32.mrb[0].mxu0
    %v2678 = vpop.f32.mrb[0].mxu0
    %v2679 = vadd.f32 %v2534, %v2678
    %v2680 = vpop.f32.mrb[0].mxu0
    %2681 = vmatprep.mubr.bf16.mxu0 0
    %2682 = vmatmul.mubr.bf16.gmra.mrb[0].mxu0 %v2272
    %v2683 = vpop.f32.mrb[0].mxu0
    %v2684 = vadd.f32 %v2539, %v2683
    %v2685 = vpop.f32.mrb[0].mxu0
    %v2686 = vpop.f32.mrb[0].mxu0
    %v2687 = vadd.f32 %v2542, %v2686
    %v2688 = vpop.f32.mrb[0].mxu0
    %2689 = vmatprep.mubr.bf16.mxu0 0
    %2690 = vmatmul.mubr.bf16.gmra.mrb[0].mxu0 %v2273
    %v2691 = vpop.f32.mrb[0].mxu0
    %v2692 = vadd.f32 %v2547, %v2691
    %v2693 = vpop.f32.mrb[0].mxu0
    %v2694 = vpop.f32.mrb[0].mxu0
    %v2695 = vadd.f32 %v2550, %v2694
    %v2696 = vpop.f32.mrb[0].mxu0
    %2697 = vmatprep.mubr.bf16.mxu0 0
    %2698 = vmatmul.mubr.bf16.gmra.mrb[0].mxu0 %v2274
    %v2699 = vpop.f32.mrb[0].mxu0
    %v2700 = vadd.f32 %v2555, %v2699
    %v2701 = vpop.f32.mrb[0].mxu0
    %v2702 = vpop.f32.mrb[0].mxu0
    %v2703 = vadd.f32 %v2558, %v2702
    %v2704 = vpop.f32.mrb[0].mxu0
    %2705 = vmatprep.mubr.bf16.mxu0 0
    %2706 = vmatmul.mubr.bf16.gmra.mrb[0].mxu0 %v2275
    %v2707 = vpop.f32.mrb[0].mxu0
    %v2708 = vadd.f32 %v2563, %v2707
    %v2709 = vpop.f32.mrb[0].mxu0
    %v2710 = vpop.f32.mrb[0].mxu0
    %v2711 = vadd.f32 %v2566, %v2710
    %v2712 = vpop.f32.mrb[0].mxu0
    %2713 = vmatprep.mubr.bf16.mxu0 0
    %2714 = vmatmul.mubr.bf16.gmra.mrb[0].mxu0 %v2276
    %v2715 = vpop.f32.mrb[0].mxu0
    %v2716 = vadd.f32 %v2571, %v2715
    %v2717 = vpop.f32.mrb[0].mxu0
    %v2718 = vpop.f32.mrb[0].mxu0
    %v2719 = vadd.f32 %v2574, %v2718
    %v2720 = vpop.f32.mrb[0].mxu0
    %2721 = vdwg.mxu0
    %v2726 = vrot.slane %v2317, 3
    %v2727 = vrot.slane %v2304, 3
    %v2728 = vsel %vm1122, %v2726, %v2727
    %v2729 = vrot.slane %v2306, 3
    %v2730 = vsel %vm1122, %v2727, %v2729
    %v2731 = vrot.slane %v2308, 3
    %v2732 = vsel %vm1122, %v2729, %v2731
    %v2733 = vrot.slane %v2321, 3
    %v2734 = vsel %vm1122, %v2731, %v2733
    %v2735 = vrot.slane %v2319, 3
    %v2736 = vrot.slane %v2311, 3
    %v2737 = vsel %vm1122, %v2735, %v2736
    %v2738 = vrot.slane %v2313, 3
    %v2739 = vsel %vm1122, %v2736, %v2738
    %v2740 = vrot.slane %v2315, 3
    %v2741 = vsel %vm1122, %v2738, %v2740
    %v2742 = vrot.slane %v2323, 3
    %v2743 = vsel %vm1122, %v2740, %v2742
    %s2752 = scalar_lea.vmem [#allocation16], 64
    %v2753 = vld [vmem:[%s2752] sm:$0xf]
    %v2754 = vld [vmem:[%s2752 + $0x4] sm:$0xf]
    %v2755 = vld [vmem:[%s2752 + $0x8] sm:$0xf]
    %v2756 = vld [vmem:[%s2752 + $0xc] sm:$0xf]
    %v2757 = vld [vmem:[%s2752 + $0x10] sm:$0xf]
    %v2758 = vld [vmem:[%s2752 + $0x14] sm:$0xf]
    %v2759 = vld [vmem:[%s2752 + $0x18] sm:$0xf]
    %v2760 = vld [vmem:[%s2752 + $0x1c] sm:$0xf]
    %v2761 = vld [vmem:[%s2752 + $0x20] sm:$0xf]
    %v2762 = vld [vmem:[%s2752 + $0x24] sm:$0xf]
    %v2763 = vld [vmem:[%s2752 + $0x28] sm:$0xf]
    %v2764 = vld [vmem:[%s2752 + $0x2c] sm:$0xf]
    %v2765 = vld [vmem:[%s2752 + $0x30] sm:$0xf]
    %v2766 = vld [vmem:[%s2752 + $0x34] sm:$0xf]
    %v2767 = vld [vmem:[%s2752 + $0x38] sm:$0xf]
    %v2768 = vld [vmem:[%s2752 + $0x3c] sm:$0xf]
    %v2785 = vunpack.c.l.b16 %v2753
    %v2786 = vunpack.c.l.b16 %v2754
    %v2787 = vunpack.c.l.b16 %v2755
    %v2788 = vunpack.c.l.b16 %v2756
    %v2789 = vunpack.c.l.b16 %v2757
    %v2790 = vunpack.c.l.b16 %v2758
    %v2791 = vunpack.c.l.b16 %v2759
    %v2792 = vunpack.c.l.b16 %v2760
    %v2793 = vunpack.c.l.b16 %v2761
    %v2794 = vunpack.c.l.b16 %v2762
    %v2795 = vunpack.c.l.b16 %v2763
    %v2796 = vunpack.c.l.b16 %v2764
    %v2797 = vunpack.c.l.b16 %v2765
    %v2798 = vunpack.c.l.b16 %v2766
    %v2799 = vunpack.c.l.b16 %v2767
    %v2800 = vunpack.c.l.b16 %v2768
    %v2801 = vpack.c.b16 %v2786, %v2785
    %v2802 = vpack.c.b16 %v2788, %v2787
    %v2803 = vpack.c.b16 %v2790, %v2789
    %v2804 = vpack.c.b16 %v2792, %v2791
    %v2805 = vpack.c.b16 %v2794, %v2793
    %v2806 = vpack.c.b16 %v2796, %v2795
    %v2807 = vpack.c.b16 %v2798, %v2797
    %v2808 = vpack.c.b16 %v2800, %v2799
    %2817 = vmatprep.subr.bf16.mxu0 0
    %2818 = vmatpush1.bf16.msra.mxu0 %v2801
    %2819 = vmatprep.subr.bf16.mxu0 0
    %2820 = vmatpush1.bf16.msra.mxu0 %v2802
    %2821 = vmatprep.subr.bf16.mxu0 0
    %2822 = vmatpush1.bf16.msra.mxu0 %v2803
    %2823 = vmatprep.subr.bf16.mxu0 0
    %2824 = vmatpush1.bf16.msra.mxu0 %v2804
    %2825 = vmatprep.subr.bf16.mxu0 0
    %2826 = vmatpush1.bf16.msra.mxu0 %v2805
    %2827 = vmatprep.subr.bf16.mxu0 0
    %2828 = vmatpush1.bf16.msra.mxu0 %v2806
    %2829 = vmatprep.subr.bf16.mxu0 0
    %2830 = vmatpush1.bf16.msra.mxu0 %v2807
    %2831 = vmatprep.subr.bf16.mxu0 0
    %2832 = vmatpush1.bf16.msra.mxu0 %v2808
    %2833 = vmatprep.subr.bf16.mxu0 0
    %2834 = vmatpush1.bf16.msra.mxu0 0
    %2835 = vmatprep.subr.bf16.mxu0 0
    %2836 = vmatpush1.bf16.msra.mxu0 0
    %2837 = vmatprep.subr.bf16.mxu0 0
    %2838 = vmatpush1.bf16.msra.mxu0 0
    %2839 = vmatprep.subr.bf16.mxu0 0
    %2840 = vmatpush1.bf16.msra.mxu0 0
    %2841 = vmatprep.subr.bf16.mxu0 0
    %2842 = vmatpush1.bf16.msra.mxu0 0
    %2843 = vmatprep.subr.bf16.mxu0 0
    %2844 = vmatpush1.bf16.msra.mxu0 0
    %2845 = vmatprep.subr.bf16.mxu0 0
    %2846 = vmatpush1.bf16.msra.mxu0 0
    %2847 = vmatprep.subr.bf16.mxu0 0
    %2848 = vmatpush1.bf16.msra.mxu0 0
    %2849 = vmatprep.mubr.bf16.mxu0 0
    %2850 = vmatmul.mubr.bf16.gmra.mrb[0].mxu0 %v2728
    %v2851 = vpop.f32.mrb[0].mxu0
    %v2852 = vadd.f32 0.0, %v2851
    %v2853 = vpop.f32.mrb[0].mxu0
    %v2854 = vpop.f32.mrb[0].mxu0
    %v2855 = vadd.f32 0.0, %v2854
    %v2856 = vpop.f32.mrb[0].mxu0
    %2857 = vmatprep.mubr.bf16.mxu0 0
    %2858 = vmatmul.mubr.bf16.gmra.mrb[0].mxu0 %v2730
    %v2859 = vpop.f32.mrb[0].mxu0
    %v2860 = vadd.f32 0.0, %v2859
    %v2861 = vpop.f32.mrb[0].mxu0
    %v2862 = vpop.f32.mrb[0].mxu0
    %v2863 = vadd.f32 0.0, %v2862
    %v2864 = vpop.f32.mrb[0].mxu0
    %2865 = vmatprep.mubr.bf16.mxu0 0
    %2866 = vmatmul.mubr.bf16.gmra.mrb[0].mxu0 %v2732
    %v2867 = vpop.f32.mrb[0].mxu0
    %v2868 = vadd.f32 0.0, %v2867
    %v2869 = vpop.f32.mrb[0].mxu0
    %v2870 = vpop.f32.mrb[0].mxu0
    %v2871 = vadd.f32 0.0, %v2870
    %v2872 = vpop.f32.mrb[0].mxu0
    %2873 = vmatprep.mubr.bf16.mxu0 0
    %2874 = vmatmul.mubr.bf16.gmra.mrb[0].mxu0 %v2734
    %v2875 = vpop.f32.mrb[0].mxu0
    %v2876 = vadd.f32 0.0, %v2875
    %v2877 = vpop.f32.mrb[0].mxu0
    %v2878 = vpop.f32.mrb[0].mxu0
    %v2879 = vadd.f32 0.0, %v2878
    %v2880 = vpop.f32.mrb[0].mxu0
    %2881 = vmatprep.mubr.bf16.mxu0 0
    %2882 = vmatmul.mubr.bf16.gmra.mrb[0].mxu0 %v2737
    %v2883 = vpop.f32.mrb[0].mxu0
    %v2884 = vadd.f32 0.0, %v2883
    %v2885 = vpop.f32.mrb[0].mxu0
    %v2886 = vpop.f32.mrb[0].mxu0
    %v2887 = vadd.f32 0.0, %v2886
    %v2888 = vpop.f32.mrb[0].mxu0
    %2889 = vmatprep.mubr.bf16.mxu0 0
    %2890 = vmatmul.mubr.bf16.gmra.mrb[0].mxu0 %v2739
    %v2891 = vpop.f32.mrb[0].mxu0
    %v2892 = vadd.f32 0.0, %v2891
    %v2893 = vpop.f32.mrb[0].mxu0
    %v2894 = vpop.f32.mrb[0].mxu0
    %v2895 = vadd.f32 0.0, %v2894
    %v2896 = vpop.f32.mrb[0].mxu0
    %2897 = vmatprep.mubr.bf16.mxu0 0
    %2898 = vmatmul.mubr.bf16.gmra.mrb[0].mxu0 %v2741
    %v2899 = vpop.f32.mrb[0].mxu0
    %v2900 = vadd.f32 0.0, %v2899
    %v2901 = vpop.f32.mrb[0].mxu0
    %v2902 = vpop.f32.mrb[0].mxu0
    %v2903 = vadd.f32 0.0, %v2902
    %v2904 = vpop.f32.mrb[0].mxu0
    %2905 = vmatprep.mubr.bf16.mxu0 0
    %2906 = vmatmul.mubr.bf16.gmra.mrb[0].mxu0 %v2743
    %v2907 = vpop.f32.mrb[0].mxu0
    %v2908 = vadd.f32 0.0, %v2907
    %v2909 = vpop.f32.mrb[0].mxu0
    %v2910 = vpop.f32.mrb[0].mxu0
    %v2911 = vadd.f32 0.0, %v2910
    %v2912 = vpop.f32.mrb[0].mxu0
    %2913 = vdwg.mxu0
    %v2914 = vadd.f32 %v2660, %v2852
    %v2915 = vadd.f32 %v2663, %v2855
    %v2916 = vadd.f32 %v2668, %v2860
    %v2917 = vadd.f32 %v2671, %v2863
    %v2918 = vadd.f32 %v2676, %v2868
    %v2919 = vadd.f32 %v2679, %v2871
    %v2920 = vadd.f32 %v2684, %v2876
    %v2921 = vadd.f32 %v2687, %v2879
    %v2922 = vadd.f32 %v2692, %v2884
    %v2923 = vadd.f32 %v2695, %v2887
    %v2924 = vadd.f32 %v2700, %v2892
    %v2925 = vadd.f32 %v2703, %v2895
    %v2926 = vadd.f32 %v2708, %v2900
    %v2927 = vadd.f32 %v2711, %v2903
    %v2928 = vadd.f32 %v2716, %v2908
    %v2929 = vadd.f32 %v2719, %v2911
    %v2930 = vrot.slane %v2324, 3
    %v2931 = vrot.slane %v2327, 4
    %v2932 = vor.u32 %v2930, %v2931
    %v2933 = vrot.slane %v2332, 3
    %v2934 = vrot.slane %v2335, 4
    %v2935 = vor.u32 %v2933, %v2934
    %v2936 = vsel %vm1327, %v2932, %v2935
    %v2937 = vrot.slane %v2341, 3
    %v2938 = vrot.slane %v2344, 4
    %v2939 = vor.u32 %v2937, %v2938
    %v2940 = vsel %vm1327, %v2935, %v2939
    %v2941 = vrot.slane %v2350, 3
    %v2942 = vrot.slane %v2353, 4
    %v2943 = vor.u32 %v2941, %v2942
    %v2944 = vsel %vm1327, %v2939, %v2943
    %v2945 = vrot.slane %v2358, 3
    %v2946 = vrot.slane %v2361, 4
    %v2947 = vor.u32 %v2945, %v2946
    %v2948 = vsel %vm1327, %v2943, %v2947
    %v2949 = vrot.slane %v2366, 3
    %v2950 = vrot.slane %v2369, 4
    %v2951 = vor.u32 %v2949, %v2950
    %v2952 = vrot.slane %v2374, 3
    %v2953 = vrot.slane %v2377, 4
    %v2954 = vor.u32 %v2952, %v2953
    %v2955 = vsel %vm1327, %v2951, %v2954
    %v2956 = vrot.slane %v2383, 3
    %v2957 = vrot.slane %v2386, 4
    %v2958 = vor.u32 %v2956, %v2957
    %v2959 = vsel %vm1327, %v2954, %v2958
    %v2960 = vrot.slane %v2392, 3
    %v2961 = vrot.slane %v2395, 4
    %v2962 = vor.u32 %v2960, %v2961
    %v2963 = vsel %vm1327, %v2958, %v2962
    %v2964 = vrot.slane %v2400, 3
    %v2965 = vrot.slane %v2403, 4
    %v2966 = vor.u32 %v2964, %v2965
    %v2967 = vsel %vm1327, %v2962, %v2966
    %s2976 = scalar_lea.vmem [#allocation16], 128
    %v2977 = vld [vmem:[%s2976] sm:$0xf]
    %v2978 = vld [vmem:[%s2976 + $0x4] sm:$0xf]
    %v2979 = vld [vmem:[%s2976 + $0x8] sm:$0xf]
    %v2980 = vld [vmem:[%s2976 + $0xc] sm:$0xf]
    %v2981 = vld [vmem:[%s2976 + $0x10] sm:$0xf]
    %v2982 = vld [vmem:[%s2976 + $0x14] sm:$0xf]
    %v2983 = vld [vmem:[%s2976 + $0x18] sm:$0xf]
    %v2984 = vld [vmem:[%s2976 + $0x1c] sm:$0xf]
    %v2985 = vld [vmem:[%s2976 + $0x20] sm:$0xf]
    %v2986 = vld [vmem:[%s2976 + $0x24] sm:$0xf]
    %v2987 = vld [vmem:[%s2976 + $0x28] sm:$0xf]
    %v2988 = vld [vmem:[%s2976 + $0x2c] sm:$0xf]
    %v2989 = vld [vmem:[%s2976 + $0x30] sm:$0xf]
    %v2990 = vld [vmem:[%s2976 + $0x34] sm:$0xf]
    %v2991 = vld [vmem:[%s2976 + $0x38] sm:$0xf]
    %v2992 = vld [vmem:[%s2976 + $0x3c] sm:$0xf]
    %v3009 = vunpack.c.l.b16 %v2977
    %v3010 = vunpack.c.l.b16 %v2978
    %v3011 = vunpack.c.l.b16 %v2979
    %v3012 = vunpack.c.l.b16 %v2980
    %v3013 = vunpack.c.l.b16 %v2981
    %v3014 = vunpack.c.l.b16 %v2982
    %v3015 = vunpack.c.l.b16 %v2983
    %v3016 = vunpack.c.l.b16 %v2984
    %v3017 = vunpack.c.l.b16 %v2985
    %v3018 = vunpack.c.l.b16 %v2986
    %v3019 = vunpack.c.l.b16 %v2987
    %v3020 = vunpack.c.l.b16 %v2988
    %v3021 = vunpack.c.l.b16 %v2989
    %v3022 = vunpack.c.l.b16 %v2990
    %v3023 = vunpack.c.l.b16 %v2991
    %v3024 = vunpack.c.l.b16 %v2992
    %v3025 = vpack.c.b16 %v3010, %v3009
    %v3026 = vpack.c.b16 %v3012, %v3011
    %v3027 = vpack.c.b16 %v3014, %v3013
    %v3028 = vpack.c.b16 %v3016, %v3015
    %v3029 = vpack.c.b16 %v3018, %v3017
    %v3030 = vpack.c.b16 %v3020, %v3019
    %v3031 = vpack.c.b16 %v3022, %v3021
    %v3032 = vpack.c.b16 %v3024, %v3023
    %3041 = vmatprep.subr.bf16.mxu0 0
    %3042 = vmatpush1.bf16.msra.mxu0 %v3025
    %3043 = vmatprep.subr.bf16.mxu0 0
    %3044 = vmatpush1.bf16.msra.mxu0 %v3026
    %3045 = vmatprep.subr.bf16.mxu0 0
    %3046 = vmatpush1.bf16.msra.mxu0 %v3027
    %3047 = vmatprep.subr.bf16.mxu0 0
    %3048 = vmatpush1.bf16.msra.mxu0 %v3028
    %3049 = vmatprep.subr.bf16.mxu0 0
    %3050 = vmatpush1.bf16.msra.mxu0 %v3029
    %3051 = vmatprep.subr.bf16.mxu0 0
    %3052 = vmatpush1.bf16.msra.mxu0 %v3030
    %3053 = vmatprep.subr.bf16.mxu0 0
    %3054 = vmatpush1.bf16.msra.mxu0 %v3031
    %3055 = vmatprep.subr.bf16.mxu0 0
    %3056 = vmatpush1.bf16.msra.mxu0 %v3032
    %3057 = vmatprep.subr.bf16.mxu0 0
    %3058 = vmatpush1.bf16.msra.mxu0 0
    %3059 = vmatprep.subr.bf16.mxu0 0
    %3060 = vmatpush1.bf16.msra.mxu0 0
    %3061 = vmatprep.subr.bf16.mxu0 0
    %3062 = vmatpush1.bf16.msra.mxu0 0
    %3063 = vmatprep.subr.bf16.mxu0 0
    %3064 = vmatpush1.bf16.msra.mxu0 0
    %3065 = vmatprep.subr.bf16.mxu0 0
    %3066 = vmatpush1.bf16.msra.mxu0 0
    %3067 = vmatprep.subr.bf16.mxu0 0
    %3068 = vmatpush1.bf16.msra.mxu0 0
    %3069 = vmatprep.subr.bf16.mxu0 0
    %3070 = vmatpush1.bf16.msra.mxu0 0
    %3071 = vmatprep.subr.bf16.mxu0 0
    %3072 = vmatpush1.bf16.msra.mxu0 0
    %3073 = vmatprep.mubr.bf16.mxu0 0
    %3074 = vmatmul.mubr.bf16.gmra.mrb[0].mxu0 %v2936
    %v3075 = vpop.f32.mrb[0].mxu0
    %v3076 = vadd.f32 0.0, %v3075
    %v3077 = vpop.f32.mrb[0].mxu0
    %v3078 = vpop.f32.mrb[0].mxu0
    %v3079 = vadd.f32 0.0, %v3078
    %v3080 = vpop.f32.mrb[0].mxu0
    %3081 = vmatprep.mubr.bf16.mxu0 0
    %3082 = vmatmul.mubr.bf16.gmra.mrb[0].mxu0 %v2940
    %v3083 = vpop.f32.mrb[0].mxu0
    %v3084 = vadd.f32 0.0, %v3083
    %v3085 = vpop.f32.mrb[0].mxu0
    %v3086 = vpop.f32.mrb[0].mxu0
    %v3087 = vadd.f32 0.0, %v3086
    %v3088 = vpop.f32.mrb[0].mxu0
    %3089 = vmatprep.mubr.bf16.mxu0 0
    %3090 = vmatmul.mubr.bf16.gmra.mrb[0].mxu0 %v2944
    %v3091 = vpop.f32.mrb[0].mxu0
    %v3092 = vadd.f32 0.0, %v3091
    %v3093 = vpop.f32.mrb[0].mxu0
    %v3094 = vpop.f32.mrb[0].mxu0
    %v3095 = vadd.f32 0.0, %v3094
    %v3096 = vpop.f32.mrb[0].mxu0
    %3097 = vmatprep.mubr.bf16.mxu0 0
    %3098 = vmatmul.mubr.bf16.gmra.mrb[0].mxu0 %v2948
    %v3099 = vpop.f32.mrb[0].mxu0
    %v3100 = vadd.f32 0.0, %v3099
    %v3101 = vpop.f32.mrb[0].mxu0
    %v3102 = vpop.f32.mrb[0].mxu0
    %v3103 = vadd.f32 0.0, %v3102
    %v3104 = vpop.f32.mrb[0].mxu0
    %3105 = vmatprep.mubr.bf16.mxu0 0
    %3106 = vmatmul.mubr.bf16.gmra.mrb[0].mxu0 %v2955
    %v3107 = vpop.f32.mrb[0].mxu0
    %v3108 = vadd.f32 0.0, %v3107
    %v3109 = vpop.f32.mrb[0].mxu0
    %v3110 = vpop.f32.mrb[0].mxu0
    %v3111 = vadd.f32 0.0, %v3110
    %v3112 = vpop.f32.mrb[0].mxu0
    %3113 = vmatprep.mubr.bf16.mxu0 0
    %3114 = vmatmul.mubr.bf16.gmra.mrb[0].mxu0 %v2959
    %v3115 = vpop.f32.mrb[0].mxu0
    %v3116 = vadd.f32 0.0, %v3115
    %v3117 = vpop.f32.mrb[0].mxu0
    %v3118 = vpop.f32.mrb[0].mxu0
    %v3119 = vadd.f32 0.0, %v3118
    %v3120 = vpop.f32.mrb[0].mxu0
    %3121 = vmatprep.mubr.bf16.mxu0 0
    %3122 = vmatmul.mubr.bf16.gmra.mrb[0].mxu0 %v2963
    %v3123 = vpop.f32.mrb[0].mxu0
    %v3124 = vadd.f32 0.0, %v3123
    %v3125 = vpop.f32.mrb[0].mxu0
    %v3126 = vpop.f32.mrb[0].mxu0
    %v3127 = vadd.f32 0.0, %v3126
    %v3128 = vpop.f32.mrb[0].mxu0
    %3129 = vmatprep.mubr.bf16.mxu0 0
    %3130 = vmatmul.mubr.bf16.gmra.mrb[0].mxu0 %v2967
    %v3131 = vpop.f32.mrb[0].mxu0
    %v3132 = vadd.f32 0.0, %v3131
    %v3133 = vpop.f32.mrb[0].mxu0
    %v3134 = vpop.f32.mrb[0].mxu0
    %v3135 = vadd.f32 0.0, %v3134
    %v3136 = vpop.f32.mrb[0].mxu0
    %3137 = vdwg.mxu0
    %v3138 = vadd.f32 %v2914, %v3076
    %v3139 = vadd.f32 %v2915, %v3079
    %v3140 = vadd.f32 %v2916, %v3084
    %v3141 = vadd.f32 %v2917, %v3087
    %v3142 = vadd.f32 %v2918, %v3092
    %v3143 = vadd.f32 %v2919, %v3095
    %v3144 = vadd.f32 %v2920, %v3100
    %v3145 = vadd.f32 %v2921, %v3103
    %v3146 = vadd.f32 %v2922, %v3108
    %v3147 = vadd.f32 %v2923, %v3111
    %v3148 = vadd.f32 %v2924, %v3116
    %v3149 = vadd.f32 %v2925, %v3119
    %v3150 = vadd.f32 %v2926, %v3124
    %v3151 = vadd.f32 %v2927, %v3127
    %v3152 = vadd.f32 %v2928, %v3132
    %v3153 = vadd.f32 %v2929, %v3135
    %v3154 = vrot.slane %v2324, 4
    %v3155 = vrot.slane %v2327, 5
    %v3156 = vor.u32 %v3154, %v3155
    %v3157 = vrot.slane %v2332, 4
    %v3158 = vrot.slane %v2335, 5
    %v3159 = vor.u32 %v3157, %v3158
    %v3160 = vsel %vm1552, %v3156, %v3159
    %v3161 = vrot.slane %v2341, 4
    %v3162 = vrot.slane %v2344, 5
    %v3163 = vor.u32 %v3161, %v3162
    %v3164 = vsel %vm1552, %v3159, %v3163
    %v3165 = vrot.slane %v2350, 4
    %v3166 = vrot.slane %v2353, 5
    %v3167 = vor.u32 %v3165, %v3166
    %v3168 = vsel %vm1552, %v3163, %v3167
    %v3169 = vrot.slane %v2358, 4
    %v3170 = vrot.slane %v2361, 5
    %v3171 = vor.u32 %v3169, %v3170
    %v3172 = vsel %vm1552, %v3167, %v3171
    %v3173 = vrot.slane %v2366, 4
    %v3174 = vrot.slane %v2369, 5
    %v3175 = vor.u32 %v3173, %v3174
    %v3176 = vrot.slane %v2374, 4
    %v3177 = vrot.slane %v2377, 5
    %v3178 = vor.u32 %v3176, %v3177
    %v3179 = vsel %vm1552, %v3175, %v3178
    %v3180 = vrot.slane %v2383, 4
    %v3181 = vrot.slane %v2386, 5
    %v3182 = vor.u32 %v3180, %v3181
    %v3183 = vsel %vm1552, %v3178, %v3182
    %v3184 = vrot.slane %v2392, 4
    %v3185 = vrot.slane %v2395, 5
    %v3186 = vor.u32 %v3184, %v3185
    %v3187 = vsel %vm1552, %v3182, %v3186
    %v3188 = vrot.slane %v2400, 4
    %v3189 = vrot.slane %v2403, 5
    %v3190 = vor.u32 %v3188, %v3189
    %v3191 = vsel %vm1552, %v3186, %v3190
    %s3200 = scalar_lea.vmem [#allocation16], 256
    %v3201 = vld [vmem:[%s3200] sm:$0xf]
    %v3202 = vld [vmem:[%s3200 + $0x4] sm:$0xf]
    %v3203 = vld [vmem:[%s3200 + $0x8] sm:$0xf]
    %v3204 = vld [vmem:[%s3200 + $0xc] sm:$0xf]
    %v3205 = vld [vmem:[%s3200 + $0x10] sm:$0xf]
    %v3206 = vld [vmem:[%s3200 + $0x14] sm:$0xf]
    %v3207 = vld [vmem:[%s3200 + $0x18] sm:$0xf]
    %v3208 = vld [vmem:[%s3200 + $0x1c] sm:$0xf]
    %v3209 = vld [vmem:[%s3200 + $0x20] sm:$0xf]
    %v3210 = vld [vmem:[%s3200 + $0x24] sm:$0xf]
    %v3211 = vld [vmem:[%s3200 + $0x28] sm:$0xf]
    %v3212 = vld [vmem:[%s3200 + $0x2c] sm:$0xf]
    %v3213 = vld [vmem:[%s3200 + $0x30] sm:$0xf]
    %v3214 = vld [vmem:[%s3200 + $0x34] sm:$0xf]
    %v3215 = vld [vmem:[%s3200 + $0x38] sm:$0xf]
    %v3216 = vld [vmem:[%s3200 + $0x3c] sm:$0xf]
    %v3233 = vunpack.c.l.b16 %v3201
    %v3234 = vunpack.c.l.b16 %v3202
    %v3235 = vunpack.c.l.b16 %v3203
    %v3236 = vunpack.c.l.b16 %v3204
    %v3237 = vunpack.c.l.b16 %v3205
    %v3238 = vunpack.c.l.b16 %v3206
    %v3239 = vunpack.c.l.b16 %v3207
    %v3240 = vunpack.c.l.b16 %v3208
    %v3241 = vunpack.c.l.b16 %v3209
    %v3242 = vunpack.c.l.b16 %v3210
    %v3243 = vunpack.c.l.b16 %v3211
    %v3244 = vunpack.c.l.b16 %v3212
    %v3245 = vunpack.c.l.b16 %v3213
    %v3246 = vunpack.c.l.b16 %v3214
    %v3247 = vunpack.c.l.b16 %v3215
    %v3248 = vunpack.c.l.b16 %v3216
    %v3249 = vpack.c.b16 %v3234, %v3233
    %v3250 = vpack.c.b16 %v3236, %v3235
    %v3251 = vpack.c.b16 %v3238, %v3237
    %v3252 = vpack.c.b16 %v3240, %v3239
    %v3253 = vpack.c.b16 %v3242, %v3241
    %v3254 = vpack.c.b16 %v3244, %v3243
    %v3255 = vpack.c.b16 %v3246, %v3245
    %v3256 = vpack.c.b16 %v3248, %v3247
    %3265 = vmatprep.subr.bf16.mxu0 0
    %3266 = vmatpush1.bf16.msra.mxu0 %v3249
    %3267 = vmatprep.subr.bf16.mxu0 0
    %3268 = vmatpush1.bf16.msra.mxu0 %v3250
    %3269 = vmatprep.subr.bf16.mxu0 0
    %3270 = vmatpush1.bf16.msra.mxu0 %v3251
    %3271 = vmatprep.subr.bf16.mxu0 0
    %3272 = vmatpush1.bf16.msra.mxu0 %v3252
    %3273 = vmatprep.subr.bf16.mxu0 0
    %3274 = vmatpush1.bf16.msra.mxu0 %v3253
    %3275 = vmatprep.subr.bf16.mxu0 0
    %3276 = vmatpush1.bf16.msra.mxu0 %v3254
    %3277 = vmatprep.subr.bf16.mxu0 0
    %3278 = vmatpush1.bf16.msra.mxu0 %v3255
    %3279 = vmatprep.subr.bf16.mxu0 0
    %3280 = vmatpush1.bf16.msra.mxu0 %v3256
    %3281 = vmatprep.subr.bf16.mxu0 0
    %3282 = vmatpush1.bf16.msra.mxu0 0
    %3283 = vmatprep.subr.bf16.mxu0 0
    %3284 = vmatpush1.bf16.msra.mxu0 0
    %3285 = vmatprep.subr.bf16.mxu0 0
    %3286 = vmatpush1.bf16.msra.mxu0 0
    %3287 = vmatprep.subr.bf16.mxu0 0
    %3288 = vmatpush1.bf16.msra.mxu0 0
    %3289 = vmatprep.subr.bf16.mxu0 0
    %3290 = vmatpush1.bf16.msra.mxu0 0
    %3291 = vmatprep.subr.bf16.mxu0 0
    %3292 = vmatpush1.bf16.msra.mxu0 0
    %3293 = vmatprep.subr.bf16.mxu0 0
    %3294 = vmatpush1.bf16.msra.mxu0 0
    %3295 = vmatprep.subr.bf16.mxu0 0
    %3296 = vmatpush1.bf16.msra.mxu0 0
    %3297 = vmatprep.mubr.bf16.mxu0 0
    %3298 = vmatmul.mubr.bf16.gmra.mrb[0].mxu0 %v3160
    %v3299 = vpop.f32.mrb[0].mxu0
    %v3300 = vadd.f32 0.0, %v3299
    %v3301 = vpop.f32.mrb[0].mxu0
    %v3302 = vpop.f32.mrb[0].mxu0
    %v3303 = vadd.f32 0.0, %v3302
    %v3304 = vpop.f32.mrb[0].mxu0
    %3305 = vmatprep.mubr.bf16.mxu0 0
    %3306 = vmatmul.mubr.bf16.gmra.mrb[0].mxu0 %v3164
    %v3307 = vpop.f32.mrb[0].mxu0
    %v3308 = vadd.f32 0.0, %v3307
    %v3309 = vpop.f32.mrb[0].mxu0
    %v3310 = vpop.f32.mrb[0].mxu0
    %v3311 = vadd.f32 0.0, %v3310
    %v3312 = vpop.f32.mrb[0].mxu0
    %3313 = vmatprep.mubr.bf16.mxu0 0
    %3314 = vmatmul.mubr.bf16.gmra.mrb[0].mxu0 %v3168
    %v3315 = vpop.f32.mrb[0].mxu0
    %v3316 = vadd.f32 0.0, %v3315
    %v3317 = vpop.f32.mrb[0].mxu0
    %v3318 = vpop.f32.mrb[0].mxu0
    %v3319 = vadd.f32 0.0, %v3318
    %v3320 = vpop.f32.mrb[0].mxu0
    %3321 = vmatprep.mubr.bf16.mxu0 0
    %3322 = vmatmul.mubr.bf16.gmra.mrb[0].mxu0 %v3172
    %v3323 = vpop.f32.mrb[0].mxu0
    %v3324 = vadd.f32 0.0, %v3323
    %v3325 = vpop.f32.mrb[0].mxu0
    %v3326 = vpop.f32.mrb[0].mxu0
    %v3327 = vadd.f32 0.0, %v3326
    %v3328 = vpop.f32.mrb[0].mxu0
    %3329 = vmatprep.mubr.bf16.mxu0 0
    %3330 = vmatmul.mubr.bf16.gmra.mrb[0].mxu0 %v3179
    %v3331 = vpop.f32.mrb[0].mxu0
    %v3332 = vadd.f32 0.0, %v3331
    %v3333 = vpop.f32.mrb[0].mxu0
    %v3334 = vpop.f32.mrb[0].mxu0
    %v3335 = vadd.f32 0.0, %v3334
    %v3336 = vpop.f32.mrb[0].mxu0
    %3337 = vmatprep.mubr.bf16.mxu0 0
    %3338 = vmatmul.mubr.bf16.gmra.mrb[0].mxu0 %v3183
    %v3339 = vpop.f32.mrb[0].mxu0
    %v3340 = vadd.f32 0.0, %v3339
    %v3341 = vpop.f32.mrb[0].mxu0
    %v3342 = vpop.f32.mrb[0].mxu0
    %v3343 = vadd.f32 0.0, %v3342
    %v3344 = vpop.f32.mrb[0].mxu0
    %3345 = vmatprep.mubr.bf16.mxu0 0
    %3346 = vmatmul.mubr.bf16.gmra.mrb[0].mxu0 %v3187
    %v3347 = vpop.f32.mrb[0].mxu0
    %v3348 = vadd.f32 0.0, %v3347
    %v3349 = vpop.f32.mrb[0].mxu0
    %v3350 = vpop.f32.mrb[0].mxu0
    %v3351 = vadd.f32 0.0, %v3350
    %v3352 = vpop.f32.mrb[0].mxu0
    %3353 = vmatprep.mubr.bf16.mxu0 0
    %3354 = vmatmul.mubr.bf16.gmra.mrb[0].mxu0 %v3191
    %v3355 = vpop.f32.mrb[0].mxu0
    %v3356 = vadd.f32 0.0, %v3355
    %v3357 = vpop.f32.mrb[0].mxu0
    %v3358 = vpop.f32.mrb[0].mxu0
    %v3359 = vadd.f32 0.0, %v3358
    %v3360 = vpop.f32.mrb[0].mxu0
    %3361 = vdwg.mxu0
    %v3362 = vadd.f32 %v3138, %v3300
    %v3363 = vadd.f32 %v3139, %v3303
    %v3364 = vadd.f32 %v3140, %v3308
    %v3365 = vadd.f32 %v3141, %v3311
    %v3366 = vadd.f32 %v3142, %v3316
    %v3367 = vadd.f32 %v3143, %v3319
    %v3368 = vadd.f32 %v3144, %v3324
    %v3369 = vadd.f32 %v3145, %v3327
    %v3370 = vadd.f32 %v3146, %v3332
    %v3371 = vadd.f32 %v3147, %v3335
    %v3372 = vadd.f32 %v3148, %v3340
    %v3373 = vadd.f32 %v3149, %v3343
    %v3374 = vadd.f32 %v3150, %v3348
    %v3375 = vadd.f32 %v3151, %v3351
    %v3376 = vadd.f32 %v3152, %v3356
    %v3377 = vadd.f32 %v3153, %v3359
    %v3378 = vrot.slane %v2317, 5
    %v3379 = vrot.slane %v2304, 5
    %v3380 = vsel %vm1777, %v3378, %v3379
    %v3381 = vrot.slane %v2306, 5
    %v3382 = vsel %vm1777, %v3379, %v3381
    %v3383 = vrot.slane %v2308, 5
    %v3384 = vsel %vm1777, %v3381, %v3383
    %v3385 = vrot.slane %v2321, 5
    %v3386 = vsel %vm1777, %v3383, %v3385
    %v3387 = vrot.slane %v2319, 5
    %v3388 = vrot.slane %v2311, 5
    %v3389 = vsel %vm1777, %v3387, %v3388
    %v3390 = vrot.slane %v2313, 5
    %v3391 = vsel %vm1777, %v3388, %v3390
    %v3392 = vrot.slane %v2315, 5
    %v3393 = vsel %vm1777, %v3390, %v3392
    %v3394 = vrot.slane %v2323, 5
    %v3395 = vsel %vm1777, %v3392, %v3394
    %s3404 = scalar_lea.vmem [#allocation16], 320
    %v3405 = vld [vmem:[%s3404] sm:$0xf]
    %v3406 = vld [vmem:[%s3404 + $0x4] sm:$0xf]
    %v3407 = vld [vmem:[%s3404 + $0x8] sm:$0xf]
    %v3408 = vld [vmem:[%s3404 + $0xc] sm:$0xf]
    %v3409 = vld [vmem:[%s3404 + $0x10] sm:$0xf]
    %v3410 = vld [vmem:[%s3404 + $0x14] sm:$0xf]
    %v3411 = vld [vmem:[%s3404 + $0x18] sm:$0xf]
    %v3412 = vld [vmem:[%s3404 + $0x1c] sm:$0xf]
    %v3413 = vld [vmem:[%s3404 + $0x20] sm:$0xf]
    %v3414 = vld [vmem:[%s3404 + $0x24] sm:$0xf]
    %v3415 = vld [vmem:[%s3404 + $0x28] sm:$0xf]
    %v3416 = vld [vmem:[%s3404 + $0x2c] sm:$0xf]
    %v3417 = vld [vmem:[%s3404 + $0x30] sm:$0xf]
    %v3418 = vld [vmem:[%s3404 + $0x34] sm:$0xf]
    %v3419 = vld [vmem:[%s3404 + $0x38] sm:$0xf]
    %v3420 = vld [vmem:[%s3404 + $0x3c] sm:$0xf]
    %v3437 = vunpack.c.l.b16 %v3405
    %v3438 = vunpack.c.l.b16 %v3406
    %v3439 = vunpack.c.l.b16 %v3407
    %v3440 = vunpack.c.l.b16 %v3408
    %v3441 = vunpack.c.l.b16 %v3409
    %v3442 = vunpack.c.l.b16 %v3410
    %v3443 = vunpack.c.l.b16 %v3411
    %v3444 = vunpack.c.l.b16 %v3412
    %v3445 = vunpack.c.l.b16 %v3413
    %v3446 = vunpack.c.l.b16 %v3414
    %v3447 = vunpack.c.l.b16 %v3415
    %v3448 = vunpack.c.l.b16 %v3416
    %v3449 = vunpack.c.l.b16 %v3417
    %v3450 = vunpack.c.l.b16 %v3418
    %v3451 = vunpack.c.l.b16 %v3419
    %v3452 = vunpack.c.l.b16 %v3420
    %v3453 = vpack.c.b16 %v3438, %v3437
    %v3454 = vpack.c.b16 %v3440, %v3439
    %v3455 = vpack.c.b16 %v3442, %v3441
    %v3456 = vpack.c.b16 %v3444, %v3443
    %v3457 = vpack.c.b16 %v3446, %v3445
    %v3458 = vpack.c.b16 %v3448, %v3447
    %v3459 = vpack.c.b16 %v3450, %v3449
    %v3460 = vpack.c.b16 %v3452, %v3451
    %3469 = vmatprep.subr.bf16.mxu0 0
    %3470 = vmatpush1.bf16.msra.mxu0 %v3453
    %3471 = vmatprep.subr.bf16.mxu0 0
    %3472 = vmatpush1.bf16.msra.mxu0 %v3454
    %3473 = vmatprep.subr.bf16.mxu0 0
    %3474 = vmatpush1.bf16.msra.mxu0 %v3455
    %3475 = vmatprep.subr.bf16.mxu0 0
    %3476 = vmatpush1.bf16.msra.mxu0 %v3456
    %3477 = vmatprep.subr.bf16.mxu0 0
    %3478 = vmatpush1.bf16.msra.mxu0 %v3457
    %3479 = vmatprep.subr.bf16.mxu0 0
    %3480 = vmatpush1.bf16.msra.mxu0 %v3458
    %3481 = vmatprep.subr.bf16.mxu0 0
    %3482 = vmatpush1.bf16.msra.mxu0 %v3459
    %3483 = vmatprep.subr.bf16.mxu0 0
    %3484 = vmatpush1.bf16.msra.mxu0 %v3460
    %3485 = vmatprep.subr.bf16.mxu0 0
    %3486 = vmatpush1.bf16.msra.mxu0 0
    %3487 = vmatprep.subr.bf16.mxu0 0
    %3488 = vmatpush1.bf16.msra.mxu0 0
    %3489 = vmatprep.subr.bf16.mxu0 0
    %3490 = vmatpush1.bf16.msra.mxu0 0
    %3491 = vmatprep.subr.bf16.mxu0 0
    %3492 = vmatpush1.bf16.msra.mxu0 0
    %3493 = vmatprep.subr.bf16.mxu0 0
    %3494 = vmatpush1.bf16.msra.mxu0 0
    %3495 = vmatprep.subr.bf16.mxu0 0
    %3496 = vmatpush1.bf16.msra.mxu0 0
    %3497 = vmatprep.subr.bf16.mxu0 0
    %3498 = vmatpush1.bf16.msra.mxu0 0
    %3499 = vmatprep.subr.bf16.mxu0 0
    %3500 = vmatpush1.bf16.msra.mxu0 0
    %3501 = vmatprep.mubr.bf16.mxu0 0
    %3502 = vmatmul.mubr.bf16.gmra.mrb[0].mxu0 %v3380
    %v3503 = vpop.f32.mrb[0].mxu0
    %v3504 = vadd.f32 0.0, %v3503
    %v3505 = vpop.f32.mrb[0].mxu0
    %v3506 = vpop.f32.mrb[0].mxu0
    %v3507 = vadd.f32 0.0, %v3506
    %v3508 = vpop.f32.mrb[0].mxu0
    %3509 = vmatprep.mubr.bf16.mxu0 0
    %3510 = vmatmul.mubr.bf16.gmra.mrb[0].mxu0 %v3382
    %v3511 = vpop.f32.mrb[0].mxu0
    %v3512 = vadd.f32 0.0, %v3511
    %v3513 = vpop.f32.mrb[0].mxu0
    %v3514 = vpop.f32.mrb[0].mxu0
    %v3515 = vadd.f32 0.0, %v3514
    %v3516 = vpop.f32.mrb[0].mxu0
    %3517 = vmatprep.mubr.bf16.mxu0 0
    %3518 = vmatmul.mubr.bf16.gmra.mrb[0].mxu0 %v3384
    %v3519 = vpop.f32.mrb[0].mxu0
    %v3520 = vadd.f32 0.0, %v3519
    %v3521 = vpop.f32.mrb[0].mxu0
    %v3522 = vpop.f32.mrb[0].mxu0
    %v3523 = vadd.f32 0.0, %v3522
    %v3524 = vpop.f32.mrb[0].mxu0
    %3525 = vmatprep.mubr.bf16.mxu0 0
    %3526 = vmatmul.mubr.bf16.gmra.mrb[0].mxu0 %v3386
    %v3527 = vpop.f32.mrb[0].mxu0
    %v3528 = vadd.f32 0.0, %v3527
    %v3529 = vpop.f32.mrb[0].mxu0
    %v3530 = vpop.f32.mrb[0].mxu0
    %v3531 = vadd.f32 0.0, %v3530
    %v3532 = vpop.f32.mrb[0].mxu0
    %3533 = vmatprep.mubr.bf16.mxu0 0
    %3534 = vmatmul.mubr.bf16.gmra.mrb[0].mxu0 %v3389
    %v3535 = vpop.f32.mrb[0].mxu0
    %v3536 = vadd.f32 0.0, %v3535
    %v3537 = vpop.f32.mrb[0].mxu0
    %v3538 = vpop.f32.mrb[0].mxu0
    %v3539 = vadd.f32 0.0, %v3538
    %v3540 = vpop.f32.mrb[0].mxu0
    %3541 = vmatprep.mubr.bf16.mxu0 0
    %3542 = vmatmul.mubr.bf16.gmra.mrb[0].mxu0 %v3391
    %v3543 = vpop.f32.mrb[0].mxu0
    %v3544 = vadd.f32 0.0, %v3543
    %v3545 = vpop.f32.mrb[0].mxu0
    %v3546 = vpop.f32.mrb[0].mxu0
    %v3547 = vadd.f32 0.0, %v3546
    %v3548 = vpop.f32.mrb[0].mxu0
    %3549 = vmatprep.mubr.bf16.mxu0 0
    %3550 = vmatmul.mubr.bf16.gmra.mrb[0].mxu0 %v3393
    %v3551 = vpop.f32.mrb[0].mxu0
    %v3552 = vadd.f32 0.0, %v3551
    %v3553 = vpop.f32.mrb[0].mxu0
    %v3554 = vpop.f32.mrb[0].mxu0
    %v3555 = vadd.f32 0.0, %v3554
    %v3556 = vpop.f32.mrb[0].mxu0
    %3557 = vmatprep.mubr.bf16.mxu0 0
    %3558 = vmatmul.mubr.bf16.gmra.mrb[0].mxu0 %v3395
    %v3559 = vpop.f32.mrb[0].mxu0
    %v3560 = vadd.f32 0.0, %v3559
    %v3561 = vpop.f32.mrb[0].mxu0
    %v3562 = vpop.f32.mrb[0].mxu0
    %v3563 = vadd.f32 0.0, %v3562
    %v3564 = vpop.f32.mrb[0].mxu0
    %3565 = vdwg.mxu0
    %v3566 = vadd.f32 %v3362, %v3504
    %v3567 = vadd.f32 %v3363, %v3507
    %v3568 = vadd.f32 %v3364, %v3512
    %v3569 = vadd.f32 %v3365, %v3515
    %v3570 = vadd.f32 %v3366, %v3520
    %v3571 = vadd.f32 %v3367, %v3523
    %v3572 = vadd.f32 %v3368, %v3528
    %v3573 = vadd.f32 %v3369, %v3531
    %v3574 = vadd.f32 %v3370, %v3536
    %v3575 = vadd.f32 %v3371, %v3539
    %v3576 = vadd.f32 %v3372, %v3544
    %v3577 = vadd.f32 %v3373, %v3547
    %v3578 = vadd.f32 %v3374, %v3552
    %v3579 = vadd.f32 %v3375, %v3555
    %v3580 = vadd.f32 %v3376, %v3560
    %v3581 = vadd.f32 %v3377, %v3563
    %v3582 = vrot.slane %v2324, 5
    %v3583 = vrot.slane %v2327, 6
    %v3584 = vor.u32 %v3582, %v3583
    %v3585 = vrot.slane %v2332, 5
    %v3586 = vrot.slane %v2335, 6
    %v3587 = vor.u32 %v3585, %v3586
    %v3588 = vsel %vm1982, %v3584, %v3587
    %v3589 = vrot.slane %v2341, 5
    %v3590 = vrot.slane %v2344, 6
    %v3591 = vor.u32 %v3589, %v3590
    %v3592 = vsel %vm1982, %v3587, %v3591
    %v3593 = vrot.slane %v2350, 5
    %v3594 = vrot.slane %v2353, 6
    %v3595 = vor.u32 %v3593, %v3594
    %v3596 = vsel %vm1982, %v3591, %v3595
    %v3597 = vrot.slane %v2358, 5
    %v3598 = vrot.slane %v2361, 6
    %v3599 = vor.u32 %v3597, %v3598
    %v3600 = vsel %vm1982, %v3595, %v3599
    %v3601 = vrot.slane %v2366, 5
    %v3602 = vrot.slane %v2369, 6
    %v3603 = vor.u32 %v3601, %v3602
    %v3604 = vrot.slane %v2374, 5
    %v3605 = vrot.slane %v2377, 6
    %v3606 = vor.u32 %v3604, %v3605
    %v3607 = vsel %vm1982, %v3603, %v3606
    %v3608 = vrot.slane %v2383, 5
    %v3609 = vrot.slane %v2386, 6
    %v3610 = vor.u32 %v3608, %v3609
    %v3611 = vsel %vm1982, %v3606, %v3610
    %v3612 = vrot.slane %v2392, 5
    %v3613 = vrot.slane %v2395, 6
    %v3614 = vor.u32 %v3612, %v3613
    %v3615 = vsel %vm1982, %v3610, %v3614
    %v3616 = vrot.slane %v2400, 5
    %v3617 = vrot.slane %v2403, 6
    %v3618 = vor.u32 %v3616, %v3617
    %v3619 = vsel %vm1982, %v3614, %v3618
    %s3628 = scalar_lea.vmem [#allocation16], 384
    %v3629 = vld [vmem:[%s3628] sm:$0xf]
    %v3630 = vld [vmem:[%s3628 + $0x4] sm:$0xf]
    %v3631 = vld [vmem:[%s3628 + $0x8] sm:$0xf]
    %v3632 = vld [vmem:[%s3628 + $0xc] sm:$0xf]
    %v3633 = vld [vmem:[%s3628 + $0x10] sm:$0xf]
    %v3634 = vld [vmem:[%s3628 + $0x14] sm:$0xf]
    %v3635 = vld [vmem:[%s3628 + $0x18] sm:$0xf]
    %v3636 = vld [vmem:[%s3628 + $0x1c] sm:$0xf]
    %v3637 = vld [vmem:[%s3628 + $0x20] sm:$0xf]
    %v3638 = vld [vmem:[%s3628 + $0x24] sm:$0xf]
    %v3639 = vld [vmem:[%s3628 + $0x28] sm:$0xf]
    %v3640 = vld [vmem:[%s3628 + $0x2c] sm:$0xf]
    %v3641 = vld [vmem:[%s3628 + $0x30] sm:$0xf]
    %v3642 = vld [vmem:[%s3628 + $0x34] sm:$0xf]
    %v3643 = vld [vmem:[%s3628 + $0x38] sm:$0xf]
    %v3644 = vld [vmem:[%s3628 + $0x3c] sm:$0xf]
    %v3661 = vunpack.c.l.b16 %v3629
    %v3662 = vunpack.c.l.b16 %v3630
    %v3663 = vunpack.c.l.b16 %v3631
    %v3664 = vunpack.c.l.b16 %v3632
    %v3665 = vunpack.c.l.b16 %v3633
    %v3666 = vunpack.c.l.b16 %v3634
    %v3667 = vunpack.c.l.b16 %v3635
    %v3668 = vunpack.c.l.b16 %v3636
    %v3669 = vunpack.c.l.b16 %v3637
    %v3670 = vunpack.c.l.b16 %v3638
    %v3671 = vunpack.c.l.b16 %v3639
    %v3672 = vunpack.c.l.b16 %v3640
    %v3673 = vunpack.c.l.b16 %v3641
    %v3674 = vunpack.c.l.b16 %v3642
    %v3675 = vunpack.c.l.b16 %v3643
    %v3676 = vunpack.c.l.b16 %v3644
    %v3677 = vpack.c.b16 %v3662, %v3661
    %v3678 = vpack.c.b16 %v3664, %v3663
    %v3679 = vpack.c.b16 %v3666, %v3665
    %v3680 = vpack.c.b16 %v3668, %v3667
    %v3681 = vpack.c.b16 %v3670, %v3669
    %v3682 = vpack.c.b16 %v3672, %v3671
    %v3683 = vpack.c.b16 %v3674, %v3673
    %v3684 = vpack.c.b16 %v3676, %v3675
    %3693 = vmatprep.subr.bf16.mxu0 0
    %3694 = vmatpush1.bf16.msra.mxu0 %v3677
    %3695 = vmatprep.subr.bf16.mxu0 0
    %3696 = vmatpush1.bf16.msra.mxu0 %v3678
    %3697 = vmatprep.subr.bf16.mxu0 0
    %3698 = vmatpush1.bf16.msra.mxu0 %v3679
    %3699 = vmatprep.subr.bf16.mxu0 0
    %3700 = vmatpush1.bf16.msra.mxu0 %v3680
    %3701 = vmatprep.subr.bf16.mxu0 0
    %3702 = vmatpush1.bf16.msra.mxu0 %v3681
    %3703 = vmatprep.subr.bf16.mxu0 0
    %3704 = vmatpush1.bf16.msra.mxu0 %v3682
    %3705 = vmatprep.subr.bf16.mxu0 0
    %3706 = vmatpush1.bf16.msra.mxu0 %v3683
    %3707 = vmatprep.subr.bf16.mxu0 0
    %3708 = vmatpush1.bf16.msra.mxu0 %v3684
    %3709 = vmatprep.subr.bf16.mxu0 0
    %3710 = vmatpush1.bf16.msra.mxu0 0
    %3711 = vmatprep.subr.bf16.mxu0 0
    %3712 = vmatpush1.bf16.msra.mxu0 0
    %3713 = vmatprep.subr.bf16.mxu0 0
    %3714 = vmatpush1.bf16.msra.mxu0 0
    %3715 = vmatprep.subr.bf16.mxu0 0
    %3716 = vmatpush1.bf16.msra.mxu0 0
    %3717 = vmatprep.subr.bf16.mxu0 0
    %3718 = vmatpush1.bf16.msra.mxu0 0
    %3719 = vmatprep.subr.bf16.mxu0 0
    %3720 = vmatpush1.bf16.msra.mxu0 0
    %3721 = vmatprep.subr.bf16.mxu0 0
    %3722 = vmatpush1.bf16.msra.mxu0 0
    %3723 = vmatprep.subr.bf16.mxu0 0
    %3724 = vmatpush1.bf16.msra.mxu0 0
    %3725 = vmatprep.mubr.bf16.mxu0 0
    %3726 = vmatmul.mubr.bf16.gmra.mrb[0].mxu0 %v3588
    %v3727 = vpop.f32.mrb[0].mxu0
    %v3728 = vadd.f32 0.0, %v3727
    %v3729 = vpop.f32.mrb[0].mxu0
    %v3730 = vpop.f32.mrb[0].mxu0
    %v3731 = vadd.f32 0.0, %v3730
    %v3732 = vpop.f32.mrb[0].mxu0
    %3733 = vmatprep.mubr.bf16.mxu0 0
    %3734 = vmatmul.mubr.bf16.gmra.mrb[0].mxu0 %v3592
    %v3735 = vpop.f32.mrb[0].mxu0
    %v3736 = vadd.f32 0.0, %v3735
    %v3737 = vpop.f32.mrb[0].mxu0
    %v3738 = vpop.f32.mrb[0].mxu0
    %v3739 = vadd.f32 0.0, %v3738
    %v3740 = vpop.f32.mrb[0].mxu0
    %3741 = vmatprep.mubr.bf16.mxu0 0
    %3742 = vmatmul.mubr.bf16.gmra.mrb[0].mxu0 %v3596
    %v3743 = vpop.f32.mrb[0].mxu0
    %v3744 = vadd.f32 0.0, %v3743
    %v3745 = vpop.f32.mrb[0].mxu0
    %v3746 = vpop.f32.mrb[0].mxu0
    %v3747 = vadd.f32 0.0, %v3746
    %v3748 = vpop.f32.mrb[0].mxu0
    %3749 = vmatprep.mubr.bf16.mxu0 0
    %3750 = vmatmul.mubr.bf16.gmra.mrb[0].mxu0 %v3600
    %v3751 = vpop.f32.mrb[0].mxu0
    %v3752 = vadd.f32 0.0, %v3751
    %v3753 = vpop.f32.mrb[0].mxu0
    %v3754 = vpop.f32.mrb[0].mxu0
    %v3755 = vadd.f32 0.0, %v3754
    %v3756 = vpop.f32.mrb[0].mxu0
    %3757 = vmatprep.mubr.bf16.mxu0 0
    %3758 = vmatmul.mubr.bf16.gmra.mrb[0].mxu0 %v3607
    %v3759 = vpop.f32.mrb[0].mxu0
    %v3760 = vadd.f32 0.0, %v3759
    %v3761 = vpop.f32.mrb[0].mxu0
    %v3762 = vpop.f32.mrb[0].mxu0
    %v3763 = vadd.f32 0.0, %v3762
    %v3764 = vpop.f32.mrb[0].mxu0
    %3765 = vmatprep.mubr.bf16.mxu0 0
    %3766 = vmatmul.mubr.bf16.gmra.mrb[0].mxu0 %v3611
    %v3767 = vpop.f32.mrb[0].mxu0
    %v3768 = vadd.f32 0.0, %v3767
    %v3769 = vpop.f32.mrb[0].mxu0
    %v3770 = vpop.f32.mrb[0].mxu0
    %v3771 = vadd.f32 0.0, %v3770
    %v3772 = vpop.f32.mrb[0].mxu0
    %3773 = vmatprep.mubr.bf16.mxu0 0
    %3774 = vmatmul.mubr.bf16.gmra.mrb[0].mxu0 %v3615
    %v3775 = vpop.f32.mrb[0].mxu0
    %v3776 = vadd.f32 0.0, %v3775
    %v3777 = vpop.f32.mrb[0].mxu0
    %v3778 = vpop.f32.mrb[0].mxu0
    %v3779 = vadd.f32 0.0, %v3778
    %v3780 = vpop.f32.mrb[0].mxu0
    %3781 = vmatprep.mubr.bf16.mxu0 0
    %3782 = vmatmul.mubr.bf16.gmra.mrb[0].mxu0 %v3619
    %v3783 = vpop.f32.mrb[0].mxu0
    %v3784 = vadd.f32 0.0, %v3783
    %v3785 = vpop.f32.mrb[0].mxu0
    %v3786 = vpop.f32.mrb[0].mxu0
    %v3787 = vadd.f32 0.0, %v3786
    %v3788 = vpop.f32.mrb[0].mxu0
    %3789 = vdwg.mxu0
    %v3790 = vadd.f32 %v3566, %v3728
    %v3791 = vadd.f32 %v3567, %v3731
    %v3792 = vadd.f32 %v3568, %v3736
    %v3793 = vadd.f32 %v3569, %v3739
    %v3794 = vadd.f32 %v3570, %v3744
    %v3795 = vadd.f32 %v3571, %v3747
    %v3796 = vadd.f32 %v3572, %v3752
    %v3797 = vadd.f32 %v3573, %v3755
    %v3798 = vadd.f32 %v3574, %v3760
    %v3799 = vadd.f32 %v3575, %v3763
    %v3800 = vadd.f32 %v3576, %v3768
    %v3801 = vadd.f32 %v3577, %v3771
    %v3802 = vadd.f32 %v3578, %v3776
    %v3803 = vadd.f32 %v3579, %v3779
    %v3804 = vadd.f32 %v3580, %v3784
    %v3805 = vadd.f32 %v3581, %v3787
    %v3806 = vld [vmem:[#allocation21] sm:$0x1]
    %v3808 = vlaneseq
    %v3809 = vshrl.u32 %v3808, 7
    %v3810 = vsub.s32 0, %v3809
    %v3811 = vrot.slane %v3806, %v3810
    %v3813 = vmul.f32 %v3790, %v3811
    %v3814 = vmul.f32 %v3791, %v3811
    %v3815 = vmul.f32 %v3792, %v3811
    %v3816 = vmul.f32 %v3793, %v3811
    %v3817 = vmul.f32 %v3794, %v3811
    %v3818 = vmul.f32 %v3795, %v3811
    %v3819 = vmul.f32 %v3796, %v3811
    %v3820 = vmul.f32 %v3797, %v3811
    %v3821 = vmul.f32 %v3798, %v3811
    %v3822 = vmul.f32 %v3799, %v3811
    %v3823 = vmul.f32 %v3800, %v3811
    %v3824 = vmul.f32 %v3801, %v3811
    %v3825 = vmul.f32 %v3802, %v3811
    %v3826 = vmul.f32 %v3803, %v3811
    %v3827 = vmul.f32 %v3804, %v3811
    %v3828 = vmul.f32 %v3805, %v3811
    %v3829 = vld [vmem:[#allocation22] sm:$0x1]
    %v3831 = vlaneseq
    %v3832 = vshrl.u32 %v3831, 7
    %v3833 = vsub.s32 0, %v3832
    %v3834 = vrot.slane %v3829, %v3833
    %v3836 = vadd.f32 %v3813, %v3834
    %v3837 = vadd.f32 %v3814, %v3834
    %v3838 = vadd.f32 %v3815, %v3834
    %v3839 = vadd.f32 %v3816, %v3834
    %v3840 = vadd.f32 %v3817, %v3834
    %v3841 = vadd.f32 %v3818, %v3834
    %v3842 = vadd.f32 %v3819, %v3834
    %v3843 = vadd.f32 %v3820, %v3834
    %v3844 = vadd.f32 %v3821, %v3834
    %v3845 = vadd.f32 %v3822, %v3834
    %v3846 = vadd.f32 %v3823, %v3834
    %v3847 = vadd.f32 %v3824, %v3834
    %v3848 = vadd.f32 %v3825, %v3834
    %v3849 = vadd.f32 %v3826, %v3834
    %v3850 = vadd.f32 %v3827, %v3834
    %v3851 = vadd.f32 %v3828, %v3834
    %v3852 = vadd.f32 %v3836, %v799
    %v3853 = vadd.f32 %v3837, %v800
    %v3854 = vadd.f32 %v3838, %v801
    %v3855 = vadd.f32 %v3839, %v802
    %v3856 = vadd.f32 %v3840, %v803
    %v3857 = vadd.f32 %v3841, %v804
    %v3858 = vadd.f32 %v3842, %v805
    %v3859 = vadd.f32 %v3843, %v806
    %v3860 = vadd.f32 %v3844, %v807
    %v3861 = vadd.f32 %v3845, %v808
    %v3862 = vadd.f32 %v3846, %v809
    %v3863 = vadd.f32 %v3847, %v810
    %v3864 = vadd.f32 %v3848, %v811
    %v3865 = vadd.f32 %v3849, %v812
    %v3866 = vadd.f32 %v3850, %v813
    %v3867 = vadd.f32 %v3851, %v814
    %v3868 = vmax.f32 %v3852, 0.0
    %v3869 = vmax.f32 %v3853, 0.0
    %v3870 = vmax.f32 %v3854, 0.0
    %v3871 = vmax.f32 %v3855, 0.0
    %v3872 = vmax.f32 %v3856, 0.0
    %v3873 = vmax.f32 %v3857, 0.0
    %v3874 = vmax.f32 %v3858, 0.0
    %v3875 = vmax.f32 %v3859, 0.0
    %v3876 = vmax.f32 %v3860, 0.0
    %v3877 = vmax.f32 %v3861, 0.0
    %v3878 = vmax.f32 %v3862, 0.0
    %v3879 = vmax.f32 %v3863, 0.0
    %v3880 = vmax.f32 %v3864, 0.0
    %v3881 = vmax.f32 %v3865, 0.0
    %v3882 = vmax.f32 %v3866, 0.0
    %v3883 = vmax.f32 %v3867, 0.0
    %s3884 = smul.u32 4, 16
    %s3885 = smul.u32 %s3884, 2
    %s3886 = sshll.u32 %s3885, 4
    %3887 = dma.done [#allocation9], %s3886
    %s3888 = smul.u32 4, 4
    %s3889 = smul.u32 %s3888, 16
    %s3890 = smul.u32 %s3889, 1
    %s3891 = sshll.u32 %s3890, 4
    %3892 = dma.done %s395, %s3891
    %s3893 = smul.u32 4, 5
    %s3894 = smul.u32 %s3893, 16
    %s3895 = smul.u32 %s3894, 1
    %s3896 = sshll.u32 %s3895, 4
    %3897 = dma.done %s407, %s3896
    %v3898 = vpack.c.bf16 %v3869, %v3868
    %v3899 = vpack.c.bf16 %v3871, %v3870
    %v3900 = vpack.c.bf16 %v3873, %v3872
    %v3901 = vpack.c.bf16 %v3875, %v3874
    %v3902 = vpack.c.bf16 %v3877, %v3876
    %v3903 = vpack.c.bf16 %v3879, %v3878
    %v3904 = vpack.c.bf16 %v3881, %v3880
    %v3905 = vpack.c.bf16 %v3883, %v3882
    %v3906 = vld [vmem:[#allocation2] sm:$0xff]
    %v3907 = vld [vmem:[#allocation2 + $0x8] sm:$0xff]
    %v3908 = vld [vmem:[#allocation2 + $0x10] sm:$0xff]
    %v3909 = vld [vmem:[#allocation2 + $0x18] sm:$0xff]
    %v3910 = vld [vmem:[#allocation2 + $0x20] sm:$0xff]
    %v3911 = vld [vmem:[#allocation2 + $0x28] sm:$0xff]
    %v3912 = vld [vmem:[#allocation2 + $0x30] sm:$0xff]
    %v3913 = vld [vmem:[#allocation2 + $0x38] sm:$0xff]
    %v3914 = vld [vmem:[#allocation2 + $0x40] sm:$0xff]
    %v3915 = vld [vmem:[#allocation2 + $0x48] sm:$0xff]
    %v3916 = vld [vmem:[#allocation2 + $0x50] sm:$0xff]
    %v3917 = vld [vmem:[#allocation2 + $0x58] sm:$0xff]
    %v3918 = vld [vmem:[#allocation2 + $0x60] sm:$0xff]
    %v3919 = vld [vmem:[#allocation2 + $0x68] sm:$0xff]
    %v3920 = vld [vmem:[#allocation2 + $0x70] sm:$0xff]
    %v3921 = vld [vmem:[#allocation2 + $0x78] sm:$0xff]
    %3922 = vmatprep.subr.bf16.mxu0 %v3907
    %3923 = vmatpush1.bf16.msra.mxu0 %v3906
    %3924 = vmatprep.subr.bf16.mxu0 %v3909
    %3925 = vmatpush1.bf16.msra.mxu0 %v3908
    %3926 = vmatprep.subr.bf16.mxu0 %v3911
    %3927 = vmatpush1.bf16.msra.mxu0 %v3910
    %3928 = vmatprep.subr.bf16.mxu0 %v3913
    %3929 = vmatpush1.bf16.msra.mxu0 %v3912
    %3930 = vmatprep.subr.bf16.mxu0 %v3915
    %3931 = vmatpush1.bf16.msra.mxu0 %v3914
    %3932 = vmatprep.subr.bf16.mxu0 %v3917
    %3933 = vmatpush1.bf16.msra.mxu0 %v3916
    %3934 = vmatprep.subr.bf16.mxu0 %v3919
    %3935 = vmatpush1.bf16.msra.mxu0 %v3918
    %3936 = vmatprep.subr.bf16.mxu0 %v3921
    %3937 = vmatpush1.bf16.msra.mxu0 %v3920
    %3938 = vmatprep.subr.bf16.mxu0 0
    %3939 = vmatpush1.bf16.msra.mxu0 0
    %3940 = vmatprep.subr.bf16.mxu0 0
    %3941 = vmatpush1.bf16.msra.mxu0 0
    %3942 = vmatprep.subr.bf16.mxu0 0
    %3943 = vmatpush1.bf16.msra.mxu0 0
    %3944 = vmatprep.subr.bf16.mxu0 0
    %3945 = vmatpush1.bf16.msra.mxu0 0
    %3946 = vmatprep.subr.bf16.mxu0 0
    %3947 = vmatpush1.bf16.msra.mxu0 0
    %3948 = vmatprep.subr.bf16.mxu0 0
    %3949 = vmatpush1.bf16.msra.mxu0 0
    %3950 = vmatprep.subr.bf16.mxu0 0
    %3951 = vmatpush1.bf16.msra.mxu0 0
    %3952 = vmatprep.subr.bf16.mxu0 0
    %3953 = vmatpush1.bf16.msra.mxu0 0
    %3954 = vmatprep.mubr.bf16.mxu0 0
    %3955 = vmatmul.mubr.bf16.gmra.mrb[0].mxu0 %v3898
    %v3956 = vpop.f32.mrb[0].mxu0
    %v3957 = vadd.f32 0.0, %v3956
    %v3958 = vpop.f32.mrb[0].mxu0
    %v3959 = vadd.f32 0.0, %v3958
    %v3960 = vpop.f32.mrb[0].mxu0
    %v3961 = vadd.f32 0.0, %v3960
    %v3962 = vpop.f32.mrb[0].mxu0
    %v3963 = vadd.f32 0.0, %v3962
    %3964 = vmatprep.mubr.bf16.mxu0 0
    %3965 = vmatmul.mubr.bf16.gmra.mrb[0].mxu0 %v3899
    %v3966 = vpop.f32.mrb[0].mxu0
    %v3967 = vadd.f32 0.0, %v3966
    %v3968 = vpop.f32.mrb[0].mxu0
    %v3969 = vadd.f32 0.0, %v3968
    %v3970 = vpop.f32.mrb[0].mxu0
    %v3971 = vadd.f32 0.0, %v3970
    %v3972 = vpop.f32.mrb[0].mxu0
    %v3973 = vadd.f32 0.0, %v3972
    %3974 = vmatprep.mubr.bf16.mxu0 0
    %3975 = vmatmul.mubr.bf16.gmra.mrb[0].mxu0 %v3900
    %v3976 = vpop.f32.mrb[0].mxu0
    %v3977 = vadd.f32 0.0, %v3976
    %v3978 = vpop.f32.mrb[0].mxu0
    %v3979 = vadd.f32 0.0, %v3978
    %v3980 = vpop.f32.mrb[0].mxu0
    %v3981 = vadd.f32 0.0, %v3980
    %v3982 = vpop.f32.mrb[0].mxu0
    %v3983 = vadd.f32 0.0, %v3982
    %3984 = vmatprep.mubr.bf16.mxu0 0
    %3985 = vmatmul.mubr.bf16.gmra.mrb[0].mxu0 %v3901
    %v3986 = vpop.f32.mrb[0].mxu0
    %v3987 = vadd.f32 0.0, %v3986
    %v3988 = vpop.f32.mrb[0].mxu0
    %v3989 = vadd.f32 0.0, %v3988
    %v3990 = vpop.f32.mrb[0].mxu0
    %v3991 = vadd.f32 0.0, %v3990
    %v3992 = vpop.f32.mrb[0].mxu0
    %v3993 = vadd.f32 0.0, %v3992
    %3994 = vmatprep.mubr.bf16.mxu0 0
    %3995 = vmatmul.mubr.bf16.gmra.mrb[0].mxu0 %v3902
    %v3996 = vpop.f32.mrb[0].mxu0
    %v3997 = vadd.f32 0.0, %v3996
    %v3998 = vpop.f32.mrb[0].mxu0
    %v3999 = vadd.f32 0.0, %v3998
    %v4000 = vpop.f32.mrb[0].mxu0
    %v4001 = vadd.f32 0.0, %v4000
    %v4002 = vpop.f32.mrb[0].mxu0
    %v4003 = vadd.f32 0.0, %v4002
    %4004 = vmatprep.mubr.bf16.mxu0 0
    %4005 = vmatmul.mubr.bf16.gmra.mrb[0].mxu0 %v3903
    %v4006 = vpop.f32.mrb[0].mxu0
    %v4007 = vadd.f32 0.0, %v4006
    %v4008 = vpop.f32.mrb[0].mxu0
    %v4009 = vadd.f32 0.0, %v4008
    %v4010 = vpop.f32.mrb[0].mxu0
    %v4011 = vadd.f32 0.0, %v4010
    %v4012 = vpop.f32.mrb[0].mxu0
    %v4013 = vadd.f32 0.0, %v4012
    %4014 = vmatprep.mubr.bf16.mxu0 0
    %4015 = vmatmul.mubr.bf16.gmra.mrb[0].mxu0 %v3904
    %v4016 = vpop.f32.mrb[0].mxu0
    %v4017 = vadd.f32 0.0, %v4016
    %v4018 = vpop.f32.mrb[0].mxu0
    %v4019 = vadd.f32 0.0, %v4018
    %v4020 = vpop.f32.mrb[0].mxu0
    %v4021 = vadd.f32 0.0, %v4020
    %v4022 = vpop.f32.mrb[0].mxu0
    %v4023 = vadd.f32 0.0, %v4022
    %4024 = vmatprep.mubr.bf16.mxu0 0
    %4025 = vmatmul.mubr.bf16.gmra.mrb[0].mxu0 %v3905
    %v4026 = vpop.f32.mrb[0].mxu0
    %v4027 = vadd.f32 0.0, %v4026
    %v4028 = vpop.f32.mrb[0].mxu0
    %v4029 = vadd.f32 0.0, %v4028
    %v4030 = vpop.f32.mrb[0].mxu0
    %v4031 = vadd.f32 0.0, %v4030
    %v4032 = vpop.f32.mrb[0].mxu0
    %v4033 = vadd.f32 0.0, %v4032
    %4034 = vdwg.mxu0
    %v4035 = vld [vmem:[#allocation31] sm:$0x1]
    %v4037 = vlaneseq
    %v4038 = vshrl.u32 %v4037, 7
    %v4039 = vsub.s32 0, %v4038
    %v4040 = vrot.slane %v4035, %v4039
    %v4042 = vadd.f32 %v3959, %v4040
    %v4043 = vadd.f32 %v3963, %v4040
    %v4044 = vadd.f32 %v3969, %v4040
    %v4045 = vadd.f32 %v3973, %v4040
    %v4046 = vadd.f32 %v3979, %v4040
    %v4047 = vadd.f32 %v3983, %v4040
    %v4048 = vadd.f32 %v3989, %v4040
    %v4049 = vadd.f32 %v3993, %v4040
    %v4050 = vadd.f32 %v3999, %v4040
    %v4051 = vadd.f32 %v4003, %v4040
    %v4052 = vadd.f32 %v4009, %v4040
    %v4053 = vadd.f32 %v4013, %v4040
    %v4054 = vadd.f32 %v4019, %v4040
    %v4055 = vadd.f32 %v4023, %v4040
    %v4056 = vadd.f32 %v4029, %v4040
    %v4057 = vadd.f32 %v4033, %v4040
    %v4066 = vrot.slane %v3898, 4
    %v4067 = vrot.slane %v3899, 4
    %v4068 = vsel %vm823, %v4066, %v4067
    %v4069 = vrot.slane %v3900, 4
    %v4070 = vsel %vm823, %v4067, %v4069
    %v4071 = vrot.slane %v3901, 4
    %v4072 = vsel %vm823, %v4069, %v4071
    %v4073 = vrot.slane %v3902, 4
    %v4074 = vrot.slane %v3903, 4
    %v4075 = vsel %vm823, %v4073, %v4074
    %v4076 = vrot.slane %v3904, 4
    %v4077 = vsel %vm823, %v4074, %v4076
    %v4078 = vrot.slane %v3905, 4
    %v4079 = vsel %vm823, %v4076, %v4078
    %v4081 = vsel %vm838, 0, %v4066
    %v4083 = vsel %vm838, 0, %v4073
    %v4085 = vsel %vm838, %v4071, 0
    %v4087 = vsel %vm838, %v4078, 0
    %v4092 = vrot.slane %v4081, 3
    %v4093 = vrot.slane %v4068, 3
    %v4094 = vsel %vm1122, %v4092, %v4093
    %v4095 = vrot.slane %v4070, 3
    %v4096 = vsel %vm1122, %v4093, %v4095
    %v4097 = vrot.slane %v4072, 3
    %v4098 = vsel %vm1122, %v4095, %v4097
    %v4099 = vrot.slane %v4085, 3
    %v4100 = vsel %vm1122, %v4097, %v4099
    %v4101 = vrot.slane %v4083, 3
    %v4102 = vrot.slane %v4075, 3
    %v4103 = vsel %vm1122, %v4101, %v4102
    %v4104 = vrot.slane %v4077, 3
    %v4105 = vsel %vm1122, %v4102, %v4104
    %v4106 = vrot.slane %v4079, 3
    %v4107 = vsel %vm1122, %v4104, %v4106
    %v4108 = vrot.slane %v4087, 3
    %v4109 = vsel %vm1122, %v4106, %v4108
    %v4118 = vld [vmem:[#allocation3] sm:$0xff]
    %v4119 = vld [vmem:[#allocation3 + $0x8] sm:$0xff]
    %v4120 = vld [vmem:[#allocation3 + $0x10] sm:$0xff]
    %v4121 = vld [vmem:[#allocation3 + $0x18] sm:$0xff]
    %v4122 = vld [vmem:[#allocation3 + $0x20] sm:$0xff]
    %v4123 = vld [vmem:[#allocation3 + $0x28] sm:$0xff]
    %v4124 = vld [vmem:[#allocation3 + $0x30] sm:$0xff]
    %v4125 = vld [vmem:[#allocation3 + $0x38] sm:$0xff]
    %4126 = vmatprep.subr.bf16.mxu0 0
    %4127 = vmatpush1.bf16.msra.mxu0 %v4118
    %4128 = vmatprep.subr.bf16.mxu0 0
    %4129 = vmatpush1.bf16.msra.mxu0 %v4119
    %4130 = vmatprep.subr.bf16.mxu0 0
    %4131 = vmatpush1.bf16.msra.mxu0 %v4120
    %4132 = vmatprep.subr.bf16.mxu0 0
    %4133 = vmatpush1.bf16.msra.mxu0 %v4121
    %4134 = vmatprep.subr.bf16.mxu0 0
    %4135 = vmatpush1.bf16.msra.mxu0 %v4122
    %4136 = vmatprep.subr.bf16.mxu0 0
    %4137 = vmatpush1.bf16.msra.mxu0 %v4123
    %4138 = vmatprep.subr.bf16.mxu0 0
    %4139 = vmatpush1.bf16.msra.mxu0 %v4124
    %4140 = vmatprep.subr.bf16.mxu0 0
    %4141 = vmatpush1.bf16.msra.mxu0 %v4125
    %4142 = vmatprep.subr.bf16.mxu0 0
    %4143 = vmatpush1.bf16.msra.mxu0 0
    %4144 = vmatprep.subr.bf16.mxu0 0
    %4145 = vmatpush1.bf16.msra.mxu0 0
    %4146 = vmatprep.subr.bf16.mxu0 0
    %4147 = vmatpush1.bf16.msra.mxu0 0
    %4148 = vmatprep.subr.bf16.mxu0 0
    %4149 = vmatpush1.bf16.msra.mxu0 0
    %4150 = vmatprep.subr.bf16.mxu0 0
    %4151 = vmatpush1.bf16.msra.mxu0 0
    %4152 = vmatprep.subr.bf16.mxu0 0
    %4153 = vmatpush1.bf16.msra.mxu0 0
    %4154 = vmatprep.subr.bf16.mxu0 0
    %4155 = vmatpush1.bf16.msra.mxu0 0
    %4156 = vmatprep.subr.bf16.mxu0 0
    %4157 = vmatpush1.bf16.msra.mxu0 0
    %4158 = vmatprep.mubr.bf16.mxu0 0
    %4159 = vmatmul.mubr.bf16.gmra.mrb[0].mxu0 %v4094
    %v4160 = vpop.f32.mrb[0].mxu0
    %v4161 = vadd.f32 0.0, %v4160
    %v4162 = vpop.f32.mrb[0].mxu0
    %v4163 = vpop.f32.mrb[0].mxu0
    %v4164 = vadd.f32 0.0, %v4163
    %v4165 = vpop.f32.mrb[0].mxu0
    %4166 = vmatprep.mubr.bf16.mxu0 0
    %4167 = vmatmul.mubr.bf16.gmra.mrb[0].mxu0 %v4096
    %v4168 = vpop.f32.mrb[0].mxu0
    %v4169 = vadd.f32 0.0, %v4168
    %v4170 = vpop.f32.mrb[0].mxu0
    %v4171 = vpop.f32.mrb[0].mxu0
    %v4172 = vadd.f32 0.0, %v4171
    %v4173 = vpop.f32.mrb[0].mxu0
    %4174 = vmatprep.mubr.bf16.mxu0 0
    %4175 = vmatmul.mubr.bf16.gmra.mrb[0].mxu0 %v4098
    %v4176 = vpop.f32.mrb[0].mxu0
    %v4177 = vadd.f32 0.0, %v4176
    %v4178 = vpop.f32.mrb[0].mxu0
    %v4179 = vpop.f32.mrb[0].mxu0
    %v4180 = vadd.f32 0.0, %v4179
    %v4181 = vpop.f32.mrb[0].mxu0
    %4182 = vmatprep.mubr.bf16.mxu0 0
    %4183 = vmatmul.mubr.bf16.gmra.mrb[0].mxu0 %v4100
    %v4184 = vpop.f32.mrb[0].mxu0
    %v4185 = vadd.f32 0.0, %v4184
    %v4186 = vpop.f32.mrb[0].mxu0
    %v4187 = vpop.f32.mrb[0].mxu0
    %v4188 = vadd.f32 0.0, %v4187
    %v4189 = vpop.f32.mrb[0].mxu0
    %4190 = vmatprep.mubr.bf16.mxu0 0
    %4191 = vmatmul.mubr.bf16.gmra.mrb[0].mxu0 %v4103
    %v4192 = vpop.f32.mrb[0].mxu0
    %v4193 = vadd.f32 0.0, %v4192
    %v4194 = vpop.f32.mrb[0].mxu0
    %v4195 = vpop.f32.mrb[0].mxu0
    %v4196 = vadd.f32 0.0, %v4195
    %v4197 = vpop.f32.mrb[0].mxu0
    %4198 = vmatprep.mubr.bf16.mxu0 0
    %4199 = vmatmul.mubr.bf16.gmra.mrb[0].mxu0 %v4105
    %v4200 = vpop.f32.mrb[0].mxu0
    %v4201 = vadd.f32 0.0, %v4200
    %v4202 = vpop.f32.mrb[0].mxu0
    %v4203 = vpop.f32.mrb[0].mxu0
    %v4204 = vadd.f32 0.0, %v4203
    %v4205 = vpop.f32.mrb[0].mxu0
    %4206 = vmatprep.mubr.bf16.mxu0 0
    %4207 = vmatmul.mubr.bf16.gmra.mrb[0].mxu0 %v4107
    %v4208 = vpop.f32.mrb[0].mxu0
    %v4209 = vadd.f32 0.0, %v4208
    %v4210 = vpop.f32.mrb[0].mxu0
    %v4211 = vpop.f32.mrb[0].mxu0
    %v4212 = vadd.f32 0.0, %v4211
    %v4213 = vpop.f32.mrb[0].mxu0
    %4214 = vmatprep.mubr.bf16.mxu0 0
    %4215 = vmatmul.mubr.bf16.gmra.mrb[0].mxu0 %v4109
    %v4216 = vpop.f32.mrb[0].mxu0
    %v4217 = vadd.f32 0.0, %v4216
    %v4218 = vpop.f32.mrb[0].mxu0
    %v4219 = vpop.f32.mrb[0].mxu0
    %v4220 = vadd.f32 0.0, %v4219
    %v4221 = vpop.f32.mrb[0].mxu0
    %4222 = vdwg.mxu0
    %v4223 = vadd.f32 %v3957, %v4161
    %v4224 = vadd.f32 %v3961, %v4164
    %v4225 = vadd.f32 %v3967, %v4169
    %v4226 = vadd.f32 %v3971, %v4172
    %v4227 = vadd.f32 %v3977, %v4177
    %v4228 = vadd.f32 %v3981, %v4180
    %v4229 = vadd.f32 %v3987, %v4185
    %v4230 = vadd.f32 %v3991, %v4188
    %v4231 = vadd.f32 %v3997, %v4193
    %v4232 = vadd.f32 %v4001, %v4196
    %v4233 = vadd.f32 %v4007, %v4201
    %v4234 = vadd.f32 %v4011, %v4204
    %v4235 = vadd.f32 %v4017, %v4209
    %v4236 = vadd.f32 %v4021, %v4212
    %v4237 = vadd.f32 %v4027, %v4217
    %v4238 = vadd.f32 %v4031, %v4220
    %v4239 = vshrl.u32 %v4081, 16
    %v4241 = vrot.slane %v4239, 3
    %v4242 = vshll.u32 %v4081, 16
    %v4244 = vrot.slane %v4242, 4
    %v4245 = vor.u32 %v4241, %v4244
    %v4247 = vshrl.u32 %v4068, 16
    %v4249 = vrot.slane %v4247, 3
    %v4250 = vshll.u32 %v4068, 16
    %v4252 = vrot.slane %v4250, 4
    %v4253 = vor.u32 %v4249, %v4252
    %v4254 = vsel %vm1327, %v4245, %v4253
    %v4256 = vshrl.u32 %v4070, 16
    %v4258 = vrot.slane %v4256, 3
    %v4259 = vshll.u32 %v4070, 16
    %v4261 = vrot.slane %v4259, 4
    %v4262 = vor.u32 %v4258, %v4261
    %v4263 = vsel %vm1327, %v4253, %v4262
    %v4265 = vshrl.u32 %v4072, 16
    %v4267 = vrot.slane %v4265, 3
    %v4268 = vshll.u32 %v4072, 16
    %v4270 = vrot.slane %v4268, 4
    %v4271 = vor.u32 %v4267, %v4270
    %v4272 = vsel %vm1327, %v4262, %v4271
    %v4273 = vshrl.u32 %v4085, 16
    %v4275 = vrot.slane %v4273, 3
    %v4276 = vshll.u32 %v4085, 16
    %v4278 = vrot.slane %v4276, 4
    %v4279 = vor.u32 %v4275, %v4278
    %v4280 = vsel %vm1327, %v4271, %v4279
    %v4281 = vshrl.u32 %v4083, 16
    %v4283 = vrot.slane %v4281, 3
    %v4284 = vshll.u32 %v4083, 16
    %v4286 = vrot.slane %v4284, 4
    %v4287 = vor.u32 %v4283, %v4286
    %v4289 = vshrl.u32 %v4075, 16
    %v4291 = vrot.slane %v4289, 3
    %v4292 = vshll.u32 %v4075, 16
    %v4294 = vrot.slane %v4292, 4
    %v4295 = vor.u32 %v4291, %v4294
    %v4296 = vsel %vm1327, %v4287, %v4295
    %v4298 = vshrl.u32 %v4077, 16
    %v4300 = vrot.slane %v4298, 3
    %v4301 = vshll.u32 %v4077, 16
    %v4303 = vrot.slane %v4301, 4
    %v4304 = vor.u32 %v4300, %v4303
    %v4305 = vsel %vm1327, %v4295, %v4304
    %v4307 = vshrl.u32 %v4079, 16
    %v4309 = vrot.slane %v4307, 3
    %v4310 = vshll.u32 %v4079, 16
    %v4312 = vrot.slane %v4310, 4
    %v4313 = vor.u32 %v4309, %v4312
    %v4314 = vsel %vm1327, %v4304, %v4313
    %v4315 = vshrl.u32 %v4087, 16
    %v4317 = vrot.slane %v4315, 3
    %v4318 = vshll.u32 %v4087, 16
    %v4320 = vrot.slane %v4318, 4
    %v4321 = vor.u32 %v4317, %v4320
    %v4322 = vsel %vm1327, %v4313, %v4321
    %s4331 = scalar_lea.vmem [#allocation3], 64
    %v4332 = vld [vmem:[%s4331] sm:$0xff]
    %v4333 = vld [vmem:[%s4331 + $0x8] sm:$0xff]
    %v4334 = vld [vmem:[%s4331 + $0x10] sm:$0xff]
    %v4335 = vld [vmem:[%s4331 + $0x18] sm:$0xff]
    %v4336 = vld [vmem:[%s4331 + $0x20] sm:$0xff]
    %v4337 = vld [vmem:[%s4331 + $0x28] sm:$0xff]
    %v4338 = vld [vmem:[%s4331 + $0x30] sm:$0xff]
    %v4339 = vld [vmem:[%s4331 + $0x38] sm:$0xff]
    %4340 = vmatprep.subr.bf16.mxu0 0
    %4341 = vmatpush1.bf16.msra.mxu0 %v4332
    %4342 = vmatprep.subr.bf16.mxu0 0
    %4343 = vmatpush1.bf16.msra.mxu0 %v4333
    %4344 = vmatprep.subr.bf16.mxu0 0
    %4345 = vmatpush1.bf16.msra.mxu0 %v4334
    %4346 = vmatprep.subr.bf16.mxu0 0
    %4347 = vmatpush1.bf16.msra.mxu0 %v4335
    %4348 = vmatprep.subr.bf16.mxu0 0
    %4349 = vmatpush1.bf16.msra.mxu0 %v4336
    %4350 = vmatprep.subr.bf16.mxu0 0
    %4351 = vmatpush1.bf16.msra.mxu0 %v4337
    %4352 = vmatprep.subr.bf16.mxu0 0
    %4353 = vmatpush1.bf16.msra.mxu0 %v4338
    %4354 = vmatprep.subr.bf16.mxu0 0
    %4355 = vmatpush1.bf16.msra.mxu0 %v4339
    %4356 = vmatprep.subr.bf16.mxu0 0
    %4357 = vmatpush1.bf16.msra.mxu0 0
    %4358 = vmatprep.subr.bf16.mxu0 0
    %4359 = vmatpush1.bf16.msra.mxu0 0
    %4360 = vmatprep.subr.bf16.mxu0 0
    %4361 = vmatpush1.bf16.msra.mxu0 0
    %4362 = vmatprep.subr.bf16.mxu0 0
    %4363 = vmatpush1.bf16.msra.mxu0 0
    %4364 = vmatprep.subr.bf16.mxu0 0
    %4365 = vmatpush1.bf16.msra.mxu0 0
    %4366 = vmatprep.subr.bf16.mxu0 0
    %4367 = vmatpush1.bf16.msra.mxu0 0
    %4368 = vmatprep.subr.bf16.mxu0 0
    %4369 = vmatpush1.bf16.msra.mxu0 0
    %4370 = vmatprep.subr.bf16.mxu0 0
    %4371 = vmatpush1.bf16.msra.mxu0 0
    %4372 = vmatprep.mubr.bf16.mxu0 0
    %4373 = vmatmul.mubr.bf16.gmra.mrb[0].mxu0 %v4254
    %v4374 = vpop.f32.mrb[0].mxu0
    %v4375 = vadd.f32 0.0, %v4374
    %v4376 = vpop.f32.mrb[0].mxu0
    %v4377 = vpop.f32.mrb[0].mxu0
    %v4378 = vadd.f32 0.0, %v4377
    %v4379 = vpop.f32.mrb[0].mxu0
    %4380 = vmatprep.mubr.bf16.mxu0 0
    %4381 = vmatmul.mubr.bf16.gmra.mrb[0].mxu0 %v4263
    %v4382 = vpop.f32.mrb[0].mxu0
    %v4383 = vadd.f32 0.0, %v4382
    %v4384 = vpop.f32.mrb[0].mxu0
    %v4385 = vpop.f32.mrb[0].mxu0
    %v4386 = vadd.f32 0.0, %v4385
    %v4387 = vpop.f32.mrb[0].mxu0
    %4388 = vmatprep.mubr.bf16.mxu0 0
    %4389 = vmatmul.mubr.bf16.gmra.mrb[0].mxu0 %v4272
    %v4390 = vpop.f32.mrb[0].mxu0
    %v4391 = vadd.f32 0.0, %v4390
    %v4392 = vpop.f32.mrb[0].mxu0
    %v4393 = vpop.f32.mrb[0].mxu0
    %v4394 = vadd.f32 0.0, %v4393
    %v4395 = vpop.f32.mrb[0].mxu0
    %4396 = vmatprep.mubr.bf16.mxu0 0
    %4397 = vmatmul.mubr.bf16.gmra.mrb[0].mxu0 %v4280
    %v4398 = vpop.f32.mrb[0].mxu0
    %v4399 = vadd.f32 0.0, %v4398
    %v4400 = vpop.f32.mrb[0].mxu0
    %v4401 = vpop.f32.mrb[0].mxu0
    %v4402 = vadd.f32 0.0, %v4401
    %v4403 = vpop.f32.mrb[0].mxu0
    %4404 = vmatprep.mubr.bf16.mxu0 0
    %4405 = vmatmul.mubr.bf16.gmra.mrb[0].mxu0 %v4296
    %v4406 = vpop.f32.mrb[0].mxu0
    %v4407 = vadd.f32 0.0, %v4406
    %v4408 = vpop.f32.mrb[0].mxu0
    %v4409 = vpop.f32.mrb[0].mxu0
    %v4410 = vadd.f32 0.0, %v4409
    %v4411 = vpop.f32.mrb[0].mxu0
    %4412 = vmatprep.mubr.bf16.mxu0 0
    %4413 = vmatmul.mubr.bf16.gmra.mrb[0].mxu0 %v4305
    %v4414 = vpop.f32.mrb[0].mxu0
    %v4415 = vadd.f32 0.0, %v4414
    %v4416 = vpop.f32.mrb[0].mxu0
    %v4417 = vpop.f32.mrb[0].mxu0
    %v4418 = vadd.f32 0.0, %v4417
    %v4419 = vpop.f32.mrb[0].mxu0
    %4420 = vmatprep.mubr.bf16.mxu0 0
    %4421 = vmatmul.mubr.bf16.gmra.mrb[0].mxu0 %v4314
    %v4422 = vpop.f32.mrb[0].mxu0
    %v4423 = vadd.f32 0.0, %v4422
    %v4424 = vpop.f32.mrb[0].mxu0
    %v4425 = vpop.f32.mrb[0].mxu0
    %v4426 = vadd.f32 0.0, %v4425
    %v4427 = vpop.f32.mrb[0].mxu0
    %4428 = vmatprep.mubr.bf16.mxu0 0
    %4429 = vmatmul.mubr.bf16.gmra.mrb[0].mxu0 %v4322
    %v4430 = vpop.f32.mrb[0].mxu0
    %v4431 = vadd.f32 0.0, %v4430
    %v4432 = vpop.f32.mrb[0].mxu0
    %v4433 = vpop.f32.mrb[0].mxu0
    %v4434 = vadd.f32 0.0, %v4433
    %v4435 = vpop.f32.mrb[0].mxu0
    %4436 = vdwg.mxu0
    %v4437 = vadd.f32 %v4223, %v4375
    %v4438 = vadd.f32 %v4224, %v4378
    %v4439 = vadd.f32 %v4225, %v4383
    %v4440 = vadd.f32 %v4226, %v4386
    %v4441 = vadd.f32 %v4227, %v4391
    %v4442 = vadd.f32 %v4228, %v4394
    %v4443 = vadd.f32 %v4229, %v4399
    %v4444 = vadd.f32 %v4230, %v4402
    %v4445 = vadd.f32 %v4231, %v4407
    %v4446 = vadd.f32 %v4232, %v4410
    %v4447 = vadd.f32 %v4233, %v4415
    %v4448 = vadd.f32 %v4234, %v4418
    %v4449 = vadd.f32 %v4235, %v4423
    %v4450 = vadd.f32 %v4236, %v4426
    %v4451 = vadd.f32 %v4237, %v4431
    %v4452 = vadd.f32 %v4238, %v4434
    %v4453 = vrot.slane %v4239, 4
    %v4454 = vrot.slane %v4242, 5
    %v4455 = vor.u32 %v4453, %v4454
    %v4456 = vrot.slane %v4247, 4
    %v4457 = vrot.slane %v4250, 5
    %v4458 = vor.u32 %v4456, %v4457
    %v4459 = vsel %vm1552, %v4455, %v4458
    %v4460 = vrot.slane %v4256, 4
    %v4461 = vrot.slane %v4259, 5
    %v4462 = vor.u32 %v4460, %v4461
    %v4463 = vsel %vm1552, %v4458, %v4462
    %v4464 = vrot.slane %v4265, 4
    %v4465 = vrot.slane %v4268, 5
    %v4466 = vor.u32 %v4464, %v4465
    %v4467 = vsel %vm1552, %v4462, %v4466
    %v4468 = vrot.slane %v4273, 4
    %v4469 = vrot.slane %v4276, 5
    %v4470 = vor.u32 %v4468, %v4469
    %v4471 = vsel %vm1552, %v4466, %v4470
    %v4472 = vrot.slane %v4281, 4
    %v4473 = vrot.slane %v4284, 5
    %v4474 = vor.u32 %v4472, %v4473
    %v4475 = vrot.slane %v4289, 4
    %v4476 = vrot.slane %v4292, 5
    %v4477 = vor.u32 %v4475, %v4476
    %v4478 = vsel %vm1552, %v4474, %v4477
    %v4479 = vrot.slane %v4298, 4
    %v4480 = vrot.slane %v4301, 5
    %v4481 = vor.u32 %v4479, %v4480
    %v4482 = vsel %vm1552, %v4477, %v4481
    %v4483 = vrot.slane %v4307, 4
    %v4484 = vrot.slane %v4310, 5
    %v4485 = vor.u32 %v4483, %v4484
    %v4486 = vsel %vm1552, %v4481, %v4485
    %v4487 = vrot.slane %v4315, 4
    %v4488 = vrot.slane %v4318, 5
    %v4489 = vor.u32 %v4487, %v4488
    %v4490 = vsel %vm1552, %v4485, %v4489
    %s4499 = scalar_lea.vmem [#allocation3], 128
    %v4500 = vld [vmem:[%s4499] sm:$0xff]
    %v4501 = vld [vmem:[%s4499 + $0x8] sm:$0xff]
    %v4502 = vld [vmem:[%s4499 + $0x10] sm:$0xff]
    %v4503 = vld [vmem:[%s4499 + $0x18] sm:$0xff]
    %v4504 = vld [vmem:[%s4499 + $0x20] sm:$0xff]
    %v4505 = vld [vmem:[%s4499 + $0x28] sm:$0xff]
    %v4506 = vld [vmem:[%s4499 + $0x30] sm:$0xff]
    %v4507 = vld [vmem:[%s4499 + $0x38] sm:$0xff]
    %4508 = vmatprep.subr.bf16.mxu0 0
    %4509 = vmatpush1.bf16.msra.mxu0 %v4500
    %4510 = vmatprep.subr.bf16.mxu0 0
    %4511 = vmatpush1.bf16.msra.mxu0 %v4501
    %4512 = vmatprep.subr.bf16.mxu0 0
    %4513 = vmatpush1.bf16.msra.mxu0 %v4502
    %4514 = vmatprep.subr.bf16.mxu0 0
    %4515 = vmatpush1.bf16.msra.mxu0 %v4503
    %4516 = vmatprep.subr.bf16.mxu0 0
    %4517 = vmatpush1.bf16.msra.mxu0 %v4504
    %4518 = vmatprep.subr.bf16.mxu0 0
    %4519 = vmatpush1.bf16.msra.mxu0 %v4505
    %4520 = vmatprep.subr.bf16.mxu0 0
    %4521 = vmatpush1.bf16.msra.mxu0 %v4506
    %4522 = vmatprep.subr.bf16.mxu0 0
    %4523 = vmatpush1.bf16.msra.mxu0 %v4507
    %4524 = vmatprep.subr.bf16.mxu0 0
    %4525 = vmatpush1.bf16.msra.mxu0 0
    %4526 = vmatprep.subr.bf16.mxu0 0
    %4527 = vmatpush1.bf16.msra.mxu0 0
    %4528 = vmatprep.subr.bf16.mxu0 0
    %4529 = vmatpush1.bf16.msra.mxu0 0
    %4530 = vmatprep.subr.bf16.mxu0 0
    %4531 = vmatpush1.bf16.msra.mxu0 0
    %4532 = vmatprep.subr.bf16.mxu0 0
    %4533 = vmatpush1.bf16.msra.mxu0 0
    %4534 = vmatprep.subr.bf16.mxu0 0
    %4535 = vmatpush1.bf16.msra.mxu0 0
    %4536 = vmatprep.subr.bf16.mxu0 0
    %4537 = vmatpush1.bf16.msra.mxu0 0
    %4538 = vmatprep.subr.bf16.mxu0 0
    %4539 = vmatpush1.bf16.msra.mxu0 0
    %4540 = vmatprep.mubr.bf16.mxu0 0
    %4541 = vmatmul.mubr.bf16.gmra.mrb[0].mxu0 %v4459
    %v4542 = vpop.f32.mrb[0].mxu0
    %v4543 = vadd.f32 0.0, %v4542
    %v4544 = vpop.f32.mrb[0].mxu0
    %v4545 = vpop.f32.mrb[0].mxu0
    %v4546 = vadd.f32 0.0, %v4545
    %v4547 = vpop.f32.mrb[0].mxu0
    %4548 = vmatprep.mubr.bf16.mxu0 0
    %4549 = vmatmul.mubr.bf16.gmra.mrb[0].mxu0 %v4463
    %v4550 = vpop.f32.mrb[0].mxu0
    %v4551 = vadd.f32 0.0, %v4550
    %v4552 = vpop.f32.mrb[0].mxu0
    %v4553 = vpop.f32.mrb[0].mxu0
    %v4554 = vadd.f32 0.0, %v4553
    %v4555 = vpop.f32.mrb[0].mxu0
    %4556 = vmatprep.mubr.bf16.mxu0 0
    %4557 = vmatmul.mubr.bf16.gmra.mrb[0].mxu0 %v4467
    %v4558 = vpop.f32.mrb[0].mxu0
    %v4559 = vadd.f32 0.0, %v4558
    %v4560 = vpop.f32.mrb[0].mxu0
    %v4561 = vpop.f32.mrb[0].mxu0
    %v4562 = vadd.f32 0.0, %v4561
    %v4563 = vpop.f32.mrb[0].mxu0
    %4564 = vmatprep.mubr.bf16.mxu0 0
    %4565 = vmatmul.mubr.bf16.gmra.mrb[0].mxu0 %v4471
    %v4566 = vpop.f32.mrb[0].mxu0
    %v4567 = vadd.f32 0.0, %v4566
    %v4568 = vpop.f32.mrb[0].mxu0
    %v4569 = vpop.f32.mrb[0].mxu0
    %v4570 = vadd.f32 0.0, %v4569
    %v4571 = vpop.f32.mrb[0].mxu0
    %4572 = vmatprep.mubr.bf16.mxu0 0
    %4573 = vmatmul.mubr.bf16.gmra.mrb[0].mxu0 %v4478
    %v4574 = vpop.f32.mrb[0].mxu0
    %v4575 = vadd.f32 0.0, %v4574
    %v4576 = vpop.f32.mrb[0].mxu0
    %v4577 = vpop.f32.mrb[0].mxu0
    %v4578 = vadd.f32 0.0, %v4577
    %v4579 = vpop.f32.mrb[0].mxu0
    %4580 = vmatprep.mubr.bf16.mxu0 0
    %4581 = vmatmul.mubr.bf16.gmra.mrb[0].mxu0 %v4482
    %v4582 = vpop.f32.mrb[0].mxu0
    %v4583 = vadd.f32 0.0, %v4582
    %v4584 = vpop.f32.mrb[0].mxu0
    %v4585 = vpop.f32.mrb[0].mxu0
    %v4586 = vadd.f32 0.0, %v4585
    %v4587 = vpop.f32.mrb[0].mxu0
    %4588 = vmatprep.mubr.bf16.mxu0 0
    %4589 = vmatmul.mubr.bf16.gmra.mrb[0].mxu0 %v4486
    %v4590 = vpop.f32.mrb[0].mxu0
    %v4591 = vadd.f32 0.0, %v4590
    %v4592 = vpop.f32.mrb[0].mxu0
    %v4593 = vpop.f32.mrb[0].mxu0
    %v4594 = vadd.f32 0.0, %v4593
    %v4595 = vpop.f32.mrb[0].mxu0
    %4596 = vmatprep.mubr.bf16.mxu0 0
    %4597 = vmatmul.mubr.bf16.gmra.mrb[0].mxu0 %v4490
    %v4598 = vpop.f32.mrb[0].mxu0
    %v4599 = vadd.f32 0.0, %v4598
    %v4600 = vpop.f32.mrb[0].mxu0
    %v4601 = vpop.f32.mrb[0].mxu0
    %v4602 = vadd.f32 0.0, %v4601
    %v4603 = vpop.f32.mrb[0].mxu0
    %4604 = vdwg.mxu0
    %v4605 = vadd.f32 %v4437, %v4543
    %v4606 = vadd.f32 %v4438, %v4546
    %v4607 = vadd.f32 %v4439, %v4551
    %v4608 = vadd.f32 %v4440, %v4554
    %v4609 = vadd.f32 %v4441, %v4559
    %v4610 = vadd.f32 %v4442, %v4562
    %v4611 = vadd.f32 %v4443, %v4567
    %v4612 = vadd.f32 %v4444, %v4570
    %v4613 = vadd.f32 %v4445, %v4575
    %v4614 = vadd.f32 %v4446, %v4578
    %v4615 = vadd.f32 %v4447, %v4583
    %v4616 = vadd.f32 %v4448, %v4586
    %v4617 = vadd.f32 %v4449, %v4591
    %v4618 = vadd.f32 %v4450, %v4594
    %v4619 = vadd.f32 %v4451, %v4599
    %v4620 = vadd.f32 %v4452, %v4602
    %v4621 = vrot.slane %v4081, 5
    %v4622 = vrot.slane %v4068, 5
    %v4623 = vsel %vm1777, %v4621, %v4622
    %v4624 = vrot.slane %v4070, 5
    %v4625 = vsel %vm1777, %v4622, %v4624
    %v4626 = vrot.slane %v4072, 5
    %v4627 = vsel %vm1777, %v4624, %v4626
    %v4628 = vrot.slane %v4085, 5
    %v4629 = vsel %vm1777, %v4626, %v4628
    %v4630 = vrot.slane %v4083, 5
    %v4631 = vrot.slane %v4075, 5
    %v4632 = vsel %vm1777, %v4630, %v4631
    %v4633 = vrot.slane %v4077, 5
    %v4634 = vsel %vm1777, %v4631, %v4633
    %v4635 = vrot.slane %v4079, 5
    %v4636 = vsel %vm1777, %v4633, %v4635
    %v4637 = vrot.slane %v4087, 5
    %v4638 = vsel %vm1777, %v4635, %v4637
    %s4647 = scalar_lea.vmem [#allocation3], 192
    %v4648 = vld [vmem:[%s4647] sm:$0xff]
    %v4649 = vld [vmem:[%s4647 + $0x8] sm:$0xff]
    %v4650 = vld [vmem:[%s4647 + $0x10] sm:$0xff]
    %v4651 = vld [vmem:[%s4647 + $0x18] sm:$0xff]
    %v4652 = vld [vmem:[%s4647 + $0x20] sm:$0xff]
    %v4653 = vld [vmem:[%s4647 + $0x28] sm:$0xff]
    %v4654 = vld [vmem:[%s4647 + $0x30] sm:$0xff]
    %v4655 = vld [vmem:[%s4647 + $0x38] sm:$0xff]
    %4656 = vmatprep.subr.bf16.mxu0 0
    %4657 = vmatpush1.bf16.msra.mxu0 %v4648
    %4658 = vmatprep.subr.bf16.mxu0 0
    %4659 = vmatpush1.bf16.msra.mxu0 %v4649
    %4660 = vmatprep.subr.bf16.mxu0 0
    %4661 = vmatpush1.bf16.msra.mxu0 %v4650
    %4662 = vmatprep.subr.bf16.mxu0 0
    %4663 = vmatpush1.bf16.msra.mxu0 %v4651
    %4664 = vmatprep.subr.bf16.mxu0 0
    %4665 = vmatpush1.bf16.msra.mxu0 %v4652
    %4666 = vmatprep.subr.bf16.mxu0 0
    %4667 = vmatpush1.bf16.msra.mxu0 %v4653
    %4668 = vmatprep.subr.bf16.mxu0 0
    %4669 = vmatpush1.bf16.msra.mxu0 %v4654
    %4670 = vmatprep.subr.bf16.mxu0 0
    %4671 = vmatpush1.bf16.msra.mxu0 %v4655
    %4672 = vmatprep.subr.bf16.mxu0 0
    %4673 = vmatpush1.bf16.msra.mxu0 0
    %4674 = vmatprep.subr.bf16.mxu0 0
    %4675 = vmatpush1.bf16.msra.mxu0 0
    %4676 = vmatprep.subr.bf16.mxu0 0
    %4677 = vmatpush1.bf16.msra.mxu0 0
    %4678 = vmatprep.subr.bf16.mxu0 0
    %4679 = vmatpush1.bf16.msra.mxu0 0
    %4680 = vmatprep.subr.bf16.mxu0 0
    %4681 = vmatpush1.bf16.msra.mxu0 0
    %4682 = vmatprep.subr.bf16.mxu0 0
    %4683 = vmatpush1.bf16.msra.mxu0 0
    %4684 = vmatprep.subr.bf16.mxu0 0
    %4685 = vmatpush1.bf16.msra.mxu0 0
    %4686 = vmatprep.subr.bf16.mxu0 0
    %4687 = vmatpush1.bf16.msra.mxu0 0
    %4688 = vmatprep.mubr.bf16.mxu0 0
    %4689 = vmatmul.mubr.bf16.gmra.mrb[0].mxu0 %v4623
    %v4690 = vpop.f32.mrb[0].mxu0
    %v4691 = vadd.f32 0.0, %v4690
    %v4692 = vpop.f32.mrb[0].mxu0
    %v4693 = vpop.f32.mrb[0].mxu0
    %v4694 = vadd.f32 0.0, %v4693
    %v4695 = vpop.f32.mrb[0].mxu0
    %4696 = vmatprep.mubr.bf16.mxu0 0
    %4697 = vmatmul.mubr.bf16.gmra.mrb[0].mxu0 %v4625
    %v4698 = vpop.f32.mrb[0].mxu0
    %v4699 = vadd.f32 0.0, %v4698
    %v4700 = vpop.f32.mrb[0].mxu0
    %v4701 = vpop.f32.mrb[0].mxu0
    %v4702 = vadd.f32 0.0, %v4701
    %v4703 = vpop.f32.mrb[0].mxu0
    %4704 = vmatprep.mubr.bf16.mxu0 0
    %4705 = vmatmul.mubr.bf16.gmra.mrb[0].mxu0 %v4627
    %v4706 = vpop.f32.mrb[0].mxu0
    %v4707 = vadd.f32 0.0, %v4706
    %v4708 = vpop.f32.mrb[0].mxu0
    %v4709 = vpop.f32.mrb[0].mxu0
    %v4710 = vadd.f32 0.0, %v4709
    %v4711 = vpop.f32.mrb[0].mxu0
    %4712 = vmatprep.mubr.bf16.mxu0 0
    %4713 = vmatmul.mubr.bf16.gmra.mrb[0].mxu0 %v4629
    %v4714 = vpop.f32.mrb[0].mxu0
    %v4715 = vadd.f32 0.0, %v4714
    %v4716 = vpop.f32.mrb[0].mxu0
    %v4717 = vpop.f32.mrb[0].mxu0
    %v4718 = vadd.f32 0.0, %v4717
    %v4719 = vpop.f32.mrb[0].mxu0
    %4720 = vmatprep.mubr.bf16.mxu0 0
    %4721 = vmatmul.mubr.bf16.gmra.mrb[0].mxu0 %v4632
    %v4722 = vpop.f32.mrb[0].mxu0
    %v4723 = vadd.f32 0.0, %v4722
    %v4724 = vpop.f32.mrb[0].mxu0
    %v4725 = vpop.f32.mrb[0].mxu0
    %v4726 = vadd.f32 0.0, %v4725
    %v4727 = vpop.f32.mrb[0].mxu0
    %4728 = vmatprep.mubr.bf16.mxu0 0
    %4729 = vmatmul.mubr.bf16.gmra.mrb[0].mxu0 %v4634
    %v4730 = vpop.f32.mrb[0].mxu0
    %v4731 = vadd.f32 0.0, %v4730
    %v4732 = vpop.f32.mrb[0].mxu0
    %v4733 = vpop.f32.mrb[0].mxu0
    %v4734 = vadd.f32 0.0, %v4733
    %v4735 = vpop.f32.mrb[0].mxu0
    %4736 = vmatprep.mubr.bf16.mxu0 0
    %4737 = vmatmul.mubr.bf16.gmra.mrb[0].mxu0 %v4636
    %v4738 = vpop.f32.mrb[0].mxu0
    %v4739 = vadd.f32 0.0, %v4738
    %v4740 = vpop.f32.mrb[0].mxu0
    %v4741 = vpop.f32.mrb[0].mxu0
    %v4742 = vadd.f32 0.0, %v4741
    %v4743 = vpop.f32.mrb[0].mxu0
    %4744 = vmatprep.mubr.bf16.mxu0 0
    %4745 = vmatmul.mubr.bf16.gmra.mrb[0].mxu0 %v4638
    %v4746 = vpop.f32.mrb[0].mxu0
    %v4747 = vadd.f32 0.0, %v4746
    %v4748 = vpop.f32.mrb[0].mxu0
    %v4749 = vpop.f32.mrb[0].mxu0
    %v4750 = vadd.f32 0.0, %v4749
    %v4751 = vpop.f32.mrb[0].mxu0
    %4752 = vdwg.mxu0
    %v4753 = vadd.f32 %v4605, %v4691
    %v4754 = vadd.f32 %v4606, %v4694
    %v4755 = vadd.f32 %v4607, %v4699
    %v4756 = vadd.f32 %v4608, %v4702
    %v4757 = vadd.f32 %v4609, %v4707
    %v4758 = vadd.f32 %v4610, %v4710
    %v4759 = vadd.f32 %v4611, %v4715
    %v4760 = vadd.f32 %v4612, %v4718
    %v4761 = vadd.f32 %v4613, %v4723
    %v4762 = vadd.f32 %v4614, %v4726
    %v4763 = vadd.f32 %v4615, %v4731
    %v4764 = vadd.f32 %v4616, %v4734
    %v4765 = vadd.f32 %v4617, %v4739
    %v4766 = vadd.f32 %v4618, %v4742
    %v4767 = vadd.f32 %v4619, %v4747
    %v4768 = vadd.f32 %v4620, %v4750
    %v4769 = vld [vmem:[#allocation25] sm:$0x1]
    %v4771 = vlaneseq
    %v4772 = vshrl.u32 %v4771, 7
    %v4773 = vsub.s32 0, %v4772
    %v4774 = vrot.slane %v4769, %v4773
    %v4776 = vmul.f32 %v4753, %v4774
    %v4777 = vmul.f32 %v4754, %v4774
    %v4778 = vmul.f32 %v4755, %v4774
    %v4779 = vmul.f32 %v4756, %v4774
    %v4780 = vmul.f32 %v4757, %v4774
    %v4781 = vmul.f32 %v4758, %v4774
    %v4782 = vmul.f32 %v4759, %v4774
    %v4783 = vmul.f32 %v4760, %v4774
    %v4784 = vmul.f32 %v4761, %v4774
    %v4785 = vmul.f32 %v4762, %v4774
    %v4786 = vmul.f32 %v4763, %v4774
    %v4787 = vmul.f32 %v4764, %v4774
    %v4788 = vmul.f32 %v4765, %v4774
    %v4789 = vmul.f32 %v4766, %v4774
    %v4790 = vmul.f32 %v4767, %v4774
    %v4791 = vmul.f32 %v4768, %v4774
    %v4792 = vld [vmem:[#allocation27] sm:$0x1]
    %v4794 = vlaneseq
    %v4795 = vshrl.u32 %v4794, 7
    %v4796 = vsub.s32 0, %v4795
    %v4797 = vrot.slane %v4792, %v4796
    %v4799 = vadd.f32 %v4776, %v4797
    %v4800 = vadd.f32 %v4777, %v4797
    %v4801 = vadd.f32 %v4778, %v4797
    %v4802 = vadd.f32 %v4779, %v4797
    %v4803 = vadd.f32 %v4780, %v4797
    %v4804 = vadd.f32 %v4781, %v4797
    %v4805 = vadd.f32 %v4782, %v4797
    %v4806 = vadd.f32 %v4783, %v4797
    %v4807 = vadd.f32 %v4784, %v4797
    %v4808 = vadd.f32 %v4785, %v4797
    %v4809 = vadd.f32 %v4786, %v4797
    %v4810 = vadd.f32 %v4787, %v4797
    %v4811 = vadd.f32 %v4788, %v4797
    %v4812 = vadd.f32 %v4789, %v4797
    %v4813 = vadd.f32 %v4790, %v4797
    %v4814 = vadd.f32 %v4791, %v4797
    %v4815 = vmax.f32 %v4799, 0.0
    %v4816 = vmax.f32 %v4800, 0.0
    %v4817 = vmax.f32 %v4801, 0.0
    %v4818 = vmax.f32 %v4802, 0.0
    %v4819 = vmax.f32 %v4803, 0.0
    %v4820 = vmax.f32 %v4804, 0.0
    %v4821 = vmax.f32 %v4805, 0.0
    %v4822 = vmax.f32 %v4806, 0.0
    %v4823 = vmax.f32 %v4807, 0.0
    %v4824 = vmax.f32 %v4808, 0.0
    %v4825 = vmax.f32 %v4809, 0.0
    %v4826 = vmax.f32 %v4810, 0.0
    %v4827 = vmax.f32 %v4811, 0.0
    %v4828 = vmax.f32 %v4812, 0.0
    %v4829 = vmax.f32 %v4813, 0.0
    %v4830 = vmax.f32 %v4814, 0.0
    %v4831 = vpack.c.bf16 %v4816, %v4815
    %v4832 = vpack.c.bf16 %v4818, %v4817
    %v4833 = vpack.c.bf16 %v4820, %v4819
    %v4834 = vpack.c.bf16 %v4822, %v4821
    %v4835 = vpack.c.bf16 %v4824, %v4823
    %v4836 = vpack.c.bf16 %v4826, %v4825
    %v4837 = vpack.c.bf16 %v4828, %v4827
    %v4838 = vpack.c.bf16 %v4830, %v4829
    %s4839 = scalar_lea.vmem [#allocation4], 128
    %v4840 = vld [vmem:[%s4839] sm:$0xff]
    %v4841 = vld [vmem:[%s4839 + $0x8] sm:$0xff]
    %v4842 = vld [vmem:[%s4839 + $0x10] sm:$0xff]
    %v4843 = vld [vmem:[%s4839 + $0x18] sm:$0xff]
    %v4844 = vld [vmem:[%s4839 + $0x20] sm:$0xff]
    %v4845 = vld [vmem:[%s4839 + $0x28] sm:$0xff]
    %v4846 = vld [vmem:[%s4839 + $0x30] sm:$0xff]
    %v4847 = vld [vmem:[%s4839 + $0x38] sm:$0xff]
    %v4856 = vrot.slane %v4831, 4
    %v4857 = vrot.slane %v4832, 4
    %v4858 = vsel %vm823, %v4856, %v4857
    %v4859 = vrot.slane %v4833, 4
    %v4860 = vsel %vm823, %v4857, %v4859
    %v4861 = vrot.slane %v4834, 4
    %v4862 = vsel %vm823, %v4859, %v4861
    %v4863 = vrot.slane %v4835, 4
    %v4864 = vrot.slane %v4836, 4
    %v4865 = vsel %vm823, %v4863, %v4864
    %v4866 = vrot.slane %v4837, 4
    %v4867 = vsel %vm823, %v4864, %v4866
    %v4868 = vrot.slane %v4838, 4
    %v4869 = vsel %vm823, %v4866, %v4868
    %v4871 = vsel %vm838, 0, %v4856
    %v4873 = vsel %vm838, 0, %v4863
    %v4875 = vsel %vm838, %v4861, 0
    %v4877 = vsel %vm838, %v4868, 0
    %v4882 = vrot.slane %v4871, 3
    %v4883 = vrot.slane %v4858, 3
    %v4884 = vsel %vm1122, %v4882, %v4883
    %v4885 = vrot.slane %v4860, 3
    %v4886 = vsel %vm1122, %v4883, %v4885
    %v4887 = vrot.slane %v4862, 3
    %v4888 = vsel %vm1122, %v4885, %v4887
    %v4889 = vrot.slane %v4875, 3
    %v4890 = vsel %vm1122, %v4887, %v4889
    %v4891 = vrot.slane %v4873, 3
    %v4892 = vrot.slane %v4865, 3
    %v4893 = vsel %vm1122, %v4891, %v4892
    %v4894 = vrot.slane %v4867, 3
    %v4895 = vsel %vm1122, %v4892, %v4894
    %v4896 = vrot.slane %v4869, 3
    %v4897 = vsel %vm1122, %v4894, %v4896
    %v4898 = vrot.slane %v4877, 3
    %v4899 = vsel %vm1122, %v4896, %v4898
    %v4908 = vld [vmem:[#allocation4] sm:$0xff]
    %v4909 = vld [vmem:[#allocation4 + $0x8] sm:$0xff]
    %v4910 = vld [vmem:[#allocation4 + $0x10] sm:$0xff]
    %v4911 = vld [vmem:[#allocation4 + $0x18] sm:$0xff]
    %v4912 = vld [vmem:[#allocation4 + $0x20] sm:$0xff]
    %v4913 = vld [vmem:[#allocation4 + $0x28] sm:$0xff]
    %v4914 = vld [vmem:[#allocation4 + $0x30] sm:$0xff]
    %v4915 = vld [vmem:[#allocation4 + $0x38] sm:$0xff]
    %4916 = vmatprep.subr.bf16.mxu0 0
    %4917 = vmatpush1.bf16.msra.mxu0 %v4908
    %4918 = vmatprep.subr.bf16.mxu0 0
    %4919 = vmatpush1.bf16.msra.mxu0 %v4909
    %4920 = vmatprep.subr.bf16.mxu0 0
    %4921 = vmatpush1.bf16.msra.mxu0 %v4910
    %4922 = vmatprep.subr.bf16.mxu0 0
    %4923 = vmatpush1.bf16.msra.mxu0 %v4911
    %4924 = vmatprep.subr.bf16.mxu0 0
    %4925 = vmatpush1.bf16.msra.mxu0 %v4912
    %4926 = vmatprep.subr.bf16.mxu0 0
    %4927 = vmatpush1.bf16.msra.mxu0 %v4913
    %4928 = vmatprep.subr.bf16.mxu0 0
    %4929 = vmatpush1.bf16.msra.mxu0 %v4914
    %4930 = vmatprep.subr.bf16.mxu0 0
    %4931 = vmatpush1.bf16.msra.mxu0 %v4915
    %4932 = vmatprep.subr.bf16.mxu0 0
    %4933 = vmatpush1.bf16.msra.mxu0 0
    %4934 = vmatprep.subr.bf16.mxu0 0
    %4935 = vmatpush1.bf16.msra.mxu0 0
    %4936 = vmatprep.subr.bf16.mxu0 0
    %4937 = vmatpush1.bf16.msra.mxu0 0
    %4938 = vmatprep.subr.bf16.mxu0 0
    %4939 = vmatpush1.bf16.msra.mxu0 0
    %4940 = vmatprep.subr.bf16.mxu0 0
    %4941 = vmatpush1.bf16.msra.mxu0 0
    %4942 = vmatprep.subr.bf16.mxu0 0
    %4943 = vmatpush1.bf16.msra.mxu0 0
    %4944 = vmatprep.subr.bf16.mxu0 0
    %4945 = vmatpush1.bf16.msra.mxu0 0
    %4946 = vmatprep.subr.bf16.mxu0 0
    %4947 = vmatpush1.bf16.msra.mxu0 0
    %4948 = vmatprep.mubr.bf16.mxu0 0
    %4949 = vmatmul.mubr.bf16.gmra.mrb[0].mxu0 %v4884
    %v4950 = vpop.f32.mrb[0].mxu0
    %v4951 = vadd.f32 0.0, %v4950
    %v4952 = vpop.f32.mrb[0].mxu0
    %v4953 = vpop.f32.mrb[0].mxu0
    %v4954 = vadd.f32 0.0, %v4953
    %v4955 = vpop.f32.mrb[0].mxu0
    %4956 = vmatprep.mubr.bf16.mxu0 0
    %4957 = vmatmul.mubr.bf16.gmra.mrb[0].mxu0 %v4886
    %v4958 = vpop.f32.mrb[0].mxu0
    %v4959 = vadd.f32 0.0, %v4958
    %v4960 = vpop.f32.mrb[0].mxu0
    %v4961 = vpop.f32.mrb[0].mxu0
    %v4962 = vadd.f32 0.0, %v4961
    %v4963 = vpop.f32.mrb[0].mxu0
    %4964 = vmatprep.mubr.bf16.mxu0 0
    %4965 = vmatmul.mubr.bf16.gmra.mrb[0].mxu0 %v4888
    %v4966 = vpop.f32.mrb[0].mxu0
    %v4967 = vadd.f32 0.0, %v4966
    %v4968 = vpop.f32.mrb[0].mxu0
    %v4969 = vpop.f32.mrb[0].mxu0
    %v4970 = vadd.f32 0.0, %v4969
    %v4971 = vpop.f32.mrb[0].mxu0
    %4972 = vmatprep.mubr.bf16.mxu0 0
    %4973 = vmatmul.mubr.bf16.gmra.mrb[0].mxu0 %v4890
    %v4974 = vpop.f32.mrb[0].mxu0
    %v4975 = vadd.f32 0.0, %v4974
    %v4976 = vpop.f32.mrb[0].mxu0
    %v4977 = vpop.f32.mrb[0].mxu0
    %v4978 = vadd.f32 0.0, %v4977
    %v4979 = vpop.f32.mrb[0].mxu0
    %4980 = vmatprep.mubr.bf16.mxu0 0
    %4981 = vmatmul.mubr.bf16.gmra.mrb[0].mxu0 %v4893
    %v4982 = vpop.f32.mrb[0].mxu0
    %v4983 = vadd.f32 0.0, %v4982
    %v4984 = vpop.f32.mrb[0].mxu0
    %v4985 = vpop.f32.mrb[0].mxu0
    %v4986 = vadd.f32 0.0, %v4985
    %v4987 = vpop.f32.mrb[0].mxu0
    %4988 = vmatprep.mubr.bf16.mxu0 0
    %4989 = vmatmul.mubr.bf16.gmra.mrb[0].mxu0 %v4895
    %v4990 = vpop.f32.mrb[0].mxu0
    %v4991 = vadd.f32 0.0, %v4990
    %v4992 = vpop.f32.mrb[0].mxu0
    %v4993 = vpop.f32.mrb[0].mxu0
    %v4994 = vadd.f32 0.0, %v4993
    %v4995 = vpop.f32.mrb[0].mxu0
    %4996 = vmatprep.mubr.bf16.mxu0 0
    %4997 = vmatmul.mubr.bf16.gmra.mrb[0].mxu0 %v4897
    %v4998 = vpop.f32.mrb[0].mxu0
    %v4999 = vadd.f32 0.0, %v4998
    %v5000 = vpop.f32.mrb[0].mxu0
    %v5001 = vpop.f32.mrb[0].mxu0
    %v5002 = vadd.f32 0.0, %v5001
    %v5003 = vpop.f32.mrb[0].mxu0
    %5004 = vmatprep.mubr.bf16.mxu0 0
    %5005 = vmatmul.mubr.bf16.gmra.mrb[0].mxu0 %v4899
    %v5006 = vpop.f32.mrb[0].mxu0
    %v5007 = vadd.f32 0.0, %v5006
    %v5008 = vpop.f32.mrb[0].mxu0
    %v5009 = vpop.f32.mrb[0].mxu0
    %v5010 = vadd.f32 0.0, %v5009
    %v5011 = vpop.f32.mrb[0].mxu0
    %5012 = vdwg.mxu0
    %5013 = vmatprep.subr.bf16.mxu0 0
    %5014 = vmatpush1.bf16.msra.mxu0 %v4840
    %5015 = vmatprep.subr.bf16.mxu0 0
    %5016 = vmatpush1.bf16.msra.mxu0 %v4841
    %5017 = vmatprep.subr.bf16.mxu0 0
    %5018 = vmatpush1.bf16.msra.mxu0 %v4842
    %5019 = vmatprep.subr.bf16.mxu0 0
    %5020 = vmatpush1.bf16.msra.mxu0 %v4843
    %5021 = vmatprep.subr.bf16.mxu0 0
    %5022 = vmatpush1.bf16.msra.mxu0 %v4844
    %5023 = vmatprep.subr.bf16.mxu0 0
    %5024 = vmatpush1.bf16.msra.mxu0 %v4845
    %5025 = vmatprep.subr.bf16.mxu0 0
    %5026 = vmatpush1.bf16.msra.mxu0 %v4846
    %5027 = vmatprep.subr.bf16.mxu0 0
    %5028 = vmatpush1.bf16.msra.mxu0 %v4847
    %5029 = vmatprep.subr.bf16.mxu0 0
    %5030 = vmatpush1.bf16.msra.mxu0 0
    %5031 = vmatprep.subr.bf16.mxu0 0
    %5032 = vmatpush1.bf16.msra.mxu0 0
    %5033 = vmatprep.subr.bf16.mxu0 0
    %5034 = vmatpush1.bf16.msra.mxu0 0
    %5035 = vmatprep.subr.bf16.mxu0 0
    %5036 = vmatpush1.bf16.msra.mxu0 0
    %5037 = vmatprep.subr.bf16.mxu0 0
    %5038 = vmatpush1.bf16.msra.mxu0 0
    %5039 = vmatprep.subr.bf16.mxu0 0
    %5040 = vmatpush1.bf16.msra.mxu0 0
    %5041 = vmatprep.subr.bf16.mxu0 0
    %5042 = vmatpush1.bf16.msra.mxu0 0
    %5043 = vmatprep.subr.bf16.mxu0 0
    %5044 = vmatpush1.bf16.msra.mxu0 0
    %5045 = vmatprep.mubr.bf16.mxu0 0
    %5046 = vmatmul.mubr.bf16.gmra.mrb[0].mxu0 %v4831
    %v5047 = vpop.f32.mrb[0].mxu0
    %v5048 = vadd.f32 %v4951, %v5047
    %v5049 = vpop.f32.mrb[0].mxu0
    %v5050 = vpop.f32.mrb[0].mxu0
    %v5051 = vadd.f32 %v4954, %v5050
    %v5052 = vpop.f32.mrb[0].mxu0
    %5053 = vmatprep.mubr.bf16.mxu0 0
    %5054 = vmatmul.mubr.bf16.gmra.mrb[0].mxu0 %v4832
    %v5055 = vpop.f32.mrb[0].mxu0
    %v5056 = vadd.f32 %v4959, %v5055
    %v5057 = vpop.f32.mrb[0].mxu0
    %v5058 = vpop.f32.mrb[0].mxu0
    %v5059 = vadd.f32 %v4962, %v5058
    %v5060 = vpop.f32.mrb[0].mxu0
    %5061 = vmatprep.mubr.bf16.mxu0 0
    %5062 = vmatmul.mubr.bf16.gmra.mrb[0].mxu0 %v4833
    %v5063 = vpop.f32.mrb[0].mxu0
    %v5064 = vadd.f32 %v4967, %v5063
    %v5065 = vpop.f32.mrb[0].mxu0
    %v5066 = vpop.f32.mrb[0].mxu0
    %v5067 = vadd.f32 %v4970, %v5066
    %v5068 = vpop.f32.mrb[0].mxu0
    %5069 = vmatprep.mubr.bf16.mxu0 0
    %5070 = vmatmul.mubr.bf16.gmra.mrb[0].mxu0 %v4834
    %v5071 = vpop.f32.mrb[0].mxu0
    %v5072 = vadd.f32 %v4975, %v5071
    %v5073 = vpop.f32.mrb[0].mxu0
    %v5074 = vpop.f32.mrb[0].mxu0
    %v5075 = vadd.f32 %v4978, %v5074
    %v5076 = vpop.f32.mrb[0].mxu0
    %5077 = vmatprep.mubr.bf16.mxu0 0
    %5078 = vmatmul.mubr.bf16.gmra.mrb[0].mxu0 %v4835
    %v5079 = vpop.f32.mrb[0].mxu0
    %v5080 = vadd.f32 %v4983, %v5079
    %v5081 = vpop.f32.mrb[0].mxu0
    %v5082 = vpop.f32.mrb[0].mxu0
    %v5083 = vadd.f32 %v4986, %v5082
    %v5084 = vpop.f32.mrb[0].mxu0
    %5085 = vmatprep.mubr.bf16.mxu0 0
    %5086 = vmatmul.mubr.bf16.gmra.mrb[0].mxu0 %v4836
    %v5087 = vpop.f32.mrb[0].mxu0
    %v5088 = vadd.f32 %v4991, %v5087
    %v5089 = vpop.f32.mrb[0].mxu0
    %v5090 = vpop.f32.mrb[0].mxu0
    %v5091 = vadd.f32 %v4994, %v5090
    %v5092 = vpop.f32.mrb[0].mxu0
    %5093 = vmatprep.mubr.bf16.mxu0 0
    %5094 = vmatmul.mubr.bf16.gmra.mrb[0].mxu0 %v4837
    %v5095 = vpop.f32.mrb[0].mxu0
    %v5096 = vadd.f32 %v4999, %v5095
    %v5097 = vpop.f32.mrb[0].mxu0
    %v5098 = vpop.f32.mrb[0].mxu0
    %v5099 = vadd.f32 %v5002, %v5098
    %v5100 = vpop.f32.mrb[0].mxu0
    %5101 = vmatprep.mubr.bf16.mxu0 0
    %5102 = vmatmul.mubr.bf16.gmra.mrb[0].mxu0 %v4838
    %v5103 = vpop.f32.mrb[0].mxu0
    %v5104 = vadd.f32 %v5007, %v5103
    %v5105 = vpop.f32.mrb[0].mxu0
    %v5106 = vpop.f32.mrb[0].mxu0
    %v5107 = vadd.f32 %v5010, %v5106
    %v5108 = vpop.f32.mrb[0].mxu0
    %5109 = vdwg.mxu0
    %v5110 = vshrl.u32 %v4871, 16
    %v5112 = vrot.slane %v5110, 3
    %v5113 = vshll.u32 %v4871, 16
    %v5115 = vrot.slane %v5113, 4
    %v5116 = vor.u32 %v5112, %v5115
    %v5118 = vshrl.u32 %v4858, 16
    %v5120 = vrot.slane %v5118, 3
    %v5121 = vshll.u32 %v4858, 16
    %v5123 = vrot.slane %v5121, 4
    %v5124 = vor.u32 %v5120, %v5123
    %v5125 = vsel %vm1327, %v5116, %v5124
    %v5127 = vshrl.u32 %v4860, 16
    %v5129 = vrot.slane %v5127, 3
    %v5130 = vshll.u32 %v4860, 16
    %v5132 = vrot.slane %v5130, 4
    %v5133 = vor.u32 %v5129, %v5132
    %v5134 = vsel %vm1327, %v5124, %v5133
    %v5136 = vshrl.u32 %v4862, 16
    %v5138 = vrot.slane %v5136, 3
    %v5139 = vshll.u32 %v4862, 16
    %v5141 = vrot.slane %v5139, 4
    %v5142 = vor.u32 %v5138, %v5141
    %v5143 = vsel %vm1327, %v5133, %v5142
    %v5144 = vshrl.u32 %v4875, 16
    %v5146 = vrot.slane %v5144, 3
    %v5147 = vshll.u32 %v4875, 16
    %v5149 = vrot.slane %v5147, 4
    %v5150 = vor.u32 %v5146, %v5149
    %v5151 = vsel %vm1327, %v5142, %v5150
    %v5152 = vshrl.u32 %v4873, 16
    %v5154 = vrot.slane %v5152, 3
    %v5155 = vshll.u32 %v4873, 16
    %v5157 = vrot.slane %v5155, 4
    %v5158 = vor.u32 %v5154, %v5157
    %v5160 = vshrl.u32 %v4865, 16
    %v5162 = vrot.slane %v5160, 3
    %v5163 = vshll.u32 %v4865, 16
    %v5165 = vrot.slane %v5163, 4
    %v5166 = vor.u32 %v5162, %v5165
    %v5167 = vsel %vm1327, %v5158, %v5166
    %v5169 = vshrl.u32 %v4867, 16
    %v5171 = vrot.slane %v5169, 3
    %v5172 = vshll.u32 %v4867, 16
    %v5174 = vrot.slane %v5172, 4
    %v5175 = vor.u32 %v5171, %v5174
    %v5176 = vsel %vm1327, %v5166, %v5175
    %v5178 = vshrl.u32 %v4869, 16
    %v5180 = vrot.slane %v5178, 3
    %v5181 = vshll.u32 %v4869, 16
    %v5183 = vrot.slane %v5181, 4
    %v5184 = vor.u32 %v5180, %v5183
    %v5185 = vsel %vm1327, %v5175, %v5184
    %v5186 = vshrl.u32 %v4877, 16
    %v5188 = vrot.slane %v5186, 3
    %v5189 = vshll.u32 %v4877, 16
    %v5191 = vrot.slane %v5189, 4
    %v5192 = vor.u32 %v5188, %v5191
    %v5193 = vsel %vm1327, %v5184, %v5192
    %s5202 = scalar_lea.vmem [#allocation4], 64
    %v5203 = vld [vmem:[%s5202] sm:$0xff]
    %v5204 = vld [vmem:[%s5202 + $0x8] sm:$0xff]
    %v5205 = vld [vmem:[%s5202 + $0x10] sm:$0xff]
    %v5206 = vld [vmem:[%s5202 + $0x18] sm:$0xff]
    %v5207 = vld [vmem:[%s5202 + $0x20] sm:$0xff]
    %v5208 = vld [vmem:[%s5202 + $0x28] sm:$0xff]
    %v5209 = vld [vmem:[%s5202 + $0x30] sm:$0xff]
    %v5210 = vld [vmem:[%s5202 + $0x38] sm:$0xff]
    %5211 = vmatprep.subr.bf16.mxu0 0
    %5212 = vmatpush1.bf16.msra.mxu0 %v5203
    %5213 = vmatprep.subr.bf16.mxu0 0
    %5214 = vmatpush1.bf16.msra.mxu0 %v5204
    %5215 = vmatprep.subr.bf16.mxu0 0
    %5216 = vmatpush1.bf16.msra.mxu0 %v5205
    %5217 = vmatprep.subr.bf16.mxu0 0
    %5218 = vmatpush1.bf16.msra.mxu0 %v5206
    %5219 = vmatprep.subr.bf16.mxu0 0
    %5220 = vmatpush1.bf16.msra.mxu0 %v5207
    %5221 = vmatprep.subr.bf16.mxu0 0
    %5222 = vmatpush1.bf16.msra.mxu0 %v5208
    %5223 = vmatprep.subr.bf16.mxu0 0
    %5224 = vmatpush1.bf16.msra.mxu0 %v5209
    %5225 = vmatprep.subr.bf16.mxu0 0
    %5226 = vmatpush1.bf16.msra.mxu0 %v5210
    %5227 = vmatprep.subr.bf16.mxu0 0
    %5228 = vmatpush1.bf16.msra.mxu0 0
    %5229 = vmatprep.subr.bf16.mxu0 0
    %5230 = vmatpush1.bf16.msra.mxu0 0
    %5231 = vmatprep.subr.bf16.mxu0 0
    %5232 = vmatpush1.bf16.msra.mxu0 0
    %5233 = vmatprep.subr.bf16.mxu0 0
    %5234 = vmatpush1.bf16.msra.mxu0 0
    %5235 = vmatprep.subr.bf16.mxu0 0
    %5236 = vmatpush1.bf16.msra.mxu0 0
    %5237 = vmatprep.subr.bf16.mxu0 0
    %5238 = vmatpush1.bf16.msra.mxu0 0
    %5239 = vmatprep.subr.bf16.mxu0 0
    %5240 = vmatpush1.bf16.msra.mxu0 0
    %5241 = vmatprep.subr.bf16.mxu0 0
    %5242 = vmatpush1.bf16.msra.mxu0 0
    %5243 = vmatprep.mubr.bf16.mxu0 0
    %5244 = vmatmul.mubr.bf16.gmra.mrb[0].mxu0 %v5125
    %v5245 = vpop.f32.mrb[0].mxu0
    %v5246 = vadd.f32 0.0, %v5245
    %v5247 = vpop.f32.mrb[0].mxu0
    %v5248 = vpop.f32.mrb[0].mxu0
    %v5249 = vadd.f32 0.0, %v5248
    %v5250 = vpop.f32.mrb[0].mxu0
    %5251 = vmatprep.mubr.bf16.mxu0 0
    %5252 = vmatmul.mubr.bf16.gmra.mrb[0].mxu0 %v5134
    %v5253 = vpop.f32.mrb[0].mxu0
    %v5254 = vadd.f32 0.0, %v5253
    %v5255 = vpop.f32.mrb[0].mxu0
    %v5256 = vpop.f32.mrb[0].mxu0
    %v5257 = vadd.f32 0.0, %v5256
    %v5258 = vpop.f32.mrb[0].mxu0
    %5259 = vmatprep.mubr.bf16.mxu0 0
    %5260 = vmatmul.mubr.bf16.gmra.mrb[0].mxu0 %v5143
    %v5261 = vpop.f32.mrb[0].mxu0
    %v5262 = vadd.f32 0.0, %v5261
    %v5263 = vpop.f32.mrb[0].mxu0
    %v5264 = vpop.f32.mrb[0].mxu0
    %v5265 = vadd.f32 0.0, %v5264
    %v5266 = vpop.f32.mrb[0].mxu0
    %5267 = vmatprep.mubr.bf16.mxu0 0
    %5268 = vmatmul.mubr.bf16.gmra.mrb[0].mxu0 %v5151
    %v5269 = vpop.f32.mrb[0].mxu0
    %v5270 = vadd.f32 0.0, %v5269
    %v5271 = vpop.f32.mrb[0].mxu0
    %v5272 = vpop.f32.mrb[0].mxu0
    %v5273 = vadd.f32 0.0, %v5272
    %v5274 = vpop.f32.mrb[0].mxu0
    %5275 = vmatprep.mubr.bf16.mxu0 0
    %5276 = vmatmul.mubr.bf16.gmra.mrb[0].mxu0 %v5167
    %v5277 = vpop.f32.mrb[0].mxu0
    %v5278 = vadd.f32 0.0, %v5277
    %v5279 = vpop.f32.mrb[0].mxu0
    %v5280 = vpop.f32.mrb[0].mxu0
    %v5281 = vadd.f32 0.0, %v5280
    %v5282 = vpop.f32.mrb[0].mxu0
    %5283 = vmatprep.mubr.bf16.mxu0 0
    %5284 = vmatmul.mubr.bf16.gmra.mrb[0].mxu0 %v5176
    %v5285 = vpop.f32.mrb[0].mxu0
    %v5286 = vadd.f32 0.0, %v5285
    %v5287 = vpop.f32.mrb[0].mxu0
    %v5288 = vpop.f32.mrb[0].mxu0
    %v5289 = vadd.f32 0.0, %v5288
    %v5290 = vpop.f32.mrb[0].mxu0
    %5291 = vmatprep.mubr.bf16.mxu0 0
    %5292 = vmatmul.mubr.bf16.gmra.mrb[0].mxu0 %v5185
    %v5293 = vpop.f32.mrb[0].mxu0
    %v5294 = vadd.f32 0.0, %v5293
    %v5295 = vpop.f32.mrb[0].mxu0
    %v5296 = vpop.f32.mrb[0].mxu0
    %v5297 = vadd.f32 0.0, %v5296
    %v5298 = vpop.f32.mrb[0].mxu0
    %5299 = vmatprep.mubr.bf16.mxu0 0
    %5300 = vmatmul.mubr.bf16.gmra.mrb[0].mxu0 %v5193
    %v5301 = vpop.f32.mrb[0].mxu0
    %v5302 = vadd.f32 0.0, %v5301
    %v5303 = vpop.f32.mrb[0].mxu0
    %v5304 = vpop.f32.mrb[0].mxu0
    %v5305 = vadd.f32 0.0, %v5304
    %v5306 = vpop.f32.mrb[0].mxu0
    %5307 = vdwg.mxu0
    %v5308 = vadd.f32 %v5048, %v5246
    %v5309 = vadd.f32 %v5051, %v5249
    %v5310 = vadd.f32 %v5056, %v5254
    %v5311 = vadd.f32 %v5059, %v5257
    %v5312 = vadd.f32 %v5064, %v5262
    %v5313 = vadd.f32 %v5067, %v5265
    %v5314 = vadd.f32 %v5072, %v5270
    %v5315 = vadd.f32 %v5075, %v5273
    %v5316 = vadd.f32 %v5080, %v5278
    %v5317 = vadd.f32 %v5083, %v5281
    %v5318 = vadd.f32 %v5088, %v5286
    %v5319 = vadd.f32 %v5091, %v5289
    %v5320 = vadd.f32 %v5096, %v5294
    %v5321 = vadd.f32 %v5099, %v5297
    %v5322 = vadd.f32 %v5104, %v5302
    %v5323 = vadd.f32 %v5107, %v5305
    %v5324 = vrot.slane %v5110, 4
    %v5325 = vrot.slane %v5113, 5
    %v5326 = vor.u32 %v5324, %v5325
    %v5327 = vrot.slane %v5118, 4
    %v5328 = vrot.slane %v5121, 5
    %v5329 = vor.u32 %v5327, %v5328
    %v5330 = vsel %vm1552, %v5326, %v5329
    %v5331 = vrot.slane %v5127, 4
    %v5332 = vrot.slane %v5130, 5
    %v5333 = vor.u32 %v5331, %v5332
    %v5334 = vsel %vm1552, %v5329, %v5333
    %v5335 = vrot.slane %v5136, 4
    %v5336 = vrot.slane %v5139, 5
    %v5337 = vor.u32 %v5335, %v5336
    %v5338 = vsel %vm1552, %v5333, %v5337
    %v5339 = vrot.slane %v5144, 4
    %v5340 = vrot.slane %v5147, 5
    %v5341 = vor.u32 %v5339, %v5340
    %v5342 = vsel %vm1552, %v5337, %v5341
    %v5343 = vrot.slane %v5152, 4
    %v5344 = vrot.slane %v5155, 5
    %v5345 = vor.u32 %v5343, %v5344
    %v5346 = vrot.slane %v5160, 4
    %v5347 = vrot.slane %v5163, 5
    %v5348 = vor.u32 %v5346, %v5347
    %v5349 = vsel %vm1552, %v5345, %v5348
    %v5350 = vrot.slane %v5169, 4
    %v5351 = vrot.slane %v5172, 5
    %v5352 = vor.u32 %v5350, %v5351
    %v5353 = vsel %vm1552, %v5348, %v5352
    %v5354 = vrot.slane %v5178, 4
    %v5355 = vrot.slane %v5181, 5
    %v5356 = vor.u32 %v5354, %v5355
    %v5357 = vsel %vm1552, %v5352, %v5356
    %v5358 = vrot.slane %v5186, 4
    %v5359 = vrot.slane %v5189, 5
    %v5360 = vor.u32 %v5358, %v5359
    %v5361 = vsel %vm1552, %v5356, %v5360
    %s5370 = scalar_lea.vmem [#allocation4], 192
    %v5371 = vld [vmem:[%s5370] sm:$0xff]
    %v5372 = vld [vmem:[%s5370 + $0x8] sm:$0xff]
    %v5373 = vld [vmem:[%s5370 + $0x10] sm:$0xff]
    %v5374 = vld [vmem:[%s5370 + $0x18] sm:$0xff]
    %v5375 = vld [vmem:[%s5370 + $0x20] sm:$0xff]
    %v5376 = vld [vmem:[%s5370 + $0x28] sm:$0xff]
    %v5377 = vld [vmem:[%s5370 + $0x30] sm:$0xff]
    %v5378 = vld [vmem:[%s5370 + $0x38] sm:$0xff]
    %5379 = vmatprep.subr.bf16.mxu0 0
    %5380 = vmatpush1.bf16.msra.mxu0 %v5371
    %5381 = vmatprep.subr.bf16.mxu0 0
    %5382 = vmatpush1.bf16.msra.mxu0 %v5372
    %5383 = vmatprep.subr.bf16.mxu0 0
    %5384 = vmatpush1.bf16.msra.mxu0 %v5373
    %5385 = vmatprep.subr.bf16.mxu0 0
    %5386 = vmatpush1.bf16.msra.mxu0 %v5374
    %5387 = vmatprep.subr.bf16.mxu0 0
    %5388 = vmatpush1.bf16.msra.mxu0 %v5375
    %5389 = vmatprep.subr.bf16.mxu0 0
    %5390 = vmatpush1.bf16.msra.mxu0 %v5376
    %5391 = vmatprep.subr.bf16.mxu0 0
    %5392 = vmatpush1.bf16.msra.mxu0 %v5377
    %5393 = vmatprep.subr.bf16.mxu0 0
    %5394 = vmatpush1.bf16.msra.mxu0 %v5378
    %5395 = vmatprep.subr.bf16.mxu0 0
    %5396 = vmatpush1.bf16.msra.mxu0 0
    %5397 = vmatprep.subr.bf16.mxu0 0
    %5398 = vmatpush1.bf16.msra.mxu0 0
    %5399 = vmatprep.subr.bf16.mxu0 0
    %5400 = vmatpush1.bf16.msra.mxu0 0
    %5401 = vmatprep.subr.bf16.mxu0 0
    %5402 = vmatpush1.bf16.msra.mxu0 0
    %5403 = vmatprep.subr.bf16.mxu0 0
    %5404 = vmatpush1.bf16.msra.mxu0 0
    %5405 = vmatprep.subr.bf16.mxu0 0
    %5406 = vmatpush1.bf16.msra.mxu0 0
    %5407 = vmatprep.subr.bf16.mxu0 0
    %5408 = vmatpush1.bf16.msra.mxu0 0
    %5409 = vmatprep.subr.bf16.mxu0 0
    %5410 = vmatpush1.bf16.msra.mxu0 0
    %5411 = vmatprep.mubr.bf16.mxu0 0
    %5412 = vmatmul.mubr.bf16.gmra.mrb[0].mxu0 %v5330
    %v5413 = vpop.f32.mrb[0].mxu0
    %v5414 = vadd.f32 0.0, %v5413
    %v5415 = vpop.f32.mrb[0].mxu0
    %v5416 = vpop.f32.mrb[0].mxu0
    %v5417 = vadd.f32 0.0, %v5416
    %v5418 = vpop.f32.mrb[0].mxu0
    %5419 = vmatprep.mubr.bf16.mxu0 0
    %5420 = vmatmul.mubr.bf16.gmra.mrb[0].mxu0 %v5334
    %v5421 = vpop.f32.mrb[0].mxu0
    %v5422 = vadd.f32 0.0, %v5421
    %v5423 = vpop.f32.mrb[0].mxu0
    %v5424 = vpop.f32.mrb[0].mxu0
    %v5425 = vadd.f32 0.0, %v5424
    %v5426 = vpop.f32.mrb[0].mxu0
    %5427 = vmatprep.mubr.bf16.mxu0 0
    %5428 = vmatmul.mubr.bf16.gmra.mrb[0].mxu0 %v5338
    %v5429 = vpop.f32.mrb[0].mxu0
    %v5430 = vadd.f32 0.0, %v5429
    %v5431 = vpop.f32.mrb[0].mxu0
    %v5432 = vpop.f32.mrb[0].mxu0
    %v5433 = vadd.f32 0.0, %v5432
    %v5434 = vpop.f32.mrb[0].mxu0
    %5435 = vmatprep.mubr.bf16.mxu0 0
    %5436 = vmatmul.mubr.bf16.gmra.mrb[0].mxu0 %v5342
    %v5437 = vpop.f32.mrb[0].mxu0
    %v5438 = vadd.f32 0.0, %v5437
    %v5439 = vpop.f32.mrb[0].mxu0
    %v5440 = vpop.f32.mrb[0].mxu0
    %v5441 = vadd.f32 0.0, %v5440
    %v5442 = vpop.f32.mrb[0].mxu0
    %5443 = vmatprep.mubr.bf16.mxu0 0
    %5444 = vmatmul.mubr.bf16.gmra.mrb[0].mxu0 %v5349
    %v5445 = vpop.f32.mrb[0].mxu0
    %v5446 = vadd.f32 0.0, %v5445
    %v5447 = vpop.f32.mrb[0].mxu0
    %v5448 = vpop.f32.mrb[0].mxu0
    %v5449 = vadd.f32 0.0, %v5448
    %v5450 = vpop.f32.mrb[0].mxu0
    %5451 = vmatprep.mubr.bf16.mxu0 0
    %5452 = vmatmul.mubr.bf16.gmra.mrb[0].mxu0 %v5353
    %v5453 = vpop.f32.mrb[0].mxu0
    %v5454 = vadd.f32 0.0, %v5453
    %v5455 = vpop.f32.mrb[0].mxu0
    %v5456 = vpop.f32.mrb[0].mxu0
    %v5457 = vadd.f32 0.0, %v5456
    %v5458 = vpop.f32.mrb[0].mxu0
    %5459 = vmatprep.mubr.bf16.mxu0 0
    %5460 = vmatmul.mubr.bf16.gmra.mrb[0].mxu0 %v5357
    %v5461 = vpop.f32.mrb[0].mxu0
    %v5462 = vadd.f32 0.0, %v5461
    %v5463 = vpop.f32.mrb[0].mxu0
    %v5464 = vpop.f32.mrb[0].mxu0
    %v5465 = vadd.f32 0.0, %v5464
    %v5466 = vpop.f32.mrb[0].mxu0
    %5467 = vmatprep.mubr.bf16.mxu0 0
    %5468 = vmatmul.mubr.bf16.gmra.mrb[0].mxu0 %v5361
    %v5469 = vpop.f32.mrb[0].mxu0
    %v5470 = vadd.f32 0.0, %v5469
    %v5471 = vpop.f32.mrb[0].mxu0
    %v5472 = vpop.f32.mrb[0].mxu0
    %v5473 = vadd.f32 0.0, %v5472
    %v5474 = vpop.f32.mrb[0].mxu0
    %5475 = vdwg.mxu0
    %v5476 = vadd.f32 %v5308, %v5414
    %v5477 = vadd.f32 %v5309, %v5417
    %v5478 = vadd.f32 %v5310, %v5422
    %v5479 = vadd.f32 %v5311, %v5425
    %v5480 = vadd.f32 %v5312, %v5430
    %v5481 = vadd.f32 %v5313, %v5433
    %v5482 = vadd.f32 %v5314, %v5438
    %v5483 = vadd.f32 %v5315, %v5441
    %v5484 = vadd.f32 %v5316, %v5446
    %v5485 = vadd.f32 %v5317, %v5449
    %v5486 = vadd.f32 %v5318, %v5454
    %v5487 = vadd.f32 %v5319, %v5457
    %v5488 = vadd.f32 %v5320, %v5462
    %v5489 = vadd.f32 %v5321, %v5465
    %v5490 = vadd.f32 %v5322, %v5470
    %v5491 = vadd.f32 %v5323, %v5473
    %v5492 = vrot.slane %v4871, 5
    %v5493 = vrot.slane %v4858, 5
    %v5494 = vsel %vm1777, %v5492, %v5493
    %v5495 = vrot.slane %v4860, 5
    %v5496 = vsel %vm1777, %v5493, %v5495
    %v5497 = vrot.slane %v4862, 5
    %v5498 = vsel %vm1777, %v5495, %v5497
    %v5499 = vrot.slane %v4875, 5
    %v5500 = vsel %vm1777, %v5497, %v5499
    %v5501 = vrot.slane %v4873, 5
    %v5502 = vrot.slane %v4865, 5
    %v5503 = vsel %vm1777, %v5501, %v5502
    %v5504 = vrot.slane %v4867, 5
    %v5505 = vsel %vm1777, %v5502, %v5504
    %v5506 = vrot.slane %v4869, 5
    %v5507 = vsel %vm1777, %v5504, %v5506
    %v5508 = vrot.slane %v4877, 5
    %v5509 = vsel %vm1777, %v5506, %v5508
    %s5518 = scalar_lea.vmem [#allocation4], 256
    %v5519 = vld [vmem:[%s5518] sm:$0xff]
    %v5520 = vld [vmem:[%s5518 + $0x8] sm:$0xff]
    %v5521 = vld [vmem:[%s5518 + $0x10] sm:$0xff]
    %v5522 = vld [vmem:[%s5518 + $0x18] sm:$0xff]
    %v5523 = vld [vmem:[%s5518 + $0x20] sm:$0xff]
    %v5524 = vld [vmem:[%s5518 + $0x28] sm:$0xff]
    %v5525 = vld [vmem:[%s5518 + $0x30] sm:$0xff]
    %v5526 = vld [vmem:[%s5518 + $0x38] sm:$0xff]
    %5527 = vmatprep.subr.bf16.mxu0 0
    %5528 = vmatpush1.bf16.msra.mxu0 %v5519
    %5529 = vmatprep.subr.bf16.mxu0 0
    %5530 = vmatpush1.bf16.msra.mxu0 %v5520
    %5531 = vmatprep.subr.bf16.mxu0 0
    %5532 = vmatpush1.bf16.msra.mxu0 %v5521
    %5533 = vmatprep.subr.bf16.mxu0 0
    %5534 = vmatpush1.bf16.msra.mxu0 %v5522
    %5535 = vmatprep.subr.bf16.mxu0 0
    %5536 = vmatpush1.bf16.msra.mxu0 %v5523
    %5537 = vmatprep.subr.bf16.mxu0 0
    %5538 = vmatpush1.bf16.msra.mxu0 %v5524
    %5539 = vmatprep.subr.bf16.mxu0 0
    %5540 = vmatpush1.bf16.msra.mxu0 %v5525
    %5541 = vmatprep.subr.bf16.mxu0 0
    %5542 = vmatpush1.bf16.msra.mxu0 %v5526
    %5543 = vmatprep.subr.bf16.mxu0 0
    %5544 = vmatpush1.bf16.msra.mxu0 0
    %5545 = vmatprep.subr.bf16.mxu0 0
    %5546 = vmatpush1.bf16.msra.mxu0 0
    %5547 = vmatprep.subr.bf16.mxu0 0
    %5548 = vmatpush1.bf16.msra.mxu0 0
    %5549 = vmatprep.subr.bf16.mxu0 0
    %5550 = vmatpush1.bf16.msra.mxu0 0
    %5551 = vmatprep.subr.bf16.mxu0 0
    %5552 = vmatpush1.bf16.msra.mxu0 0
    %5553 = vmatprep.subr.bf16.mxu0 0
    %5554 = vmatpush1.bf16.msra.mxu0 0
    %5555 = vmatprep.subr.bf16.mxu0 0
    %5556 = vmatpush1.bf16.msra.mxu0 0
    %5557 = vmatprep.subr.bf16.mxu0 0
    %5558 = vmatpush1.bf16.msra.mxu0 0
    %5559 = vmatprep.mubr.bf16.mxu0 0
    %5560 = vmatmul.mubr.bf16.gmra.mrb[0].mxu0 %v5494
    %v5561 = vpop.f32.mrb[0].mxu0
    %v5562 = vadd.f32 0.0, %v5561
    %v5563 = vpop.f32.mrb[0].mxu0
    %v5564 = vpop.f32.mrb[0].mxu0
    %v5565 = vadd.f32 0.0, %v5564
    %v5566 = vpop.f32.mrb[0].mxu0
    %5567 = vmatprep.mubr.bf16.mxu0 0
    %5568 = vmatmul.mubr.bf16.gmra.mrb[0].mxu0 %v5496
    %v5569 = vpop.f32.mrb[0].mxu0
    %v5570 = vadd.f32 0.0, %v5569
    %v5571 = vpop.f32.mrb[0].mxu0
    %v5572 = vpop.f32.mrb[0].mxu0
    %v5573 = vadd.f32 0.0, %v5572
    %v5574 = vpop.f32.mrb[0].mxu0
    %5575 = vmatprep.mubr.bf16.mxu0 0
    %5576 = vmatmul.mubr.bf16.gmra.mrb[0].mxu0 %v5498
    %v5577 = vpop.f32.mrb[0].mxu0
    %v5578 = vadd.f32 0.0, %v5577
    %v5579 = vpop.f32.mrb[0].mxu0
    %v5580 = vpop.f32.mrb[0].mxu0
    %v5581 = vadd.f32 0.0, %v5580
    %v5582 = vpop.f32.mrb[0].mxu0
    %5583 = vmatprep.mubr.bf16.mxu0 0
    %5584 = vmatmul.mubr.bf16.gmra.mrb[0].mxu0 %v5500
    %v5585 = vpop.f32.mrb[0].mxu0
    %v5586 = vadd.f32 0.0, %v5585
    %v5587 = vpop.f32.mrb[0].mxu0
    %v5588 = vpop.f32.mrb[0].mxu0
    %v5589 = vadd.f32 0.0, %v5588
    %v5590 = vpop.f32.mrb[0].mxu0
    %5591 = vmatprep.mubr.bf16.mxu0 0
    %5592 = vmatmul.mubr.bf16.gmra.mrb[0].mxu0 %v5503
    %v5593 = vpop.f32.mrb[0].mxu0
    %v5594 = vadd.f32 0.0, %v5593
    %v5595 = vpop.f32.mrb[0].mxu0
    %v5596 = vpop.f32.mrb[0].mxu0
    %v5597 = vadd.f32 0.0, %v5596
    %v5598 = vpop.f32.mrb[0].mxu0
    %5599 = vmatprep.mubr.bf16.mxu0 0
    %5600 = vmatmul.mubr.bf16.gmra.mrb[0].mxu0 %v5505
    %v5601 = vpop.f32.mrb[0].mxu0
    %v5602 = vadd.f32 0.0, %v5601
    %v5603 = vpop.f32.mrb[0].mxu0
    %v5604 = vpop.f32.mrb[0].mxu0
    %v5605 = vadd.f32 0.0, %v5604
    %v5606 = vpop.f32.mrb[0].mxu0
    %5607 = vmatprep.mubr.bf16.mxu0 0
    %5608 = vmatmul.mubr.bf16.gmra.mrb[0].mxu0 %v5507
    %v5609 = vpop.f32.mrb[0].mxu0
    %v5610 = vadd.f32 0.0, %v5609
    %v5611 = vpop.f32.mrb[0].mxu0
    %v5612 = vpop.f32.mrb[0].mxu0
    %v5613 = vadd.f32 0.0, %v5612
    %v5614 = vpop.f32.mrb[0].mxu0
    %5615 = vmatprep.mubr.bf16.mxu0 0
    %5616 = vmatmul.mubr.bf16.gmra.mrb[0].mxu0 %v5509
    %v5617 = vpop.f32.mrb[0].mxu0
    %v5618 = vadd.f32 0.0, %v5617
    %v5619 = vpop.f32.mrb[0].mxu0
    %v5620 = vpop.f32.mrb[0].mxu0
    %v5621 = vadd.f32 0.0, %v5620
    %v5622 = vpop.f32.mrb[0].mxu0
    %5623 = vdwg.mxu0
    %v5624 = vadd.f32 %v5476, %v5562
    %v5625 = vadd.f32 %v5477, %v5565
    %v5626 = vadd.f32 %v5478, %v5570
    %v5627 = vadd.f32 %v5479, %v5573
    %v5628 = vadd.f32 %v5480, %v5578
    %v5629 = vadd.f32 %v5481, %v5581
    %v5630 = vadd.f32 %v5482, %v5586
    %v5631 = vadd.f32 %v5483, %v5589
    %v5632 = vadd.f32 %v5484, %v5594
    %v5633 = vadd.f32 %v5485, %v5597
    %v5634 = vadd.f32 %v5486, %v5602
    %v5635 = vadd.f32 %v5487, %v5605
    %v5636 = vadd.f32 %v5488, %v5610
    %v5637 = vadd.f32 %v5489, %v5613
    %v5638 = vadd.f32 %v5490, %v5618
    %v5639 = vadd.f32 %v5491, %v5621
    %v5640 = vld [vmem:[#allocation28] sm:$0x1]
    %v5642 = vlaneseq
    %v5643 = vshrl.u32 %v5642, 7
    %v5644 = vsub.s32 0, %v5643
    %v5645 = vrot.slane %v5640, %v5644
    %v5647 = vmul.f32 %v5624, %v5645
    %v5648 = vmul.f32 %v5625, %v5645
    %v5649 = vmul.f32 %v5626, %v5645
    %v5650 = vmul.f32 %v5627, %v5645
    %v5651 = vmul.f32 %v5628, %v5645
    %v5652 = vmul.f32 %v5629, %v5645
    %v5653 = vmul.f32 %v5630, %v5645
    %v5654 = vmul.f32 %v5631, %v5645
    %v5655 = vmul.f32 %v5632, %v5645
    %v5656 = vmul.f32 %v5633, %v5645
    %v5657 = vmul.f32 %v5634, %v5645
    %v5658 = vmul.f32 %v5635, %v5645
    %v5659 = vmul.f32 %v5636, %v5645
    %v5660 = vmul.f32 %v5637, %v5645
    %v5661 = vmul.f32 %v5638, %v5645
    %v5662 = vmul.f32 %v5639, %v5645
    %v5663 = vld [vmem:[#allocation30] sm:$0x1]
    %v5665 = vlaneseq
    %v5666 = vshrl.u32 %v5665, 7
    %v5667 = vsub.s32 0, %v5666
    %v5668 = vrot.slane %v5663, %v5667
    %v5670 = vadd.f32 %v5647, %v5668
    %v5671 = vadd.f32 %v5648, %v5668
    %v5672 = vadd.f32 %v5649, %v5668
    %v5673 = vadd.f32 %v5650, %v5668
    %v5674 = vadd.f32 %v5651, %v5668
    %v5675 = vadd.f32 %v5652, %v5668
    %v5676 = vadd.f32 %v5653, %v5668
    %v5677 = vadd.f32 %v5654, %v5668
    %v5678 = vadd.f32 %v5655, %v5668
    %v5679 = vadd.f32 %v5656, %v5668
    %v5680 = vadd.f32 %v5657, %v5668
    %v5681 = vadd.f32 %v5658, %v5668
    %v5682 = vadd.f32 %v5659, %v5668
    %v5683 = vadd.f32 %v5660, %v5668
    %v5684 = vadd.f32 %v5661, %v5668
    %v5685 = vadd.f32 %v5662, %v5668
    %v5686 = vadd.f32 %v5670, %v4042
    %v5687 = vadd.f32 %v5671, %v4043
    %v5688 = vadd.f32 %v5672, %v4044
    %v5689 = vadd.f32 %v5673, %v4045
    %v5690 = vadd.f32 %v5674, %v4046
    %v5691 = vadd.f32 %v5675, %v4047
    %v5692 = vadd.f32 %v5676, %v4048
    %v5693 = vadd.f32 %v5677, %v4049
    %v5694 = vadd.f32 %v5678, %v4050
    %v5695 = vadd.f32 %v5679, %v4051
    %v5696 = vadd.f32 %v5680, %v4052
    %v5697 = vadd.f32 %v5681, %v4053
    %v5698 = vadd.f32 %v5682, %v4054
    %v5699 = vadd.f32 %v5683, %v4055
    %v5700 = vadd.f32 %v5684, %v4056
    %v5701 = vadd.f32 %v5685, %v4057
    %v5702 = vmax.f32 %v5686, 0.0
    %v5703 = vmax.f32 %v5687, 0.0
    %v5704 = vmax.f32 %v5688, 0.0
    %v5705 = vmax.f32 %v5689, 0.0
    %v5706 = vmax.f32 %v5690, 0.0
    %v5707 = vmax.f32 %v5691, 0.0
    %v5708 = vmax.f32 %v5692, 0.0
    %v5709 = vmax.f32 %v5693, 0.0
    %v5710 = vmax.f32 %v5694, 0.0
    %v5711 = vmax.f32 %v5695, 0.0
    %v5712 = vmax.f32 %v5696, 0.0
    %v5713 = vmax.f32 %v5697, 0.0
    %v5714 = vmax.f32 %v5698, 0.0
    %v5715 = vmax.f32 %v5699, 0.0
    %v5716 = vmax.f32 %v5700, 0.0
    %v5717 = vmax.f32 %v5701, 0.0
    %s5718 = smul.u32 %s3884, 4
    %s5719 = sshll.u32 %s5718, 4
    %5720 = dma.done %s419, %s5719
    %s5721 = smul.u32 4, 2
    %s5722 = smul.u32 %s5721, 16
    %s5723 = smul.u32 %s5722, 2
    %s5724 = sshll.u32 %s5723, 4
    %5725 = dma.done %s454, %s5724
    %s5726 = smul.u32 4, 3
    %s5727 = smul.u32 %s5726, 32
    %s5728 = smul.u32 %s5727, 2
    %s5729 = sshll.u32 %s5728, 4
    %5730 = dma.done %s489, %s5729
    %v5731 = vpack.c.bf16 %v5703, %v5702
    %v5732 = vpack.c.bf16 %v5705, %v5704
    %v5733 = vpack.c.bf16 %v5707, %v5706
    %v5734 = vpack.c.bf16 %v5709, %v5708
    %v5735 = vpack.c.bf16 %v5711, %v5710
    %v5736 = vpack.c.bf16 %v5713, %v5712
    %v5737 = vpack.c.bf16 %v5715, %v5714
    %v5738 = vpack.c.bf16 %v5717, %v5716
    %v5739 = vld [vmem:[#allocation5] sm:$0xff]
    %v5740 = vld [vmem:[#allocation5 + $0x8] sm:$0xff]
    %v5741 = vld [vmem:[#allocation5 + $0x10] sm:$0xff]
    %v5742 = vld [vmem:[#allocation5 + $0x18] sm:$0xff]
    %v5743 = vld [vmem:[#allocation5 + $0x20] sm:$0xff]
    %v5744 = vld [vmem:[#allocation5 + $0x28] sm:$0xff]
    %v5745 = vld [vmem:[#allocation5 + $0x30] sm:$0xff]
    %v5746 = vld [vmem:[#allocation5 + $0x38] sm:$0xff]
    %v5747 = vld [vmem:[#allocation5 + $0x40] sm:$0xff]
    %v5748 = vld [vmem:[#allocation5 + $0x48] sm:$0xff]
    %v5749 = vld [vmem:[#allocation5 + $0x50] sm:$0xff]
    %v5750 = vld [vmem:[#allocation5 + $0x58] sm:$0xff]
    %v5751 = vld [vmem:[#allocation5 + $0x60] sm:$0xff]
    %v5752 = vld [vmem:[#allocation5 + $0x68] sm:$0xff]
    %v5753 = vld [vmem:[#allocation5 + $0x70] sm:$0xff]
    %v5754 = vld [vmem:[#allocation5 + $0x78] sm:$0xff]
    %v5755 = vld [vmem:[#allocation5 + $0x80] sm:$0xff]
    %v5756 = vld [vmem:[#allocation5 + $0x88] sm:$0xff]
    %v5757 = vld [vmem:[#allocation5 + $0x90] sm:$0xff]
    %v5758 = vld [vmem:[#allocation5 + $0x98] sm:$0xff]
    %v5759 = vld [vmem:[#allocation5 + $0xa0] sm:$0xff]
    %v5760 = vld [vmem:[#allocation5 + $0xa8] sm:$0xff]
    %v5761 = vld [vmem:[#allocation5 + $0xb0] sm:$0xff]
    %v5762 = vld [vmem:[#allocation5 + $0xb8] sm:$0xff]
    %v5763 = vld [vmem:[#allocation5 + $0xc0] sm:$0xff]
    %v5764 = vld [vmem:[#allocation5 + $0xc8] sm:$0xff]
    %v5765 = vld [vmem:[#allocation5 + $0xd0] sm:$0xff]
    %v5766 = vld [vmem:[#allocation5 + $0xd8] sm:$0xff]
    %v5767 = vld [vmem:[#allocation5 + $0xe0] sm:$0xff]
    %v5768 = vld [vmem:[#allocation5 + $0xe8] sm:$0xff]
    %v5769 = vld [vmem:[#allocation5 + $0xf0] sm:$0xff]
    %v5770 = vld [vmem:[#allocation5 + $0xf8] sm:$0xff]
    %5771 = vmatprep.subr.bf16.mxu0 %v5740
    %5772 = vmatpush1.bf16.msra.mxu0 %v5739
    %5773 = vmatprep.subr.bf16.mxu0 %v5744
    %5774 = vmatpush1.bf16.msra.mxu0 %v5743
    %5775 = vmatprep.subr.bf16.mxu0 %v5748
    %5776 = vmatpush1.bf16.msra.mxu0 %v5747
    %5777 = vmatprep.subr.bf16.mxu0 %v5752
    %5778 = vmatpush1.bf16.msra.mxu0 %v5751
    %5779 = vmatprep.subr.bf16.mxu0 %v5756
    %5780 = vmatpush1.bf16.msra.mxu0 %v5755
    %5781 = vmatprep.subr.bf16.mxu0 %v5760
    %5782 = vmatpush1.bf16.msra.mxu0 %v5759
    %5783 = vmatprep.subr.bf16.mxu0 %v5764
    %5784 = vmatpush1.bf16.msra.mxu0 %v5763
    %5785 = vmatprep.subr.bf16.mxu0 %v5768
    %5786 = vmatpush1.bf16.msra.mxu0 %v5767
    %5787 = vmatprep.subr.bf16.mxu0 0
    %5788 = vmatpush1.bf16.msra.mxu0 0
    %5789 = vmatprep.subr.bf16.mxu0 0
    %5790 = vmatpush1.bf16.msra.mxu0 0
    %5791 = vmatprep.subr.bf16.mxu0 0
    %5792 = vmatpush1.bf16.msra.mxu0 0
    %5793 = vmatprep.subr.bf16.mxu0 0
    %5794 = vmatpush1.bf16.msra.mxu0 0
    %5795 = vmatprep.subr.bf16.mxu0 0
    %5796 = vmatpush1.bf16.msra.mxu0 0
    %5797 = vmatprep.subr.bf16.mxu0 0
    %5798 = vmatpush1.bf16.msra.mxu0 0
    %5799 = vmatprep.subr.bf16.mxu0 0
    %5800 = vmatpush1.bf16.msra.mxu0 0
    %5801 = vmatprep.subr.bf16.mxu0 0
    %5802 = vmatpush1.bf16.msra.mxu0 0
    %5803 = vmatprep.mubr.bf16.mxu0 0
    %5804 = vmatmul.mubr.bf16.gmra.mrb[0].mxu0 %v5731
    %v5805 = vpop.f32.mrb[0].mxu0
    %v5806 = vadd.f32 0.0, %v5805
    %v5807 = vpop.f32.mrb[0].mxu0
    %v5808 = vadd.f32 0.0, %v5807
    %v5809 = vpop.f32.mrb[0].mxu0
    %v5810 = vadd.f32 0.0, %v5809
    %v5811 = vpop.f32.mrb[0].mxu0
    %v5812 = vadd.f32 0.0, %v5811
    %5813 = vmatprep.mubr.bf16.mxu0 0
    %5814 = vmatmul.mubr.bf16.gmra.mrb[0].mxu0 %v5732
    %v5815 = vpop.f32.mrb[0].mxu0
    %v5816 = vadd.f32 0.0, %v5815
    %v5817 = vpop.f32.mrb[0].mxu0
    %v5818 = vadd.f32 0.0, %v5817
    %v5819 = vpop.f32.mrb[0].mxu0
    %v5820 = vadd.f32 0.0, %v5819
    %v5821 = vpop.f32.mrb[0].mxu0
    %v5822 = vadd.f32 0.0, %v5821
    %5823 = vmatprep.mubr.bf16.mxu0 0
    %5824 = vmatmul.mubr.bf16.gmra.mrb[0].mxu0 %v5733
    %v5825 = vpop.f32.mrb[0].mxu0
    %v5826 = vadd.f32 0.0, %v5825
    %v5827 = vpop.f32.mrb[0].mxu0
    %v5828 = vadd.f32 0.0, %v5827
    %v5829 = vpop.f32.mrb[0].mxu0
    %v5830 = vadd.f32 0.0, %v5829
    %v5831 = vpop.f32.mrb[0].mxu0
    %v5832 = vadd.f32 0.0, %v5831
    %5833 = vmatprep.mubr.bf16.mxu0 0
    %5834 = vmatmul.mubr.bf16.gmra.mrb[0].mxu0 %v5734
    %v5835 = vpop.f32.mrb[0].mxu0
    %v5836 = vadd.f32 0.0, %v5835
    %v5837 = vpop.f32.mrb[0].mxu0
    %v5838 = vadd.f32 0.0, %v5837
    %v5839 = vpop.f32.mrb[0].mxu0
    %v5840 = vadd.f32 0.0, %v5839
    %v5841 = vpop.f32.mrb[0].mxu0
    %v5842 = vadd.f32 0.0, %v5841
    %5843 = vmatprep.mubr.bf16.mxu0 0
    %5844 = vmatmul.mubr.bf16.gmra.mrb[0].mxu0 %v5735
    %v5845 = vpop.f32.mrb[0].mxu0
    %v5846 = vadd.f32 0.0, %v5845
    %v5847 = vpop.f32.mrb[0].mxu0
    %v5848 = vadd.f32 0.0, %v5847
    %v5849 = vpop.f32.mrb[0].mxu0
    %v5850 = vadd.f32 0.0, %v5849
    %v5851 = vpop.f32.mrb[0].mxu0
    %v5852 = vadd.f32 0.0, %v5851
    %5853 = vmatprep.mubr.bf16.mxu0 0
    %5854 = vmatmul.mubr.bf16.gmra.mrb[0].mxu0 %v5736
    %v5855 = vpop.f32.mrb[0].mxu0
    %v5856 = vadd.f32 0.0, %v5855
    %v5857 = vpop.f32.mrb[0].mxu0
    %v5858 = vadd.f32 0.0, %v5857
    %v5859 = vpop.f32.mrb[0].mxu0
    %v5860 = vadd.f32 0.0, %v5859
    %v5861 = vpop.f32.mrb[0].mxu0
    %v5862 = vadd.f32 0.0, %v5861
    %5863 = vmatprep.mubr.bf16.mxu0 0
    %5864 = vmatmul.mubr.bf16.gmra.mrb[0].mxu0 %v5737
    %v5865 = vpop.f32.mrb[0].mxu0
    %v5866 = vadd.f32 0.0, %v5865
    %v5867 = vpop.f32.mrb[0].mxu0
    %v5868 = vadd.f32 0.0, %v5867
    %v5869 = vpop.f32.mrb[0].mxu0
    %v5870 = vadd.f32 0.0, %v5869
    %v5871 = vpop.f32.mrb[0].mxu0
    %v5872 = vadd.f32 0.0, %v5871
    %5873 = vmatprep.mubr.bf16.mxu0 0
    %5874 = vmatmul.mubr.bf16.gmra.mrb[0].mxu0 %v5738
    %v5875 = vpop.f32.mrb[0].mxu0
    %v5876 = vadd.f32 0.0, %v5875
    %v5877 = vpop.f32.mrb[0].mxu0
    %v5878 = vadd.f32 0.0, %v5877
    %v5879 = vpop.f32.mrb[0].mxu0
    %v5880 = vadd.f32 0.0, %v5879
    %v5881 = vpop.f32.mrb[0].mxu0
    %v5882 = vadd.f32 0.0, %v5881
    %5883 = vdwg.mxu0
    %5884 = vmatprep.subr.bf16.mxu0 %v5742
    %5885 = vmatpush1.bf16.msra.mxu0 %v5741
    %5886 = vmatprep.subr.bf16.mxu0 %v5746
    %5887 = vmatpush1.bf16.msra.mxu0 %v5745
    %5888 = vmatprep.subr.bf16.mxu0 %v5750
    %5889 = vmatpush1.bf16.msra.mxu0 %v5749
    %5890 = vmatprep.subr.bf16.mxu0 %v5754
    %5891 = vmatpush1.bf16.msra.mxu0 %v5753
    %5892 = vmatprep.subr.bf16.mxu0 %v5758
    %5893 = vmatpush1.bf16.msra.mxu0 %v5757
    %5894 = vmatprep.subr.bf16.mxu0 %v5762
    %5895 = vmatpush1.bf16.msra.mxu0 %v5761
    %5896 = vmatprep.subr.bf16.mxu0 %v5766
    %5897 = vmatpush1.bf16.msra.mxu0 %v5765
    %5898 = vmatprep.subr.bf16.mxu0 %v5770
    %5899 = vmatpush1.bf16.msra.mxu0 %v5769
    %5900 = vmatprep.subr.bf16.mxu0 0
    %5901 = vmatpush1.bf16.msra.mxu0 0
    %5902 = vmatprep.subr.bf16.mxu0 0
    %5903 = vmatpush1.bf16.msra.mxu0 0
    %5904 = vmatprep.subr.bf16.mxu0 0
    %5905 = vmatpush1.bf16.msra.mxu0 0
    %5906 = vmatprep.subr.bf16.mxu0 0
    %5907 = vmatpush1.bf16.msra.mxu0 0
    %5908 = vmatprep.subr.bf16.mxu0 0
    %5909 = vmatpush1.bf16.msra.mxu0 0
    %5910 = vmatprep.subr.bf16.mxu0 0
    %5911 = vmatpush1.bf16.msra.mxu0 0
    %5912 = vmatprep.subr.bf16.mxu0 0
    %5913 = vmatpush1.bf16.msra.mxu0 0
    %5914 = vmatprep.subr.bf16.mxu0 0
    %5915 = vmatpush1.bf16.msra.mxu0 0
    %5916 = vmatprep.mubr.bf16.mxu0 0
    %5917 = vmatmul.mubr.bf16.gmra.mrb[0].mxu0 %v5731
    %v5918 = vpop.f32.mrb[0].mxu0
    %v5919 = vadd.f32 0.0, %v5918
    %v5920 = vpop.f32.mrb[0].mxu0
    %v5921 = vadd.f32 0.0, %v5920
    %v5922 = vpop.f32.mrb[0].mxu0
    %v5923 = vadd.f32 0.0, %v5922
    %v5924 = vpop.f32.mrb[0].mxu0
    %v5925 = vadd.f32 0.0, %v5924
    %5926 = vmatprep.mubr.bf16.mxu0 0
    %5927 = vmatmul.mubr.bf16.gmra.mrb[0].mxu0 %v5732
    %v5928 = vpop.f32.mrb[0].mxu0
    %v5929 = vadd.f32 0.0, %v5928
    %v5930 = vpop.f32.mrb[0].mxu0
    %v5931 = vadd.f32 0.0, %v5930
    %v5932 = vpop.f32.mrb[0].mxu0
    %v5933 = vadd.f32 0.0, %v5932
    %v5934 = vpop.f32.mrb[0].mxu0
    %v5935 = vadd.f32 0.0, %v5934
    %5936 = vmatprep.mubr.bf16.mxu0 0
    %5937 = vmatmul.mubr.bf16.gmra.mrb[0].mxu0 %v5733
    %v5938 = vpop.f32.mrb[0].mxu0
    %v5939 = vadd.f32 0.0, %v5938
    %v5940 = vpop.f32.mrb[0].mxu0
    %v5941 = vadd.f32 0.0, %v5940
    %v5942 = vpop.f32.mrb[0].mxu0
    %v5943 = vadd.f32 0.0, %v5942
    %v5944 = vpop.f32.mrb[0].mxu0
    %v5945 = vadd.f32 0.0, %v5944
    %5946 = vmatprep.mubr.bf16.mxu0 0
    %5947 = vmatmul.mubr.bf16.gmra.mrb[0].mxu0 %v5734
    %v5948 = vpop.f32.mrb[0].mxu0
    %v5949 = vadd.f32 0.0, %v5948
    %v5950 = vpop.f32.mrb[0].mxu0
    %v5951 = vadd.f32 0.0, %v5950
    %v5952 = vpop.f32.mrb[0].mxu0
    %v5953 = vadd.f32 0.0, %v5952
    %v5954 = vpop.f32.mrb[0].mxu0
    %v5955 = vadd.f32 0.0, %v5954
    %5956 = vmatprep.mubr.bf16.mxu0 0
    %5957 = vmatmul.mubr.bf16.gmra.mrb[0].mxu0 %v5735
    %v5958 = vpop.f32.mrb[0].mxu0
    %v5959 = vadd.f32 0.0, %v5958
    %v5960 = vpop.f32.mrb[0].mxu0
    %v5961 = vadd.f32 0.0, %v5960
    %v5962 = vpop.f32.mrb[0].mxu0
    %v5963 = vadd.f32 0.0, %v5962
    %v5964 = vpop.f32.mrb[0].mxu0
    %v5965 = vadd.f32 0.0, %v5964
    %5966 = vmatprep.mubr.bf16.mxu0 0
    %5967 = vmatmul.mubr.bf16.gmra.mrb[0].mxu0 %v5736
    %v5968 = vpop.f32.mrb[0].mxu0
    %v5969 = vadd.f32 0.0, %v5968
    %v5970 = vpop.f32.mrb[0].mxu0
    %v5971 = vadd.f32 0.0, %v5970
    %v5972 = vpop.f32.mrb[0].mxu0
    %v5973 = vadd.f32 0.0, %v5972
    %v5974 = vpop.f32.mrb[0].mxu0
    %v5975 = vadd.f32 0.0, %v5974
    %5976 = vmatprep.mubr.bf16.mxu0 0
    %5977 = vmatmul.mubr.bf16.gmra.mrb[0].mxu0 %v5737
    %v5978 = vpop.f32.mrb[0].mxu0
    %v5979 = vadd.f32 0.0, %v5978
    %v5980 = vpop.f32.mrb[0].mxu0
    %v5981 = vadd.f32 0.0, %v5980
    %v5982 = vpop.f32.mrb[0].mxu0
    %v5983 = vadd.f32 0.0, %v5982
    %v5984 = vpop.f32.mrb[0].mxu0
    %v5985 = vadd.f32 0.0, %v5984
    %5986 = vmatprep.mubr.bf16.mxu0 0
    %5987 = vmatmul.mubr.bf16.gmra.mrb[0].mxu0 %v5738
    %v5988 = vpop.f32.mrb[0].mxu0
    %v5989 = vadd.f32 0.0, %v5988
    %v5990 = vpop.f32.mrb[0].mxu0
    %v5991 = vadd.f32 0.0, %v5990
    %v5992 = vpop.f32.mrb[0].mxu0
    %v5993 = vadd.f32 0.0, %v5992
    %v5994 = vpop.f32.mrb[0].mxu0
    %v5995 = vadd.f32 0.0, %v5994
    %5996 = vdwg.mxu0
    %v5997 = vld [vmem:[#allocation39] sm:$0x3]
    %v5999 = vlaneseq
    %v6000 = vshrl.u32 %v5999, 7
    %v6001 = vsub.s32 0, %v6000
    %v6002 = vrot.slane %v5997, %v6001
    %v6003 = vlaneseq
    %v6004 = vshrl.u32 %v6003, 7
    %v6005 = vsub.s32 1, %v6004
    %v6006 = vrot.slane %v5997, %v6005
    %v6009 = vadd.f32 %v5919, %v6002
    %v6010 = vadd.f32 %v5921, %v6006
    %v6011 = vadd.f32 %v5923, %v6002
    %v6012 = vadd.f32 %v5925, %v6006
    %v6013 = vadd.f32 %v5929, %v6002
    %v6014 = vadd.f32 %v5931, %v6006
    %v6015 = vadd.f32 %v5933, %v6002
    %v6016 = vadd.f32 %v5935, %v6006
    %v6017 = vadd.f32 %v5939, %v6002
    %v6018 = vadd.f32 %v5941, %v6006
    %v6019 = vadd.f32 %v5943, %v6002
    %v6020 = vadd.f32 %v5945, %v6006
    %v6021 = vadd.f32 %v5949, %v6002
    %v6022 = vadd.f32 %v5951, %v6006
    %v6023 = vadd.f32 %v5953, %v6002
    %v6024 = vadd.f32 %v5955, %v6006
    %v6025 = vadd.f32 %v5959, %v6002
    %v6026 = vadd.f32 %v5961, %v6006
    %v6027 = vadd.f32 %v5963, %v6002
    %v6028 = vadd.f32 %v5965, %v6006
    %v6029 = vadd.f32 %v5969, %v6002
    %v6030 = vadd.f32 %v5971, %v6006
    %v6031 = vadd.f32 %v5973, %v6002
    %v6032 = vadd.f32 %v5975, %v6006
    %v6033 = vadd.f32 %v5979, %v6002
    %v6034 = vadd.f32 %v5981, %v6006
    %v6035 = vadd.f32 %v5983, %v6002
    %v6036 = vadd.f32 %v5985, %v6006
    %v6037 = vadd.f32 %v5989, %v6002
    %v6038 = vadd.f32 %v5991, %v6006
    %v6039 = vadd.f32 %v5993, %v6002
    %v6040 = vadd.f32 %v5995, %v6006
    %v6049 = vrot.slane %v5731, 4
    %v6050 = vrot.slane %v5732, 4
    %v6051 = vsel %vm823, %v6049, %v6050
    %v6052 = vrot.slane %v5733, 4
    %v6053 = vsel %vm823, %v6050, %v6052
    %v6054 = vrot.slane %v5734, 4
    %v6055 = vsel %vm823, %v6052, %v6054
    %v6056 = vrot.slane %v5735, 4
    %v6057 = vrot.slane %v5736, 4
    %v6058 = vsel %vm823, %v6056, %v6057
    %v6059 = vrot.slane %v5737, 4
    %v6060 = vsel %vm823, %v6057, %v6059
    %v6061 = vrot.slane %v5738, 4
    %v6062 = vsel %vm823, %v6059, %v6061
    %v6064 = vsel %vm838, 0, %v6049
    %v6066 = vsel %vm838, 0, %v6056
    %v6068 = vsel %vm838, %v6054, 0
    %v6070 = vsel %vm838, %v6061, 0
    %v6071 = vshrl.u32 %v6064, 16
    %v6073 = vrot.slane %v6071, 3
    %v6074 = vshll.u32 %v6064, 16
    %v6076 = vrot.slane %v6074, 4
    %v6077 = vor.u32 %v6073, %v6076
    %v6079 = vshrl.u32 %v6051, 16
    %v6081 = vrot.slane %v6079, 3
    %v6082 = vshll.u32 %v6051, 16
    %v6084 = vrot.slane %v6082, 4
    %v6085 = vor.u32 %v6081, %v6084
    %v6086 = vsel %vm1327, %v6077, %v6085
    %v6088 = vshrl.u32 %v6053, 16
    %v6090 = vrot.slane %v6088, 3
    %v6091 = vshll.u32 %v6053, 16
    %v6093 = vrot.slane %v6091, 4
    %v6094 = vor.u32 %v6090, %v6093
    %v6095 = vsel %vm1327, %v6085, %v6094
    %v6097 = vshrl.u32 %v6055, 16
    %v6099 = vrot.slane %v6097, 3
    %v6100 = vshll.u32 %v6055, 16
    %v6102 = vrot.slane %v6100, 4
    %v6103 = vor.u32 %v6099, %v6102
    %v6104 = vsel %vm1327, %v6094, %v6103
    %v6105 = vshrl.u32 %v6068, 16
    %v6107 = vrot.slane %v6105, 3
    %v6108 = vshll.u32 %v6068, 16
    %v6110 = vrot.slane %v6108, 4
    %v6111 = vor.u32 %v6107, %v6110
    %v6112 = vsel %vm1327, %v6103, %v6111
    %v6113 = vshrl.u32 %v6066, 16
    %v6115 = vrot.slane %v6113, 3
    %v6116 = vshll.u32 %v6066, 16
    %v6118 = vrot.slane %v6116, 4
    %v6119 = vor.u32 %v6115, %v6118
    %v6121 = vshrl.u32 %v6058, 16
    %v6123 = vrot.slane %v6121, 3
    %v6124 = vshll.u32 %v6058, 16
    %v6126 = vrot.slane %v6124, 4
    %v6127 = vor.u32 %v6123, %v6126
    %v6128 = vsel %vm1327, %v6119, %v6127
    %v6130 = vshrl.u32 %v6060, 16
    %v6132 = vrot.slane %v6130, 3
    %v6133 = vshll.u32 %v6060, 16
    %v6135 = vrot.slane %v6133, 4
    %v6136 = vor.u32 %v6132, %v6135
    %v6137 = vsel %vm1327, %v6127, %v6136
    %v6139 = vshrl.u32 %v6062, 16
    %v6141 = vrot.slane %v6139, 3
    %v6142 = vshll.u32 %v6062, 16
    %v6144 = vrot.slane %v6142, 4
    %v6145 = vor.u32 %v6141, %v6144
    %v6146 = vsel %vm1327, %v6136, %v6145
    %v6147 = vshrl.u32 %v6070, 16
    %v6149 = vrot.slane %v6147, 3
    %v6150 = vshll.u32 %v6070, 16
    %v6152 = vrot.slane %v6150, 4
    %v6153 = vor.u32 %v6149, %v6152
    %v6154 = vsel %vm1327, %v6145, %v6153
    %v6163 = vld [vmem:[#allocation6] sm:$0xff]
    %v6164 = vld [vmem:[#allocation6 + $0x8] sm:$0xff]
    %v6165 = vld [vmem:[#allocation6 + $0x10] sm:$0xff]
    %v6166 = vld [vmem:[#allocation6 + $0x18] sm:$0xff]
    %v6167 = vld [vmem:[#allocation6 + $0x20] sm:$0xff]
    %v6168 = vld [vmem:[#allocation6 + $0x28] sm:$0xff]
    %v6169 = vld [vmem:[#allocation6 + $0x30] sm:$0xff]
    %v6170 = vld [vmem:[#allocation6 + $0x38] sm:$0xff]
    %v6171 = vld [vmem:[#allocation6 + $0x40] sm:$0xff]
    %v6172 = vld [vmem:[#allocation6 + $0x48] sm:$0xff]
    %v6173 = vld [vmem:[#allocation6 + $0x50] sm:$0xff]
    %v6174 = vld [vmem:[#allocation6 + $0x58] sm:$0xff]
    %v6175 = vld [vmem:[#allocation6 + $0x60] sm:$0xff]
    %v6176 = vld [vmem:[#allocation6 + $0x68] sm:$0xff]
    %v6177 = vld [vmem:[#allocation6 + $0x70] sm:$0xff]
    %v6178 = vld [vmem:[#allocation6 + $0x78] sm:$0xff]
    %6179 = vmatprep.subr.bf16.mxu0 %v6164
    %6180 = vmatpush1.bf16.msra.mxu0 %v6163
    %6181 = vmatprep.subr.bf16.mxu0 %v6166
    %6182 = vmatpush1.bf16.msra.mxu0 %v6165
    %6183 = vmatprep.subr.bf16.mxu0 %v6168
    %6184 = vmatpush1.bf16.msra.mxu0 %v6167
    %6185 = vmatprep.subr.bf16.mxu0 %v6170
    %6186 = vmatpush1.bf16.msra.mxu0 %v6169
    %6187 = vmatprep.subr.bf16.mxu0 %v6172
    %6188 = vmatpush1.bf16.msra.mxu0 %v6171
    %6189 = vmatprep.subr.bf16.mxu0 %v6174
    %6190 = vmatpush1.bf16.msra.mxu0 %v6173
    %6191 = vmatprep.subr.bf16.mxu0 %v6176
    %6192 = vmatpush1.bf16.msra.mxu0 %v6175
    %6193 = vmatprep.subr.bf16.mxu0 %v6178
    %6194 = vmatpush1.bf16.msra.mxu0 %v6177
    %6195 = vmatprep.subr.bf16.mxu0 0
    %6196 = vmatpush1.bf16.msra.mxu0 0
    %6197 = vmatprep.subr.bf16.mxu0 0
    %6198 = vmatpush1.bf16.msra.mxu0 0
    %6199 = vmatprep.subr.bf16.mxu0 0
    %6200 = vmatpush1.bf16.msra.mxu0 0
    %6201 = vmatprep.subr.bf16.mxu0 0
    %6202 = vmatpush1.bf16.msra.mxu0 0
    %6203 = vmatprep.subr.bf16.mxu0 0
    %6204 = vmatpush1.bf16.msra.mxu0 0
    %6205 = vmatprep.subr.bf16.mxu0 0
    %6206 = vmatpush1.bf16.msra.mxu0 0
    %6207 = vmatprep.subr.bf16.mxu0 0
    %6208 = vmatpush1.bf16.msra.mxu0 0
    %6209 = vmatprep.subr.bf16.mxu0 0
    %6210 = vmatpush1.bf16.msra.mxu0 0
    %6211 = vmatprep.mubr.bf16.mxu0 0
    %6212 = vmatmul.mubr.bf16.gmra.mrb[0].mxu0 %v6086
    %v6213 = vpop.f32.mrb[0].mxu0
    %v6214 = vadd.f32 0.0, %v6213
    %v6215 = vpop.f32.mrb[0].mxu0
    %v6216 = vadd.f32 0.0, %v6215
    %v6217 = vpop.f32.mrb[0].mxu0
    %v6218 = vadd.f32 0.0, %v6217
    %v6219 = vpop.f32.mrb[0].mxu0
    %v6220 = vadd.f32 0.0, %v6219
    %6221 = vmatprep.mubr.bf16.mxu0 0
    %6222 = vmatmul.mubr.bf16.gmra.mrb[0].mxu0 %v6095
    %v6223 = vpop.f32.mrb[0].mxu0
    %v6224 = vadd.f32 0.0, %v6223
    %v6225 = vpop.f32.mrb[0].mxu0
    %v6226 = vadd.f32 0.0, %v6225
    %v6227 = vpop.f32.mrb[0].mxu0
    %v6228 = vadd.f32 0.0, %v6227
    %v6229 = vpop.f32.mrb[0].mxu0
    %v6230 = vadd.f32 0.0, %v6229
    %6231 = vmatprep.mubr.bf16.mxu0 0
    %6232 = vmatmul.mubr.bf16.gmra.mrb[0].mxu0 %v6104
    %v6233 = vpop.f32.mrb[0].mxu0
    %v6234 = vadd.f32 0.0, %v6233
    %v6235 = vpop.f32.mrb[0].mxu0
    %v6236 = vadd.f32 0.0, %v6235
    %v6237 = vpop.f32.mrb[0].mxu0
    %v6238 = vadd.f32 0.0, %v6237
    %v6239 = vpop.f32.mrb[0].mxu0
    %v6240 = vadd.f32 0.0, %v6239
    %6241 = vmatprep.mubr.bf16.mxu0 0
    %6242 = vmatmul.mubr.bf16.gmra.mrb[0].mxu0 %v6112
    %v6243 = vpop.f32.mrb[0].mxu0
    %v6244 = vadd.f32 0.0, %v6243
    %v6245 = vpop.f32.mrb[0].mxu0
    %v6246 = vadd.f32 0.0, %v6245
    %v6247 = vpop.f32.mrb[0].mxu0
    %v6248 = vadd.f32 0.0, %v6247
    %v6249 = vpop.f32.mrb[0].mxu0
    %v6250 = vadd.f32 0.0, %v6249
    %6251 = vmatprep.mubr.bf16.mxu0 0
    %6252 = vmatmul.mubr.bf16.gmra.mrb[0].mxu0 %v6128
    %v6253 = vpop.f32.mrb[0].mxu0
    %v6254 = vadd.f32 0.0, %v6253
    %v6255 = vpop.f32.mrb[0].mxu0
    %v6256 = vadd.f32 0.0, %v6255
    %v6257 = vpop.f32.mrb[0].mxu0
    %v6258 = vadd.f32 0.0, %v6257
    %v6259 = vpop.f32.mrb[0].mxu0
    %v6260 = vadd.f32 0.0, %v6259
    %6261 = vmatprep.mubr.bf16.mxu0 0
    %6262 = vmatmul.mubr.bf16.gmra.mrb[0].mxu0 %v6137
    %v6263 = vpop.f32.mrb[0].mxu0
    %v6264 = vadd.f32 0.0, %v6263
    %v6265 = vpop.f32.mrb[0].mxu0
    %v6266 = vadd.f32 0.0, %v6265
    %v6267 = vpop.f32.mrb[0].mxu0
    %v6268 = vadd.f32 0.0, %v6267
    %v6269 = vpop.f32.mrb[0].mxu0
    %v6270 = vadd.f32 0.0, %v6269
    %6271 = vmatprep.mubr.bf16.mxu0 0
    %6272 = vmatmul.mubr.bf16.gmra.mrb[0].mxu0 %v6146
    %v6273 = vpop.f32.mrb[0].mxu0
    %v6274 = vadd.f32 0.0, %v6273
    %v6275 = vpop.f32.mrb[0].mxu0
    %v6276 = vadd.f32 0.0, %v6275
    %v6277 = vpop.f32.mrb[0].mxu0
    %v6278 = vadd.f32 0.0, %v6277
    %v6279 = vpop.f32.mrb[0].mxu0
    %v6280 = vadd.f32 0.0, %v6279
    %6281 = vmatprep.mubr.bf16.mxu0 0
    %6282 = vmatmul.mubr.bf16.gmra.mrb[0].mxu0 %v6154
    %v6283 = vpop.f32.mrb[0].mxu0
    %v6284 = vadd.f32 0.0, %v6283
    %v6285 = vpop.f32.mrb[0].mxu0
    %v6286 = vadd.f32 0.0, %v6285
    %v6287 = vpop.f32.mrb[0].mxu0
    %v6288 = vadd.f32 0.0, %v6287
    %v6289 = vpop.f32.mrb[0].mxu0
    %v6290 = vadd.f32 0.0, %v6289
    %6291 = vdwg.mxu0
    %v6292 = vadd.f32 %v5806, %v6214
    %v6293 = vadd.f32 %v5808, %v6216
    %v6294 = vadd.f32 %v5810, %v6218
    %v6295 = vadd.f32 %v5812, %v6220
    %v6296 = vadd.f32 %v5816, %v6224
    %v6297 = vadd.f32 %v5818, %v6226
    %v6298 = vadd.f32 %v5820, %v6228
    %v6299 = vadd.f32 %v5822, %v6230
    %v6300 = vadd.f32 %v5826, %v6234
    %v6301 = vadd.f32 %v5828, %v6236
    %v6302 = vadd.f32 %v5830, %v6238
    %v6303 = vadd.f32 %v5832, %v6240
    %v6304 = vadd.f32 %v5836, %v6244
    %v6305 = vadd.f32 %v5838, %v6246
    %v6306 = vadd.f32 %v5840, %v6248
    %v6307 = vadd.f32 %v5842, %v6250
    %v6308 = vadd.f32 %v5846, %v6254
    %v6309 = vadd.f32 %v5848, %v6256
    %v6310 = vadd.f32 %v5850, %v6258
    %v6311 = vadd.f32 %v5852, %v6260
    %v6312 = vadd.f32 %v5856, %v6264
    %v6313 = vadd.f32 %v5858, %v6266
    %v6314 = vadd.f32 %v5860, %v6268
    %v6315 = vadd.f32 %v5862, %v6270
    %v6316 = vadd.f32 %v5866, %v6274
    %v6317 = vadd.f32 %v5868, %v6276
    %v6318 = vadd.f32 %v5870, %v6278
    %v6319 = vadd.f32 %v5872, %v6280
    %v6320 = vadd.f32 %v5876, %v6284
    %v6321 = vadd.f32 %v5878, %v6286
    %v6322 = vadd.f32 %v5880, %v6288
    %v6323 = vadd.f32 %v5882, %v6290
    %v6324 = vrot.slane %v6071, 4
    %v6325 = vrot.slane %v6074, 5
    %v6326 = vor.u32 %v6324, %v6325
    %v6327 = vrot.slane %v6079, 4
    %v6328 = vrot.slane %v6082, 5
    %v6329 = vor.u32 %v6327, %v6328
    %v6330 = vsel %vm1552, %v6326, %v6329
    %v6331 = vrot.slane %v6088, 4
    %v6332 = vrot.slane %v6091, 5
    %v6333 = vor.u32 %v6331, %v6332
    %v6334 = vsel %vm1552, %v6329, %v6333
    %v6335 = vrot.slane %v6097, 4
    %v6336 = vrot.slane %v6100, 5
    %v6337 = vor.u32 %v6335, %v6336
    %v6338 = vsel %vm1552, %v6333, %v6337
    %v6339 = vrot.slane %v6105, 4
    %v6340 = vrot.slane %v6108, 5
    %v6341 = vor.u32 %v6339, %v6340
    %v6342 = vsel %vm1552, %v6337, %v6341
    %v6343 = vrot.slane %v6113, 4
    %v6344 = vrot.slane %v6116, 5
    %v6345 = vor.u32 %v6343, %v6344
    %v6346 = vrot.slane %v6121, 4
    %v6347 = vrot.slane %v6124, 5
    %v6348 = vor.u32 %v6346, %v6347
    %v6349 = vsel %vm1552, %v6345, %v6348
    %v6350 = vrot.slane %v6130, 4
    %v6351 = vrot.slane %v6133, 5
    %v6352 = vor.u32 %v6350, %v6351
    %v6353 = vsel %vm1552, %v6348, %v6352
    %v6354 = vrot.slane %v6139, 4
    %v6355 = vrot.slane %v6142, 5
    %v6356 = vor.u32 %v6354, %v6355
    %v6357 = vsel %vm1552, %v6352, %v6356
    %v6358 = vrot.slane %v6147, 4
    %v6359 = vrot.slane %v6150, 5
    %v6360 = vor.u32 %v6358, %v6359
    %v6361 = vsel %vm1552, %v6356, %v6360
    %s6370 = scalar_lea.vmem [#allocation6], 128
    %v6371 = vld [vmem:[%s6370] sm:$0xff]
    %v6372 = vld [vmem:[%s6370 + $0x8] sm:$0xff]
    %v6373 = vld [vmem:[%s6370 + $0x10] sm:$0xff]
    %v6374 = vld [vmem:[%s6370 + $0x18] sm:$0xff]
    %v6375 = vld [vmem:[%s6370 + $0x20] sm:$0xff]
    %v6376 = vld [vmem:[%s6370 + $0x28] sm:$0xff]
    %v6377 = vld [vmem:[%s6370 + $0x30] sm:$0xff]
    %v6378 = vld [vmem:[%s6370 + $0x38] sm:$0xff]
    %v6379 = vld [vmem:[%s6370 + $0x40] sm:$0xff]
    %v6380 = vld [vmem:[%s6370 + $0x48] sm:$0xff]
    %v6381 = vld [vmem:[%s6370 + $0x50] sm:$0xff]
    %v6382 = vld [vmem:[%s6370 + $0x58] sm:$0xff]
    %v6383 = vld [vmem:[%s6370 + $0x60] sm:$0xff]
    %v6384 = vld [vmem:[%s6370 + $0x68] sm:$0xff]
    %v6385 = vld [vmem:[%s6370 + $0x70] sm:$0xff]
    %v6386 = vld [vmem:[%s6370 + $0x78] sm:$0xff]
    %6387 = vmatprep.subr.bf16.mxu0 %v6372
    %6388 = vmatpush1.bf16.msra.mxu0 %v6371
    %6389 = vmatprep.subr.bf16.mxu0 %v6374
    %6390 = vmatpush1.bf16.msra.mxu0 %v6373
    %6391 = vmatprep.subr.bf16.mxu0 %v6376
    %6392 = vmatpush1.bf16.msra.mxu0 %v6375
    %6393 = vmatprep.subr.bf16.mxu0 %v6378
    %6394 = vmatpush1.bf16.msra.mxu0 %v6377
    %6395 = vmatprep.subr.bf16.mxu0 %v6380
    %6396 = vmatpush1.bf16.msra.mxu0 %v6379
    %6397 = vmatprep.subr.bf16.mxu0 %v6382
    %6398 = vmatpush1.bf16.msra.mxu0 %v6381
    %6399 = vmatprep.subr.bf16.mxu0 %v6384
    %6400 = vmatpush1.bf16.msra.mxu0 %v6383
    %6401 = vmatprep.subr.bf16.mxu0 %v6386
    %6402 = vmatpush1.bf16.msra.mxu0 %v6385
    %6403 = vmatprep.subr.bf16.mxu0 0
    %6404 = vmatpush1.bf16.msra.mxu0 0
    %6405 = vmatprep.subr.bf16.mxu0 0
    %6406 = vmatpush1.bf16.msra.mxu0 0
    %6407 = vmatprep.subr.bf16.mxu0 0
    %6408 = vmatpush1.bf16.msra.mxu0 0
    %6409 = vmatprep.subr.bf16.mxu0 0
    %6410 = vmatpush1.bf16.msra.mxu0 0
    %6411 = vmatprep.subr.bf16.mxu0 0
    %6412 = vmatpush1.bf16.msra.mxu0 0
    %6413 = vmatprep.subr.bf16.mxu0 0
    %6414 = vmatpush1.bf16.msra.mxu0 0
    %6415 = vmatprep.subr.bf16.mxu0 0
    %6416 = vmatpush1.bf16.msra.mxu0 0
    %6417 = vmatprep.subr.bf16.mxu0 0
    %6418 = vmatpush1.bf16.msra.mxu0 0
    %6419 = vmatprep.mubr.bf16.mxu0 0
    %6420 = vmatmul.mubr.bf16.gmra.mrb[0].mxu0 %v6330
    %v6421 = vpop.f32.mrb[0].mxu0
    %v6422 = vadd.f32 0.0, %v6421
    %v6423 = vpop.f32.mrb[0].mxu0
    %v6424 = vadd.f32 0.0, %v6423
    %v6425 = vpop.f32.mrb[0].mxu0
    %v6426 = vadd.f32 0.0, %v6425
    %v6427 = vpop.f32.mrb[0].mxu0
    %v6428 = vadd.f32 0.0, %v6427
    %6429 = vmatprep.mubr.bf16.mxu0 0
    %6430 = vmatmul.mubr.bf16.gmra.mrb[0].mxu0 %v6334
    %v6431 = vpop.f32.mrb[0].mxu0
    %v6432 = vadd.f32 0.0, %v6431
    %v6433 = vpop.f32.mrb[0].mxu0
    %v6434 = vadd.f32 0.0, %v6433
    %v6435 = vpop.f32.mrb[0].mxu0
    %v6436 = vadd.f32 0.0, %v6435
    %v6437 = vpop.f32.mrb[0].mxu0
    %v6438 = vadd.f32 0.0, %v6437
    %6439 = vmatprep.mubr.bf16.mxu0 0
    %6440 = vmatmul.mubr.bf16.gmra.mrb[0].mxu0 %v6338
    %v6441 = vpop.f32.mrb[0].mxu0
    %v6442 = vadd.f32 0.0, %v6441
    %v6443 = vpop.f32.mrb[0].mxu0
    %v6444 = vadd.f32 0.0, %v6443
    %v6445 = vpop.f32.mrb[0].mxu0
    %v6446 = vadd.f32 0.0, %v6445
    %v6447 = vpop.f32.mrb[0].mxu0
    %v6448 = vadd.f32 0.0, %v6447
    %6449 = vmatprep.mubr.bf16.mxu0 0
    %6450 = vmatmul.mubr.bf16.gmra.mrb[0].mxu0 %v6342
    %v6451 = vpop.f32.mrb[0].mxu0
    %v6452 = vadd.f32 0.0, %v6451
    %v6453 = vpop.f32.mrb[0].mxu0
    %v6454 = vadd.f32 0.0, %v6453
    %v6455 = vpop.f32.mrb[0].mxu0
    %v6456 = vadd.f32 0.0, %v6455
    %v6457 = vpop.f32.mrb[0].mxu0
    %v6458 = vadd.f32 0.0, %v6457
    %6459 = vmatprep.mubr.bf16.mxu0 0
    %6460 = vmatmul.mubr.bf16.gmra.mrb[0].mxu0 %v6349
    %v6461 = vpop.f32.mrb[0].mxu0
    %v6462 = vadd.f32 0.0, %v6461
    %v6463 = vpop.f32.mrb[0].mxu0
    %v6464 = vadd.f32 0.0, %v6463
    %v6465 = vpop.f32.mrb[0].mxu0
    %v6466 = vadd.f32 0.0, %v6465
    %v6467 = vpop.f32.mrb[0].mxu0
    %v6468 = vadd.f32 0.0, %v6467
    %6469 = vmatprep.mubr.bf16.mxu0 0
    %6470 = vmatmul.mubr.bf16.gmra.mrb[0].mxu0 %v6353
    %v6471 = vpop.f32.mrb[0].mxu0
    %v6472 = vadd.f32 0.0, %v6471
    %v6473 = vpop.f32.mrb[0].mxu0
    %v6474 = vadd.f32 0.0, %v6473
    %v6475 = vpop.f32.mrb[0].mxu0
    %v6476 = vadd.f32 0.0, %v6475
    %v6477 = vpop.f32.mrb[0].mxu0
    %v6478 = vadd.f32 0.0, %v6477
    %6479 = vmatprep.mubr.bf16.mxu0 0
    %6480 = vmatmul.mubr.bf16.gmra.mrb[0].mxu0 %v6357
    %v6481 = vpop.f32.mrb[0].mxu0
    %v6482 = vadd.f32 0.0, %v6481
    %v6483 = vpop.f32.mrb[0].mxu0
    %v6484 = vadd.f32 0.0, %v6483
    %v6485 = vpop.f32.mrb[0].mxu0
    %v6486 = vadd.f32 0.0, %v6485
    %v6487 = vpop.f32.mrb[0].mxu0
    %v6488 = vadd.f32 0.0, %v6487
    %6489 = vmatprep.mubr.bf16.mxu0 0
    %6490 = vmatmul.mubr.bf16.gmra.mrb[0].mxu0 %v6361
    %v6491 = vpop.f32.mrb[0].mxu0
    %v6492 = vadd.f32 0.0, %v6491
    %v6493 = vpop.f32.mrb[0].mxu0
    %v6494 = vadd.f32 0.0, %v6493
    %v6495 = vpop.f32.mrb[0].mxu0
    %v6496 = vadd.f32 0.0, %v6495
    %v6497 = vpop.f32.mrb[0].mxu0
    %v6498 = vadd.f32 0.0, %v6497
    %6499 = vdwg.mxu0
    %v6500 = vadd.f32 %v6292, %v6422
    %v6501 = vadd.f32 %v6293, %v6424
    %v6502 = vadd.f32 %v6294, %v6426
    %v6503 = vadd.f32 %v6295, %v6428
    %v6504 = vadd.f32 %v6296, %v6432
    %v6505 = vadd.f32 %v6297, %v6434
    %v6506 = vadd.f32 %v6298, %v6436
    %v6507 = vadd.f32 %v6299, %v6438
    %v6508 = vadd.f32 %v6300, %v6442
    %v6509 = vadd.f32 %v6301, %v6444
    %v6510 = vadd.f32 %v6302, %v6446
    %v6511 = vadd.f32 %v6303, %v6448
    %v6512 = vadd.f32 %v6304, %v6452
    %v6513 = vadd.f32 %v6305, %v6454
    %v6514 = vadd.f32 %v6306, %v6456
    %v6515 = vadd.f32 %v6307, %v6458
    %v6516 = vadd.f32 %v6308, %v6462
    %v6517 = vadd.f32 %v6309, %v6464
    %v6518 = vadd.f32 %v6310, %v6466
    %v6519 = vadd.f32 %v6311, %v6468
    %v6520 = vadd.f32 %v6312, %v6472
    %v6521 = vadd.f32 %v6313, %v6474
    %v6522 = vadd.f32 %v6314, %v6476
    %v6523 = vadd.f32 %v6315, %v6478
    %v6524 = vadd.f32 %v6316, %v6482
    %v6525 = vadd.f32 %v6317, %v6484
    %v6526 = vadd.f32 %v6318, %v6486
    %v6527 = vadd.f32 %v6319, %v6488
    %v6528 = vadd.f32 %v6320, %v6492
    %v6529 = vadd.f32 %v6321, %v6494
    %v6530 = vadd.f32 %v6322, %v6496
    %v6531 = vadd.f32 %v6323, %v6498
    %v6532 = vld [vmem:[#allocation33] sm:$0x3]
    %v6534 = vlaneseq
    %v6535 = vshrl.u32 %v6534, 7
    %v6536 = vsub.s32 0, %v6535
    %v6537 = vrot.slane %v6532, %v6536
    %v6538 = vlaneseq
    %v6539 = vshrl.u32 %v6538, 7
    %v6540 = vsub.s32 1, %v6539
    %v6541 = vrot.slane %v6532, %v6540
    %v6544 = vmul.f32 %v6500, %v6537
    %v6545 = vmul.f32 %v6501, %v6541
    %v6546 = vmul.f32 %v6502, %v6537
    %v6547 = vmul.f32 %v6503, %v6541
    %v6548 = vmul.f32 %v6504, %v6537
    %v6549 = vmul.f32 %v6505, %v6541
    %v6550 = vmul.f32 %v6506, %v6537
    %v6551 = vmul.f32 %v6507, %v6541
    %v6552 = vmul.f32 %v6508, %v6537
    %v6553 = vmul.f32 %v6509, %v6541
    %v6554 = vmul.f32 %v6510, %v6537
    %v6555 = vmul.f32 %v6511, %v6541
    %v6556 = vmul.f32 %v6512, %v6537
    %v6557 = vmul.f32 %v6513, %v6541
    %v6558 = vmul.f32 %v6514, %v6537
    %v6559 = vmul.f32 %v6515, %v6541
    %v6560 = vmul.f32 %v6516, %v6537
    %v6561 = vmul.f32 %v6517, %v6541
    %v6562 = vmul.f32 %v6518, %v6537
    %v6563 = vmul.f32 %v6519, %v6541
    %v6564 = vmul.f32 %v6520, %v6537
    %v6565 = vmul.f32 %v6521, %v6541
    %v6566 = vmul.f32 %v6522, %v6537
    %v6567 = vmul.f32 %v6523, %v6541
    %v6568 = vmul.f32 %v6524, %v6537
    %v6569 = vmul.f32 %v6525, %v6541
    %v6570 = vmul.f32 %v6526, %v6537
    %v6571 = vmul.f32 %v6527, %v6541
    %v6572 = vmul.f32 %v6528, %v6537
    %v6573 = vmul.f32 %v6529, %v6541
    %v6574 = vmul.f32 %v6530, %v6537
    %v6575 = vmul.f32 %v6531, %v6541
    %v6576 = vld [vmem:[#allocation34] sm:$0x3]
    %v6578 = vlaneseq
    %v6579 = vshrl.u32 %v6578, 7
    %v6580 = vsub.s32 0, %v6579
    %v6581 = vrot.slane %v6576, %v6580
    %v6582 = vlaneseq
    %v6583 = vshrl.u32 %v6582, 7
    %v6584 = vsub.s32 1, %v6583
    %v6585 = vrot.slane %v6576, %v6584
    %v6588 = vadd.f32 %v6544, %v6581
    %v6589 = vadd.f32 %v6545, %v6585
    %v6590 = vadd.f32 %v6546, %v6581
    %v6591 = vadd.f32 %v6547, %v6585
    %v6592 = vadd.f32 %v6548, %v6581
    %v6593 = vadd.f32 %v6549, %v6585
    %v6594 = vadd.f32 %v6550, %v6581
    %v6595 = vadd.f32 %v6551, %v6585
    %v6596 = vadd.f32 %v6552, %v6581
    %v6597 = vadd.f32 %v6553, %v6585
    %v6598 = vadd.f32 %v6554, %v6581
    %v6599 = vadd.f32 %v6555, %v6585
    %v6600 = vadd.f32 %v6556, %v6581
    %v6601 = vadd.f32 %v6557, %v6585
    %v6602 = vadd.f32 %v6558, %v6581
    %v6603 = vadd.f32 %v6559, %v6585
    %v6604 = vadd.f32 %v6560, %v6581
    %v6605 = vadd.f32 %v6561, %v6585
    %v6606 = vadd.f32 %v6562, %v6581
    %v6607 = vadd.f32 %v6563, %v6585
    %v6608 = vadd.f32 %v6564, %v6581
    %v6609 = vadd.f32 %v6565, %v6585
    %v6610 = vadd.f32 %v6566, %v6581
    %v6611 = vadd.f32 %v6567, %v6585
    %v6612 = vadd.f32 %v6568, %v6581
    %v6613 = vadd.f32 %v6569, %v6585
    %v6614 = vadd.f32 %v6570, %v6581
    %v6615 = vadd.f32 %v6571, %v6585
    %v6616 = vadd.f32 %v6572, %v6581
    %v6617 = vadd.f32 %v6573, %v6585
    %v6618 = vadd.f32 %v6574, %v6581
    %v6619 = vadd.f32 %v6575, %v6585
    %v6620 = vmax.f32 %v6588, 0.0
    %v6621 = vmax.f32 %v6589, 0.0
    %v6622 = vmax.f32 %v6590, 0.0
    %v6623 = vmax.f32 %v6591, 0.0
    %v6624 = vmax.f32 %v6592, 0.0
    %v6625 = vmax.f32 %v6593, 0.0
    %v6626 = vmax.f32 %v6594, 0.0
    %v6627 = vmax.f32 %v6595, 0.0
    %v6628 = vmax.f32 %v6596, 0.0
    %v6629 = vmax.f32 %v6597, 0.0
    %v6630 = vmax.f32 %v6598, 0.0
    %v6631 = vmax.f32 %v6599, 0.0
    %v6632 = vmax.f32 %v6600, 0.0
    %v6633 = vmax.f32 %v6601, 0.0
    %v6634 = vmax.f32 %v6602, 0.0
    %v6635 = vmax.f32 %v6603, 0.0
    %v6636 = vmax.f32 %v6604, 0.0
    %v6637 = vmax.f32 %v6605, 0.0
    %v6638 = vmax.f32 %v6606, 0.0
    %v6639 = vmax.f32 %v6607, 0.0
    %v6640 = vmax.f32 %v6608, 0.0
    %v6641 = vmax.f32 %v6609, 0.0
    %v6642 = vmax.f32 %v6610, 0.0
    %v6643 = vmax.f32 %v6611, 0.0
    %v6644 = vmax.f32 %v6612, 0.0
    %v6645 = vmax.f32 %v6613, 0.0
    %v6646 = vmax.f32 %v6614, 0.0
    %v6647 = vmax.f32 %v6615, 0.0
    %v6648 = vmax.f32 %v6616, 0.0
    %v6649 = vmax.f32 %v6617, 0.0
    %v6650 = vmax.f32 %v6618, 0.0
    %v6651 = vmax.f32 %v6619, 0.0
    %v6652 = vpack.c.bf16 %v6622, %v6620
    %v6653 = vpack.c.bf16 %v6623, %v6621
    %v6654 = vpack.c.bf16 %v6626, %v6624
    %v6655 = vpack.c.bf16 %v6627, %v6625
    %v6656 = vpack.c.bf16 %v6630, %v6628
    %v6657 = vpack.c.bf16 %v6631, %v6629
    %v6658 = vpack.c.bf16 %v6634, %v6632
    %v6659 = vpack.c.bf16 %v6635, %v6633
    %v6660 = vpack.c.bf16 %v6638, %v6636
    %v6661 = vpack.c.bf16 %v6639, %v6637
    %v6662 = vpack.c.bf16 %v6642, %v6640
    %v6663 = vpack.c.bf16 %v6643, %v6641
    %v6664 = vpack.c.bf16 %v6646, %v6644
    %v6665 = vpack.c.bf16 %v6647, %v6645
    %v6666 = vpack.c.bf16 %v6650, %v6648
    %v6667 = vpack.c.bf16 %v6651, %v6649
    %s6668 = scalar_lea.vmem [#allocation7], 256
    %v6669 = vld [vmem:[%s6668] sm:$0xff]
    %v6670 = vld [vmem:[%s6668 + $0x8] sm:$0xff]
    %v6671 = vld [vmem:[%s6668 + $0x10] sm:$0xff]
    %v6672 = vld [vmem:[%s6668 + $0x18] sm:$0xff]
    %v6673 = vld [vmem:[%s6668 + $0x20] sm:$0xff]
    %v6674 = vld [vmem:[%s6668 + $0x28] sm:$0xff]
    %v6675 = vld [vmem:[%s6668 + $0x30] sm:$0xff]
    %v6676 = vld [vmem:[%s6668 + $0x38] sm:$0xff]
    %v6677 = vld [vmem:[%s6668 + $0x40] sm:$0xff]
    %v6678 = vld [vmem:[%s6668 + $0x48] sm:$0xff]
    %v6679 = vld [vmem:[%s6668 + $0x50] sm:$0xff]
    %v6680 = vld [vmem:[%s6668 + $0x58] sm:$0xff]
    %v6681 = vld [vmem:[%s6668 + $0x60] sm:$0xff]
    %v6682 = vld [vmem:[%s6668 + $0x68] sm:$0xff]
    %v6683 = vld [vmem:[%s6668 + $0x70] sm:$0xff]
    %v6684 = vld [vmem:[%s6668 + $0x78] sm:$0xff]
    %v6685 = vld [vmem:[%s6668 + $0x80] sm:$0xff]
    %v6686 = vld [vmem:[%s6668 + $0x88] sm:$0xff]
    %v6687 = vld [vmem:[%s6668 + $0x90] sm:$0xff]
    %v6688 = vld [vmem:[%s6668 + $0x98] sm:$0xff]
    %v6689 = vld [vmem:[%s6668 + $0xa0] sm:$0xff]
    %v6690 = vld [vmem:[%s6668 + $0xa8] sm:$0xff]
    %v6691 = vld [vmem:[%s6668 + $0xb0] sm:$0xff]
    %v6692 = vld [vmem:[%s6668 + $0xb8] sm:$0xff]
    %v6693 = vld [vmem:[%s6668 + $0xc0] sm:$0xff]
    %v6694 = vld [vmem:[%s6668 + $0xc8] sm:$0xff]
    %v6695 = vld [vmem:[%s6668 + $0xd0] sm:$0xff]
    %v6696 = vld [vmem:[%s6668 + $0xd8] sm:$0xff]
    %v6697 = vld [vmem:[%s6668 + $0xe0] sm:$0xff]
    %v6698 = vld [vmem:[%s6668 + $0xe8] sm:$0xff]
    %v6699 = vld [vmem:[%s6668 + $0xf0] sm:$0xff]
    %v6700 = vld [vmem:[%s6668 + $0xf8] sm:$0xff]
    %v6717 = vrot.slane %v6652, 4
    %v6718 = vrot.slane %v6653, 4
    %v6719 = vrot.slane %v6654, 4
    %v6720 = vsel %vm823, %v6717, %v6719
    %v6721 = vrot.slane %v6655, 4
    %v6722 = vsel %vm823, %v6718, %v6721
    %v6723 = vrot.slane %v6656, 4
    %v6724 = vsel %vm823, %v6719, %v6723
    %v6725 = vrot.slane %v6657, 4
    %v6726 = vsel %vm823, %v6721, %v6725
    %v6727 = vrot.slane %v6658, 4
    %v6728 = vsel %vm823, %v6723, %v6727
    %v6729 = vrot.slane %v6659, 4
    %v6730 = vsel %vm823, %v6725, %v6729
    %v6731 = vrot.slane %v6660, 4
    %v6732 = vrot.slane %v6661, 4
    %v6733 = vrot.slane %v6662, 4
    %v6734 = vsel %vm823, %v6731, %v6733
    %v6735 = vrot.slane %v6663, 4
    %v6736 = vsel %vm823, %v6732, %v6735
    %v6737 = vrot.slane %v6664, 4
    %v6738 = vsel %vm823, %v6733, %v6737
    %v6739 = vrot.slane %v6665, 4
    %v6740 = vsel %vm823, %v6735, %v6739
    %v6741 = vrot.slane %v6666, 4
    %v6742 = vsel %vm823, %v6737, %v6741
    %v6743 = vrot.slane %v6667, 4
    %v6744 = vsel %vm823, %v6739, %v6743
    %v6746 = vsel %vm838, 0, %v6717
    %v6748 = vsel %vm838, 0, %v6718
    %v6750 = vsel %vm838, 0, %v6731
    %v6752 = vsel %vm838, 0, %v6732
    %v6754 = vsel %vm838, %v6727, 0
    %v6756 = vsel %vm838, %v6729, 0
    %v6758 = vsel %vm838, %v6741, 0
    %v6760 = vsel %vm838, %v6743, 0
    %v6761 = vshrl.u32 %v6746, 16
    %v6763 = vrot.slane %v6761, 3
    %v6764 = vshll.u32 %v6746, 16
    %v6766 = vrot.slane %v6764, 4
    %v6767 = vor.u32 %v6763, %v6766
    %v6769 = vshrl.u32 %v6720, 16
    %v6771 = vrot.slane %v6769, 3
    %v6772 = vshll.u32 %v6720, 16
    %v6774 = vrot.slane %v6772, 4
    %v6775 = vor.u32 %v6771, %v6774
    %v6776 = vsel %vm1327, %v6767, %v6775
    %v6777 = vshrl.u32 %v6748, 16
    %v6779 = vrot.slane %v6777, 3
    %v6780 = vshll.u32 %v6748, 16
    %v6782 = vrot.slane %v6780, 4
    %v6783 = vor.u32 %v6779, %v6782
    %v6785 = vshrl.u32 %v6722, 16
    %v6787 = vrot.slane %v6785, 3
    %v6788 = vshll.u32 %v6722, 16
    %v6790 = vrot.slane %v6788, 4
    %v6791 = vor.u32 %v6787, %v6790
    %v6792 = vsel %vm1327, %v6783, %v6791
    %v6794 = vshrl.u32 %v6724, 16
    %v6796 = vrot.slane %v6794, 3
    %v6797 = vshll.u32 %v6724, 16
    %v6799 = vrot.slane %v6797, 4
    %v6800 = vor.u32 %v6796, %v6799
    %v6801 = vsel %vm1327, %v6775, %v6800
    %v6803 = vshrl.u32 %v6726, 16
    %v6805 = vrot.slane %v6803, 3
    %v6806 = vshll.u32 %v6726, 16
    %v6808 = vrot.slane %v6806, 4
    %v6809 = vor.u32 %v6805, %v6808
    %v6810 = vsel %vm1327, %v6791, %v6809
    %v6812 = vshrl.u32 %v6728, 16
    %v6814 = vrot.slane %v6812, 3
    %v6815 = vshll.u32 %v6728, 16
    %v6817 = vrot.slane %v6815, 4
    %v6818 = vor.u32 %v6814, %v6817
    %v6819 = vsel %vm1327, %v6800, %v6818
    %v6821 = vshrl.u32 %v6730, 16
    %v6823 = vrot.slane %v6821, 3
    %v6824 = vshll.u32 %v6730, 16
    %v6826 = vrot.slane %v6824, 4
    %v6827 = vor.u32 %v6823, %v6826
    %v6828 = vsel %vm1327, %v6809, %v6827
    %v6829 = vshrl.u32 %v6754, 16
    %v6831 = vrot.slane %v6829, 3
    %v6832 = vshll.u32 %v6754, 16
    %v6834 = vrot.slane %v6832, 4
    %v6835 = vor.u32 %v6831, %v6834
    %v6836 = vsel %vm1327, %v6818, %v6835
    %v6837 = vshrl.u32 %v6756, 16
    %v6839 = vrot.slane %v6837, 3
    %v6840 = vshll.u32 %v6756, 16
    %v6842 = vrot.slane %v6840, 4
    %v6843 = vor.u32 %v6839, %v6842
    %v6844 = vsel %vm1327, %v6827, %v6843
    %v6845 = vshrl.u32 %v6750, 16
    %v6847 = vrot.slane %v6845, 3
    %v6848 = vshll.u32 %v6750, 16
    %v6850 = vrot.slane %v6848, 4
    %v6851 = vor.u32 %v6847, %v6850
    %v6853 = vshrl.u32 %v6734, 16
    %v6855 = vrot.slane %v6853, 3
    %v6856 = vshll.u32 %v6734, 16
    %v6858 = vrot.slane %v6856, 4
    %v6859 = vor.u32 %v6855, %v6858
    %v6860 = vsel %vm1327, %v6851, %v6859
    %v6861 = vshrl.u32 %v6752, 16
    %v6863 = vrot.slane %v6861, 3
    %v6864 = vshll.u32 %v6752, 16
    %v6866 = vrot.slane %v6864, 4
    %v6867 = vor.u32 %v6863, %v6866
    %v6869 = vshrl.u32 %v6736, 16
    %v6871 = vrot.slane %v6869, 3
    %v6872 = vshll.u32 %v6736, 16
    %v6874 = vrot.slane %v6872, 4
    %v6875 = vor.u32 %v6871, %v6874
    %v6876 = vsel %vm1327, %v6867, %v6875
    %v6878 = vshrl.u32 %v6738, 16
    %v6880 = vrot.slane %v6878, 3
    %v6881 = vshll.u32 %v6738, 16
    %v6883 = vrot.slane %v6881, 4
    %v6884 = vor.u32 %v6880, %v6883
    %v6885 = vsel %vm1327, %v6859, %v6884
    %v6887 = vshrl.u32 %v6740, 16
    %v6889 = vrot.slane %v6887, 3
    %v6890 = vshll.u32 %v6740, 16
    %v6892 = vrot.slane %v6890, 4
    %v6893 = vor.u32 %v6889, %v6892
    %v6894 = vsel %vm1327, %v6875, %v6893
    %v6896 = vshrl.u32 %v6742, 16
    %v6898 = vrot.slane %v6896, 3
    %v6899 = vshll.u32 %v6742, 16
    %v6901 = vrot.slane %v6899, 4
    %v6902 = vor.u32 %v6898, %v6901
    %v6903 = vsel %vm1327, %v6884, %v6902
    %v6905 = vshrl.u32 %v6744, 16
    %v6907 = vrot.slane %v6905, 3
    %v6908 = vshll.u32 %v6744, 16
    %v6910 = vrot.slane %v6908, 4
    %v6911 = vor.u32 %v6907, %v6910
    %v6912 = vsel %vm1327, %v6893, %v6911
    %v6913 = vshrl.u32 %v6758, 16
    %v6915 = vrot.slane %v6913, 3
    %v6916 = vshll.u32 %v6758, 16
    %v6918 = vrot.slane %v6916, 4
    %v6919 = vor.u32 %v6915, %v6918
    %v6920 = vsel %vm1327, %v6902, %v6919
    %v6921 = vshrl.u32 %v6760, 16
    %v6923 = vrot.slane %v6921, 3
    %v6924 = vshll.u32 %v6760, 16
    %v6926 = vrot.slane %v6924, 4
    %v6927 = vor.u32 %v6923, %v6926
    %v6928 = vsel %vm1327, %v6911, %v6927
    %v6945 = vld [vmem:[#allocation7] sm:$0xff]
    %v6946 = vld [vmem:[#allocation7 + $0x8] sm:$0xff]
    %v6947 = vld [vmem:[#allocation7 + $0x10] sm:$0xff]
    %v6948 = vld [vmem:[#allocation7 + $0x18] sm:$0xff]
    %v6949 = vld [vmem:[#allocation7 + $0x20] sm:$0xff]
    %v6950 = vld [vmem:[#allocation7 + $0x28] sm:$0xff]
    %v6951 = vld [vmem:[#allocation7 + $0x30] sm:$0xff]
    %v6952 = vld [vmem:[#allocation7 + $0x38] sm:$0xff]
    %v6953 = vld [vmem:[#allocation7 + $0x40] sm:$0xff]
    %v6954 = vld [vmem:[#allocation7 + $0x48] sm:$0xff]
    %v6955 = vld [vmem:[#allocation7 + $0x50] sm:$0xff]
    %v6956 = vld [vmem:[#allocation7 + $0x58] sm:$0xff]
    %v6957 = vld [vmem:[#allocation7 + $0x60] sm:$0xff]
    %v6958 = vld [vmem:[#allocation7 + $0x68] sm:$0xff]
    %v6959 = vld [vmem:[#allocation7 + $0x70] sm:$0xff]
    %v6960 = vld [vmem:[#allocation7 + $0x78] sm:$0xff]
    %v6961 = vld [vmem:[#allocation7 + $0x80] sm:$0xff]
    %v6962 = vld [vmem:[#allocation7 + $0x88] sm:$0xff]
    %v6963 = vld [vmem:[#allocation7 + $0x90] sm:$0xff]
    %v6964 = vld [vmem:[#allocation7 + $0x98] sm:$0xff]
    %v6965 = vld [vmem:[#allocation7 + $0xa0] sm:$0xff]
    %v6966 = vld [vmem:[#allocation7 + $0xa8] sm:$0xff]
    %v6967 = vld [vmem:[#allocation7 + $0xb0] sm:$0xff]
    %v6968 = vld [vmem:[#allocation7 + $0xb8] sm:$0xff]
    %v6969 = vld [vmem:[#allocation7 + $0xc0] sm:$0xff]
    %v6970 = vld [vmem:[#allocation7 + $0xc8] sm:$0xff]
    %v6971 = vld [vmem:[#allocation7 + $0xd0] sm:$0xff]
    %v6972 = vld [vmem:[#allocation7 + $0xd8] sm:$0xff]
    %v6973 = vld [vmem:[#allocation7 + $0xe0] sm:$0xff]
    %v6974 = vld [vmem:[#allocation7 + $0xe8] sm:$0xff]
    %v6975 = vld [vmem:[#allocation7 + $0xf0] sm:$0xff]
    %v6976 = vld [vmem:[#allocation7 + $0xf8] sm:$0xff]
    %6977 = vmatprep.subr.bf16.mxu0 %v6946
    %6978 = vmatpush1.bf16.msra.mxu0 %v6945
    %6979 = vmatprep.subr.bf16.mxu0 %v6948
    %6980 = vmatpush1.bf16.msra.mxu0 %v6947
    %6981 = vmatprep.subr.bf16.mxu0 %v6950
    %6982 = vmatpush1.bf16.msra.mxu0 %v6949
    %6983 = vmatprep.subr.bf16.mxu0 %v6952
    %6984 = vmatpush1.bf16.msra.mxu0 %v6951
    %6985 = vmatprep.subr.bf16.mxu0 %v6954
    %6986 = vmatpush1.bf16.msra.mxu0 %v6953
    %6987 = vmatprep.subr.bf16.mxu0 %v6956
    %6988 = vmatpush1.bf16.msra.mxu0 %v6955
    %6989 = vmatprep.subr.bf16.mxu0 %v6958
    %6990 = vmatpush1.bf16.msra.mxu0 %v6957
    %6991 = vmatprep.subr.bf16.mxu0 %v6960
    %6992 = vmatpush1.bf16.msra.mxu0 %v6959
    %6993 = vmatprep.subr.bf16.mxu0 %v6962
    %6994 = vmatpush1.bf16.msra.mxu0 %v6961
    %6995 = vmatprep.subr.bf16.mxu0 %v6964
    %6996 = vmatpush1.bf16.msra.mxu0 %v6963
    %6997 = vmatprep.subr.bf16.mxu0 %v6966
    %6998 = vmatpush1.bf16.msra.mxu0 %v6965
    %6999 = vmatprep.subr.bf16.mxu0 %v6968
    %7000 = vmatpush1.bf16.msra.mxu0 %v6967
    %7001 = vmatprep.subr.bf16.mxu0 %v6970
    %7002 = vmatpush1.bf16.msra.mxu0 %v6969
    %7003 = vmatprep.subr.bf16.mxu0 %v6972
    %7004 = vmatpush1.bf16.msra.mxu0 %v6971
    %7005 = vmatprep.subr.bf16.mxu0 %v6974
    %7006 = vmatpush1.bf16.msra.mxu0 %v6973
    %7007 = vmatprep.subr.bf16.mxu0 %v6976
    %7008 = vmatpush1.bf16.msra.mxu0 %v6975
    %7009 = vmatprep.mubr.bf16.mxu0 %v6792
    %7010 = vmatmul.mubr.bf16.gmra.mrb[0].mxu0 %v6776
    %v7011 = vpop.f32.mrb[0].mxu0
    %v7012 = vadd.f32 0.0, %v7011
    %v7013 = vpop.f32.mrb[0].mxu0
    %v7014 = vadd.f32 0.0, %v7013
    %v7015 = vpop.f32.mrb[0].mxu0
    %v7016 = vadd.f32 0.0, %v7015
    %v7017 = vpop.f32.mrb[0].mxu0
    %v7018 = vadd.f32 0.0, %v7017
    %7019 = vmatprep.mubr.bf16.mxu0 %v6810
    %7020 = vmatmul.mubr.bf16.gmra.mrb[0].mxu0 %v6801
    %v7021 = vpop.f32.mrb[0].mxu0
    %v7022 = vadd.f32 0.0, %v7021
    %v7023 = vpop.f32.mrb[0].mxu0
    %v7024 = vadd.f32 0.0, %v7023
    %v7025 = vpop.f32.mrb[0].mxu0
    %v7026 = vadd.f32 0.0, %v7025
    %v7027 = vpop.f32.mrb[0].mxu0
    %v7028 = vadd.f32 0.0, %v7027
    %7029 = vmatprep.mubr.bf16.mxu0 %v6828
    %7030 = vmatmul.mubr.bf16.gmra.mrb[0].mxu0 %v6819
    %v7031 = vpop.f32.mrb[0].mxu0
    %v7032 = vadd.f32 0.0, %v7031
    %v7033 = vpop.f32.mrb[0].mxu0
    %v7034 = vadd.f32 0.0, %v7033
    %v7035 = vpop.f32.mrb[0].mxu0
    %v7036 = vadd.f32 0.0, %v7035
    %v7037 = vpop.f32.mrb[0].mxu0
    %v7038 = vadd.f32 0.0, %v7037
    %7039 = vmatprep.mubr.bf16.mxu0 %v6844
    %7040 = vmatmul.mubr.bf16.gmra.mrb[0].mxu0 %v6836
    %v7041 = vpop.f32.mrb[0].mxu0
    %v7042 = vadd.f32 0.0, %v7041
    %v7043 = vpop.f32.mrb[0].mxu0
    %v7044 = vadd.f32 0.0, %v7043
    %v7045 = vpop.f32.mrb[0].mxu0
    %v7046 = vadd.f32 0.0, %v7045
    %v7047 = vpop.f32.mrb[0].mxu0
    %v7048 = vadd.f32 0.0, %v7047
    %7049 = vmatprep.mubr.bf16.mxu0 %v6876
    %7050 = vmatmul.mubr.bf16.gmra.mrb[0].mxu0 %v6860
    %v7051 = vpop.f32.mrb[0].mxu0
    %v7052 = vadd.f32 0.0, %v7051
    %v7053 = vpop.f32.mrb[0].mxu0
    %v7054 = vadd.f32 0.0, %v7053
    %v7055 = vpop.f32.mrb[0].mxu0
    %v7056 = vadd.f32 0.0, %v7055
    %v7057 = vpop.f32.mrb[0].mxu0
    %v7058 = vadd.f32 0.0, %v7057
    %7059 = vmatprep.mubr.bf16.mxu0 %v6894
    %7060 = vmatmul.mubr.bf16.gmra.mrb[0].mxu0 %v6885
    %v7061 = vpop.f32.mrb[0].mxu0
    %v7062 = vadd.f32 0.0, %v7061
    %v7063 = vpop.f32.mrb[0].mxu0
    %v7064 = vadd.f32 0.0, %v7063
    %v7065 = vpop.f32.mrb[0].mxu0
    %v7066 = vadd.f32 0.0, %v7065
    %v7067 = vpop.f32.mrb[0].mxu0
    %v7068 = vadd.f32 0.0, %v7067
    %7069 = vmatprep.mubr.bf16.mxu0 %v6912
    %7070 = vmatmul.mubr.bf16.gmra.mrb[0].mxu0 %v6903
    %v7071 = vpop.f32.mrb[0].mxu0
    %v7072 = vadd.f32 0.0, %v7071
    %v7073 = vpop.f32.mrb[0].mxu0
    %v7074 = vadd.f32 0.0, %v7073
    %v7075 = vpop.f32.mrb[0].mxu0
    %v7076 = vadd.f32 0.0, %v7075
    %v7077 = vpop.f32.mrb[0].mxu0
    %v7078 = vadd.f32 0.0, %v7077
    %7079 = vmatprep.mubr.bf16.mxu0 %v6928
    %7080 = vmatmul.mubr.bf16.gmra.mrb[0].mxu0 %v6920
    %v7081 = vpop.f32.mrb[0].mxu0
    %v7082 = vadd.f32 0.0, %v7081
    %v7083 = vpop.f32.mrb[0].mxu0
    %v7084 = vadd.f32 0.0, %v7083
    %v7085 = vpop.f32.mrb[0].mxu0
    %v7086 = vadd.f32 0.0, %v7085
    %v7087 = vpop.f32.mrb[0].mxu0
    %v7088 = vadd.f32 0.0, %v7087
    %7089 = vdwg.mxu0
    %7090 = vmatprep.subr.bf16.mxu0 %v6670
    %7091 = vmatpush1.bf16.msra.mxu0 %v6669
    %7092 = vmatprep.subr.bf16.mxu0 %v6672
    %7093 = vmatpush1.bf16.msra.mxu0 %v6671
    %7094 = vmatprep.subr.bf16.mxu0 %v6674
    %7095 = vmatpush1.bf16.msra.mxu0 %v6673
    %7096 = vmatprep.subr.bf16.mxu0 %v6676
    %7097 = vmatpush1.bf16.msra.mxu0 %v6675
    %7098 = vmatprep.subr.bf16.mxu0 %v6678
    %7099 = vmatpush1.bf16.msra.mxu0 %v6677
    %7100 = vmatprep.subr.bf16.mxu0 %v6680
    %7101 = vmatpush1.bf16.msra.mxu0 %v6679
    %7102 = vmatprep.subr.bf16.mxu0 %v6682
    %7103 = vmatpush1.bf16.msra.mxu0 %v6681
    %7104 = vmatprep.subr.bf16.mxu0 %v6684
    %7105 = vmatpush1.bf16.msra.mxu0 %v6683
    %7106 = vmatprep.subr.bf16.mxu0 %v6686
    %7107 = vmatpush1.bf16.msra.mxu0 %v6685
    %7108 = vmatprep.subr.bf16.mxu0 %v6688
    %7109 = vmatpush1.bf16.msra.mxu0 %v6687
    %7110 = vmatprep.subr.bf16.mxu0 %v6690
    %7111 = vmatpush1.bf16.msra.mxu0 %v6689
    %7112 = vmatprep.subr.bf16.mxu0 %v6692
    %7113 = vmatpush1.bf16.msra.mxu0 %v6691
    %7114 = vmatprep.subr.bf16.mxu0 %v6694
    %7115 = vmatpush1.bf16.msra.mxu0 %v6693
    %7116 = vmatprep.subr.bf16.mxu0 %v6696
    %7117 = vmatpush1.bf16.msra.mxu0 %v6695
    %7118 = vmatprep.subr.bf16.mxu0 %v6698
    %7119 = vmatpush1.bf16.msra.mxu0 %v6697
    %7120 = vmatprep.subr.bf16.mxu0 %v6700
    %7121 = vmatpush1.bf16.msra.mxu0 %v6699
    %7122 = vmatprep.mubr.bf16.mxu0 %v6653
    %7123 = vmatmul.mubr.bf16.gmra.mrb[0].mxu0 %v6652
    %v7124 = vpop.f32.mrb[0].mxu0
    %v7125 = vadd.f32 %v7012, %v7124
    %v7126 = vpop.f32.mrb[0].mxu0
    %v7127 = vadd.f32 %v7014, %v7126
    %v7128 = vpop.f32.mrb[0].mxu0
    %v7129 = vadd.f32 %v7016, %v7128
    %v7130 = vpop.f32.mrb[0].mxu0
    %v7131 = vadd.f32 %v7018, %v7130
    %7132 = vmatprep.mubr.bf16.mxu0 %v6655
    %7133 = vmatmul.mubr.bf16.gmra.mrb[0].mxu0 %v6654
    %v7134 = vpop.f32.mrb[0].mxu0
    %v7135 = vadd.f32 %v7022, %v7134
    %v7136 = vpop.f32.mrb[0].mxu0
    %v7137 = vadd.f32 %v7024, %v7136
    %v7138 = vpop.f32.mrb[0].mxu0
    %v7139 = vadd.f32 %v7026, %v7138
    %v7140 = vpop.f32.mrb[0].mxu0
    %v7141 = vadd.f32 %v7028, %v7140
    %7142 = vmatprep.mubr.bf16.mxu0 %v6657
    %7143 = vmatmul.mubr.bf16.gmra.mrb[0].mxu0 %v6656
    %v7144 = vpop.f32.mrb[0].mxu0
    %v7145 = vadd.f32 %v7032, %v7144
    %v7146 = vpop.f32.mrb[0].mxu0
    %v7147 = vadd.f32 %v7034, %v7146
    %v7148 = vpop.f32.mrb[0].mxu0
    %v7149 = vadd.f32 %v7036, %v7148
    %v7150 = vpop.f32.mrb[0].mxu0
    %v7151 = vadd.f32 %v7038, %v7150
    %7152 = vmatprep.mubr.bf16.mxu0 %v6659
    %7153 = vmatmul.mubr.bf16.gmra.mrb[0].mxu0 %v6658
    %v7154 = vpop.f32.mrb[0].mxu0
    %v7155 = vadd.f32 %v7042, %v7154
    %v7156 = vpop.f32.mrb[0].mxu0
    %v7157 = vadd.f32 %v7044, %v7156
    %v7158 = vpop.f32.mrb[0].mxu0
    %v7159 = vadd.f32 %v7046, %v7158
    %v7160 = vpop.f32.mrb[0].mxu0
    %v7161 = vadd.f32 %v7048, %v7160
    %7162 = vmatprep.mubr.bf16.mxu0 %v6661
    %7163 = vmatmul.mubr.bf16.gmra.mrb[0].mxu0 %v6660
    %v7164 = vpop.f32.mrb[0].mxu0
    %v7165 = vadd.f32 %v7052, %v7164
    %v7166 = vpop.f32.mrb[0].mxu0
    %v7167 = vadd.f32 %v7054, %v7166
    %v7168 = vpop.f32.mrb[0].mxu0
    %v7169 = vadd.f32 %v7056, %v7168
    %v7170 = vpop.f32.mrb[0].mxu0
    %v7171 = vadd.f32 %v7058, %v7170
    %7172 = vmatprep.mubr.bf16.mxu0 %v6663
    %7173 = vmatmul.mubr.bf16.gmra.mrb[0].mxu0 %v6662
    %v7174 = vpop.f32.mrb[0].mxu0
    %v7175 = vadd.f32 %v7062, %v7174
    %v7176 = vpop.f32.mrb[0].mxu0
    %v7177 = vadd.f32 %v7064, %v7176
    %v7178 = vpop.f32.mrb[0].mxu0
    %v7179 = vadd.f32 %v7066, %v7178
    %v7180 = vpop.f32.mrb[0].mxu0
    %v7181 = vadd.f32 %v7068, %v7180
    %7182 = vmatprep.mubr.bf16.mxu0 %v6665
    %7183 = vmatmul.mubr.bf16.gmra.mrb[0].mxu0 %v6664
    %v7184 = vpop.f32.mrb[0].mxu0
    %v7185 = vadd.f32 %v7072, %v7184
    %v7186 = vpop.f32.mrb[0].mxu0
    %v7187 = vadd.f32 %v7074, %v7186
    %v7188 = vpop.f32.mrb[0].mxu0
    %v7189 = vadd.f32 %v7076, %v7188
    %v7190 = vpop.f32.mrb[0].mxu0
    %v7191 = vadd.f32 %v7078, %v7190
    %7192 = vmatprep.mubr.bf16.mxu0 %v6667
    %7193 = vmatmul.mubr.bf16.gmra.mrb[0].mxu0 %v6666
    %v7194 = vpop.f32.mrb[0].mxu0
    %v7195 = vadd.f32 %v7082, %v7194
    %v7196 = vpop.f32.mrb[0].mxu0
    %v7197 = vadd.f32 %v7084, %v7196
    %v7198 = vpop.f32.mrb[0].mxu0
    %v7199 = vadd.f32 %v7086, %v7198
    %v7200 = vpop.f32.mrb[0].mxu0
    %v7201 = vadd.f32 %v7088, %v7200
    %7202 = vdwg.mxu0
    %v7203 = vrot.slane %v6761, 4
    %v7204 = vrot.slane %v6764, 5
    %v7205 = vor.u32 %v7203, %v7204
    %v7206 = vrot.slane %v6769, 4
    %v7207 = vrot.slane %v6772, 5
    %v7208 = vor.u32 %v7206, %v7207
    %v7209 = vsel %vm1552, %v7205, %v7208
    %v7210 = vrot.slane %v6777, 4
    %v7211 = vrot.slane %v6780, 5
    %v7212 = vor.u32 %v7210, %v7211
    %v7213 = vrot.slane %v6785, 4
    %v7214 = vrot.slane %v6788, 5
    %v7215 = vor.u32 %v7213, %v7214
    %v7216 = vsel %vm1552, %v7212, %v7215
    %v7217 = vrot.slane %v6794, 4
    %v7218 = vrot.slane %v6797, 5
    %v7219 = vor.u32 %v7217, %v7218
    %v7220 = vsel %vm1552, %v7208, %v7219
    %v7221 = vrot.slane %v6803, 4
    %v7222 = vrot.slane %v6806, 5
    %v7223 = vor.u32 %v7221, %v7222
    %v7224 = vsel %vm1552, %v7215, %v7223
    %v7225 = vrot.slane %v6812, 4
    %v7226 = vrot.slane %v6815, 5
    %v7227 = vor.u32 %v7225, %v7226
    %v7228 = vsel %vm1552, %v7219, %v7227
    %v7229 = vrot.slane %v6821, 4
    %v7230 = vrot.slane %v6824, 5
    %v7231 = vor.u32 %v7229, %v7230
    %v7232 = vsel %vm1552, %v7223, %v7231
    %v7233 = vrot.slane %v6829, 4
    %v7234 = vrot.slane %v6832, 5
    %v7235 = vor.u32 %v7233, %v7234
    %v7236 = vsel %vm1552, %v7227, %v7235
    %v7237 = vrot.slane %v6837, 4
    %v7238 = vrot.slane %v6840, 5
    %v7239 = vor.u32 %v7237, %v7238
    %v7240 = vsel %vm1552, %v7231, %v7239
    %v7241 = vrot.slane %v6845, 4
    %v7242 = vrot.slane %v6848, 5
    %v7243 = vor.u32 %v7241, %v7242
    %v7244 = vrot.slane %v6853, 4
    %v7245 = vrot.slane %v6856, 5
    %v7246 = vor.u32 %v7244, %v7245
    %v7247 = vsel %vm1552, %v7243, %v7246
    %v7248 = vrot.slane %v6861, 4
    %v7249 = vrot.slane %v6864, 5
    %v7250 = vor.u32 %v7248, %v7249
    %v7251 = vrot.slane %v6869, 4
    %v7252 = vrot.slane %v6872, 5
    %v7253 = vor.u32 %v7251, %v7252
    %v7254 = vsel %vm1552, %v7250, %v7253
    %v7255 = vrot.slane %v6878, 4
    %v7256 = vrot.slane %v6881, 5
    %v7257 = vor.u32 %v7255, %v7256
    %v7258 = vsel %vm1552, %v7246, %v7257
    %v7259 = vrot.slane %v6887, 4
    %v7260 = vrot.slane %v6890, 5
    %v7261 = vor.u32 %v7259, %v7260
    %v7262 = vsel %vm1552, %v7253, %v7261
    %v7263 = vrot.slane %v6896, 4
    %v7264 = vrot.slane %v6899, 5
    %v7265 = vor.u32 %v7263, %v7264
    %v7266 = vsel %vm1552, %v7257, %v7265
    %v7267 = vrot.slane %v6905, 4
    %v7268 = vrot.slane %v6908, 5
    %v7269 = vor.u32 %v7267, %v7268
    %v7270 = vsel %vm1552, %v7261, %v7269
    %v7271 = vrot.slane %v6913, 4
    %v7272 = vrot.slane %v6916, 5
    %v7273 = vor.u32 %v7271, %v7272
    %v7274 = vsel %vm1552, %v7265, %v7273
    %v7275 = vrot.slane %v6921, 4
    %v7276 = vrot.slane %v6924, 5
    %v7277 = vor.u32 %v7275, %v7276
    %v7278 = vsel %vm1552, %v7269, %v7277
    %s7295 = scalar_lea.vmem [#allocation7], 512
    %v7296 = vld [vmem:[%s7295] sm:$0xff]
    %v7297 = vld [vmem:[%s7295 + $0x8] sm:$0xff]
    %v7298 = vld [vmem:[%s7295 + $0x10] sm:$0xff]
    %v7299 = vld [vmem:[%s7295 + $0x18] sm:$0xff]
    %v7300 = vld [vmem:[%s7295 + $0x20] sm:$0xff]
    %v7301 = vld [vmem:[%s7295 + $0x28] sm:$0xff]
    %v7302 = vld [vmem:[%s7295 + $0x30] sm:$0xff]
    %v7303 = vld [vmem:[%s7295 + $0x38] sm:$0xff]
    %v7304 = vld [vmem:[%s7295 + $0x40] sm:$0xff]
    %v7305 = vld [vmem:[%s7295 + $0x48] sm:$0xff]
    %v7306 = vld [vmem:[%s7295 + $0x50] sm:$0xff]
    %v7307 = vld [vmem:[%s7295 + $0x58] sm:$0xff]
    %v7308 = vld [vmem:[%s7295 + $0x60] sm:$0xff]
    %v7309 = vld [vmem:[%s7295 + $0x68] sm:$0xff]
    %v7310 = vld [vmem:[%s7295 + $0x70] sm:$0xff]
    %v7311 = vld [vmem:[%s7295 + $0x78] sm:$0xff]
    %v7312 = vld [vmem:[%s7295 + $0x80] sm:$0xff]
    %v7313 = vld [vmem:[%s7295 + $0x88] sm:$0xff]
    %v7314 = vld [vmem:[%s7295 + $0x90] sm:$0xff]
    %v7315 = vld [vmem:[%s7295 + $0x98] sm:$0xff]
    %v7316 = vld [vmem:[%s7295 + $0xa0] sm:$0xff]
    %v7317 = vld [vmem:[%s7295 + $0xa8] sm:$0xff]
    %v7318 = vld [vmem:[%s7295 + $0xb0] sm:$0xff]
    %v7319 = vld [vmem:[%s7295 + $0xb8] sm:$0xff]
    %v7320 = vld [vmem:[%s7295 + $0xc0] sm:$0xff]
    %v7321 = vld [vmem:[%s7295 + $0xc8] sm:$0xff]
    %v7322 = vld [vmem:[%s7295 + $0xd0] sm:$0xff]
    %v7323 = vld [vmem:[%s7295 + $0xd8] sm:$0xff]
    %v7324 = vld [vmem:[%s7295 + $0xe0] sm:$0xff]
    %v7325 = vld [vmem:[%s7295 + $0xe8] sm:$0xff]
    %v7326 = vld [vmem:[%s7295 + $0xf0] sm:$0xff]
    %v7327 = vld [vmem:[%s7295 + $0xf8] sm:$0xff]
    %7328 = vmatprep.subr.bf16.mxu0 %v7297
    %7329 = vmatpush1.bf16.msra.mxu0 %v7296
    %7330 = vmatprep.subr.bf16.mxu0 %v7299
    %7331 = vmatpush1.bf16.msra.mxu0 %v7298
    %7332 = vmatprep.subr.bf16.mxu0 %v7301
    %7333 = vmatpush1.bf16.msra.mxu0 %v7300
    %7334 = vmatprep.subr.bf16.mxu0 %v7303
    %7335 = vmatpush1.bf16.msra.mxu0 %v7302
    %7336 = vmatprep.subr.bf16.mxu0 %v7305
    %7337 = vmatpush1.bf16.msra.mxu0 %v7304
    %7338 = vmatprep.subr.bf16.mxu0 %v7307
    %7339 = vmatpush1.bf16.msra.mxu0 %v7306
    %7340 = vmatprep.subr.bf16.mxu0 %v7309
    %7341 = vmatpush1.bf16.msra.mxu0 %v7308
    %7342 = vmatprep.subr.bf16.mxu0 %v7311
    %7343 = vmatpush1.bf16.msra.mxu0 %v7310
    %7344 = vmatprep.subr.bf16.mxu0 %v7313
    %7345 = vmatpush1.bf16.msra.mxu0 %v7312
    %7346 = vmatprep.subr.bf16.mxu0 %v7315
    %7347 = vmatpush1.bf16.msra.mxu0 %v7314
    %7348 = vmatprep.subr.bf16.mxu0 %v7317
    %7349 = vmatpush1.bf16.msra.mxu0 %v7316
    %7350 = vmatprep.subr.bf16.mxu0 %v7319
    %7351 = vmatpush1.bf16.msra.mxu0 %v7318
    %7352 = vmatprep.subr.bf16.mxu0 %v7321
    %7353 = vmatpush1.bf16.msra.mxu0 %v7320
    %7354 = vmatprep.subr.bf16.mxu0 %v7323
    %7355 = vmatpush1.bf16.msra.mxu0 %v7322
    %7356 = vmatprep.subr.bf16.mxu0 %v7325
    %7357 = vmatpush1.bf16.msra.mxu0 %v7324
    %7358 = vmatprep.subr.bf16.mxu0 %v7327
    %7359 = vmatpush1.bf16.msra.mxu0 %v7326
    %7360 = vmatprep.mubr.bf16.mxu0 %v7216
    %7361 = vmatmul.mubr.bf16.gmra.mrb[0].mxu0 %v7209
    %v7362 = vpop.f32.mrb[0].mxu0
    %v7363 = vadd.f32 0.0, %v7362
    %v7364 = vpop.f32.mrb[0].mxu0
    %v7365 = vadd.f32 0.0, %v7364
    %v7366 = vpop.f32.mrb[0].mxu0
    %v7367 = vadd.f32 0.0, %v7366
    %v7368 = vpop.f32.mrb[0].mxu0
    %v7369 = vadd.f32 0.0, %v7368
    %7370 = vmatprep.mubr.bf16.mxu0 %v7224
    %7371 = vmatmul.mubr.bf16.gmra.mrb[0].mxu0 %v7220
    %v7372 = vpop.f32.mrb[0].mxu0
    %v7373 = vadd.f32 0.0, %v7372
    %v7374 = vpop.f32.mrb[0].mxu0
    %v7375 = vadd.f32 0.0, %v7374
    %v7376 = vpop.f32.mrb[0].mxu0
    %v7377 = vadd.f32 0.0, %v7376
    %v7378 = vpop.f32.mrb[0].mxu0
    %v7379 = vadd.f32 0.0, %v7378
    %7380 = vmatprep.mubr.bf16.mxu0 %v7232
    %7381 = vmatmul.mubr.bf16.gmra.mrb[0].mxu0 %v7228
    %v7382 = vpop.f32.mrb[0].mxu0
    %v7383 = vadd.f32 0.0, %v7382
    %v7384 = vpop.f32.mrb[0].mxu0
    %v7385 = vadd.f32 0.0, %v7384
    %v7386 = vpop.f32.mrb[0].mxu0
    %v7387 = vadd.f32 0.0, %v7386
    %v7388 = vpop.f32.mrb[0].mxu0
    %v7389 = vadd.f32 0.0, %v7388
    %7390 = vmatprep.mubr.bf16.mxu0 %v7240
    %7391 = vmatmul.mubr.bf16.gmra.mrb[0].mxu0 %v7236
    %v7392 = vpop.f32.mrb[0].mxu0
    %v7393 = vadd.f32 0.0, %v7392
    %v7394 = vpop.f32.mrb[0].mxu0
    %v7395 = vadd.f32 0.0, %v7394
    %v7396 = vpop.f32.mrb[0].mxu0
    %v7397 = vadd.f32 0.0, %v7396
    %v7398 = vpop.f32.mrb[0].mxu0
    %v7399 = vadd.f32 0.0, %v7398
    %7400 = vmatprep.mubr.bf16.mxu0 %v7254
    %7401 = vmatmul.mubr.bf16.gmra.mrb[0].mxu0 %v7247
    %v7402 = vpop.f32.mrb[0].mxu0
    %v7403 = vadd.f32 0.0, %v7402
    %v7404 = vpop.f32.mrb[0].mxu0
    %v7405 = vadd.f32 0.0, %v7404
    %v7406 = vpop.f32.mrb[0].mxu0
    %v7407 = vadd.f32 0.0, %v7406
    %v7408 = vpop.f32.mrb[0].mxu0
    %v7409 = vadd.f32 0.0, %v7408
    %7410 = vmatprep.mubr.bf16.mxu0 %v7262
    %7411 = vmatmul.mubr.bf16.gmra.mrb[0].mxu0 %v7258
    %v7412 = vpop.f32.mrb[0].mxu0
    %v7413 = vadd.f32 0.0, %v7412
    %v7414 = vpop.f32.mrb[0].mxu0
    %v7415 = vadd.f32 0.0, %v7414
    %v7416 = vpop.f32.mrb[0].mxu0
    %v7417 = vadd.f32 0.0, %v7416
    %v7418 = vpop.f32.mrb[0].mxu0
    %v7419 = vadd.f32 0.0, %v7418
    %7420 = vmatprep.mubr.bf16.mxu0 %v7270
    %7421 = vmatmul.mubr.bf16.gmra.mrb[0].mxu0 %v7266
    %v7422 = vpop.f32.mrb[0].mxu0
    %v7423 = vadd.f32 0.0, %v7422
    %v7424 = vpop.f32.mrb[0].mxu0
    %v7425 = vadd.f32 0.0, %v7424
    %v7426 = vpop.f32.mrb[0].mxu0
    %v7427 = vadd.f32 0.0, %v7426
    %v7428 = vpop.f32.mrb[0].mxu0
    %v7429 = vadd.f32 0.0, %v7428
    %7430 = vmatprep.mubr.bf16.mxu0 %v7278
    %7431 = vmatmul.mubr.bf16.gmra.mrb[0].mxu0 %v7274
    %v7432 = vpop.f32.mrb[0].mxu0
    %v7433 = vadd.f32 0.0, %v7432
    %v7434 = vpop.f32.mrb[0].mxu0
    %v7435 = vadd.f32 0.0, %v7434
    %v7436 = vpop.f32.mrb[0].mxu0
    %v7437 = vadd.f32 0.0, %v7436
    %v7438 = vpop.f32.mrb[0].mxu0
    %v7439 = vadd.f32 0.0, %v7438
    %7440 = vdwg.mxu0
    %v7441 = vadd.f32 %v7125, %v7363
    %v7442 = vadd.f32 %v7127, %v7365
    %v7443 = vadd.f32 %v7129, %v7367
    %v7444 = vadd.f32 %v7131, %v7369
    %v7445 = vadd.f32 %v7135, %v7373
    %v7446 = vadd.f32 %v7137, %v7375
    %v7447 = vadd.f32 %v7139, %v7377
    %v7448 = vadd.f32 %v7141, %v7379
    %v7449 = vadd.f32 %v7145, %v7383
    %v7450 = vadd.f32 %v7147, %v7385
    %v7451 = vadd.f32 %v7149, %v7387
    %v7452 = vadd.f32 %v7151, %v7389
    %v7453 = vadd.f32 %v7155, %v7393
    %v7454 = vadd.f32 %v7157, %v7395
    %v7455 = vadd.f32 %v7159, %v7397
    %v7456 = vadd.f32 %v7161, %v7399
    %v7457 = vadd.f32 %v7165, %v7403
    %v7458 = vadd.f32 %v7167, %v7405
    %v7459 = vadd.f32 %v7169, %v7407
    %v7460 = vadd.f32 %v7171, %v7409
    %v7461 = vadd.f32 %v7175, %v7413
    %v7462 = vadd.f32 %v7177, %v7415
    %v7463 = vadd.f32 %v7179, %v7417
    %v7464 = vadd.f32 %v7181, %v7419
    %v7465 = vadd.f32 %v7185, %v7423
    %v7466 = vadd.f32 %v7187, %v7425
    %v7467 = vadd.f32 %v7189, %v7427
    %v7468 = vadd.f32 %v7191, %v7429
    %v7469 = vadd.f32 %v7195, %v7433
    %v7470 = vadd.f32 %v7197, %v7435
    %v7471 = vadd.f32 %v7199, %v7437
    %v7472 = vadd.f32 %v7201, %v7439
    %v7473 = vld [vmem:[#allocation36] sm:$0x3]
    %v7475 = vlaneseq
    %v7476 = vshrl.u32 %v7475, 7
    %v7477 = vsub.s32 0, %v7476
    %v7478 = vrot.slane %v7473, %v7477
    %v7479 = vlaneseq
    %v7480 = vshrl.u32 %v7479, 7
    %v7481 = vsub.s32 1, %v7480
    %v7482 = vrot.slane %v7473, %v7481
    %v7485 = vmul.f32 %v7441, %v7478
    %v7486 = vmul.f32 %v7442, %v7482
    %v7487 = vmul.f32 %v7443, %v7478
    %v7488 = vmul.f32 %v7444, %v7482
    %v7489 = vmul.f32 %v7445, %v7478
    %v7490 = vmul.f32 %v7446, %v7482
    %v7491 = vmul.f32 %v7447, %v7478
    %v7492 = vmul.f32 %v7448, %v7482
    %v7493 = vmul.f32 %v7449, %v7478
    %v7494 = vmul.f32 %v7450, %v7482
    %v7495 = vmul.f32 %v7451, %v7478
    %v7496 = vmul.f32 %v7452, %v7482
    %v7497 = vmul.f32 %v7453, %v7478
    %v7498 = vmul.f32 %v7454, %v7482
    %v7499 = vmul.f32 %v7455, %v7478
    %v7500 = vmul.f32 %v7456, %v7482
    %v7501 = vmul.f32 %v7457, %v7478
    %v7502 = vmul.f32 %v7458, %v7482
    %v7503 = vmul.f32 %v7459, %v7478
    %v7504 = vmul.f32 %v7460, %v7482
    %v7505 = vmul.f32 %v7461, %v7478
    %v7506 = vmul.f32 %v7462, %v7482
    %v7507 = vmul.f32 %v7463, %v7478
    %v7508 = vmul.f32 %v7464, %v7482
    %v7509 = vmul.f32 %v7465, %v7478
    %v7510 = vmul.f32 %v7466, %v7482
    %v7511 = vmul.f32 %v7467, %v7478
    %v7512 = vmul.f32 %v7468, %v7482
    %v7513 = vmul.f32 %v7469, %v7478
    %v7514 = vmul.f32 %v7470, %v7482
    %v7515 = vmul.f32 %v7471, %v7478
    %v7516 = vmul.f32 %v7472, %v7482
    %v7517 = vld [vmem:[#allocation37] sm:$0x3]
    %v7519 = vlaneseq
    %v7520 = vshrl.u32 %v7519, 7
    %v7521 = vsub.s32 0, %v7520
    %v7522 = vrot.slane %v7517, %v7521
    %v7523 = vlaneseq
    %v7524 = vshrl.u32 %v7523, 7
    %v7525 = vsub.s32 1, %v7524
    %v7526 = vrot.slane %v7517, %v7525
    %v7529 = vadd.f32 %v7485, %v7522
    %v7530 = vadd.f32 %v7486, %v7526
    %v7531 = vadd.f32 %v7487, %v7522
    %v7532 = vadd.f32 %v7488, %v7526
    %v7533 = vadd.f32 %v7489, %v7522
    %v7534 = vadd.f32 %v7490, %v7526
    %v7535 = vadd.f32 %v7491, %v7522
    %v7536 = vadd.f32 %v7492, %v7526
    %v7537 = vadd.f32 %v7493, %v7522
    %v7538 = vadd.f32 %v7494, %v7526
    %v7539 = vadd.f32 %v7495, %v7522
    %v7540 = vadd.f32 %v7496, %v7526
    %v7541 = vadd.f32 %v7497, %v7522
    %v7542 = vadd.f32 %v7498, %v7526
    %v7543 = vadd.f32 %v7499, %v7522
    %v7544 = vadd.f32 %v7500, %v7526
    %v7545 = vadd.f32 %v7501, %v7522
    %v7546 = vadd.f32 %v7502, %v7526
    %v7547 = vadd.f32 %v7503, %v7522
    %v7548 = vadd.f32 %v7504, %v7526
    %v7549 = vadd.f32 %v7505, %v7522
    %v7550 = vadd.f32 %v7506, %v7526
    %v7551 = vadd.f32 %v7507, %v7522
    %v7552 = vadd.f32 %v7508, %v7526
    %v7553 = vadd.f32 %v7509, %v7522
    %v7554 = vadd.f32 %v7510, %v7526
    %v7555 = vadd.f32 %v7511, %v7522
    %v7556 = vadd.f32 %v7512, %v7526
    %v7557 = vadd.f32 %v7513, %v7522
    %v7558 = vadd.f32 %v7514, %v7526
    %v7559 = vadd.f32 %v7515, %v7522
    %v7560 = vadd.f32 %v7516, %v7526
    %v7561 = vadd.f32 %v7529, %v6009
    %v7562 = vadd.f32 %v7530, %v6010
    %v7563 = vadd.f32 %v7531, %v6011
    %v7564 = vadd.f32 %v7532, %v6012
    %v7565 = vadd.f32 %v7533, %v6013
    %v7566 = vadd.f32 %v7534, %v6014
    %v7567 = vadd.f32 %v7535, %v6015
    %v7568 = vadd.f32 %v7536, %v6016
    %v7569 = vadd.f32 %v7537, %v6017
    %v7570 = vadd.f32 %v7538, %v6018
    %v7571 = vadd.f32 %v7539, %v6019
    %v7572 = vadd.f32 %v7540, %v6020
    %v7573 = vadd.f32 %v7541, %v6021
    %v7574 = vadd.f32 %v7542, %v6022
    %v7575 = vadd.f32 %v7543, %v6023
    %v7576 = vadd.f32 %v7544, %v6024
    %v7577 = vadd.f32 %v7545, %v6025
    %v7578 = vadd.f32 %v7546, %v6026
    %v7579 = vadd.f32 %v7547, %v6027
    %v7580 = vadd.f32 %v7548, %v6028
    %v7581 = vadd.f32 %v7549, %v6029
    %v7582 = vadd.f32 %v7550, %v6030
    %v7583 = vadd.f32 %v7551, %v6031
    %v7584 = vadd.f32 %v7552, %v6032
    %v7585 = vadd.f32 %v7553, %v6033
    %v7586 = vadd.f32 %v7554, %v6034
    %v7587 = vadd.f32 %v7555, %v6035
    %v7588 = vadd.f32 %v7556, %v6036
    %v7589 = vadd.f32 %v7557, %v6037
    %v7590 = vadd.f32 %v7558, %v6038
    %v7591 = vadd.f32 %v7559, %v6039
    %v7592 = vadd.f32 %v7560, %v6040
    %v7593 = vmax.f32 %v7561, 0.0
    %v7594 = vmax.f32 %v7562, 0.0
    %v7595 = vmax.f32 %v7563, 0.0
    %v7596 = vmax.f32 %v7564, 0.0
    %v7597 = vmax.f32 %v7565, 0.0
    %v7598 = vmax.f32 %v7566, 0.0
    %v7599 = vmax.f32 %v7567, 0.0
    %v7600 = vmax.f32 %v7568, 0.0
    %v7601 = vmax.f32 %v7569, 0.0
    %v7602 = vmax.f32 %v7570, 0.0
    %v7603 = vmax.f32 %v7571, 0.0
    %v7604 = vmax.f32 %v7572, 0.0
    %v7605 = vmax.f32 %v7573, 0.0
    %v7606 = vmax.f32 %v7574, 0.0
    %v7607 = vmax.f32 %v7575, 0.0
    %v7608 = vmax.f32 %v7576, 0.0
    %v7609 = vmax.f32 %v7577, 0.0
    %v7610 = vmax.f32 %v7578, 0.0
    %v7611 = vmax.f32 %v7579, 0.0
    %v7612 = vmax.f32 %v7580, 0.0
    %v7613 = vmax.f32 %v7581, 0.0
    %v7614 = vmax.f32 %v7582, 0.0
    %v7615 = vmax.f32 %v7583, 0.0
    %v7616 = vmax.f32 %v7584, 0.0
    %v7617 = vmax.f32 %v7585, 0.0
    %v7618 = vmax.f32 %v7586, 0.0
    %v7619 = vmax.f32 %v7587, 0.0
    %v7620 = vmax.f32 %v7588, 0.0
    %v7621 = vmax.f32 %v7589, 0.0
    %v7622 = vmax.f32 %v7590, 0.0
    %v7623 = vmax.f32 %v7591, 0.0
    %v7624 = vmax.f32 %v7592, 0.0
    %v7657 = vcombine.low %v7593, %v7594
    %v7658 = vcombine.high %v7593, %v7594
    %v7659 = vcombine.low %v7595, %v7596
    %v7660 = vcombine.high %v7595, %v7596
    %v7661 = vcombine.low %v7597, %v7598
    %v7662 = vcombine.high %v7597, %v7598
    %v7663 = vcombine.low %v7599, %v7600
    %v7664 = vcombine.high %v7599, %v7600
    %v7665 = vcombine.low %v7601, %v7602
    %v7666 = vcombine.high %v7601, %v7602
    %v7667 = vcombine.low %v7603, %v7604
    %v7668 = vcombine.high %v7603, %v7604
    %v7669 = vcombine.low %v7605, %v7606
    %v7670 = vcombine.high %v7605, %v7606
    %v7671 = vcombine.low %v7607, %v7608
    %v7672 = vcombine.high %v7607, %v7608
    %v7673 = vcombine.low %v7609, %v7610
    %v7674 = vcombine.high %v7609, %v7610
    %v7675 = vcombine.low %v7611, %v7612
    %v7676 = vcombine.high %v7611, %v7612
    %v7677 = vcombine.low %v7613, %v7614
    %v7678 = vcombine.high %v7613, %v7614
    %v7679 = vcombine.low %v7615, %v7616
    %v7680 = vcombine.high %v7615, %v7616
    %v7681 = vcombine.low %v7617, %v7618
    %v7682 = vcombine.high %v7617, %v7618
    %v7683 = vcombine.low %v7619, %v7620
    %v7684 = vcombine.high %v7619, %v7620
    %v7685 = vcombine.low %v7621, %v7622
    %v7686 = vcombine.high %v7621, %v7622
    %v7687 = vcombine.low %v7623, %v7624
    %v7688 = vcombine.high %v7623, %v7624
    %v7721 = vcombine.high %v7657, %v7657
    %v7722 = vcombine.high %v7658, %v7658
    %v7723 = vcombine.high %v7659, %v7659
    %v7724 = vcombine.high %v7660, %v7660
    %v7725 = vcombine.high %v7661, %v7661
    %v7726 = vcombine.high %v7662, %v7662
    %v7727 = vcombine.high %v7663, %v7663
    %v7728 = vcombine.high %v7664, %v7664
    %v7729 = vcombine.high %v7665, %v7665
    %v7730 = vcombine.high %v7666, %v7666
    %v7731 = vcombine.high %v7667, %v7667
    %v7732 = vcombine.high %v7668, %v7668
    %v7733 = vcombine.high %v7669, %v7669
    %v7734 = vcombine.high %v7670, %v7670
    %v7735 = vcombine.high %v7671, %v7671
    %v7736 = vcombine.high %v7672, %v7672
    %v7737 = vcombine.high %v7673, %v7673
    %v7738 = vcombine.high %v7674, %v7674
    %v7739 = vcombine.high %v7675, %v7675
    %v7740 = vcombine.high %v7676, %v7676
    %v7741 = vcombine.high %v7677, %v7677
    %v7742 = vcombine.high %v7678, %v7678
    %v7743 = vcombine.high %v7679, %v7679
    %v7744 = vcombine.high %v7680, %v7680
    %v7745 = vcombine.high %v7681, %v7681
    %v7746 = vcombine.high %v7682, %v7682
    %v7747 = vcombine.high %v7683, %v7683
    %v7748 = vcombine.high %v7684, %v7684
    %v7749 = vcombine.high %v7685, %v7685
    %v7750 = vcombine.high %v7686, %v7686
    %v7751 = vcombine.high %v7687, %v7687
    %v7752 = vcombine.high %v7688, %v7688
    %v7785 = vsel %vm838, %v7657, -inf
    %v7786 = vrot.slane %v7785, 4
    %v7787 = vmax.f32 %v7785, %v7786
    %v7788 = vrot.slane %v7787, 2
    %v7789 = vmax.f32 %v7787, %v7788
    %v7790 = vrot.slane %v7789, 1
    %v7791 = vmax.f32 %v7789, %v7790
    %v7792 = vsel %vm838, %v7721, -inf
    %v7793 = vrot.slane %v7792, 4
    %v7794 = vmax.f32 %v7792, %v7793
    %v7795 = vrot.slane %v7794, 2
    %v7796 = vmax.f32 %v7794, %v7795
    %v7797 = vrot.slane %v7796, 1
    %v7798 = vmax.f32 %v7796, %v7797
    %v7799 = vsel %vm838, %v7658, -inf
    %v7800 = vrot.slane %v7799, 4
    %v7801 = vmax.f32 %v7799, %v7800
    %v7802 = vrot.slane %v7801, 2
    %v7803 = vmax.f32 %v7801, %v7802
    %v7804 = vrot.slane %v7803, 1
    %v7805 = vmax.f32 %v7803, %v7804
    %v7806 = vsel %vm838, %v7722, -inf
    %v7807 = vrot.slane %v7806, 4
    %v7808 = vmax.f32 %v7806, %v7807
    %v7809 = vrot.slane %v7808, 2
    %v7810 = vmax.f32 %v7808, %v7809
    %v7811 = vrot.slane %v7810, 1
    %v7812 = vmax.f32 %v7810, %v7811
    %v7813 = vsel %vm838, %v7659, -inf
    %v7814 = vrot.slane %v7813, 4
    %v7815 = vmax.f32 %v7813, %v7814
    %v7816 = vrot.slane %v7815, 2
    %v7817 = vmax.f32 %v7815, %v7816
    %v7818 = vrot.slane %v7817, 1
    %v7819 = vmax.f32 %v7817, %v7818
    %v7820 = vsel %vm838, %v7723, -inf
    %v7821 = vrot.slane %v7820, 4
    %v7822 = vmax.f32 %v7820, %v7821
    %v7823 = vrot.slane %v7822, 2
    %v7824 = vmax.f32 %v7822, %v7823
    %v7825 = vrot.slane %v7824, 1
    %v7826 = vmax.f32 %v7824, %v7825
    %v7827 = vsel %vm838, %v7660, -inf
    %v7828 = vrot.slane %v7827, 4
    %v7829 = vmax.f32 %v7827, %v7828
    %v7830 = vrot.slane %v7829, 2
    %v7831 = vmax.f32 %v7829, %v7830
    %v7832 = vrot.slane %v7831, 1
    %v7833 = vmax.f32 %v7831, %v7832
    %v7834 = vsel %vm838, %v7724, -inf
    %v7835 = vrot.slane %v7834, 4
    %v7836 = vmax.f32 %v7834, %v7835
    %v7837 = vrot.slane %v7836, 2
    %v7838 = vmax.f32 %v7836, %v7837
    %v7839 = vrot.slane %v7838, 1
    %v7840 = vmax.f32 %v7838, %v7839
    %v7841 = vsel %vm838, %v7661, -inf
    %v7842 = vrot.slane %v7841, 4
    %v7843 = vmax.f32 %v7841, %v7842
    %v7844 = vrot.slane %v7843, 2
    %v7845 = vmax.f32 %v7843, %v7844
    %v7846 = vrot.slane %v7845, 1
    %v7847 = vmax.f32 %v7845, %v7846
    %v7848 = vsel %vm838, %v7725, -inf
    %v7849 = vrot.slane %v7848, 4
    %v7850 = vmax.f32 %v7848, %v7849
    %v7851 = vrot.slane %v7850, 2
    %v7852 = vmax.f32 %v7850, %v7851
    %v7853 = vrot.slane %v7852, 1
    %v7854 = vmax.f32 %v7852, %v7853
    %v7855 = vsel %vm838, %v7662, -inf
    %v7856 = vrot.slane %v7855, 4
    %v7857 = vmax.f32 %v7855, %v7856
    %v7858 = vrot.slane %v7857, 2
    %v7859 = vmax.f32 %v7857, %v7858
    %v7860 = vrot.slane %v7859, 1
    %v7861 = vmax.f32 %v7859, %v7860
    %v7862 = vsel %vm838, %v7726, -inf
    %v7863 = vrot.slane %v7862, 4
    %v7864 = vmax.f32 %v7862, %v7863
    %v7865 = vrot.slane %v7864, 2
    %v7866 = vmax.f32 %v7864, %v7865
    %v7867 = vrot.slane %v7866, 1
    %v7868 = vmax.f32 %v7866, %v7867
    %v7869 = vsel %vm838, %v7663, -inf
    %v7870 = vrot.slane %v7869, 4
    %v7871 = vmax.f32 %v7869, %v7870
    %v7872 = vrot.slane %v7871, 2
    %v7873 = vmax.f32 %v7871, %v7872
    %v7874 = vrot.slane %v7873, 1
    %v7875 = vmax.f32 %v7873, %v7874
    %v7876 = vsel %vm838, %v7727, -inf
    %v7877 = vrot.slane %v7876, 4
    %v7878 = vmax.f32 %v7876, %v7877
    %v7879 = vrot.slane %v7878, 2
    %v7880 = vmax.f32 %v7878, %v7879
    %v7881 = vrot.slane %v7880, 1
    %v7882 = vmax.f32 %v7880, %v7881
    %v7883 = vsel %vm838, %v7664, -inf
    %v7884 = vrot.slane %v7883, 4
    %v7885 = vmax.f32 %v7883, %v7884
    %v7886 = vrot.slane %v7885, 2
    %v7887 = vmax.f32 %v7885, %v7886
    %v7888 = vrot.slane %v7887, 1
    %v7889 = vmax.f32 %v7887, %v7888
    %v7890 = vsel %vm838, %v7728, -inf
    %v7891 = vrot.slane %v7890, 4
    %v7892 = vmax.f32 %v7890, %v7891
    %v7893 = vrot.slane %v7892, 2
    %v7894 = vmax.f32 %v7892, %v7893
    %v7895 = vrot.slane %v7894, 1
    %v7896 = vmax.f32 %v7894, %v7895
    %v7897 = vsel %vm838, %v7665, -inf
    %v7898 = vrot.slane %v7897, 4
    %v7899 = vmax.f32 %v7897, %v7898
    %v7900 = vrot.slane %v7899, 2
    %v7901 = vmax.f32 %v7899, %v7900
    %v7902 = vrot.slane %v7901, 1
    %v7903 = vmax.f32 %v7901, %v7902
    %v7904 = vsel %vm838, %v7729, -inf
    %v7905 = vrot.slane %v7904, 4
    %v7906 = vmax.f32 %v7904, %v7905
    %v7907 = vrot.slane %v7906, 2
    %v7908 = vmax.f32 %v7906, %v7907
    %v7909 = vrot.slane %v7908, 1
    %v7910 = vmax.f32 %v7908, %v7909
    %v7911 = vsel %vm838, %v7666, -inf
    %v7912 = vrot.slane %v7911, 4
    %v7913 = vmax.f32 %v7911, %v7912
    %v7914 = vrot.slane %v7913, 2
    %v7915 = vmax.f32 %v7913, %v7914
    %v7916 = vrot.slane %v7915, 1
    %v7917 = vmax.f32 %v7915, %v7916
    %v7918 = vsel %vm838, %v7730, -inf
    %v7919 = vrot.slane %v7918, 4
    %v7920 = vmax.f32 %v7918, %v7919
    %v7921 = vrot.slane %v7920, 2
    %v7922 = vmax.f32 %v7920, %v7921
    %v7923 = vrot.slane %v7922, 1
    %v7924 = vmax.f32 %v7922, %v7923
    %v7925 = vsel %vm838, %v7667, -inf
    %v7926 = vrot.slane %v7925, 4
    %v7927 = vmax.f32 %v7925, %v7926
    %v7928 = vrot.slane %v7927, 2
    %v7929 = vmax.f32 %v7927, %v7928
    %v7930 = vrot.slane %v7929, 1
    %v7931 = vmax.f32 %v7929, %v7930
    %v7932 = vsel %vm838, %v7731, -inf
    %v7933 = vrot.slane %v7932, 4
    %v7934 = vmax.f32 %v7932, %v7933
    %v7935 = vrot.slane %v7934, 2
    %v7936 = vmax.f32 %v7934, %v7935
    %v7937 = vrot.slane %v7936, 1
    %v7938 = vmax.f32 %v7936, %v7937
    %v7939 = vsel %vm838, %v7668, -inf
    %v7940 = vrot.slane %v7939, 4
    %v7941 = vmax.f32 %v7939, %v7940
    %v7942 = vrot.slane %v7941, 2
    %v7943 = vmax.f32 %v7941, %v7942
    %v7944 = vrot.slane %v7943, 1
    %v7945 = vmax.f32 %v7943, %v7944
    %v7946 = vsel %vm838, %v7732, -inf
    %v7947 = vrot.slane %v7946, 4
    %v7948 = vmax.f32 %v7946, %v7947
    %v7949 = vrot.slane %v7948, 2
    %v7950 = vmax.f32 %v7948, %v7949
    %v7951 = vrot.slane %v7950, 1
    %v7952 = vmax.f32 %v7950, %v7951
    %v7953 = vsel %vm838, %v7669, -inf
    %v7954 = vrot.slane %v7953, 4
    %v7955 = vmax.f32 %v7953, %v7954
    %v7956 = vrot.slane %v7955, 2
    %v7957 = vmax.f32 %v7955, %v7956
    %v7958 = vrot.slane %v7957, 1
    %v7959 = vmax.f32 %v7957, %v7958
    %v7960 = vsel %vm838, %v7733, -inf
    %v7961 = vrot.slane %v7960, 4
    %v7962 = vmax.f32 %v7960, %v7961
    %v7963 = vrot.slane %v7962, 2
    %v7964 = vmax.f32 %v7962, %v7963
    %v7965 = vrot.slane %v7964, 1
    %v7966 = vmax.f32 %v7964, %v7965
    %v7967 = vsel %vm838, %v7670, -inf
    %v7968 = vrot.slane %v7967, 4
    %v7969 = vmax.f32 %v7967, %v7968
    %v7970 = vrot.slane %v7969, 2
    %v7971 = vmax.f32 %v7969, %v7970
    %v7972 = vrot.slane %v7971, 1
    %v7973 = vmax.f32 %v7971, %v7972
    %v7974 = vsel %vm838, %v7734, -inf
    %v7975 = vrot.slane %v7974, 4
    %v7976 = vmax.f32 %v7974, %v7975
    %v7977 = vrot.slane %v7976, 2
    %v7978 = vmax.f32 %v7976, %v7977
    %v7979 = vrot.slane %v7978, 1
    %v7980 = vmax.f32 %v7978, %v7979
    %v7981 = vsel %vm838, %v7671, -inf
    %v7982 = vrot.slane %v7981, 4
    %v7983 = vmax.f32 %v7981, %v7982
    %v7984 = vrot.slane %v7983, 2
    %v7985 = vmax.f32 %v7983, %v7984
    %v7986 = vrot.slane %v7985, 1
    %v7987 = vmax.f32 %v7985, %v7986
    %v7988 = vsel %vm838, %v7735, -inf
    %v7989 = vrot.slane %v7988, 4
    %v7990 = vmax.f32 %v7988, %v7989
    %v7991 = vrot.slane %v7990, 2
    %v7992 = vmax.f32 %v7990, %v7991
    %v7993 = vrot.slane %v7992, 1
    %v7994 = vmax.f32 %v7992, %v7993
    %v7995 = vsel %vm838, %v7672, -inf
    %v7996 = vrot.slane %v7995, 4
    %v7997 = vmax.f32 %v7995, %v7996
    %v7998 = vrot.slane %v7997, 2
    %v7999 = vmax.f32 %v7997, %v7998
    %v8000 = vrot.slane %v7999, 1
    %v8001 = vmax.f32 %v7999, %v8000
    %v8002 = vsel %vm838, %v7736, -inf
    %v8003 = vrot.slane %v8002, 4
    %v8004 = vmax.f32 %v8002, %v8003
    %v8005 = vrot.slane %v8004, 2
    %v8006 = vmax.f32 %v8004, %v8005
    %v8007 = vrot.slane %v8006, 1
    %v8008 = vmax.f32 %v8006, %v8007
    %v8009 = vsel %vm838, %v7673, -inf
    %v8010 = vrot.slane %v8009, 4
    %v8011 = vmax.f32 %v8009, %v8010
    %v8012 = vrot.slane %v8011, 2
    %v8013 = vmax.f32 %v8011, %v8012
    %v8014 = vrot.slane %v8013, 1
    %v8015 = vmax.f32 %v8013, %v8014
    %v8016 = vsel %vm838, %v7737, -inf
    %v8017 = vrot.slane %v8016, 4
    %v8018 = vmax.f32 %v8016, %v8017
    %v8019 = vrot.slane %v8018, 2
    %v8020 = vmax.f32 %v8018, %v8019
    %v8021 = vrot.slane %v8020, 1
    %v8022 = vmax.f32 %v8020, %v8021
    %v8023 = vsel %vm838, %v7674, -inf
    %v8024 = vrot.slane %v8023, 4
    %v8025 = vmax.f32 %v8023, %v8024
    %v8026 = vrot.slane %v8025, 2
    %v8027 = vmax.f32 %v8025, %v8026
    %v8028 = vrot.slane %v8027, 1
    %v8029 = vmax.f32 %v8027, %v8028
    %v8030 = vsel %vm838, %v7738, -inf
    %v8031 = vrot.slane %v8030, 4
    %v8032 = vmax.f32 %v8030, %v8031
    %v8033 = vrot.slane %v8032, 2
    %v8034 = vmax.f32 %v8032, %v8033
    %v8035 = vrot.slane %v8034, 1
    %v8036 = vmax.f32 %v8034, %v8035
    %v8037 = vsel %vm838, %v7675, -inf
    %v8038 = vrot.slane %v8037, 4
    %v8039 = vmax.f32 %v8037, %v8038
    %v8040 = vrot.slane %v8039, 2
    %v8041 = vmax.f32 %v8039, %v8040
    %v8042 = vrot.slane %v8041, 1
    %v8043 = vmax.f32 %v8041, %v8042
    %v8044 = vsel %vm838, %v7739, -inf
    %v8045 = vrot.slane %v8044, 4
    %v8046 = vmax.f32 %v8044, %v8045
    %v8047 = vrot.slane %v8046, 2
    %v8048 = vmax.f32 %v8046, %v8047
    %v8049 = vrot.slane %v8048, 1
    %v8050 = vmax.f32 %v8048, %v8049
    %v8051 = vsel %vm838, %v7676, -inf
    %v8052 = vrot.slane %v8051, 4
    %v8053 = vmax.f32 %v8051, %v8052
    %v8054 = vrot.slane %v8053, 2
    %v8055 = vmax.f32 %v8053, %v8054
    %v8056 = vrot.slane %v8055, 1
    %v8057 = vmax.f32 %v8055, %v8056
    %v8058 = vsel %vm838, %v7740, -inf
    %v8059 = vrot.slane %v8058, 4
    %v8060 = vmax.f32 %v8058, %v8059
    %v8061 = vrot.slane %v8060, 2
    %v8062 = vmax.f32 %v8060, %v8061
    %v8063 = vrot.slane %v8062, 1
    %v8064 = vmax.f32 %v8062, %v8063
    %v8065 = vsel %vm838, %v7677, -inf
    %v8066 = vrot.slane %v8065, 4
    %v8067 = vmax.f32 %v8065, %v8066
    %v8068 = vrot.slane %v8067, 2
    %v8069 = vmax.f32 %v8067, %v8068
    %v8070 = vrot.slane %v8069, 1
    %v8071 = vmax.f32 %v8069, %v8070
    %v8072 = vsel %vm838, %v7741, -inf
    %v8073 = vrot.slane %v8072, 4
    %v8074 = vmax.f32 %v8072, %v8073
    %v8075 = vrot.slane %v8074, 2
    %v8076 = vmax.f32 %v8074, %v8075
    %v8077 = vrot.slane %v8076, 1
    %v8078 = vmax.f32 %v8076, %v8077
    %v8079 = vsel %vm838, %v7678, -inf
    %v8080 = vrot.slane %v8079, 4
    %v8081 = vmax.f32 %v8079, %v8080
    %v8082 = vrot.slane %v8081, 2
    %v8083 = vmax.f32 %v8081, %v8082
    %v8084 = vrot.slane %v8083, 1
    %v8085 = vmax.f32 %v8083, %v8084
    %v8086 = vsel %vm838, %v7742, -inf
    %v8087 = vrot.slane %v8086, 4
    %v8088 = vmax.f32 %v8086, %v8087
    %v8089 = vrot.slane %v8088, 2
    %v8090 = vmax.f32 %v8088, %v8089
    %v8091 = vrot.slane %v8090, 1
    %v8092 = vmax.f32 %v8090, %v8091
    %v8093 = vsel %vm838, %v7679, -inf
    %v8094 = vrot.slane %v8093, 4
    %v8095 = vmax.f32 %v8093, %v8094
    %v8096 = vrot.slane %v8095, 2
    %v8097 = vmax.f32 %v8095, %v8096
    %v8098 = vrot.slane %v8097, 1
    %v8099 = vmax.f32 %v8097, %v8098
    %v8100 = vsel %vm838, %v7743, -inf
    %v8101 = vrot.slane %v8100, 4
    %v8102 = vmax.f32 %v8100, %v8101
    %v8103 = vrot.slane %v8102, 2
    %v8104 = vmax.f32 %v8102, %v8103
    %v8105 = vrot.slane %v8104, 1
    %v8106 = vmax.f32 %v8104, %v8105
    %v8107 = vsel %vm838, %v7680, -inf
    %v8108 = vrot.slane %v8107, 4
    %v8109 = vmax.f32 %v8107, %v8108
    %v8110 = vrot.slane %v8109, 2
    %v8111 = vmax.f32 %v8109, %v8110
    %v8112 = vrot.slane %v8111, 1
    %v8113 = vmax.f32 %v8111, %v8112
    %v8114 = vsel %vm838, %v7744, -inf
    %v8115 = vrot.slane %v8114, 4
    %v8116 = vmax.f32 %v8114, %v8115
    %v8117 = vrot.slane %v8116, 2
    %v8118 = vmax.f32 %v8116, %v8117
    %v8119 = vrot.slane %v8118, 1
    %v8120 = vmax.f32 %v8118, %v8119
    %v8121 = vsel %vm838, %v7681, -inf
    %v8122 = vrot.slane %v8121, 4
    %v8123 = vmax.f32 %v8121, %v8122
    %v8124 = vrot.slane %v8123, 2
    %v8125 = vmax.f32 %v8123, %v8124
    %v8126 = vrot.slane %v8125, 1
    %v8127 = vmax.f32 %v8125, %v8126
    %v8128 = vsel %vm838, %v7745, -inf
    %v8129 = vrot.slane %v8128, 4
    %v8130 = vmax.f32 %v8128, %v8129
    %v8131 = vrot.slane %v8130, 2
    %v8132 = vmax.f32 %v8130, %v8131
    %v8133 = vrot.slane %v8132, 1
    %v8134 = vmax.f32 %v8132, %v8133
    %v8135 = vsel %vm838, %v7682, -inf
    %v8136 = vrot.slane %v8135, 4
    %v8137 = vmax.f32 %v8135, %v8136
    %v8138 = vrot.slane %v8137, 2
    %v8139 = vmax.f32 %v8137, %v8138
    %v8140 = vrot.slane %v8139, 1
    %v8141 = vmax.f32 %v8139, %v8140
    %v8142 = vsel %vm838, %v7746, -inf
    %v8143 = vrot.slane %v8142, 4
    %v8144 = vmax.f32 %v8142, %v8143
    %v8145 = vrot.slane %v8144, 2
    %v8146 = vmax.f32 %v8144, %v8145
    %v8147 = vrot.slane %v8146, 1
    %v8148 = vmax.f32 %v8146, %v8147
    %v8149 = vsel %vm838, %v7683, -inf
    %v8150 = vrot.slane %v8149, 4
    %v8151 = vmax.f32 %v8149, %v8150
    %v8152 = vrot.slane %v8151, 2
    %v8153 = vmax.f32 %v8151, %v8152
    %v8154 = vrot.slane %v8153, 1
    %v8155 = vmax.f32 %v8153, %v8154
    %v8156 = vsel %vm838, %v7747, -inf
    %v8157 = vrot.slane %v8156, 4
    %v8158 = vmax.f32 %v8156, %v8157
    %v8159 = vrot.slane %v8158, 2
    %v8160 = vmax.f32 %v8158, %v8159
    %v8161 = vrot.slane %v8160, 1
    %v8162 = vmax.f32 %v8160, %v8161
    %v8163 = vsel %vm838, %v7684, -inf
    %v8164 = vrot.slane %v8163, 4
    %v8165 = vmax.f32 %v8163, %v8164
    %v8166 = vrot.slane %v8165, 2
    %v8167 = vmax.f32 %v8165, %v8166
    %v8168 = vrot.slane %v8167, 1
    %v8169 = vmax.f32 %v8167, %v8168
    %v8170 = vsel %vm838, %v7748, -inf
    %v8171 = vrot.slane %v8170, 4
    %v8172 = vmax.f32 %v8170, %v8171
    %v8173 = vrot.slane %v8172, 2
    %v8174 = vmax.f32 %v8172, %v8173
    %v8175 = vrot.slane %v8174, 1
    %v8176 = vmax.f32 %v8174, %v8175
    %v8177 = vsel %vm838, %v7685, -inf
    %v8178 = vrot.slane %v8177, 4
    %v8179 = vmax.f32 %v8177, %v8178
    %v8180 = vrot.slane %v8179, 2
    %v8181 = vmax.f32 %v8179, %v8180
    %v8182 = vrot.slane %v8181, 1
    %v8183 = vmax.f32 %v8181, %v8182
    %v8184 = vsel %vm838, %v7749, -inf
    %v8185 = vrot.slane %v8184, 4
    %v8186 = vmax.f32 %v8184, %v8185
    %v8187 = vrot.slane %v8186, 2
    %v8188 = vmax.f32 %v8186, %v8187
    %v8189 = vrot.slane %v8188, 1
    %v8190 = vmax.f32 %v8188, %v8189
    %v8191 = vsel %vm838, %v7686, -inf
    %v8192 = vrot.slane %v8191, 4
    %v8193 = vmax.f32 %v8191, %v8192
    %v8194 = vrot.slane %v8193, 2
    %v8195 = vmax.f32 %v8193, %v8194
    %v8196 = vrot.slane %v8195, 1
    %v8197 = vmax.f32 %v8195, %v8196
    %v8198 = vsel %vm838, %v7750, -inf
    %v8199 = vrot.slane %v8198, 4
    %v8200 = vmax.f32 %v8198, %v8199
    %v8201 = vrot.slane %v8200, 2
    %v8202 = vmax.f32 %v8200, %v8201
    %v8203 = vrot.slane %v8202, 1
    %v8204 = vmax.f32 %v8202, %v8203
    %v8205 = vsel %vm838, %v7687, -inf
    %v8206 = vrot.slane %v8205, 4
    %v8207 = vmax.f32 %v8205, %v8206
    %v8208 = vrot.slane %v8207, 2
    %v8209 = vmax.f32 %v8207, %v8208
    %v8210 = vrot.slane %v8209, 1
    %v8211 = vmax.f32 %v8209, %v8210
    %v8212 = vsel %vm838, %v7751, -inf
    %v8213 = vrot.slane %v8212, 4
    %v8214 = vmax.f32 %v8212, %v8213
    %v8215 = vrot.slane %v8214, 2
    %v8216 = vmax.f32 %v8214, %v8215
    %v8217 = vrot.slane %v8216, 1
    %v8218 = vmax.f32 %v8216, %v8217
    %v8219 = vsel %vm838, %v7688, -inf
    %v8220 = vrot.slane %v8219, 4
    %v8221 = vmax.f32 %v8219, %v8220
    %v8222 = vrot.slane %v8221, 2
    %v8223 = vmax.f32 %v8221, %v8222
    %v8224 = vrot.slane %v8223, 1
    %v8225 = vmax.f32 %v8223, %v8224
    %v8226 = vsel %vm838, %v7752, -inf
    %v8227 = vrot.slane %v8226, 4
    %v8228 = vmax.f32 %v8226, %v8227
    %v8229 = vrot.slane %v8228, 2
    %v8230 = vmax.f32 %v8228, %v8229
    %v8231 = vrot.slane %v8230, 1
    %v8232 = vmax.f32 %v8230, %v8231
    %vm8297 = vcmask 1041409
    %v8298 = vsel %vm8297, %v7805, %v7791
    %vm8299 = vcmask 1042434
    %v8300 = vsel %vm8299, %v7819, %v8298
    %vm8301 = vcmask 1043459
    %v8302 = vsel %vm8301, %v7833, %v8300
    %vm8303 = vcmask 1044484
    %v8304 = vsel %vm8303, %v7847, %v8302
    %vm8305 = vcmask 1045509
    %v8306 = vsel %vm8305, %v7861, %v8304
    %vm8307 = vcmask 1046534
    %v8308 = vsel %vm8307, %v7875, %v8306
    %vm8309 = vcmask 1047559
    %v8310 = vsel %vm8309, %v7889, %v8308
    %v8311 = vsel %vm8297, %v7812, %v7798
    %v8312 = vsel %vm8299, %v7826, %v8311
    %v8313 = vsel %vm8301, %v7840, %v8312
    %v8314 = vsel %vm8303, %v7854, %v8313
    %v8315 = vsel %vm8305, %v7868, %v8314
    %v8316 = vsel %vm8307, %v7882, %v8315
    %v8317 = vsel %vm8309, %v7896, %v8316
    %v8318 = vsel %vm8297, %v7917, %v7903
    %v8319 = vsel %vm8299, %v7931, %v8318
    %v8320 = vsel %vm8301, %v7945, %v8319
    %v8321 = vsel %vm8303, %v7959, %v8320
    %v8322 = vsel %vm8305, %v7973, %v8321
    %v8323 = vsel %vm8307, %v7987, %v8322
    %v8324 = vsel %vm8309, %v8001, %v8323
    %v8325 = vsel %vm8297, %v7924, %v7910
    %v8326 = vsel %vm8299, %v7938, %v8325
    %v8327 = vsel %vm8301, %v7952, %v8326
    %v8328 = vsel %vm8303, %v7966, %v8327
    %v8329 = vsel %vm8305, %v7980, %v8328
    %v8330 = vsel %vm8307, %v7994, %v8329
    %v8331 = vsel %vm8309, %v8008, %v8330
    %v8332 = vsel %vm8297, %v8029, %v8015
    %v8333 = vsel %vm8299, %v8043, %v8332
    %v8334 = vsel %vm8301, %v8057, %v8333
    %v8335 = vsel %vm8303, %v8071, %v8334
    %v8336 = vsel %vm8305, %v8085, %v8335
    %v8337 = vsel %vm8307, %v8099, %v8336
    %v8338 = vsel %vm8309, %v8113, %v8337
    %v8339 = vsel %vm8297, %v8036, %v8022
    %v8340 = vsel %vm8299, %v8050, %v8339
    %v8341 = vsel %vm8301, %v8064, %v8340
    %v8342 = vsel %vm8303, %v8078, %v8341
    %v8343 = vsel %vm8305, %v8092, %v8342
    %v8344 = vsel %vm8307, %v8106, %v8343
    %v8345 = vsel %vm8309, %v8120, %v8344
    %v8346 = vsel %vm8297, %v8141, %v8127
    %v8347 = vsel %vm8299, %v8155, %v8346
    %v8348 = vsel %vm8301, %v8169, %v8347
    %v8349 = vsel %vm8303, %v8183, %v8348
    %v8350 = vsel %vm8305, %v8197, %v8349
    %v8351 = vsel %vm8307, %v8211, %v8350
    %v8352 = vsel %vm8309, %v8225, %v8351
    %v8353 = vsel %vm8297, %v8148, %v8134
    %v8354 = vsel %vm8299, %v8162, %v8353
    %v8355 = vsel %vm8301, %v8176, %v8354
    %v8356 = vsel %vm8303, %v8190, %v8355
    %v8357 = vsel %vm8305, %v8204, %v8356
    %v8358 = vsel %vm8307, %v8218, %v8357
    %v8359 = vsel %vm8309, %v8232, %v8358
    %v8368 = vcombine.high %v8310, 0.0
    %v8370 = vunpack.c.l.s4 1983009808
    %v8371 = vunpack.c.0.s8 %v8370
    %v8372 = vlaneseq
    %v8373 = vshrl.u32 %v8372, 7
    %v8374 = vsub.s32 %v8371, %v8373
    %v8375 = vrot.slane %v8310, %v8374
    %v8377 = vunpack.c.l.s4 1983009808
    %v8378 = vunpack.c.0.s8 %v8377
    %v8379 = vlaneseq
    %v8380 = vshrl.u32 %v8379, 7
    %v8381 = vsub.s32 %v8378, %v8380
    %v8382 = vrot.slane %v8368, %v8381
    %v8383 = vcombine.high %v8338, 0.0
    %v8385 = vunpack.c.l.s4 1983009808
    %v8386 = vunpack.c.0.s8 %v8385
    %v8387 = vlaneseq
    %v8388 = vshrl.u32 %v8387, 7
    %v8389 = vsub.s32 %v8386, %v8388
    %v8390 = vrot.slane %v8338, %v8389
    %v8392 = vunpack.c.l.s4 1983009808
    %v8393 = vunpack.c.0.s8 %v8392
    %v8394 = vlaneseq
    %v8395 = vshrl.u32 %v8394, 7
    %v8396 = vsub.s32 %v8393, %v8395
    %v8397 = vrot.slane %v8383, %v8396
    %v8398 = vcombine.low %v8375, %v8390
    %v8399 = vcombine.high %v8375, %v8390
    %v8401 = vunpack.c.l.s4 1934713408
    %v8402 = vunpack.c.0.s8 %v8401
    %v8403 = vlaneseq
    %v8404 = vshrl.u32 %v8403, 7
    %v8405 = vsub.s32 %v8402, %v8404
    %v8406 = vrot.slane %v8398, %v8405
    %v8408 = vunpack.c.l.s4 1934713408
    %v8409 = vunpack.c.0.s8 %v8408
    %v8410 = vlaneseq
    %v8411 = vshrl.u32 %v8410, 7
    %v8412 = vsub.s32 %v8409, %v8411
    %v8413 = vrot.slane %v8399, %v8412
    %v8414 = vcombine.low %v8382, %v8397
    %v8415 = vcombine.high %v8382, %v8397
    %v8417 = vunpack.c.l.s4 1934713408
    %v8418 = vunpack.c.0.s8 %v8417
    %v8419 = vlaneseq
    %v8420 = vshrl.u32 %v8419, 7
    %v8421 = vsub.s32 %v8418, %v8420
    %v8422 = vrot.slane %v8414, %v8421
    %v8424 = vunpack.c.l.s4 1934713408
    %v8425 = vunpack.c.0.s8 %v8424
    %v8426 = vlaneseq
    %v8427 = vshrl.u32 %v8426, 7
    %v8428 = vsub.s32 %v8425, %v8427
    %v8429 = vrot.slane %v8415, %v8428
    %v8430 = vcombine.high %v8406, 0.0
    %v8431 = vcombine.high %v8413, 0.0
    %v8432 = vcombine.high %v8422, 0.0
    %v8433 = vcombine.high %v8429, 0.0
    %v8434 = vcombine.high %v8324, 0.0
    %v8436 = vunpack.c.l.s4 1983009808
    %v8437 = vunpack.c.0.s8 %v8436
    %v8438 = vlaneseq
    %v8439 = vshrl.u32 %v8438, 7
    %v8440 = vsub.s32 %v8437, %v8439
    %v8441 = vrot.slane %v8324, %v8440
    %v8443 = vunpack.c.l.s4 1983009808
    %v8444 = vunpack.c.0.s8 %v8443
    %v8445 = vlaneseq
    %v8446 = vshrl.u32 %v8445, 7
    %v8447 = vsub.s32 %v8444, %v8446
    %v8448 = vrot.slane %v8434, %v8447
    %v8449 = vcombine.high %v8352, 0.0
    %v8451 = vunpack.c.l.s4 1983009808
    %v8452 = vunpack.c.0.s8 %v8451
    %v8453 = vlaneseq
    %v8454 = vshrl.u32 %v8453, 7
    %v8455 = vsub.s32 %v8452, %v8454
    %v8456 = vrot.slane %v8352, %v8455
    %v8458 = vunpack.c.l.s4 1983009808
    %v8459 = vunpack.c.0.s8 %v8458
    %v8460 = vlaneseq
    %v8461 = vshrl.u32 %v8460, 7
    %v8462 = vsub.s32 %v8459, %v8461
    %v8463 = vrot.slane %v8449, %v8462
    %v8464 = vcombine.low %v8441, %v8456
    %v8465 = vcombine.high %v8441, %v8456
    %v8467 = vunpack.c.l.s4 1934713408
    %v8468 = vunpack.c.0.s8 %v8467
    %v8469 = vlaneseq
    %v8470 = vshrl.u32 %v8469, 7
    %v8471 = vsub.s32 %v8468, %v8470
    %v8472 = vrot.slane %v8464, %v8471
    %v8474 = vunpack.c.l.s4 1934713408
    %v8475 = vunpack.c.0.s8 %v8474
    %v8476 = vlaneseq
    %v8477 = vshrl.u32 %v8476, 7
    %v8478 = vsub.s32 %v8475, %v8477
    %v8479 = vrot.slane %v8465, %v8478
    %v8480 = vcombine.low %v8448, %v8463
    %v8481 = vcombine.high %v8448, %v8463
    %v8483 = vunpack.c.l.s4 1934713408
    %v8484 = vunpack.c.0.s8 %v8483
    %v8485 = vlaneseq
    %v8486 = vshrl.u32 %v8485, 7
    %v8487 = vsub.s32 %v8484, %v8486
    %v8488 = vrot.slane %v8480, %v8487
    %v8490 = vunpack.c.l.s4 1934713408
    %v8491 = vunpack.c.0.s8 %v8490
    %v8492 = vlaneseq
    %v8493 = vshrl.u32 %v8492, 7
    %v8494 = vsub.s32 %v8491, %v8493
    %v8495 = vrot.slane %v8481, %v8494
    %v8496 = vcombine.high %v8472, 0.0
    %v8497 = vcombine.high %v8479, 0.0
    %v8498 = vcombine.high %v8488, 0.0
    %v8499 = vcombine.high %v8495, 0.0
    %v8500 = vcombine.high %v8317, 0.0
    %v8502 = vunpack.c.l.s4 1983009808
    %v8503 = vunpack.c.0.s8 %v8502
    %v8504 = vlaneseq
    %v8505 = vshrl.u32 %v8504, 7
    %v8506 = vsub.s32 %v8503, %v8505
    %v8507 = vrot.slane %v8317, %v8506
    %v8509 = vunpack.c.l.s4 1983009808
    %v8510 = vunpack.c.0.s8 %v8509
    %v8511 = vlaneseq
    %v8512 = vshrl.u32 %v8511, 7
    %v8513 = vsub.s32 %v8510, %v8512
    %v8514 = vrot.slane %v8500, %v8513
    %v8515 = vcombine.high %v8345, 0.0
    %v8517 = vunpack.c.l.s4 1983009808
    %v8518 = vunpack.c.0.s8 %v8517
    %v8519 = vlaneseq
    %v8520 = vshrl.u32 %v8519, 7
    %v8521 = vsub.s32 %v8518, %v8520
    %v8522 = vrot.slane %v8345, %v8521
    %v8524 = vunpack.c.l.s4 1983009808
    %v8525 = vunpack.c.0.s8 %v8524
    %v8526 = vlaneseq
    %v8527 = vshrl.u32 %v8526, 7
    %v8528 = vsub.s32 %v8525, %v8527
    %v8529 = vrot.slane %v8515, %v8528
    %v8530 = vcombine.low %v8507, %v8522
    %v8531 = vcombine.high %v8507, %v8522
    %v8533 = vunpack.c.l.s4 1934713408
    %v8534 = vunpack.c.0.s8 %v8533
    %v8535 = vlaneseq
    %v8536 = vshrl.u32 %v8535, 7
    %v8537 = vsub.s32 %v8534, %v8536
    %v8538 = vrot.slane %v8530, %v8537
    %v8540 = vunpack.c.l.s4 1934713408
    %v8541 = vunpack.c.0.s8 %v8540
    %v8542 = vlaneseq
    %v8543 = vshrl.u32 %v8542, 7
    %v8544 = vsub.s32 %v8541, %v8543
    %v8545 = vrot.slane %v8531, %v8544
    %v8546 = vcombine.low %v8514, %v8529
    %v8547 = vcombine.high %v8514, %v8529
    %v8549 = vunpack.c.l.s4 1934713408
    %v8550 = vunpack.c.0.s8 %v8549
    %v8551 = vlaneseq
    %v8552 = vshrl.u32 %v8551, 7
    %v8553 = vsub.s32 %v8550, %v8552
    %v8554 = vrot.slane %v8546, %v8553
    %v8556 = vunpack.c.l.s4 1934713408
    %v8557 = vunpack.c.0.s8 %v8556
    %v8558 = vlaneseq
    %v8559 = vshrl.u32 %v8558, 7
    %v8560 = vsub.s32 %v8557, %v8559
    %v8561 = vrot.slane %v8547, %v8560
    %v8562 = vcombine.high %v8538, 0.0
    %v8563 = vcombine.high %v8545, 0.0
    %v8564 = vcombine.high %v8554, 0.0
    %v8565 = vcombine.high %v8561, 0.0
    %v8566 = vcombine.high %v8331, 0.0
    %v8568 = vunpack.c.l.s4 1983009808
    %v8569 = vunpack.c.0.s8 %v8568
    %v8570 = vlaneseq
    %v8571 = vshrl.u32 %v8570, 7
    %v8572 = vsub.s32 %v8569, %v8571
    %v8573 = vrot.slane %v8331, %v8572
    %v8575 = vunpack.c.l.s4 1983009808
    %v8576 = vunpack.c.0.s8 %v8575
    %v8577 = vlaneseq
    %v8578 = vshrl.u32 %v8577, 7
    %v8579 = vsub.s32 %v8576, %v8578
    %v8580 = vrot.slane %v8566, %v8579
    %v8581 = vcombine.high %v8359, 0.0
    %v8583 = vunpack.c.l.s4 1983009808
    %v8584 = vunpack.c.0.s8 %v8583
    %v8585 = vlaneseq
    %v8586 = vshrl.u32 %v8585, 7
    %v8587 = vsub.s32 %v8584, %v8586
    %v8588 = vrot.slane %v8359, %v8587
    %v8590 = vunpack.c.l.s4 1983009808
    %v8591 = vunpack.c.0.s8 %v8590
    %v8592 = vlaneseq
    %v8593 = vshrl.u32 %v8592, 7
    %v8594 = vsub.s32 %v8591, %v8593
    %v8595 = vrot.slane %v8581, %v8594
    %v8596 = vcombine.low %v8573, %v8588
    %v8597 = vcombine.high %v8573, %v8588
    %v8599 = vunpack.c.l.s4 1934713408
    %v8600 = vunpack.c.0.s8 %v8599
    %v8601 = vlaneseq
    %v8602 = vshrl.u32 %v8601, 7
    %v8603 = vsub.s32 %v8600, %v8602
    %v8604 = vrot.slane %v8596, %v8603
    %v8606 = vunpack.c.l.s4 1934713408
    %v8607 = vunpack.c.0.s8 %v8606
    %v8608 = vlaneseq
    %v8609 = vshrl.u32 %v8608, 7
    %v8610 = vsub.s32 %v8607, %v8609
    %v8611 = vrot.slane %v8597, %v8610
    %v8612 = vcombine.low %v8580, %v8595
    %v8613 = vcombine.high %v8580, %v8595
    %v8615 = vunpack.c.l.s4 1934713408
    %v8616 = vunpack.c.0.s8 %v8615
    %v8617 = vlaneseq
    %v8618 = vshrl.u32 %v8617, 7
    %v8619 = vsub.s32 %v8616, %v8618
    %v8620 = vrot.slane %v8612, %v8619
    %v8622 = vunpack.c.l.s4 1934713408
    %v8623 = vunpack.c.0.s8 %v8622
    %v8624 = vlaneseq
    %v8625 = vshrl.u32 %v8624, 7
    %v8626 = vsub.s32 %v8623, %v8625
    %v8627 = vrot.slane %v8613, %v8626
    %v8628 = vcombine.high %v8604, 0.0
    %v8629 = vcombine.high %v8611, 0.0
    %v8630 = vcombine.high %v8620, 0.0
    %v8631 = vcombine.high %v8627, 0.0
    %s8632 = smul.u32 4, 512
    %s8633 = smul.u32 %s8632, 2
    %s8634 = sshll.u32 %s8633, 4
    %8635 = dma.done %s524, %s8634
    %v8636 = vpack.c.bf16 %v8406, %v8406
    %v8637 = vpack.c.bf16 %v8538, %v8538
    %v8638 = vpack.c.bf16 %v8430, %v8430
    %v8639 = vpack.c.bf16 %v8562, %v8562
    %v8640 = vpack.c.bf16 %v8413, %v8413
    %v8641 = vpack.c.bf16 %v8545, %v8545
    %v8642 = vpack.c.bf16 %v8431, %v8431
    %v8643 = vpack.c.bf16 %v8563, %v8563
    %v8644 = vpack.c.bf16 %v8422, %v8422
    %v8645 = vpack.c.bf16 %v8554, %v8554
    %v8646 = vpack.c.bf16 %v8432, %v8432
    %v8647 = vpack.c.bf16 %v8564, %v8564
    %v8648 = vpack.c.bf16 %v8429, %v8429
    %v8649 = vpack.c.bf16 %v8561, %v8561
    %v8650 = vpack.c.bf16 %v8433, %v8433
    %v8651 = vpack.c.bf16 %v8565, %v8565
    %v8652 = vpack.c.bf16 %v8472, %v8472
    %v8653 = vpack.c.bf16 %v8604, %v8604
    %v8654 = vpack.c.bf16 %v8496, %v8496
    %v8655 = vpack.c.bf16 %v8628, %v8628
    %v8656 = vpack.c.bf16 %v8479, %v8479
    %v8657 = vpack.c.bf16 %v8611, %v8611
    %v8658 = vpack.c.bf16 %v8497, %v8497
    %v8659 = vpack.c.bf16 %v8629, %v8629
    %v8660 = vpack.c.bf16 %v8488, %v8488
    %v8661 = vpack.c.bf16 %v8620, %v8620
    %v8662 = vpack.c.bf16 %v8498, %v8498
    %v8663 = vpack.c.bf16 %v8630, %v8630
    %v8664 = vpack.c.bf16 %v8495, %v8495
    %v8665 = vpack.c.bf16 %v8627, %v8627
    %v8666 = vpack.c.bf16 %v8499, %v8499
    %v8667 = vpack.c.bf16 %v8631, %v8631
    %v8668 = vld [vmem:[#allocation8] sm:$0xff]
    %v8669 = vld [vmem:[#allocation8 + $0x8] sm:$0xff]
    %v8670 = vld [vmem:[#allocation8 + $0x10] sm:$0xff]
    %v8671 = vld [vmem:[#allocation8 + $0x18] sm:$0xff]
    %v8672 = vld [vmem:[#allocation8 + $0x20] sm:$0xff]
    %v8673 = vld [vmem:[#allocation8 + $0x28] sm:$0xff]
    %v8674 = vld [vmem:[#allocation8 + $0x30] sm:$0xff]
    %v8675 = vld [vmem:[#allocation8 + $0x38] sm:$0xff]
    %v8676 = vld [vmem:[#allocation8 + $0x40] sm:$0xff]
    %v8677 = vld [vmem:[#allocation8 + $0x48] sm:$0xff]
    %v8678 = vld [vmem:[#allocation8 + $0x50] sm:$0xff]
    %v8679 = vld [vmem:[#allocation8 + $0x58] sm:$0xff]
    %v8680 = vld [vmem:[#allocation8 + $0x60] sm:$0xff]
    %v8681 = vld [vmem:[#allocation8 + $0x68] sm:$0xff]
    %v8682 = vld [vmem:[#allocation8 + $0x70] sm:$0xff]
    %v8683 = vld [vmem:[#allocation8 + $0x78] sm:$0xff]
    %v8684 = vld [vmem:[#allocation8 + $0x80] sm:$0xff]
    %v8685 = vld [vmem:[#allocation8 + $0x88] sm:$0xff]
    %v8686 = vld [vmem:[#allocation8 + $0x90] sm:$0xff]
    %v8687 = vld [vmem:[#allocation8 + $0x98] sm:$0xff]
    %v8688 = vld [vmem:[#allocation8 + $0xa0] sm:$0xff]
    %v8689 = vld [vmem:[#allocation8 + $0xa8] sm:$0xff]
    %v8690 = vld [vmem:[#allocation8 + $0xb0] sm:$0xff]
    %v8691 = vld [vmem:[#allocation8 + $0xb8] sm:$0xff]
    %v8692 = vld [vmem:[#allocation8 + $0xc0] sm:$0xff]
    %v8693 = vld [vmem:[#allocation8 + $0xc8] sm:$0xff]
    %v8694 = vld [vmem:[#allocation8 + $0xd0] sm:$0xff]
    %v8695 = vld [vmem:[#allocation8 + $0xd8] sm:$0xff]
    %v8696 = vld [vmem:[#allocation8 + $0xe0] sm:$0xff]
    %v8697 = vld [vmem:[#allocation8 + $0xe8] sm:$0xff]
    %v8698 = vld [vmem:[#allocation8 + $0xf0] sm:$0xff]
    %v8699 = vld [vmem:[#allocation8 + $0xf8] sm:$0xff]
    %v8700 = vld [vmem:[#allocation8 + $0x100] sm:$0xff]
    %v8701 = vld [vmem:[#allocation8 + $0x108] sm:$0xff]
    %v8702 = vld [vmem:[#allocation8 + $0x110] sm:$0xff]
    %v8703 = vld [vmem:[#allocation8 + $0x118] sm:$0xff]
    %v8704 = vld [vmem:[#allocation8 + $0x120] sm:$0xff]
    %v8705 = vld [vmem:[#allocation8 + $0x128] sm:$0xff]
    %v8706 = vld [vmem:[#allocation8 + $0x130] sm:$0xff]
    %v8707 = vld [vmem:[#allocation8 + $0x138] sm:$0xff]
    %v8708 = vld [vmem:[#allocation8 + $0x140] sm:$0xff]
    %v8709 = vld [vmem:[#allocation8 + $0x148] sm:$0xff]
    %v8710 = vld [vmem:[#allocation8 + $0x150] sm:$0xff]
    %v8711 = vld [vmem:[#allocation8 + $0x158] sm:$0xff]
    %v8712 = vld [vmem:[#allocation8 + $0x160] sm:$0xff]
    %v8713 = vld [vmem:[#allocation8 + $0x168] sm:$0xff]
    %v8714 = vld [vmem:[#allocation8 + $0x170] sm:$0xff]
    %v8715 = vld [vmem:[#allocation8 + $0x178] sm:$0xff]
    %v8716 = vld [vmem:[#allocation8 + $0x180] sm:$0xff]
    %v8717 = vld [vmem:[#allocation8 + $0x188] sm:$0xff]
    %v8718 = vld [vmem:[#allocation8 + $0x190] sm:$0xff]
    %v8719 = vld [vmem:[#allocation8 + $0x198] sm:$0xff]
    %v8720 = vld [vmem:[#allocation8 + $0x1a0] sm:$0xff]
    %v8721 = vld [vmem:[#allocation8 + $0x1a8] sm:$0xff]
    %v8722 = vld [vmem:[#allocation8 + $0x1b0] sm:$0xff]
    %v8723 = vld [vmem:[#allocation8 + $0x1b8] sm:$0xff]
    %v8724 = vld [vmem:[#allocation8 + $0x1c0] sm:$0xff]
    %v8725 = vld [vmem:[#allocation8 + $0x1c8] sm:$0xff]
    %v8726 = vld [vmem:[#allocation8 + $0x1d0] sm:$0xff]
    %v8727 = vld [vmem:[#allocation8 + $0x1d8] sm:$0xff]
    %v8728 = vld [vmem:[#allocation8 + $0x1e0] sm:$0xff]
    %v8729 = vld [vmem:[#allocation8 + $0x1e8] sm:$0xff]
    %v8730 = vld [vmem:[#allocation8 + $0x1f0] sm:$0xff]
    %v8731 = vld [vmem:[#allocation8 + $0x1f8] sm:$0xff]
    %v8732 = vld [vmem:[#allocation8 + $0x200] sm:$0xff]
    %v8733 = vld [vmem:[#allocation8 + $0x208] sm:$0xff]
    %v8734 = vld [vmem:[#allocation8 + $0x210] sm:$0xff]
    %v8735 = vld [vmem:[#allocation8 + $0x218] sm:$0xff]
    %v8736 = vld [vmem:[#allocation8 + $0x220] sm:$0xff]
    %v8737 = vld [vmem:[#allocation8 + $0x228] sm:$0xff]
    %v8738 = vld [vmem:[#allocation8 + $0x230] sm:$0xff]
    %v8739 = vld [vmem:[#allocation8 + $0x238] sm:$0xff]
    %v8740 = vld [vmem:[#allocation8 + $0x240] sm:$0xff]
    %v8741 = vld [vmem:[#allocation8 + $0x248] sm:$0xff]
    %v8742 = vld [vmem:[#allocation8 + $0x250] sm:$0xff]
    %v8743 = vld [vmem:[#allocation8 + $0x258] sm:$0xff]
    %v8744 = vld [vmem:[#allocation8 + $0x260] sm:$0xff]
    %v8745 = vld [vmem:[#allocation8 + $0x268] sm:$0xff]
    %v8746 = vld [vmem:[#allocation8 + $0x270] sm:$0xff]
    %v8747 = vld [vmem:[#allocation8 + $0x278] sm:$0xff]
    %v8748 = vld [vmem:[#allocation8 + $0x280] sm:$0xff]
    %v8749 = vld [vmem:[#allocation8 + $0x288] sm:$0xff]
    %v8750 = vld [vmem:[#allocation8 + $0x290] sm:$0xff]
    %v8751 = vld [vmem:[#allocation8 + $0x298] sm:$0xff]
    %v8752 = vld [vmem:[#allocation8 + $0x2a0] sm:$0xff]
    %v8753 = vld [vmem:[#allocation8 + $0x2a8] sm:$0xff]
    %v8754 = vld [vmem:[#allocation8 + $0x2b0] sm:$0xff]
    %v8755 = vld [vmem:[#allocation8 + $0x2b8] sm:$0xff]
    %v8756 = vld [vmem:[#allocation8 + $0x2c0] sm:$0xff]
    %v8757 = vld [vmem:[#allocation8 + $0x2c8] sm:$0xff]
    %v8758 = vld [vmem:[#allocation8 + $0x2d0] sm:$0xff]
    %v8759 = vld [vmem:[#allocation8 + $0x2d8] sm:$0xff]
    %v8760 = vld [vmem:[#allocation8 + $0x2e0] sm:$0xff]
    %v8761 = vld [vmem:[#allocation8 + $0x2e8] sm:$0xff]
    %v8762 = vld [vmem:[#allocation8 + $0x2f0] sm:$0xff]
    %v8763 = vld [vmem:[#allocation8 + $0x2f8] sm:$0xff]
    %v8764 = vld [vmem:[#allocation8 + $0x300] sm:$0xff]
    %v8765 = vld [vmem:[#allocation8 + $0x308] sm:$0xff]
    %v8766 = vld [vmem:[#allocation8 + $0x310] sm:$0xff]
    %v8767 = vld [vmem:[#allocation8 + $0x318] sm:$0xff]
    %v8768 = vld [vmem:[#allocation8 + $0x320] sm:$0xff]
    %v8769 = vld [vmem:[#allocation8 + $0x328] sm:$0xff]
    %v8770 = vld [vmem:[#allocation8 + $0x330] sm:$0xff]
    %v8771 = vld [vmem:[#allocation8 + $0x338] sm:$0xff]
    %v8772 = vld [vmem:[#allocation8 + $0x340] sm:$0xff]
    %v8773 = vld [vmem:[#allocation8 + $0x348] sm:$0xff]
    %v8774 = vld [vmem:[#allocation8 + $0x350] sm:$0xff]
    %v8775 = vld [vmem:[#allocation8 + $0x358] sm:$0xff]
    %v8776 = vld [vmem:[#allocation8 + $0x360] sm:$0xff]
    %v8777 = vld [vmem:[#allocation8 + $0x368] sm:$0xff]
    %v8778 = vld [vmem:[#allocation8 + $0x370] sm:$0xff]
    %v8779 = vld [vmem:[#allocation8 + $0x378] sm:$0xff]
    %v8780 = vld [vmem:[#allocation8 + $0x380] sm:$0xff]
    %v8781 = vld [vmem:[#allocation8 + $0x388] sm:$0xff]
    %v8782 = vld [vmem:[#allocation8 + $0x390] sm:$0xff]
    %v8783 = vld [vmem:[#allocation8 + $0x398] sm:$0xff]
    %v8784 = vld [vmem:[#allocation8 + $0x3a0] sm:$0xff]
    %v8785 = vld [vmem:[#allocation8 + $0x3a8] sm:$0xff]
    %v8786 = vld [vmem:[#allocation8 + $0x3b0] sm:$0xff]
    %v8787 = vld [vmem:[#allocation8 + $0x3b8] sm:$0xff]
    %v8788 = vld [vmem:[#allocation8 + $0x3c0] sm:$0xff]
    %v8789 = vld [vmem:[#allocation8 + $0x3c8] sm:$0xff]
    %v8790 = vld [vmem:[#allocation8 + $0x3d0] sm:$0xff]
    %v8791 = vld [vmem:[#allocation8 + $0x3d8] sm:$0xff]
    %v8792 = vld [vmem:[#allocation8 + $0x3e0] sm:$0xff]
    %v8793 = vld [vmem:[#allocation8 + $0x3e8] sm:$0xff]
    %v8794 = vld [vmem:[#allocation8 + $0x3f0] sm:$0xff]
    %v8795 = vld [vmem:[#allocation8 + $0x3f8] sm:$0xff]
    %v8796 = vld [vmem:[#allocation8 + $0x400] sm:$0xff]
    %v8797 = vld [vmem:[#allocation8 + $0x408] sm:$0xff]
    %v8798 = vld [vmem:[#allocation8 + $0x410] sm:$0xff]
    %v8799 = vld [vmem:[#allocation8 + $0x418] sm:$0xff]
    %v8800 = vld [vmem:[#allocation8 + $0x420] sm:$0xff]
    %v8801 = vld [vmem:[#allocation8 + $0x428] sm:$0xff]
    %v8802 = vld [vmem:[#allocation8 + $0x430] sm:$0xff]
    %v8803 = vld [vmem:[#allocation8 + $0x438] sm:$0xff]
    %v8804 = vld [vmem:[#allocation8 + $0x440] sm:$0xff]
    %v8805 = vld [vmem:[#allocation8 + $0x448] sm:$0xff]
    %v8806 = vld [vmem:[#allocation8 + $0x450] sm:$0xff]
    %v8807 = vld [vmem:[#allocation8 + $0x458] sm:$0xff]
    %v8808 = vld [vmem:[#allocation8 + $0x460] sm:$0xff]
    %v8809 = vld [vmem:[#allocation8 + $0x468] sm:$0xff]
    %v8810 = vld [vmem:[#allocation8 + $0x470] sm:$0xff]
    %v8811 = vld [vmem:[#allocation8 + $0x478] sm:$0xff]
    %v8812 = vld [vmem:[#allocation8 + $0x480] sm:$0xff]
    %v8813 = vld [vmem:[#allocation8 + $0x488] sm:$0xff]
    %v8814 = vld [vmem:[#allocation8 + $0x490] sm:$0xff]
    %v8815 = vld [vmem:[#allocation8 + $0x498] sm:$0xff]
    %v8816 = vld [vmem:[#allocation8 + $0x4a0] sm:$0xff]
    %v8817 = vld [vmem:[#allocation8 + $0x4a8] sm:$0xff]
    %v8818 = vld [vmem:[#allocation8 + $0x4b0] sm:$0xff]
    %v8819 = vld [vmem:[#allocation8 + $0x4b8] sm:$0xff]
    %v8820 = vld [vmem:[#allocation8 + $0x4c0] sm:$0xff]
    %v8821 = vld [vmem:[#allocation8 + $0x4c8] sm:$0xff]
    %v8822 = vld [vmem:[#allocation8 + $0x4d0] sm:$0xff]
    %v8823 = vld [vmem:[#allocation8 + $0x4d8] sm:$0xff]
    %v8824 = vld [vmem:[#allocation8 + $0x4e0] sm:$0xff]
    %v8825 = vld [vmem:[#allocation8 + $0x4e8] sm:$0xff]
    %v8826 = vld [vmem:[#allocation8 + $0x4f0] sm:$0xff]
    %v8827 = vld [vmem:[#allocation8 + $0x4f8] sm:$0xff]
    %v8828 = vld [vmem:[#allocation8 + $0x500] sm:$0xff]
    %v8829 = vld [vmem:[#allocation8 + $0x508] sm:$0xff]
    %v8830 = vld [vmem:[#allocation8 + $0x510] sm:$0xff]
    %v8831 = vld [vmem:[#allocation8 + $0x518] sm:$0xff]
    %v8832 = vld [vmem:[#allocation8 + $0x520] sm:$0xff]
    %v8833 = vld [vmem:[#allocation8 + $0x528] sm:$0xff]
    %v8834 = vld [vmem:[#allocation8 + $0x530] sm:$0xff]
    %v8835 = vld [vmem:[#allocation8 + $0x538] sm:$0xff]
    %v8836 = vld [vmem:[#allocation8 + $0x540] sm:$0xff]
    %v8837 = vld [vmem:[#allocation8 + $0x548] sm:$0xff]
    %v8838 = vld [vmem:[#allocation8 + $0x550] sm:$0xff]
    %v8839 = vld [vmem:[#allocation8 + $0x558] sm:$0xff]
    %v8840 = vld [vmem:[#allocation8 + $0x560] sm:$0xff]
    %v8841 = vld [vmem:[#allocation8 + $0x568] sm:$0xff]
    %v8842 = vld [vmem:[#allocation8 + $0x570] sm:$0xff]
    %v8843 = vld [vmem:[#allocation8 + $0x578] sm:$0xff]
    %v8844 = vld [vmem:[#allocation8 + $0x580] sm:$0xff]
    %v8845 = vld [vmem:[#allocation8 + $0x588] sm:$0xff]
    %v8846 = vld [vmem:[#allocation8 + $0x590] sm:$0xff]
    %v8847 = vld [vmem:[#allocation8 + $0x598] sm:$0xff]
    %v8848 = vld [vmem:[#allocation8 + $0x5a0] sm:$0xff]
    %v8849 = vld [vmem:[#allocation8 + $0x5a8] sm:$0xff]
    %v8850 = vld [vmem:[#allocation8 + $0x5b0] sm:$0xff]
    %v8851 = vld [vmem:[#allocation8 + $0x5b8] sm:$0xff]
    %v8852 = vld [vmem:[#allocation8 + $0x5c0] sm:$0xff]
    %v8853 = vld [vmem:[#allocation8 + $0x5c8] sm:$0xff]
    %v8854 = vld [vmem:[#allocation8 + $0x5d0] sm:$0xff]
    %v8855 = vld [vmem:[#allocation8 + $0x5d8] sm:$0xff]
    %v8856 = vld [vmem:[#allocation8 + $0x5e0] sm:$0xff]
    %v8857 = vld [vmem:[#allocation8 + $0x5e8] sm:$0xff]
    %v8858 = vld [vmem:[#allocation8 + $0x5f0] sm:$0xff]
    %v8859 = vld [vmem:[#allocation8 + $0x5f8] sm:$0xff]
    %v8860 = vld [vmem:[#allocation8 + $0x600] sm:$0xff]
    %v8861 = vld [vmem:[#allocation8 + $0x608] sm:$0xff]
    %v8862 = vld [vmem:[#allocation8 + $0x610] sm:$0xff]
    %v8863 = vld [vmem:[#allocation8 + $0x618] sm:$0xff]
    %v8864 = vld [vmem:[#allocation8 + $0x620] sm:$0xff]
    %v8865 = vld [vmem:[#allocation8 + $0x628] sm:$0xff]
    %v8866 = vld [vmem:[#allocation8 + $0x630] sm:$0xff]
    %v8867 = vld [vmem:[#allocation8 + $0x638] sm:$0xff]
    %v8868 = vld [vmem:[#allocation8 + $0x640] sm:$0xff]
    %v8869 = vld [vmem:[#allocation8 + $0x648] sm:$0xff]
    %v8870 = vld [vmem:[#allocation8 + $0x650] sm:$0xff]
    %v8871 = vld [vmem:[#allocation8 + $0x658] sm:$0xff]
    %v8872 = vld [vmem:[#allocation8 + $0x660] sm:$0xff]
    %v8873 = vld [vmem:[#allocation8 + $0x668] sm:$0xff]
    %v8874 = vld [vmem:[#allocation8 + $0x670] sm:$0xff]
    %v8875 = vld [vmem:[#allocation8 + $0x678] sm:$0xff]
    %v8876 = vld [vmem:[#allocation8 + $0x680] sm:$0xff]
    %v8877 = vld [vmem:[#allocation8 + $0x688] sm:$0xff]
    %v8878 = vld [vmem:[#allocation8 + $0x690] sm:$0xff]
    %v8879 = vld [vmem:[#allocation8 + $0x698] sm:$0xff]
    %v8880 = vld [vmem:[#allocation8 + $0x6a0] sm:$0xff]
    %v8881 = vld [vmem:[#allocation8 + $0x6a8] sm:$0xff]
    %v8882 = vld [vmem:[#allocation8 + $0x6b0] sm:$0xff]
    %v8883 = vld [vmem:[#allocation8 + $0x6b8] sm:$0xff]
    %v8884 = vld [vmem:[#allocation8 + $0x6c0] sm:$0xff]
    %v8885 = vld [vmem:[#allocation8 + $0x6c8] sm:$0xff]
    %v8886 = vld [vmem:[#allocation8 + $0x6d0] sm:$0xff]
    %v8887 = vld [vmem:[#allocation8 + $0x6d8] sm:$0xff]
    %v8888 = vld [vmem:[#allocation8 + $0x6e0] sm:$0xff]
    %v8889 = vld [vmem:[#allocation8 + $0x6e8] sm:$0xff]
    %v8890 = vld [vmem:[#allocation8 + $0x6f0] sm:$0xff]
    %v8891 = vld [vmem:[#allocation8 + $0x6f8] sm:$0xff]
    %v8892 = vld [vmem:[#allocation8 + $0x700] sm:$0xff]
    %v8893 = vld [vmem:[#allocation8 + $0x708] sm:$0xff]
    %v8894 = vld [vmem:[#allocation8 + $0x710] sm:$0xff]
    %v8895 = vld [vmem:[#allocation8 + $0x718] sm:$0xff]
    %v8896 = vld [vmem:[#allocation8 + $0x720] sm:$0xff]
    %v8897 = vld [vmem:[#allocation8 + $0x728] sm:$0xff]
    %v8898 = vld [vmem:[#allocation8 + $0x730] sm:$0xff]
    %v8899 = vld [vmem:[#allocation8 + $0x738] sm:$0xff]
    %v8900 = vld [vmem:[#allocation8 + $0x740] sm:$0xff]
    %v8901 = vld [vmem:[#allocation8 + $0x748] sm:$0xff]
    %v8902 = vld [vmem:[#allocation8 + $0x750] sm:$0xff]
    %v8903 = vld [vmem:[#allocation8 + $0x758] sm:$0xff]
    %v8904 = vld [vmem:[#allocation8 + $0x760] sm:$0xff]
    %v8905 = vld [vmem:[#allocation8 + $0x768] sm:$0xff]
    %v8906 = vld [vmem:[#allocation8 + $0x770] sm:$0xff]
    %v8907 = vld [vmem:[#allocation8 + $0x778] sm:$0xff]
    %v8908 = vld [vmem:[#allocation8 + $0x780] sm:$0xff]
    %v8909 = vld [vmem:[#allocation8 + $0x788] sm:$0xff]
    %v8910 = vld [vmem:[#allocation8 + $0x790] sm:$0xff]
    %v8911 = vld [vmem:[#allocation8 + $0x798] sm:$0xff]
    %v8912 = vld [vmem:[#allocation8 + $0x7a0] sm:$0xff]
    %v8913 = vld [vmem:[#allocation8 + $0x7a8] sm:$0xff]
    %v8914 = vld [vmem:[#allocation8 + $0x7b0] sm:$0xff]
    %v8915 = vld [vmem:[#allocation8 + $0x7b8] sm:$0xff]
    %v8916 = vld [vmem:[#allocation8 + $0x7c0] sm:$0xff]
    %v8917 = vld [vmem:[#allocation8 + $0x7c8] sm:$0xff]
    %v8918 = vld [vmem:[#allocation8 + $0x7d0] sm:$0xff]
    %v8919 = vld [vmem:[#allocation8 + $0x7d8] sm:$0xff]
    %v8920 = vld [vmem:[#allocation8 + $0x7e0] sm:$0xff]
    %v8921 = vld [vmem:[#allocation8 + $0x7e8] sm:$0xff]
    %v8922 = vld [vmem:[#allocation8 + $0x7f0] sm:$0xff]
    %v8923 = vld [vmem:[#allocation8 + $0x7f8] sm:$0xff]
    %v8924 = vld [vmem:[#allocation8 + $0x800] sm:$0xff]
    %v8925 = vld [vmem:[#allocation8 + $0x808] sm:$0xff]
    %v8926 = vld [vmem:[#allocation8 + $0x810] sm:$0xff]
    %v8927 = vld [vmem:[#allocation8 + $0x818] sm:$0xff]
    %v8928 = vld [vmem:[#allocation8 + $0x820] sm:$0xff]
    %v8929 = vld [vmem:[#allocation8 + $0x828] sm:$0xff]
    %v8930 = vld [vmem:[#allocation8 + $0x830] sm:$0xff]
    %v8931 = vld [vmem:[#allocation8 + $0x838] sm:$0xff]
    %v8932 = vld [vmem:[#allocation8 + $0x840] sm:$0xff]
    %v8933 = vld [vmem:[#allocation8 + $0x848] sm:$0xff]
    %v8934 = vld [vmem:[#allocation8 + $0x850] sm:$0xff]
    %v8935 = vld [vmem:[#allocation8 + $0x858] sm:$0xff]
    %v8936 = vld [vmem:[#allocation8 + $0x860] sm:$0xff]
    %v8937 = vld [vmem:[#allocation8 + $0x868] sm:$0xff]
    %v8938 = vld [vmem:[#allocation8 + $0x870] sm:$0xff]
    %v8939 = vld [vmem:[#allocation8 + $0x878] sm:$0xff]
    %v8940 = vld [vmem:[#allocation8 + $0x880] sm:$0xff]
    %v8941 = vld [vmem:[#allocation8 + $0x888] sm:$0xff]
    %v8942 = vld [vmem:[#allocation8 + $0x890] sm:$0xff]
    %v8943 = vld [vmem:[#allocation8 + $0x898] sm:$0xff]
    %v8944 = vld [vmem:[#allocation8 + $0x8a0] sm:$0xff]
    %v8945 = vld [vmem:[#allocation8 + $0x8a8] sm:$0xff]
    %v8946 = vld [vmem:[#allocation8 + $0x8b0] sm:$0xff]
    %v8947 = vld [vmem:[#allocation8 + $0x8b8] sm:$0xff]
    %v8948 = vld [vmem:[#allocation8 + $0x8c0] sm:$0xff]
    %v8949 = vld [vmem:[#allocation8 + $0x8c8] sm:$0xff]
    %v8950 = vld [vmem:[#allocation8 + $0x8d0] sm:$0xff]
    %v8951 = vld [vmem:[#allocation8 + $0x8d8] sm:$0xff]
    %v8952 = vld [vmem:[#allocation8 + $0x8e0] sm:$0xff]
    %v8953 = vld [vmem:[#allocation8 + $0x8e8] sm:$0xff]
    %v8954 = vld [vmem:[#allocation8 + $0x8f0] sm:$0xff]
    %v8955 = vld [vmem:[#allocation8 + $0x8f8] sm:$0xff]
    %v8956 = vld [vmem:[#allocation8 + $0x900] sm:$0xff]
    %v8957 = vld [vmem:[#allocation8 + $0x908] sm:$0xff]
    %v8958 = vld [vmem:[#allocation8 + $0x910] sm:$0xff]
    %v8959 = vld [vmem:[#allocation8 + $0x918] sm:$0xff]
    %v8960 = vld [vmem:[#allocation8 + $0x920] sm:$0xff]
    %v8961 = vld [vmem:[#allocation8 + $0x928] sm:$0xff]
    %v8962 = vld [vmem:[#allocation8 + $0x930] sm:$0xff]
    %v8963 = vld [vmem:[#allocation8 + $0x938] sm:$0xff]
    %v8964 = vld [vmem:[#allocation8 + $0x940] sm:$0xff]
    %v8965 = vld [vmem:[#allocation8 + $0x948] sm:$0xff]
    %v8966 = vld [vmem:[#allocation8 + $0x950] sm:$0xff]
    %v8967 = vld [vmem:[#allocation8 + $0x958] sm:$0xff]
    %v8968 = vld [vmem:[#allocation8 + $0x960] sm:$0xff]
    %v8969 = vld [vmem:[#allocation8 + $0x968] sm:$0xff]
    %v8970 = vld [vmem:[#allocation8 + $0x970] sm:$0xff]
    %v8971 = vld [vmem:[#allocation8 + $0x978] sm:$0xff]
    %v8972 = vld [vmem:[#allocation8 + $0x980] sm:$0xff]
    %v8973 = vld [vmem:[#allocation8 + $0x988] sm:$0xff]
    %v8974 = vld [vmem:[#allocation8 + $0x990] sm:$0xff]
    %v8975 = vld [vmem:[#allocation8 + $0x998] sm:$0xff]
    %v8976 = vld [vmem:[#allocation8 + $0x9a0] sm:$0xff]
    %v8977 = vld [vmem:[#allocation8 + $0x9a8] sm:$0xff]
    %v8978 = vld [vmem:[#allocation8 + $0x9b0] sm:$0xff]
    %v8979 = vld [vmem:[#allocation8 + $0x9b8] sm:$0xff]
    %v8980 = vld [vmem:[#allocation8 + $0x9c0] sm:$0xff]
    %v8981 = vld [vmem:[#allocation8 + $0x9c8] sm:$0xff]
    %v8982 = vld [vmem:[#allocation8 + $0x9d0] sm:$0xff]
    %v8983 = vld [vmem:[#allocation8 + $0x9d8] sm:$0xff]
    %v8984 = vld [vmem:[#allocation8 + $0x9e0] sm:$0xff]
    %v8985 = vld [vmem:[#allocation8 + $0x9e8] sm:$0xff]
    %v8986 = vld [vmem:[#allocation8 + $0x9f0] sm:$0xff]
    %v8987 = vld [vmem:[#allocation8 + $0x9f8] sm:$0xff]
    %v8988 = vld [vmem:[#allocation8 + $0xa00] sm:$0xff]
    %v8989 = vld [vmem:[#allocation8 + $0xa08] sm:$0xff]
    %v8990 = vld [vmem:[#allocation8 + $0xa10] sm:$0xff]
    %v8991 = vld [vmem:[#allocation8 + $0xa18] sm:$0xff]
    %v8992 = vld [vmem:[#allocation8 + $0xa20] sm:$0xff]
    %v8993 = vld [vmem:[#allocation8 + $0xa28] sm:$0xff]
    %v8994 = vld [vmem:[#allocation8 + $0xa30] sm:$0xff]
    %v8995 = vld [vmem:[#allocation8 + $0xa38] sm:$0xff]
    %v8996 = vld [vmem:[#allocation8 + $0xa40] sm:$0xff]
    %v8997 = vld [vmem:[#allocation8 + $0xa48] sm:$0xff]
    %v8998 = vld [vmem:[#allocation8 + $0xa50] sm:$0xff]
    %v8999 = vld [vmem:[#allocation8 + $0xa58] sm:$0xff]
    %v9000 = vld [vmem:[#allocation8 + $0xa60] sm:$0xff]
    %v9001 = vld [vmem:[#allocation8 + $0xa68] sm:$0xff]
    %v9002 = vld [vmem:[#allocation8 + $0xa70] sm:$0xff]
    %v9003 = vld [vmem:[#allocation8 + $0xa78] sm:$0xff]
    %v9004 = vld [vmem:[#allocation8 + $0xa80] sm:$0xff]
    %v9005 = vld [vmem:[#allocation8 + $0xa88] sm:$0xff]
    %v9006 = vld [vmem:[#allocation8 + $0xa90] sm:$0xff]
    %v9007 = vld [vmem:[#allocation8 + $0xa98] sm:$0xff]
    %v9008 = vld [vmem:[#allocation8 + $0xaa0] sm:$0xff]
    %v9009 = vld [vmem:[#allocation8 + $0xaa8] sm:$0xff]
    %v9010 = vld [vmem:[#allocation8 + $0xab0] sm:$0xff]
    %v9011 = vld [vmem:[#allocation8 + $0xab8] sm:$0xff]
    %v9012 = vld [vmem:[#allocation8 + $0xac0] sm:$0xff]
    %v9013 = vld [vmem:[#allocation8 + $0xac8] sm:$0xff]
    %v9014 = vld [vmem:[#allocation8 + $0xad0] sm:$0xff]
    %v9015 = vld [vmem:[#allocation8 + $0xad8] sm:$0xff]
    %v9016 = vld [vmem:[#allocation8 + $0xae0] sm:$0xff]
    %v9017 = vld [vmem:[#allocation8 + $0xae8] sm:$0xff]
    %v9018 = vld [vmem:[#allocation8 + $0xaf0] sm:$0xff]
    %v9019 = vld [vmem:[#allocation8 + $0xaf8] sm:$0xff]
    %v9020 = vld [vmem:[#allocation8 + $0xb00] sm:$0xff]
    %v9021 = vld [vmem:[#allocation8 + $0xb08] sm:$0xff]
    %v9022 = vld [vmem:[#allocation8 + $0xb10] sm:$0xff]
    %v9023 = vld [vmem:[#allocation8 + $0xb18] sm:$0xff]
    %v9024 = vld [vmem:[#allocation8 + $0xb20] sm:$0xff]
    %v9025 = vld [vmem:[#allocation8 + $0xb28] sm:$0xff]
    %v9026 = vld [vmem:[#allocation8 + $0xb30] sm:$0xff]
    %v9027 = vld [vmem:[#allocation8 + $0xb38] sm:$0xff]
    %v9028 = vld [vmem:[#allocation8 + $0xb40] sm:$0xff]
    %v9029 = vld [vmem:[#allocation8 + $0xb48] sm:$0xff]
    %v9030 = vld [vmem:[#allocation8 + $0xb50] sm:$0xff]
    %v9031 = vld [vmem:[#allocation8 + $0xb58] sm:$0xff]
    %v9032 = vld [vmem:[#allocation8 + $0xb60] sm:$0xff]
    %v9033 = vld [vmem:[#allocation8 + $0xb68] sm:$0xff]
    %v9034 = vld [vmem:[#allocation8 + $0xb70] sm:$0xff]
    %v9035 = vld [vmem:[#allocation8 + $0xb78] sm:$0xff]
    %v9036 = vld [vmem:[#allocation8 + $0xb80] sm:$0xff]
    %v9037 = vld [vmem:[#allocation8 + $0xb88] sm:$0xff]
    %v9038 = vld [vmem:[#allocation8 + $0xb90] sm:$0xff]
    %v9039 = vld [vmem:[#allocation8 + $0xb98] sm:$0xff]
    %v9040 = vld [vmem:[#allocation8 + $0xba0] sm:$0xff]
    %v9041 = vld [vmem:[#allocation8 + $0xba8] sm:$0xff]
    %v9042 = vld [vmem:[#allocation8 + $0xbb0] sm:$0xff]
    %v9043 = vld [vmem:[#allocation8 + $0xbb8] sm:$0xff]
    %v9044 = vld [vmem:[#allocation8 + $0xbc0] sm:$0xff]
    %v9045 = vld [vmem:[#allocation8 + $0xbc8] sm:$0xff]
    %v9046 = vld [vmem:[#allocation8 + $0xbd0] sm:$0xff]
    %v9047 = vld [vmem:[#allocation8 + $0xbd8] sm:$0xff]
    %v9048 = vld [vmem:[#allocation8 + $0xbe0] sm:$0xff]
    %v9049 = vld [vmem:[#allocation8 + $0xbe8] sm:$0xff]
    %v9050 = vld [vmem:[#allocation8 + $0xbf0] sm:$0xff]
    %v9051 = vld [vmem:[#allocation8 + $0xbf8] sm:$0xff]
    %v9052 = vld [vmem:[#allocation8 + $0xc00] sm:$0xff]
    %v9053 = vld [vmem:[#allocation8 + $0xc08] sm:$0xff]
    %v9054 = vld [vmem:[#allocation8 + $0xc10] sm:$0xff]
    %v9055 = vld [vmem:[#allocation8 + $0xc18] sm:$0xff]
    %v9056 = vld [vmem:[#allocation8 + $0xc20] sm:$0xff]
    %v9057 = vld [vmem:[#allocation8 + $0xc28] sm:$0xff]
    %v9058 = vld [vmem:[#allocation8 + $0xc30] sm:$0xff]
    %v9059 = vld [vmem:[#allocation8 + $0xc38] sm:$0xff]
    %v9060 = vld [vmem:[#allocation8 + $0xc40] sm:$0xff]
    %v9061 = vld [vmem:[#allocation8 + $0xc48] sm:$0xff]
    %v9062 = vld [vmem:[#allocation8 + $0xc50] sm:$0xff]
    %v9063 = vld [vmem:[#allocation8 + $0xc58] sm:$0xff]
    %v9064 = vld [vmem:[#allocation8 + $0xc60] sm:$0xff]
    %v9065 = vld [vmem:[#allocation8 + $0xc68] sm:$0xff]
    %v9066 = vld [vmem:[#allocation8 + $0xc70] sm:$0xff]
    %v9067 = vld [vmem:[#allocation8 + $0xc78] sm:$0xff]
    %v9068 = vld [vmem:[#allocation8 + $0xc80] sm:$0xff]
    %v9069 = vld [vmem:[#allocation8 + $0xc88] sm:$0xff]
    %v9070 = vld [vmem:[#allocation8 + $0xc90] sm:$0xff]
    %v9071 = vld [vmem:[#allocation8 + $0xc98] sm:$0xff]
    %v9072 = vld [vmem:[#allocation8 + $0xca0] sm:$0xff]
    %v9073 = vld [vmem:[#allocation8 + $0xca8] sm:$0xff]
    %v9074 = vld [vmem:[#allocation8 + $0xcb0] sm:$0xff]
    %v9075 = vld [vmem:[#allocation8 + $0xcb8] sm:$0xff]
    %v9076 = vld [vmem:[#allocation8 + $0xcc0] sm:$0xff]
    %v9077 = vld [vmem:[#allocation8 + $0xcc8] sm:$0xff]
    %v9078 = vld [vmem:[#allocation8 + $0xcd0] sm:$0xff]
    %v9079 = vld [vmem:[#allocation8 + $0xcd8] sm:$0xff]
    %v9080 = vld [vmem:[#allocation8 + $0xce0] sm:$0xff]
    %v9081 = vld [vmem:[#allocation8 + $0xce8] sm:$0xff]
    %v9082 = vld [vmem:[#allocation8 + $0xcf0] sm:$0xff]
    %v9083 = vld [vmem:[#allocation8 + $0xcf8] sm:$0xff]
    %v9084 = vld [vmem:[#allocation8 + $0xd00] sm:$0xff]
    %v9085 = vld [vmem:[#allocation8 + $0xd08] sm:$0xff]
    %v9086 = vld [vmem:[#allocation8 + $0xd10] sm:$0xff]
    %v9087 = vld [vmem:[#allocation8 + $0xd18] sm:$0xff]
    %v9088 = vld [vmem:[#allocation8 + $0xd20] sm:$0xff]
    %v9089 = vld [vmem:[#allocation8 + $0xd28] sm:$0xff]
    %v9090 = vld [vmem:[#allocation8 + $0xd30] sm:$0xff]
    %v9091 = vld [vmem:[#allocation8 + $0xd38] sm:$0xff]
    %v9092 = vld [vmem:[#allocation8 + $0xd40] sm:$0xff]
    %v9093 = vld [vmem:[#allocation8 + $0xd48] sm:$0xff]
    %v9094 = vld [vmem:[#allocation8 + $0xd50] sm:$0xff]
    %v9095 = vld [vmem:[#allocation8 + $0xd58] sm:$0xff]
    %v9096 = vld [vmem:[#allocation8 + $0xd60] sm:$0xff]
    %v9097 = vld [vmem:[#allocation8 + $0xd68] sm:$0xff]
    %v9098 = vld [vmem:[#allocation8 + $0xd70] sm:$0xff]
    %v9099 = vld [vmem:[#allocation8 + $0xd78] sm:$0xff]
    %v9100 = vld [vmem:[#allocation8 + $0xd80] sm:$0xff]
    %v9101 = vld [vmem:[#allocation8 + $0xd88] sm:$0xff]
    %v9102 = vld [vmem:[#allocation8 + $0xd90] sm:$0xff]
    %v9103 = vld [vmem:[#allocation8 + $0xd98] sm:$0xff]
    %v9104 = vld [vmem:[#allocation8 + $0xda0] sm:$0xff]
    %v9105 = vld [vmem:[#allocation8 + $0xda8] sm:$0xff]
    %v9106 = vld [vmem:[#allocation8 + $0xdb0] sm:$0xff]
    %v9107 = vld [vmem:[#allocation8 + $0xdb8] sm:$0xff]
    %v9108 = vld [vmem:[#allocation8 + $0xdc0] sm:$0xff]
    %v9109 = vld [vmem:[#allocation8 + $0xdc8] sm:$0xff]
    %v9110 = vld [vmem:[#allocation8 + $0xdd0] sm:$0xff]
    %v9111 = vld [vmem:[#allocation8 + $0xdd8] sm:$0xff]
    %v9112 = vld [vmem:[#allocation8 + $0xde0] sm:$0xff]
    %v9113 = vld [vmem:[#allocation8 + $0xde8] sm:$0xff]
    %v9114 = vld [vmem:[#allocation8 + $0xdf0] sm:$0xff]
    %v9115 = vld [vmem:[#allocation8 + $0xdf8] sm:$0xff]
    %v9116 = vld [vmem:[#allocation8 + $0xe00] sm:$0xff]
    %v9117 = vld [vmem:[#allocation8 + $0xe08] sm:$0xff]
    %v9118 = vld [vmem:[#allocation8 + $0xe10] sm:$0xff]
    %v9119 = vld [vmem:[#allocation8 + $0xe18] sm:$0xff]
    %v9120 = vld [vmem:[#allocation8 + $0xe20] sm:$0xff]
    %v9121 = vld [vmem:[#allocation8 + $0xe28] sm:$0xff]
    %v9122 = vld [vmem:[#allocation8 + $0xe30] sm:$0xff]
    %v9123 = vld [vmem:[#allocation8 + $0xe38] sm:$0xff]
    %v9124 = vld [vmem:[#allocation8 + $0xe40] sm:$0xff]
    %v9125 = vld [vmem:[#allocation8 + $0xe48] sm:$0xff]
    %v9126 = vld [vmem:[#allocation8 + $0xe50] sm:$0xff]
    %v9127 = vld [vmem:[#allocation8 + $0xe58] sm:$0xff]
    %v9128 = vld [vmem:[#allocation8 + $0xe60] sm:$0xff]
    %v9129 = vld [vmem:[#allocation8 + $0xe68] sm:$0xff]
    %v9130 = vld [vmem:[#allocation8 + $0xe70] sm:$0xff]
    %v9131 = vld [vmem:[#allocation8 + $0xe78] sm:$0xff]
    %v9132 = vld [vmem:[#allocation8 + $0xe80] sm:$0xff]
    %v9133 = vld [vmem:[#allocation8 + $0xe88] sm:$0xff]
    %v9134 = vld [vmem:[#allocation8 + $0xe90] sm:$0xff]
    %v9135 = vld [vmem:[#allocation8 + $0xe98] sm:$0xff]
    %v9136 = vld [vmem:[#allocation8 + $0xea0] sm:$0xff]
    %v9137 = vld [vmem:[#allocation8 + $0xea8] sm:$0xff]
    %v9138 = vld [vmem:[#allocation8 + $0xeb0] sm:$0xff]
    %v9139 = vld [vmem:[#allocation8 + $0xeb8] sm:$0xff]
    %v9140 = vld [vmem:[#allocation8 + $0xec0] sm:$0xff]
    %v9141 = vld [vmem:[#allocation8 + $0xec8] sm:$0xff]
    %v9142 = vld [vmem:[#allocation8 + $0xed0] sm:$0xff]
    %v9143 = vld [vmem:[#allocation8 + $0xed8] sm:$0xff]
    %v9144 = vld [vmem:[#allocation8 + $0xee0] sm:$0xff]
    %v9145 = vld [vmem:[#allocation8 + $0xee8] sm:$0xff]
    %v9146 = vld [vmem:[#allocation8 + $0xef0] sm:$0xff]
    %v9147 = vld [vmem:[#allocation8 + $0xef8] sm:$0xff]
    %v9148 = vld [vmem:[#allocation8 + $0xf00] sm:$0xff]
    %v9149 = vld [vmem:[#allocation8 + $0xf08] sm:$0xff]
    %v9150 = vld [vmem:[#allocation8 + $0xf10] sm:$0xff]
    %v9151 = vld [vmem:[#allocation8 + $0xf18] sm:$0xff]
    %v9152 = vld [vmem:[#allocation8 + $0xf20] sm:$0xff]
    %v9153 = vld [vmem:[#allocation8 + $0xf28] sm:$0xff]
    %v9154 = vld [vmem:[#allocation8 + $0xf30] sm:$0xff]
    %v9155 = vld [vmem:[#allocation8 + $0xf38] sm:$0xff]
    %v9156 = vld [vmem:[#allocation8 + $0xf40] sm:$0xff]
    %v9157 = vld [vmem:[#allocation8 + $0xf48] sm:$0xff]
    %v9158 = vld [vmem:[#allocation8 + $0xf50] sm:$0xff]
    %v9159 = vld [vmem:[#allocation8 + $0xf58] sm:$0xff]
    %v9160 = vld [vmem:[#allocation8 + $0xf60] sm:$0xff]
    %v9161 = vld [vmem:[#allocation8 + $0xf68] sm:$0xff]
    %v9162 = vld [vmem:[#allocation8 + $0xf70] sm:$0xff]
    %v9163 = vld [vmem:[#allocation8 + $0xf78] sm:$0xff]
    %v9164 = vld [vmem:[#allocation8 + $0xf80] sm:$0xff]
    %v9165 = vld [vmem:[#allocation8 + $0xf88] sm:$0xff]
    %v9166 = vld [vmem:[#allocation8 + $0xf90] sm:$0xff]
    %v9167 = vld [vmem:[#allocation8 + $0xf98] sm:$0xff]
    %v9168 = vld [vmem:[#allocation8 + $0xfa0] sm:$0xff]
    %v9169 = vld [vmem:[#allocation8 + $0xfa8] sm:$0xff]
    %v9170 = vld [vmem:[#allocation8 + $0xfb0] sm:$0xff]
    %v9171 = vld [vmem:[#allocation8 + $0xfb8] sm:$0xff]
    %v9172 = vld [vmem:[#allocation8 + $0xfc0] sm:$0xff]
    %v9173 = vld [vmem:[#allocation8 + $0xfc8] sm:$0xff]
    %v9174 = vld [vmem:[#allocation8 + $0xfd0] sm:$0xff]
    %v9175 = vld [vmem:[#allocation8 + $0xfd8] sm:$0xff]
    %v9176 = vld [vmem:[#allocation8 + $0xfe0] sm:$0xff]
    %v9177 = vld [vmem:[#allocation8 + $0xfe8] sm:$0xff]
    %v9178 = vld [vmem:[#allocation8 + $0xff0] sm:$0xff]
    %v9179 = vld [vmem:[#allocation8 + $0xff8] sm:$0xff]
    %v9180 = vld [vmem:[#allocation40] sm:$0x3]
    %v9182 = vlaneseq
    %v9183 = vshrl.u32 %v9182, 7
    %v9184 = vsub.s32 0, %v9183
    %v9185 = vrot.slane %v9180, %v9184
    %v9186 = vlaneseq
    %v9187 = vshrl.u32 %v9186, 7
    %v9188 = vsub.s32 1, %v9187
    %v9189 = vrot.slane %v9180, %v9188
    %9192 = vmatprep.subr.bf16.mxu0 %v8669
    %9193 = vmatpush1.bf16.msra.mxu0 %v8668
    %9194 = vmatprep.subr.bf16.mxu0 %v8671
    %9195 = vmatpush1.bf16.msra.mxu0 %v8670
    %9196 = vmatprep.subr.bf16.mxu0 %v8673
    %9197 = vmatpush1.bf16.msra.mxu0 %v8672
    %9198 = vmatprep.subr.bf16.mxu0 %v8675
    %9199 = vmatpush1.bf16.msra.mxu0 %v8674
    %9200 = vmatprep.subr.bf16.mxu0 %v8677
    %9201 = vmatpush1.bf16.msra.mxu0 %v8676
    %9202 = vmatprep.subr.bf16.mxu0 %v8679
    %9203 = vmatpush1.bf16.msra.mxu0 %v8678
    %9204 = vmatprep.subr.bf16.mxu0 %v8681
    %9205 = vmatpush1.bf16.msra.mxu0 %v8680
    %9206 = vmatprep.subr.bf16.mxu0 %v8683
    %9207 = vmatpush1.bf16.msra.mxu0 %v8682
    %9208 = vmatprep.subr.bf16.mxu0 %v8685
    %9209 = vmatpush1.bf16.msra.mxu0 %v8684
    %9210 = vmatprep.subr.bf16.mxu0 %v8687
    %9211 = vmatpush1.bf16.msra.mxu0 %v8686
    %9212 = vmatprep.subr.bf16.mxu0 %v8689
    %9213 = vmatpush1.bf16.msra.mxu0 %v8688
    %9214 = vmatprep.subr.bf16.mxu0 %v8691
    %9215 = vmatpush1.bf16.msra.mxu0 %v8690
    %9216 = vmatprep.subr.bf16.mxu0 %v8693
    %9217 = vmatpush1.bf16.msra.mxu0 %v8692
    %9218 = vmatprep.subr.bf16.mxu0 %v8695
    %9219 = vmatpush1.bf16.msra.mxu0 %v8694
    %9220 = vmatprep.subr.bf16.mxu0 %v8697
    %9221 = vmatpush1.bf16.msra.mxu0 %v8696
    %9222 = vmatprep.subr.bf16.mxu0 %v8699
    %9223 = vmatpush1.bf16.msra.mxu0 %v8698
    %9224 = vmatprep.mubr.bf16.mxu0 %v8637
    %9225 = vmatmul.mubr.bf16.gmra.mrb[0].mxu0 %v8636
    %v9226 = vpop.f32.mrb[0].mxu0
    %v9227 = vadd.f32 %v9185, %v9226
    %v9228 = vpop.f32.mrb[0].mxu0
    %v9229 = vadd.f32 %v9189, %v9228
    %v9230 = vpop.f32.mrb[0].mxu0
    %v9231 = vpop.f32.mrb[0].mxu0
    %9232 = vdwg.mxu0
    %9233 = vmatprep.subr.bf16.mxu0 %v8701
    %9234 = vmatpush1.bf16.msra.mxu0 %v8700
    %9235 = vmatprep.subr.bf16.mxu0 %v8703
    %9236 = vmatpush1.bf16.msra.mxu0 %v8702
    %9237 = vmatprep.subr.bf16.mxu0 %v8705
    %9238 = vmatpush1.bf16.msra.mxu0 %v8704
    %9239 = vmatprep.subr.bf16.mxu0 %v8707
    %9240 = vmatpush1.bf16.msra.mxu0 %v8706
    %9241 = vmatprep.subr.bf16.mxu0 %v8709
    %9242 = vmatpush1.bf16.msra.mxu0 %v8708
    %9243 = vmatprep.subr.bf16.mxu0 %v8711
    %9244 = vmatpush1.bf16.msra.mxu0 %v8710
    %9245 = vmatprep.subr.bf16.mxu0 %v8713
    %9246 = vmatpush1.bf16.msra.mxu0 %v8712
    %9247 = vmatprep.subr.bf16.mxu0 %v8715
    %9248 = vmatpush1.bf16.msra.mxu0 %v8714
    %9249 = vmatprep.subr.bf16.mxu0 %v8717
    %9250 = vmatpush1.bf16.msra.mxu0 %v8716
    %9251 = vmatprep.subr.bf16.mxu0 %v8719
    %9252 = vmatpush1.bf16.msra.mxu0 %v8718
    %9253 = vmatprep.subr.bf16.mxu0 %v8721
    %9254 = vmatpush1.bf16.msra.mxu0 %v8720
    %9255 = vmatprep.subr.bf16.mxu0 %v8723
    %9256 = vmatpush1.bf16.msra.mxu0 %v8722
    %9257 = vmatprep.subr.bf16.mxu0 %v8725
    %9258 = vmatpush1.bf16.msra.mxu0 %v8724
    %9259 = vmatprep.subr.bf16.mxu0 %v8727
    %9260 = vmatpush1.bf16.msra.mxu0 %v8726
    %9261 = vmatprep.subr.bf16.mxu0 %v8729
    %9262 = vmatpush1.bf16.msra.mxu0 %v8728
    %9263 = vmatprep.subr.bf16.mxu0 %v8731
    %9264 = vmatpush1.bf16.msra.mxu0 %v8730
    %9265 = vmatprep.mubr.bf16.mxu0 %v8639
    %9266 = vmatmul.mubr.bf16.gmra.mrb[0].mxu0 %v8638
    %v9267 = vpop.f32.mrb[0].mxu0
    %v9268 = vadd.f32 %v9227, %v9267
    %v9269 = vpop.f32.mrb[0].mxu0
    %v9270 = vadd.f32 %v9229, %v9269
    %v9271 = vpop.f32.mrb[0].mxu0
    %v9272 = vpop.f32.mrb[0].mxu0
    %9273 = vdwg.mxu0
    %9274 = vmatprep.subr.bf16.mxu0 %v8733
    %9275 = vmatpush1.bf16.msra.mxu0 %v8732
    %9276 = vmatprep.subr.bf16.mxu0 %v8735
    %9277 = vmatpush1.bf16.msra.mxu0 %v8734
    %9278 = vmatprep.subr.bf16.mxu0 %v8737
    %9279 = vmatpush1.bf16.msra.mxu0 %v8736
    %9280 = vmatprep.subr.bf16.mxu0 %v8739
    %9281 = vmatpush1.bf16.msra.mxu0 %v8738
    %9282 = vmatprep.subr.bf16.mxu0 %v8741
    %9283 = vmatpush1.bf16.msra.mxu0 %v8740
    %9284 = vmatprep.subr.bf16.mxu0 %v8743
    %9285 = vmatpush1.bf16.msra.mxu0 %v8742
    %9286 = vmatprep.subr.bf16.mxu0 %v8745
    %9287 = vmatpush1.bf16.msra.mxu0 %v8744
    %9288 = vmatprep.subr.bf16.mxu0 %v8747
    %9289 = vmatpush1.bf16.msra.mxu0 %v8746
    %9290 = vmatprep.subr.bf16.mxu0 %v8749
    %9291 = vmatpush1.bf16.msra.mxu0 %v8748
    %9292 = vmatprep.subr.bf16.mxu0 %v8751
    %9293 = vmatpush1.bf16.msra.mxu0 %v8750
    %9294 = vmatprep.subr.bf16.mxu0 %v8753
    %9295 = vmatpush1.bf16.msra.mxu0 %v8752
    %9296 = vmatprep.subr.bf16.mxu0 %v8755
    %9297 = vmatpush1.bf16.msra.mxu0 %v8754
    %9298 = vmatprep.subr.bf16.mxu0 %v8757
    %9299 = vmatpush1.bf16.msra.mxu0 %v8756
    %9300 = vmatprep.subr.bf16.mxu0 %v8759
    %9301 = vmatpush1.bf16.msra.mxu0 %v8758
    %9302 = vmatprep.subr.bf16.mxu0 %v8761
    %9303 = vmatpush1.bf16.msra.mxu0 %v8760
    %9304 = vmatprep.subr.bf16.mxu0 %v8763
    %9305 = vmatpush1.bf16.msra.mxu0 %v8762
    %9306 = vmatprep.mubr.bf16.mxu0 %v8641
    %9307 = vmatmul.mubr.bf16.gmra.mrb[0].mxu0 %v8640
    %v9308 = vpop.f32.mrb[0].mxu0
    %v9309 = vadd.f32 %v9268, %v9308
    %v9310 = vpop.f32.mrb[0].mxu0
    %v9311 = vadd.f32 %v9270, %v9310
    %v9312 = vpop.f32.mrb[0].mxu0
    %v9313 = vpop.f32.mrb[0].mxu0
    %9314 = vdwg.mxu0
    %9315 = vmatprep.subr.bf16.mxu0 %v8765
    %9316 = vmatpush1.bf16.msra.mxu0 %v8764
    %9317 = vmatprep.subr.bf16.mxu0 %v8767
    %9318 = vmatpush1.bf16.msra.mxu0 %v8766
    %9319 = vmatprep.subr.bf16.mxu0 %v8769
    %9320 = vmatpush1.bf16.msra.mxu0 %v8768
    %9321 = vmatprep.subr.bf16.mxu0 %v8771
    %9322 = vmatpush1.bf16.msra.mxu0 %v8770
    %9323 = vmatprep.subr.bf16.mxu0 %v8773
    %9324 = vmatpush1.bf16.msra.mxu0 %v8772
    %9325 = vmatprep.subr.bf16.mxu0 %v8775
    %9326 = vmatpush1.bf16.msra.mxu0 %v8774
    %9327 = vmatprep.subr.bf16.mxu0 %v8777
    %9328 = vmatpush1.bf16.msra.mxu0 %v8776
    %9329 = vmatprep.subr.bf16.mxu0 %v8779
    %9330 = vmatpush1.bf16.msra.mxu0 %v8778
    %9331 = vmatprep.subr.bf16.mxu0 %v8781
    %9332 = vmatpush1.bf16.msra.mxu0 %v8780
    %9333 = vmatprep.subr.bf16.mxu0 %v8783
    %9334 = vmatpush1.bf16.msra.mxu0 %v8782
    %9335 = vmatprep.subr.bf16.mxu0 %v8785
    %9336 = vmatpush1.bf16.msra.mxu0 %v8784
    %9337 = vmatprep.subr.bf16.mxu0 %v8787
    %9338 = vmatpush1.bf16.msra.mxu0 %v8786
    %9339 = vmatprep.subr.bf16.mxu0 %v8789
    %9340 = vmatpush1.bf16.msra.mxu0 %v8788
    %9341 = vmatprep.subr.bf16.mxu0 %v8791
    %9342 = vmatpush1.bf16.msra.mxu0 %v8790
    %9343 = vmatprep.subr.bf16.mxu0 %v8793
    %9344 = vmatpush1.bf16.msra.mxu0 %v8792
    %9345 = vmatprep.subr.bf16.mxu0 %v8795
    %9346 = vmatpush1.bf16.msra.mxu0 %v8794
    %9347 = vmatprep.mubr.bf16.mxu0 %v8643
    %9348 = vmatmul.mubr.bf16.gmra.mrb[0].mxu0 %v8642
    %v9349 = vpop.f32.mrb[0].mxu0
    %v9350 = vadd.f32 %v9309, %v9349
    %v9351 = vpop.f32.mrb[0].mxu0
    %v9352 = vadd.f32 %v9311, %v9351
    %v9353 = vpop.f32.mrb[0].mxu0
    %v9354 = vpop.f32.mrb[0].mxu0
    %9355 = vdwg.mxu0
    %9356 = vmatprep.subr.bf16.mxu0 %v8797
    %9357 = vmatpush1.bf16.msra.mxu0 %v8796
    %9358 = vmatprep.subr.bf16.mxu0 %v8799
    %9359 = vmatpush1.bf16.msra.mxu0 %v8798
    %9360 = vmatprep.subr.bf16.mxu0 %v8801
    %9361 = vmatpush1.bf16.msra.mxu0 %v8800
    %9362 = vmatprep.subr.bf16.mxu0 %v8803
    %9363 = vmatpush1.bf16.msra.mxu0 %v8802
    %9364 = vmatprep.subr.bf16.mxu0 %v8805
    %9365 = vmatpush1.bf16.msra.mxu0 %v8804
    %9366 = vmatprep.subr.bf16.mxu0 %v8807
    %9367 = vmatpush1.bf16.msra.mxu0 %v8806
    %9368 = vmatprep.subr.bf16.mxu0 %v8809
    %9369 = vmatpush1.bf16.msra.mxu0 %v8808
    %9370 = vmatprep.subr.bf16.mxu0 %v8811
    %9371 = vmatpush1.bf16.msra.mxu0 %v8810
    %9372 = vmatprep.subr.bf16.mxu0 %v8813
    %9373 = vmatpush1.bf16.msra.mxu0 %v8812
    %9374 = vmatprep.subr.bf16.mxu0 %v8815
    %9375 = vmatpush1.bf16.msra.mxu0 %v8814
    %9376 = vmatprep.subr.bf16.mxu0 %v8817
    %9377 = vmatpush1.bf16.msra.mxu0 %v8816
    %9378 = vmatprep.subr.bf16.mxu0 %v8819
    %9379 = vmatpush1.bf16.msra.mxu0 %v8818
    %9380 = vmatprep.subr.bf16.mxu0 %v8821
    %9381 = vmatpush1.bf16.msra.mxu0 %v8820
    %9382 = vmatprep.subr.bf16.mxu0 %v8823
    %9383 = vmatpush1.bf16.msra.mxu0 %v8822
    %9384 = vmatprep.subr.bf16.mxu0 %v8825
    %9385 = vmatpush1.bf16.msra.mxu0 %v8824
    %9386 = vmatprep.subr.bf16.mxu0 %v8827
    %9387 = vmatpush1.bf16.msra.mxu0 %v8826
    %9388 = vmatprep.mubr.bf16.mxu0 %v8645
    %9389 = vmatmul.mubr.bf16.gmra.mrb[0].mxu0 %v8644
    %v9390 = vpop.f32.mrb[0].mxu0
    %v9391 = vadd.f32 %v9350, %v9390
    %v9392 = vpop.f32.mrb[0].mxu0
    %v9393 = vadd.f32 %v9352, %v9392
    %v9394 = vpop.f32.mrb[0].mxu0
    %v9395 = vpop.f32.mrb[0].mxu0
    %9396 = vdwg.mxu0
    %9397 = vmatprep.subr.bf16.mxu0 %v8829
    %9398 = vmatpush1.bf16.msra.mxu0 %v8828
    %9399 = vmatprep.subr.bf16.mxu0 %v8831
    %9400 = vmatpush1.bf16.msra.mxu0 %v8830
    %9401 = vmatprep.subr.bf16.mxu0 %v8833
    %9402 = vmatpush1.bf16.msra.mxu0 %v8832
    %9403 = vmatprep.subr.bf16.mxu0 %v8835
    %9404 = vmatpush1.bf16.msra.mxu0 %v8834
    %9405 = vmatprep.subr.bf16.mxu0 %v8837
    %9406 = vmatpush1.bf16.msra.mxu0 %v8836
    %9407 = vmatprep.subr.bf16.mxu0 %v8839
    %9408 = vmatpush1.bf16.msra.mxu0 %v8838
    %9409 = vmatprep.subr.bf16.mxu0 %v8841
    %9410 = vmatpush1.bf16.msra.mxu0 %v8840
    %9411 = vmatprep.subr.bf16.mxu0 %v8843
    %9412 = vmatpush1.bf16.msra.mxu0 %v8842
    %9413 = vmatprep.subr.bf16.mxu0 %v8845
    %9414 = vmatpush1.bf16.msra.mxu0 %v8844
    %9415 = vmatprep.subr.bf16.mxu0 %v8847
    %9416 = vmatpush1.bf16.msra.mxu0 %v8846
    %9417 = vmatprep.subr.bf16.mxu0 %v8849
    %9418 = vmatpush1.bf16.msra.mxu0 %v8848
    %9419 = vmatprep.subr.bf16.mxu0 %v8851
    %9420 = vmatpush1.bf16.msra.mxu0 %v8850
    %9421 = vmatprep.subr.bf16.mxu0 %v8853
    %9422 = vmatpush1.bf16.msra.mxu0 %v8852
    %9423 = vmatprep.subr.bf16.mxu0 %v8855
    %9424 = vmatpush1.bf16.msra.mxu0 %v8854
    %9425 = vmatprep.subr.bf16.mxu0 %v8857
    %9426 = vmatpush1.bf16.msra.mxu0 %v8856
    %9427 = vmatprep.subr.bf16.mxu0 %v8859
    %9428 = vmatpush1.bf16.msra.mxu0 %v8858
    %9429 = vmatprep.mubr.bf16.mxu0 %v8647
    %9430 = vmatmul.mubr.bf16.gmra.mrb[0].mxu0 %v8646
    %v9431 = vpop.f32.mrb[0].mxu0
    %v9432 = vadd.f32 %v9391, %v9431
    %v9433 = vpop.f32.mrb[0].mxu0
    %v9434 = vadd.f32 %v9393, %v9433
    %v9435 = vpop.f32.mrb[0].mxu0
    %v9436 = vpop.f32.mrb[0].mxu0
    %9437 = vdwg.mxu0
    %9438 = vmatprep.subr.bf16.mxu0 %v8861
    %9439 = vmatpush1.bf16.msra.mxu0 %v8860
    %9440 = vmatprep.subr.bf16.mxu0 %v8863
    %9441 = vmatpush1.bf16.msra.mxu0 %v8862
    %9442 = vmatprep.subr.bf16.mxu0 %v8865
    %9443 = vmatpush1.bf16.msra.mxu0 %v8864
    %9444 = vmatprep.subr.bf16.mxu0 %v8867
    %9445 = vmatpush1.bf16.msra.mxu0 %v8866
    %9446 = vmatprep.subr.bf16.mxu0 %v8869
    %9447 = vmatpush1.bf16.msra.mxu0 %v8868
    %9448 = vmatprep.subr.bf16.mxu0 %v8871
    %9449 = vmatpush1.bf16.msra.mxu0 %v8870
    %9450 = vmatprep.subr.bf16.mxu0 %v8873
    %9451 = vmatpush1.bf16.msra.mxu0 %v8872
    %9452 = vmatprep.subr.bf16.mxu0 %v8875
    %9453 = vmatpush1.bf16.msra.mxu0 %v8874
    %9454 = vmatprep.subr.bf16.mxu0 %v8877
    %9455 = vmatpush1.bf16.msra.mxu0 %v8876
    %9456 = vmatprep.subr.bf16.mxu0 %v8879
    %9457 = vmatpush1.bf16.msra.mxu0 %v8878
    %9458 = vmatprep.subr.bf16.mxu0 %v8881
    %9459 = vmatpush1.bf16.msra.mxu0 %v8880
    %9460 = vmatprep.subr.bf16.mxu0 %v8883
    %9461 = vmatpush1.bf16.msra.mxu0 %v8882
    %9462 = vmatprep.subr.bf16.mxu0 %v8885
    %9463 = vmatpush1.bf16.msra.mxu0 %v8884
    %9464 = vmatprep.subr.bf16.mxu0 %v8887
    %9465 = vmatpush1.bf16.msra.mxu0 %v8886
    %9466 = vmatprep.subr.bf16.mxu0 %v8889
    %9467 = vmatpush1.bf16.msra.mxu0 %v8888
    %9468 = vmatprep.subr.bf16.mxu0 %v8891
    %9469 = vmatpush1.bf16.msra.mxu0 %v8890
    %9470 = vmatprep.mubr.bf16.mxu0 %v8649
    %9471 = vmatmul.mubr.bf16.gmra.mrb[0].mxu0 %v8648
    %v9472 = vpop.f32.mrb[0].mxu0
    %v9473 = vadd.f32 %v9432, %v9472
    %v9474 = vpop.f32.mrb[0].mxu0
    %v9475 = vadd.f32 %v9434, %v9474
    %v9476 = vpop.f32.mrb[0].mxu0
    %v9477 = vpop.f32.mrb[0].mxu0
    %9478 = vdwg.mxu0
    %9479 = vmatprep.subr.bf16.mxu0 %v8893
    %9480 = vmatpush1.bf16.msra.mxu0 %v8892
    %9481 = vmatprep.subr.bf16.mxu0 %v8895
    %9482 = vmatpush1.bf16.msra.mxu0 %v8894
    %9483 = vmatprep.subr.bf16.mxu0 %v8897
    %9484 = vmatpush1.bf16.msra.mxu0 %v8896
    %9485 = vmatprep.subr.bf16.mxu0 %v8899
    %9486 = vmatpush1.bf16.msra.mxu0 %v8898
    %9487 = vmatprep.subr.bf16.mxu0 %v8901
    %9488 = vmatpush1.bf16.msra.mxu0 %v8900
    %9489 = vmatprep.subr.bf16.mxu0 %v8903
    %9490 = vmatpush1.bf16.msra.mxu0 %v8902
    %9491 = vmatprep.subr.bf16.mxu0 %v8905
    %9492 = vmatpush1.bf16.msra.mxu0 %v8904
    %9493 = vmatprep.subr.bf16.mxu0 %v8907
    %9494 = vmatpush1.bf16.msra.mxu0 %v8906
    %9495 = vmatprep.subr.bf16.mxu0 %v8909
    %9496 = vmatpush1.bf16.msra.mxu0 %v8908
    %9497 = vmatprep.subr.bf16.mxu0 %v8911
    %9498 = vmatpush1.bf16.msra.mxu0 %v8910
    %9499 = vmatprep.subr.bf16.mxu0 %v8913
    %9500 = vmatpush1.bf16.msra.mxu0 %v8912
    %9501 = vmatprep.subr.bf16.mxu0 %v8915
    %9502 = vmatpush1.bf16.msra.mxu0 %v8914
    %9503 = vmatprep.subr.bf16.mxu0 %v8917
    %9504 = vmatpush1.bf16.msra.mxu0 %v8916
    %9505 = vmatprep.subr.bf16.mxu0 %v8919
    %9506 = vmatpush1.bf16.msra.mxu0 %v8918
    %9507 = vmatprep.subr.bf16.mxu0 %v8921
    %9508 = vmatpush1.bf16.msra.mxu0 %v8920
    %9509 = vmatprep.subr.bf16.mxu0 %v8923
    %9510 = vmatpush1.bf16.msra.mxu0 %v8922
    %9511 = vmatprep.mubr.bf16.mxu0 %v8651
    %9512 = vmatmul.mubr.bf16.gmra.mrb[0].mxu0 %v8650
    %v9513 = vpop.f32.mrb[0].mxu0
    %v9514 = vadd.f32 %v9473, %v9513
    %v9515 = vpop.f32.mrb[0].mxu0
    %v9516 = vadd.f32 %v9475, %v9515
    %v9517 = vpop.f32.mrb[0].mxu0
    %v9518 = vpop.f32.mrb[0].mxu0
    %9519 = vdwg.mxu0
    %9520 = vmatprep.subr.bf16.mxu0 %v8925
    %9521 = vmatpush1.bf16.msra.mxu0 %v8924
    %9522 = vmatprep.subr.bf16.mxu0 %v8927
    %9523 = vmatpush1.bf16.msra.mxu0 %v8926
    %9524 = vmatprep.subr.bf16.mxu0 %v8929
    %9525 = vmatpush1.bf16.msra.mxu0 %v8928
    %9526 = vmatprep.subr.bf16.mxu0 %v8931
    %9527 = vmatpush1.bf16.msra.mxu0 %v8930
    %9528 = vmatprep.subr.bf16.mxu0 %v8933
    %9529 = vmatpush1.bf16.msra.mxu0 %v8932
    %9530 = vmatprep.subr.bf16.mxu0 %v8935
    %9531 = vmatpush1.bf16.msra.mxu0 %v8934
    %9532 = vmatprep.subr.bf16.mxu0 %v8937
    %9533 = vmatpush1.bf16.msra.mxu0 %v8936
    %9534 = vmatprep.subr.bf16.mxu0 %v8939
    %9535 = vmatpush1.bf16.msra.mxu0 %v8938
    %9536 = vmatprep.subr.bf16.mxu0 %v8941
    %9537 = vmatpush1.bf16.msra.mxu0 %v8940
    %9538 = vmatprep.subr.bf16.mxu0 %v8943
    %9539 = vmatpush1.bf16.msra.mxu0 %v8942
    %9540 = vmatprep.subr.bf16.mxu0 %v8945
    %9541 = vmatpush1.bf16.msra.mxu0 %v8944
    %9542 = vmatprep.subr.bf16.mxu0 %v8947
    %9543 = vmatpush1.bf16.msra.mxu0 %v8946
    %9544 = vmatprep.subr.bf16.mxu0 %v8949
    %9545 = vmatpush1.bf16.msra.mxu0 %v8948
    %9546 = vmatprep.subr.bf16.mxu0 %v8951
    %9547 = vmatpush1.bf16.msra.mxu0 %v8950
    %9548 = vmatprep.subr.bf16.mxu0 %v8953
    %9549 = vmatpush1.bf16.msra.mxu0 %v8952
    %9550 = vmatprep.subr.bf16.mxu0 %v8955
    %9551 = vmatpush1.bf16.msra.mxu0 %v8954
    %9552 = vmatprep.mubr.bf16.mxu0 %v8653
    %9553 = vmatmul.mubr.bf16.gmra.mrb[0].mxu0 %v8652
    %v9554 = vpop.f32.mrb[0].mxu0
    %v9555 = vadd.f32 %v9514, %v9554
    %v9556 = vpop.f32.mrb[0].mxu0
    %v9557 = vadd.f32 %v9516, %v9556
    %v9558 = vpop.f32.mrb[0].mxu0
    %v9559 = vpop.f32.mrb[0].mxu0
    %9560 = vdwg.mxu0
    %9561 = vmatprep.subr.bf16.mxu0 %v8957
    %9562 = vmatpush1.bf16.msra.mxu0 %v8956
    %9563 = vmatprep.subr.bf16.mxu0 %v8959
    %9564 = vmatpush1.bf16.msra.mxu0 %v8958
    %9565 = vmatprep.subr.bf16.mxu0 %v8961
    %9566 = vmatpush1.bf16.msra.mxu0 %v8960
    %9567 = vmatprep.subr.bf16.mxu0 %v8963
    %9568 = vmatpush1.bf16.msra.mxu0 %v8962
    %9569 = vmatprep.subr.bf16.mxu0 %v8965
    %9570 = vmatpush1.bf16.msra.mxu0 %v8964
    %9571 = vmatprep.subr.bf16.mxu0 %v8967
    %9572 = vmatpush1.bf16.msra.mxu0 %v8966
    %9573 = vmatprep.subr.bf16.mxu0 %v8969
    %9574 = vmatpush1.bf16.msra.mxu0 %v8968
    %9575 = vmatprep.subr.bf16.mxu0 %v8971
    %9576 = vmatpush1.bf16.msra.mxu0 %v8970
    %9577 = vmatprep.subr.bf16.mxu0 %v8973
    %9578 = vmatpush1.bf16.msra.mxu0 %v8972
    %9579 = vmatprep.subr.bf16.mxu0 %v8975
    %9580 = vmatpush1.bf16.msra.mxu0 %v8974
    %9581 = vmatprep.subr.bf16.mxu0 %v8977
    %9582 = vmatpush1.bf16.msra.mxu0 %v8976
    %9583 = vmatprep.subr.bf16.mxu0 %v8979
    %9584 = vmatpush1.bf16.msra.mxu0 %v8978
    %9585 = vmatprep.subr.bf16.mxu0 %v8981
    %9586 = vmatpush1.bf16.msra.mxu0 %v8980
    %9587 = vmatprep.subr.bf16.mxu0 %v8983
    %9588 = vmatpush1.bf16.msra.mxu0 %v8982
    %9589 = vmatprep.subr.bf16.mxu0 %v8985
    %9590 = vmatpush1.bf16.msra.mxu0 %v8984
    %9591 = vmatprep.subr.bf16.mxu0 %v8987
    %9592 = vmatpush1.bf16.msra.mxu0 %v8986
    %9593 = vmatprep.mubr.bf16.mxu0 %v8655
    %9594 = vmatmul.mubr.bf16.gmra.mrb[0].mxu0 %v8654
    %v9595 = vpop.f32.mrb[0].mxu0
    %v9596 = vadd.f32 %v9555, %v9595
    %v9597 = vpop.f32.mrb[0].mxu0
    %v9598 = vadd.f32 %v9557, %v9597
    %v9599 = vpop.f32.mrb[0].mxu0
    %v9600 = vpop.f32.mrb[0].mxu0
    %9601 = vdwg.mxu0
    %9602 = vmatprep.subr.bf16.mxu0 %v8989
    %9603 = vmatpush1.bf16.msra.mxu0 %v8988
    %9604 = vmatprep.subr.bf16.mxu0 %v8991
    %9605 = vmatpush1.bf16.msra.mxu0 %v8990
    %9606 = vmatprep.subr.bf16.mxu0 %v8993
    %9607 = vmatpush1.bf16.msra.mxu0 %v8992
    %9608 = vmatprep.subr.bf16.mxu0 %v8995
    %9609 = vmatpush1.bf16.msra.mxu0 %v8994
    %9610 = vmatprep.subr.bf16.mxu0 %v8997
    %9611 = vmatpush1.bf16.msra.mxu0 %v8996
    %9612 = vmatprep.subr.bf16.mxu0 %v8999
    %9613 = vmatpush1.bf16.msra.mxu0 %v8998
    %9614 = vmatprep.subr.bf16.mxu0 %v9001
    %9615 = vmatpush1.bf16.msra.mxu0 %v9000
    %9616 = vmatprep.subr.bf16.mxu0 %v9003
    %9617 = vmatpush1.bf16.msra.mxu0 %v9002
    %9618 = vmatprep.subr.bf16.mxu0 %v9005
    %9619 = vmatpush1.bf16.msra.mxu0 %v9004
    %9620 = vmatprep.subr.bf16.mxu0 %v9007
    %9621 = vmatpush1.bf16.msra.mxu0 %v9006
    %9622 = vmatprep.subr.bf16.mxu0 %v9009
    %9623 = vmatpush1.bf16.msra.mxu0 %v9008
    %9624 = vmatprep.subr.bf16.mxu0 %v9011
    %9625 = vmatpush1.bf16.msra.mxu0 %v9010
    %9626 = vmatprep.subr.bf16.mxu0 %v9013
    %9627 = vmatpush1.bf16.msra.mxu0 %v9012
    %9628 = vmatprep.subr.bf16.mxu0 %v9015
    %9629 = vmatpush1.bf16.msra.mxu0 %v9014
    %9630 = vmatprep.subr.bf16.mxu0 %v9017
    %9631 = vmatpush1.bf16.msra.mxu0 %v9016
    %9632 = vmatprep.subr.bf16.mxu0 %v9019
    %9633 = vmatpush1.bf16.msra.mxu0 %v9018
    %9634 = vmatprep.mubr.bf16.mxu0 %v8657
    %9635 = vmatmul.mubr.bf16.gmra.mrb[0].mxu0 %v8656
    %v9636 = vpop.f32.mrb[0].mxu0
    %v9637 = vadd.f32 %v9596, %v9636
    %v9638 = vpop.f32.mrb[0].mxu0
    %v9639 = vadd.f32 %v9598, %v9638
    %v9640 = vpop.f32.mrb[0].mxu0
    %v9641 = vpop.f32.mrb[0].mxu0
    %9642 = vdwg.mxu0
    %9643 = vmatprep.subr.bf16.mxu0 %v9021
    %9644 = vmatpush1.bf16.msra.mxu0 %v9020
    %9645 = vmatprep.subr.bf16.mxu0 %v9023
    %9646 = vmatpush1.bf16.msra.mxu0 %v9022
    %9647 = vmatprep.subr.bf16.mxu0 %v9025
    %9648 = vmatpush1.bf16.msra.mxu0 %v9024
    %9649 = vmatprep.subr.bf16.mxu0 %v9027
    %9650 = vmatpush1.bf16.msra.mxu0 %v9026
    %9651 = vmatprep.subr.bf16.mxu0 %v9029
    %9652 = vmatpush1.bf16.msra.mxu0 %v9028
    %9653 = vmatprep.subr.bf16.mxu0 %v9031
    %9654 = vmatpush1.bf16.msra.mxu0 %v9030
    %9655 = vmatprep.subr.bf16.mxu0 %v9033
    %9656 = vmatpush1.bf16.msra.mxu0 %v9032
    %9657 = vmatprep.subr.bf16.mxu0 %v9035
    %9658 = vmatpush1.bf16.msra.mxu0 %v9034
    %9659 = vmatprep.subr.bf16.mxu0 %v9037
    %9660 = vmatpush1.bf16.msra.mxu0 %v9036
    %9661 = vmatprep.subr.bf16.mxu0 %v9039
    %9662 = vmatpush1.bf16.msra.mxu0 %v9038
    %9663 = vmatprep.subr.bf16.mxu0 %v9041
    %9664 = vmatpush1.bf16.msra.mxu0 %v9040
    %9665 = vmatprep.subr.bf16.mxu0 %v9043
    %9666 = vmatpush1.bf16.msra.mxu0 %v9042
    %9667 = vmatprep.subr.bf16.mxu0 %v9045
    %9668 = vmatpush1.bf16.msra.mxu0 %v9044
    %9669 = vmatprep.subr.bf16.mxu0 %v9047
    %9670 = vmatpush1.bf16.msra.mxu0 %v9046
    %9671 = vmatprep.subr.bf16.mxu0 %v9049
    %9672 = vmatpush1.bf16.msra.mxu0 %v9048
    %9673 = vmatprep.subr.bf16.mxu0 %v9051
    %9674 = vmatpush1.bf16.msra.mxu0 %v9050
    %9675 = vmatprep.mubr.bf16.mxu0 %v8659
    %9676 = vmatmul.mubr.bf16.gmra.mrb[0].mxu0 %v8658
    %v9677 = vpop.f32.mrb[0].mxu0
    %v9678 = vadd.f32 %v9637, %v9677
    %v9679 = vpop.f32.mrb[0].mxu0
    %v9680 = vadd.f32 %v9639, %v9679
    %v9681 = vpop.f32.mrb[0].mxu0
    %v9682 = vpop.f32.mrb[0].mxu0
    %9683 = vdwg.mxu0
    %9684 = vmatprep.subr.bf16.mxu0 %v9053
    %9685 = vmatpush1.bf16.msra.mxu0 %v9052
    %9686 = vmatprep.subr.bf16.mxu0 %v9055
    %9687 = vmatpush1.bf16.msra.mxu0 %v9054
    %9688 = vmatprep.subr.bf16.mxu0 %v9057
    %9689 = vmatpush1.bf16.msra.mxu0 %v9056
    %9690 = vmatprep.subr.bf16.mxu0 %v9059
    %9691 = vmatpush1.bf16.msra.mxu0 %v9058
    %9692 = vmatprep.subr.bf16.mxu0 %v9061
    %9693 = vmatpush1.bf16.msra.mxu0 %v9060
    %9694 = vmatprep.subr.bf16.mxu0 %v9063
    %9695 = vmatpush1.bf16.msra.mxu0 %v9062
    %9696 = vmatprep.subr.bf16.mxu0 %v9065
    %9697 = vmatpush1.bf16.msra.mxu0 %v9064
    %9698 = vmatprep.subr.bf16.mxu0 %v9067
    %9699 = vmatpush1.bf16.msra.mxu0 %v9066
    %9700 = vmatprep.subr.bf16.mxu0 %v9069
    %9701 = vmatpush1.bf16.msra.mxu0 %v9068
    %9702 = vmatprep.subr.bf16.mxu0 %v9071
    %9703 = vmatpush1.bf16.msra.mxu0 %v9070
    %9704 = vmatprep.subr.bf16.mxu0 %v9073
    %9705 = vmatpush1.bf16.msra.mxu0 %v9072
    %9706 = vmatprep.subr.bf16.mxu0 %v9075
    %9707 = vmatpush1.bf16.msra.mxu0 %v9074
    %9708 = vmatprep.subr.bf16.mxu0 %v9077
    %9709 = vmatpush1.bf16.msra.mxu0 %v9076
    %9710 = vmatprep.subr.bf16.mxu0 %v9079
    %9711 = vmatpush1.bf16.msra.mxu0 %v9078
    %9712 = vmatprep.subr.bf16.mxu0 %v9081
    %9713 = vmatpush1.bf16.msra.mxu0 %v9080
    %9714 = vmatprep.subr.bf16.mxu0 %v9083
    %9715 = vmatpush1.bf16.msra.mxu0 %v9082
    %9716 = vmatprep.mubr.bf16.mxu0 %v8661
    %9717 = vmatmul.mubr.bf16.gmra.mrb[0].mxu0 %v8660
    %v9718 = vpop.f32.mrb[0].mxu0
    %v9719 = vadd.f32 %v9678, %v9718
    %v9720 = vpop.f32.mrb[0].mxu0
    %v9721 = vadd.f32 %v9680, %v9720
    %v9722 = vpop.f32.mrb[0].mxu0
    %v9723 = vpop.f32.mrb[0].mxu0
    %9724 = vdwg.mxu0
    %9725 = vmatprep.subr.bf16.mxu0 %v9085
    %9726 = vmatpush1.bf16.msra.mxu0 %v9084
    %9727 = vmatprep.subr.bf16.mxu0 %v9087
    %9728 = vmatpush1.bf16.msra.mxu0 %v9086
    %9729 = vmatprep.subr.bf16.mxu0 %v9089
    %9730 = vmatpush1.bf16.msra.mxu0 %v9088
    %9731 = vmatprep.subr.bf16.mxu0 %v9091
    %9732 = vmatpush1.bf16.msra.mxu0 %v9090
    %9733 = vmatprep.subr.bf16.mxu0 %v9093
    %9734 = vmatpush1.bf16.msra.mxu0 %v9092
    %9735 = vmatprep.subr.bf16.mxu0 %v9095
    %9736 = vmatpush1.bf16.msra.mxu0 %v9094
    %9737 = vmatprep.subr.bf16.mxu0 %v9097
    %9738 = vmatpush1.bf16.msra.mxu0 %v9096
    %9739 = vmatprep.subr.bf16.mxu0 %v9099
    %9740 = vmatpush1.bf16.msra.mxu0 %v9098
    %9741 = vmatprep.subr.bf16.mxu0 %v9101
    %9742 = vmatpush1.bf16.msra.mxu0 %v9100
    %9743 = vmatprep.subr.bf16.mxu0 %v9103
    %9744 = vmatpush1.bf16.msra.mxu0 %v9102
    %9745 = vmatprep.subr.bf16.mxu0 %v9105
    %9746 = vmatpush1.bf16.msra.mxu0 %v9104
    %9747 = vmatprep.subr.bf16.mxu0 %v9107
    %9748 = vmatpush1.bf16.msra.mxu0 %v9106
    %9749 = vmatprep.subr.bf16.mxu0 %v9109
    %9750 = vmatpush1.bf16.msra.mxu0 %v9108
    %9751 = vmatprep.subr.bf16.mxu0 %v9111
    %9752 = vmatpush1.bf16.msra.mxu0 %v9110
    %9753 = vmatprep.subr.bf16.mxu0 %v9113
    %9754 = vmatpush1.bf16.msra.mxu0 %v9112
    %9755 = vmatprep.subr.bf16.mxu0 %v9115
    %9756 = vmatpush1.bf16.msra.mxu0 %v9114
    %9757 = vmatprep.mubr.bf16.mxu0 %v8663
    %9758 = vmatmul.mubr.bf16.gmra.mrb[0].mxu0 %v8662
    %v9759 = vpop.f32.mrb[0].mxu0
    %v9760 = vadd.f32 %v9719, %v9759
    %v9761 = vpop.f32.mrb[0].mxu0
    %v9762 = vadd.f32 %v9721, %v9761
    %v9763 = vpop.f32.mrb[0].mxu0
    %v9764 = vpop.f32.mrb[0].mxu0
    %9765 = vdwg.mxu0
    %9766 = vmatprep.subr.bf16.mxu0 %v9117
    %9767 = vmatpush1.bf16.msra.mxu0 %v9116
    %9768 = vmatprep.subr.bf16.mxu0 %v9119
    %9769 = vmatpush1.bf16.msra.mxu0 %v9118
    %9770 = vmatprep.subr.bf16.mxu0 %v9121
    %9771 = vmatpush1.bf16.msra.mxu0 %v9120
    %9772 = vmatprep.subr.bf16.mxu0 %v9123
    %9773 = vmatpush1.bf16.msra.mxu0 %v9122
    %9774 = vmatprep.subr.bf16.mxu0 %v9125
    %9775 = vmatpush1.bf16.msra.mxu0 %v9124
    %9776 = vmatprep.subr.bf16.mxu0 %v9127
    %9777 = vmatpush1.bf16.msra.mxu0 %v9126
    %9778 = vmatprep.subr.bf16.mxu0 %v9129
    %9779 = vmatpush1.bf16.msra.mxu0 %v9128
    %9780 = vmatprep.subr.bf16.mxu0 %v9131
    %9781 = vmatpush1.bf16.msra.mxu0 %v9130
    %9782 = vmatprep.subr.bf16.mxu0 %v9133
    %9783 = vmatpush1.bf16.msra.mxu0 %v9132
    %9784 = vmatprep.subr.bf16.mxu0 %v9135
    %9785 = vmatpush1.bf16.msra.mxu0 %v9134
    %9786 = vmatprep.subr.bf16.mxu0 %v9137
    %9787 = vmatpush1.bf16.msra.mxu0 %v9136
    %9788 = vmatprep.subr.bf16.mxu0 %v9139
    %9789 = vmatpush1.bf16.msra.mxu0 %v9138
    %9790 = vmatprep.subr.bf16.mxu0 %v9141
    %9791 = vmatpush1.bf16.msra.mxu0 %v9140
    %9792 = vmatprep.subr.bf16.mxu0 %v9143
    %9793 = vmatpush1.bf16.msra.mxu0 %v9142
    %9794 = vmatprep.subr.bf16.mxu0 %v9145
    %9795 = vmatpush1.bf16.msra.mxu0 %v9144
    %9796 = vmatprep.subr.bf16.mxu0 %v9147
    %9797 = vmatpush1.bf16.msra.mxu0 %v9146
    %9798 = vmatprep.mubr.bf16.mxu0 %v8665
    %9799 = vmatmul.mubr.bf16.gmra.mrb[0].mxu0 %v8664
    %v9800 = vpop.f32.mrb[0].mxu0
    %v9801 = vadd.f32 %v9760, %v9800
    %v9802 = vpop.f32.mrb[0].mxu0
    %v9803 = vadd.f32 %v9762, %v9802
    %v9804 = vpop.f32.mrb[0].mxu0
    %v9805 = vpop.f32.mrb[0].mxu0
    %9806 = vdwg.mxu0
    %9807 = vmatprep.subr.bf16.mxu0 %v9149
    %9808 = vmatpush1.bf16.msra.mxu0 %v9148
    %9809 = vmatprep.subr.bf16.mxu0 %v9151
    %9810 = vmatpush1.bf16.msra.mxu0 %v9150
    %9811 = vmatprep.subr.bf16.mxu0 %v9153
    %9812 = vmatpush1.bf16.msra.mxu0 %v9152
    %9813 = vmatprep.subr.bf16.mxu0 %v9155
    %9814 = vmatpush1.bf16.msra.mxu0 %v9154
    %9815 = vmatprep.subr.bf16.mxu0 %v9157
    %9816 = vmatpush1.bf16.msra.mxu0 %v9156
    %9817 = vmatprep.subr.bf16.mxu0 %v9159
    %9818 = vmatpush1.bf16.msra.mxu0 %v9158
    %9819 = vmatprep.subr.bf16.mxu0 %v9161
    %9820 = vmatpush1.bf16.msra.mxu0 %v9160
    %9821 = vmatprep.subr.bf16.mxu0 %v9163
    %9822 = vmatpush1.bf16.msra.mxu0 %v9162
    %9823 = vmatprep.subr.bf16.mxu0 %v9165
    %9824 = vmatpush1.bf16.msra.mxu0 %v9164
    %9825 = vmatprep.subr.bf16.mxu0 %v9167
    %9826 = vmatpush1.bf16.msra.mxu0 %v9166
    %9827 = vmatprep.subr.bf16.mxu0 %v9169
    %9828 = vmatpush1.bf16.msra.mxu0 %v9168
    %9829 = vmatprep.subr.bf16.mxu0 %v9171
    %9830 = vmatpush1.bf16.msra.mxu0 %v9170
    %9831 = vmatprep.subr.bf16.mxu0 %v9173
    %9832 = vmatpush1.bf16.msra.mxu0 %v9172
    %9833 = vmatprep.subr.bf16.mxu0 %v9175
    %9834 = vmatpush1.bf16.msra.mxu0 %v9174
    %9835 = vmatprep.subr.bf16.mxu0 %v9177
    %9836 = vmatpush1.bf16.msra.mxu0 %v9176
    %9837 = vmatprep.subr.bf16.mxu0 %v9179
    %9838 = vmatpush1.bf16.msra.mxu0 %v9178
    %9839 = vmatprep.mubr.bf16.mxu0 %v8667
    %9840 = vmatmul.mubr.bf16.gmra.mrb[0].mxu0 %v8666
    %v9841 = vpop.f32.mrb[0].mxu0
    %v9842 = vadd.f32 %v9801, %v9841
    %v9843 = vpop.f32.mrb[0].mxu0
    %v9844 = vadd.f32 %v9803, %v9843
    %v9845 = vpop.f32.mrb[0].mxu0
    %v9846 = vpop.f32.mrb[0].mxu0
    %9847 = vdwg.mxu0
    %v9848 = vmax.f32 %v9842, 0.0
    %v9849 = vmax.f32 %v9844, 0.0
    %v9850 = vpack.c.bf16 %v9848, %v9848
    %v9851 = vpack.c.bf16 %v9849, %v9849
    %v9852 = vld [vmem:[%s55] sm:$0xf]
    %v9853 = vld [vmem:[%s55 + $0x4] sm:$0xf]
    %v9854 = vld [vmem:[%s55 + $0x8] sm:$0xf]
    %v9855 = vld [vmem:[%s55 + $0xc] sm:$0xf]
    %v9856 = vld [vmem:[%s55 + $0x10] sm:$0xf]
    %v9857 = vld [vmem:[%s55 + $0x14] sm:$0xf]
    %v9858 = vld [vmem:[%s55 + $0x18] sm:$0xf]
    %v9859 = vld [vmem:[%s55 + $0x1c] sm:$0xf]
    %v9860 = vld [vmem:[%s55 + $0x20] sm:$0xf]
    %v9861 = vld [vmem:[%s55 + $0x24] sm:$0xf]
    %v9862 = vld [vmem:[%s55 + $0x28] sm:$0xf]
    %v9863 = vld [vmem:[%s55 + $0x2c] sm:$0xf]
    %v9864 = vld [vmem:[%s55 + $0x30] sm:$0xf]
    %v9865 = vld [vmem:[%s55 + $0x34] sm:$0xf]
    %v9866 = vld [vmem:[%s55 + $0x38] sm:$0xf]
    %v9867 = vld [vmem:[%s55 + $0x3c] sm:$0xf]
    %v9868 = vld [vmem:[%s55 + $0x40] sm:$0xf]
    %v9869 = vld [vmem:[%s55 + $0x44] sm:$0xf]
    %v9870 = vld [vmem:[%s55 + $0x48] sm:$0xf]
    %v9871 = vld [vmem:[%s55 + $0x4c] sm:$0xf]
    %v9872 = vld [vmem:[%s55 + $0x50] sm:$0xf]
    %v9873 = vld [vmem:[%s55 + $0x54] sm:$0xf]
    %v9874 = vld [vmem:[%s55 + $0x58] sm:$0xf]
    %v9875 = vld [vmem:[%s55 + $0x5c] sm:$0xf]
    %v9876 = vld [vmem:[%s55 + $0x60] sm:$0xf]
    %v9877 = vld [vmem:[%s55 + $0x64] sm:$0xf]
    %v9878 = vld [vmem:[%s55 + $0x68] sm:$0xf]
    %v9879 = vld [vmem:[%s55 + $0x6c] sm:$0xf]
    %v9880 = vld [vmem:[%s55 + $0x70] sm:$0xf]
    %v9881 = vld [vmem:[%s55 + $0x74] sm:$0xf]
    %v9882 = vld [vmem:[%s55 + $0x78] sm:$0xf]
    %v9883 = vld [vmem:[%s55 + $0x7c] sm:$0xf]
    %v9884 = vld [vmem:[#allocation42] sm:$0x1]
    %v9886 = vlaneseq
    %v9887 = vshrl.u32 %v9886, 7
    %v9888 = vsub.s32 0, %v9887
    %v9889 = vrot.slane %v9884, %v9888
    %v9923 = vunpack.c.l.b16 %v9852
    %v9924 = vunpack.c.l.b16 %v9853
    %v9925 = vunpack.c.l.b16 %v9854
    %v9926 = vunpack.c.l.b16 %v9855
    %v9927 = vunpack.c.l.b16 %v9856
    %v9928 = vunpack.c.l.b16 %v9857
    %v9929 = vunpack.c.l.b16 %v9858
    %v9930 = vunpack.c.l.b16 %v9859
    %v9931 = vunpack.c.l.b16 %v9860
    %v9932 = vunpack.c.l.b16 %v9861
    %v9933 = vunpack.c.l.b16 %v9862
    %v9934 = vunpack.c.l.b16 %v9863
    %v9935 = vunpack.c.l.b16 %v9864
    %v9936 = vunpack.c.l.b16 %v9865
    %v9937 = vunpack.c.l.b16 %v9866
    %v9938 = vunpack.c.l.b16 %v9867
    %v9939 = vunpack.c.l.b16 %v9868
    %v9940 = vunpack.c.l.b16 %v9869
    %v9941 = vunpack.c.l.b16 %v9870
    %v9942 = vunpack.c.l.b16 %v9871
    %v9943 = vunpack.c.l.b16 %v9872
    %v9944 = vunpack.c.l.b16 %v9873
    %v9945 = vunpack.c.l.b16 %v9874
    %v9946 = vunpack.c.l.b16 %v9875
    %v9947 = vunpack.c.l.b16 %v9876
    %v9948 = vunpack.c.l.b16 %v9877
    %v9949 = vunpack.c.l.b16 %v9878
    %v9950 = vunpack.c.l.b16 %v9879
    %v9951 = vunpack.c.l.b16 %v9880
    %v9952 = vunpack.c.l.b16 %v9881
    %v9953 = vunpack.c.l.b16 %v9882
    %v9954 = vunpack.c.l.b16 %v9883
    %v9955 = vpack.c.b16 %v9924, %v9923
    %v9956 = vpack.c.b16 %v9926, %v9925
    %v9957 = vpack.c.b16 %v9928, %v9927
    %v9958 = vpack.c.b16 %v9930, %v9929
    %v9959 = vpack.c.b16 %v9932, %v9931
    %v9960 = vpack.c.b16 %v9934, %v9933
    %v9961 = vpack.c.b16 %v9936, %v9935
    %v9962 = vpack.c.b16 %v9938, %v9937
    %v9963 = vpack.c.b16 %v9940, %v9939
    %v9964 = vpack.c.b16 %v9942, %v9941
    %v9965 = vpack.c.b16 %v9944, %v9943
    %v9966 = vpack.c.b16 %v9946, %v9945
    %v9967 = vpack.c.b16 %v9948, %v9947
    %v9968 = vpack.c.b16 %v9950, %v9949
    %v9969 = vpack.c.b16 %v9952, %v9951
    %v9970 = vpack.c.b16 %v9954, %v9953
    %9987 = vmatprep.subr.bf16.mxu0 0
    %9988 = vmatpush1.bf16.msra.mxu0 %v9955
    %9989 = vmatprep.subr.bf16.mxu0 0
    %9990 = vmatpush1.bf16.msra.mxu0 %v9956
    %9991 = vmatprep.subr.bf16.mxu0 0
    %9992 = vmatpush1.bf16.msra.mxu0 %v9957
    %9993 = vmatprep.subr.bf16.mxu0 0
    %9994 = vmatpush1.bf16.msra.mxu0 %v9958
    %9995 = vmatprep.subr.bf16.mxu0 0
    %9996 = vmatpush1.bf16.msra.mxu0 %v9959
    %9997 = vmatprep.subr.bf16.mxu0 0
    %9998 = vmatpush1.bf16.msra.mxu0 %v9960
    %9999 = vmatprep.subr.bf16.mxu0 0
    %10000 = vmatpush1.bf16.msra.mxu0 %v9961
    %10001 = vmatprep.subr.bf16.mxu0 0
    %10002 = vmatpush1.bf16.msra.mxu0 %v9962
    %10003 = vmatprep.subr.bf16.mxu0 0
    %10004 = vmatpush1.bf16.msra.mxu0 %v9963
    %10005 = vmatprep.subr.bf16.mxu0 0
    %10006 = vmatpush1.bf16.msra.mxu0 %v9964
    %10007 = vmatprep.subr.bf16.mxu0 0
    %10008 = vmatpush1.bf16.msra.mxu0 %v9965
    %10009 = vmatprep.subr.bf16.mxu0 0
    %10010 = vmatpush1.bf16.msra.mxu0 %v9966
    %10011 = vmatprep.subr.bf16.mxu0 0
    %10012 = vmatpush1.bf16.msra.mxu0 %v9967
    %10013 = vmatprep.subr.bf16.mxu0 0
    %10014 = vmatpush1.bf16.msra.mxu0 %v9968
    %10015 = vmatprep.subr.bf16.mxu0 0
    %10016 = vmatpush1.bf16.msra.mxu0 %v9969
    %10017 = vmatprep.subr.bf16.mxu0 0
    %10018 = vmatpush1.bf16.msra.mxu0 %v9970
    %10019 = vmatprep.mubr.bf16.mxu0 %v9851
    %10020 = vmatmul.mubr.bf16.gmra.mrb[0].mxu0 %v9850
    %v10021 = vpop.f32.mrb[0].mxu0
    %v10022 = vadd.f32 %v9889, %v10021
    %v10023 = vpop.f32.mrb[0].mxu0
    %v10024 = vpop.f32.mrb[0].mxu0
    %v10025 = vpop.f32.mrb[0].mxu0
    %10026 = vdwg.mxu0
    %vm10027 = vcmask 17408
    %10028 = vst.msk [vmem:[#allocation43] sm:$0x3] %vm10027, %v10022
    // Predicated region
    $region182: #{tpu_custom_call.1} parent=1 // pred_check
      _
    $region183: #{tpu_custom_call.1} parent=1 // pred_check_branch
      %10030 = sbr.rel (0) target = $region185
    $region184: #{tpu_custom_call.1} parent=1 // pred_region
      %s10032 = ssub.s32 32, 32
      %10033 = vsyncadd [#allocation12], %s10032
      %s10035 = sshll.u32 [#allocation43], 4
      %s10036 = int_to_ptr.vmem [resolvable:$true] %s10035
      %10038 = dma.vmem_to_hbm [thread:$0]  %s10036, 32, %s59, [#allocation12]
    $region185: #{tpu_custom_call.1} parent=1 // pred_fallthru
      _
    // Predicated region
    $region186: #{tpu_custom_call.1} parent=1 // pred_check
      _
    $region187: #{tpu_custom_call.1} parent=1 // pred_check_branch
      %10040 = sbr.rel (0) target = $region189
    $region188: #{tpu_custom_call.1} parent=1 // pred_region
      %10041 = dma.done [#allocation12], 32
    $region189: #{tpu_custom_call.1} parent=1 // pred_fallthru
      _
    %10042 = vsyncpa [#allocation11], 1
    %10043 = vsyncpa [#allocation14], 1
    %10044 = vsyncpa [#allocation17], 1
    %10045 = vsyncpa [#allocation20], 1
    %10046 = vsyncpa [#allocation23], 1
    %10047 = vsyncpa [#allocation26], 1
    %10048 = vsyncpa [#allocation29], 1
    %10049 = vsyncpa [#allocation32], 1
    %10050 = vsyncpa [#allocation35], 1
    %10051 = vsyncpa [#allocation38], 1
    %10052 = vsyncpa [#allocation41], 1
    %10053 = vsyncpa [#allocation12], 1
  %10054 = vsyncmov [#allocation9]
  %s10055 = vpop.sfrf %10054
  %p10056 = scmp.eq.s32.totalorder %s10055, 0
  %p10057 = pneg %p10056
  %10059 = shalt.err (%p10057)
  %s10060 = scalar_lea.sflag [#allocation9], 1
  %10061 = vsyncmov %s10060
  %s10062 = vpop.sfrf %10061
  %p10063 = scmp.eq.s32.totalorder %s10062, 0
  %p10064 = pneg %p10063
  %10066 = shalt.err (%p10064)
  %s10067 = scalar_lea.sflag [#allocation9], 2
  %10068 = vsyncmov %s10067
  %s10069 = vpop.sfrf %10068
  %p10070 = scmp.eq.s32.totalorder %s10069, 0
  %p10071 = pneg %p10070
  %10073 = shalt.err (%p10071)
  %s10074 = scalar_lea.sflag [#allocation9], 3
  %10075 = vsyncmov %s10074
  %s10076 = vpop.sfrf %10075
  %p10077 = scmp.eq.s32.totalorder %s10076, 0
  %p10078 = pneg %p10077
  %10080 = shalt.err (%p10078)
  %s10081 = scalar_lea.sflag [#allocation9], 4
  %10082 = vsyncmov %s10081
  %s10083 = vpop.sfrf %10082
  %p10084 = scmp.eq.s32.totalorder %s10083, 0
  %p10085 = pneg %p10084
  %10087 = shalt.err (%p10085)
  %s10088 = scalar_lea.sflag [#allocation9], 5
  %10089 = vsyncmov %s10088
  %s10090 = vpop.sfrf %10089
  %p10091 = scmp.eq.s32.totalorder %s10090, 0
  %p10092 = pneg %p10091
  %10094 = shalt.err (%p10092)
  %s10095 = scalar_lea.sflag [#allocation9], 6
  %10096 = vsyncmov %s10095
  %s10097 = vpop.sfrf %10096
  %p10098 = scmp.eq.s32.totalorder %s10097, 0
  %p10099 = pneg %p10098
  %10101 = shalt.err (%p10099)

</llo_original>
